<compile_context>
chip_gen: v6e
topology: v6e:2x2x1
jax: 0.10.0
libtpu: 0.0.40
codegen_flags: <defaults>
</compile_context>

<pallas_src>
import jax
import jax.numpy as jnp
from jax import lax
from jax.experimental import pallas as pl
from jax.experimental.pallas import tpu as pltpu


def _round_up(x, m):
    return ((x + m - 1) // m) * m


_UNROLL_T_MAX = 16  # fully unroll the time loop up to this T, else fori_loop(unroll=4)


# ----------------------------------------------------------------------------
# Fused Pallas kernel (all layers + head in one call)
# ----------------------------------------------------------------------------
def _make_fused_kernel(num_layers, T, Bp, Hp, Ep, use_fori):
    """Kernel ref layout:
       refs[0]                   : x        (T*Bp, Ep)      bf16  VMEM (time-major, batch-padded)
       refs[1 : 1+3L]            : per layer [wih_fb(HBM), whh_fb(HBM), b_fb(VMEM)]
       refs[1+3L : 5+3L]         : w_ffn, b_ffn, w_cls, b_cls   (VMEM)
       refs[5+3L]                : out      (Bp, Cp)        f32
       scratch                   : y_sc (T,Bp,2Hp) bf16 | wih_buf (2,maxin,8Hp) bf16 |
                                   whh_buf (2,2Hp,4Hp) bf16 | DMA sem (2,2) |
                                   [gx_sc (T,Bp,8Hp) bf16 iff use_fori]
    """
    in_rows = [Ep] + [2 * Hp] * (num_layers - 1)

    def kernel(*refs):
        x_ref = refs[0]
        layer_refs = refs[1:1 + 3 * num_layers]
        w_ffn_ref, b_ffn_ref, w_cls_ref, b_cls_ref = refs[1 + 3 * num_layers:
                                                          5 + 3 * num_layers]
        out_ref = refs[5 + 3 * num_layers]
        scratch = refs[6 + 3 * num_layers:]
        y_sc, wih_buf, whh_buf, wsem = scratch[0], scratch[1], scratch[2], scratch[3]
        gx_sc = scratch[4] if use_fori else None

        # ---- per-layer weight streaming (HBM -> 2-deep VMEM double buffer) ----
        def wih_copy(l, slot):
            return pltpu.make_async_copy(layer_refs[3 * l + 0],
                                         wih_buf.at[slot, 0:in_rows[l], :],
                                         wsem.at[slot, 0])

        def whh_copy(l, slot):
            return pltpu.make_async_copy(layer_refs[3 * l + 1],
                                         whh_buf.at[slot],
                                         wsem.at[slot, 1])

        def start_copy(l, slot):
            wih_copy(l, slot).start()
            whh_copy(l, slot).start()

        def wait_copy(l, slot):
            wih_copy(l, slot).wait()
            whh_copy(l, slot).wait()

        # ---- gate math ----
        def sigm(x):
            # single EUP push per gate (vs. exp + reciprocal)
            return 0.5 * jnp.tanh(0.5 * x) + 0.5

        def gate_update(gates, c):
            # PyTorch gate ordering: i, f, g, o (each in its own lane-aligned Hp slot)
            i = sigm(gates[:, 0 * Hp:1 * Hp])
            f = sigm(gates[:, 1 * Hp:2 * Hp])
            g = jnp.tanh(gates[:, 2 * Hp:3 * Hp])
            o = sigm(gates[:, 3 * Hp:4 * Hp])
            c_new = f * c + i * g                                   # f32
            h_new = (o * jnp.tanh(c_new)).astype(jnp.bfloat16)      # h consumed only as bf16
            return h_new, c_new

        def make_step(whh_v):
            zero = jnp.zeros((Bp, Hp), jnp.bfloat16)

            def step(gxf_t, gxb_t, hf, cf, hb, cb):
                # Fused fwd/bwd recurrence: one block-diagonal K=2Hp matmul per step.
                lhs = jnp.concatenate(
                    [jnp.concatenate([hf, zero], axis=1),
                     jnp.concatenate([zero, hb], axis=1)], axis=0)          # (2Bp, 2Hp)
                hh = jnp.dot(lhs, whh_v, preferred_element_type=jnp.float32)  # (2Bp, 4Hp)
                gates_f = gxf_t.astype(jnp.float32) + hh[0:Bp]
                gates_b = gxb_t.astype(jnp.float32) + hh[Bp:2 * Bp]
                hf, cf = gate_update(gates_f, cf)
                hb, cb = gate_update(gates_b, cb)
                return hf, cf, hb, cb

            return step

        def run_layer(l, slot, xin):
            rows = in_rows[l]
            wih_v = wih_buf[slot, 0:rows, :]        # (rows, 8Hp) bf16
            whh_v = whh_buf[slot]                   # (2Hp, 4Hp) bf16
            b_v = layer_refs[3 * l + 2][...]        # (1, 8Hp)    f32

            # Hoisted input projection for BOTH directions, all timesteps, bias folded in;
            # stored bf16 so only ~half the bytes stay live across the recurrence.
            gx = (jnp.dot(xin, wih_v, preferred_element_type=jnp.float32)
                  + b_v).astype(jnp.bfloat16)        # (T*Bp, 8Hp)
            # TODO(synk): for very long T compute gx in T-chunks (double-buffered scratch).

            step = make_step(whh_v)
            hf = hb = jnp.zeros((Bp, Hp), jnp.bfloat16)
            cf = cb = jnp.zeros((Bp, Hp), jnp.float32)

            if not use_fori:
                # Fully unrolled: only the h @ W_hh chain is serial; fwd (t) and bwd
                # (T-1-t) chains interleave.
                for t in range(T):
                    tb = T - 1 - t
                    gxf_t = gx[t * Bp:(t + 1) * Bp, 0:4 * Hp]
                    gxb_t = gx[tb * Bp:(tb + 1) * Bp, 4 * Hp:8 * Hp]
                    hf, cf, hb, cb = step(gxf_t, gxb_t, hf, cf, hb, cb)
                    y_sc[t, :, 0:Hp] = hf
                    y_sc[tb, :, Hp:2 * Hp] = hb
            else:
                gx_sc[...] = gx.reshape(T, Bp, 8 * Hp)

                def body(t, carry):
                    hf, cf, hb, cb = carry
                    tb = T - 1 - t
                    gxf_t = gx_sc[pl.ds(t, 1), :, 0:4 * Hp].reshape(Bp, 4 * Hp)
                    gxb_t = gx_sc[pl.ds(tb, 1), :, 4 * Hp:8 * Hp].reshape(Bp, 4 * Hp)
                    hf, cf, hb, cb = step(gxf_t, gxb_t, hf, cf, hb, cb)
                    y_sc[pl.ds(t, 1), :, 0:Hp] = hf.reshape(1, Bp, Hp)
                    y_sc[pl.ds(tb, 1), :, Hp:2 * Hp] = hb.reshape(1, Bp, Hp)
                    return hf, cf, hb, cb

                lax.fori_loop(0, T, body, (hf, cf, hb, cb), unroll=4)

        # ---- layer loop: stream next layer's weights while this layer computes ----
        start_copy(0, 0)
        xin = x_ref[...]                            # (T*Bp, Ep) bf16
        for l in range(num_layers):
            slot = l % 2
            wait_copy(l, slot)
            if l + 1 < num_layers:
                start_copy(l + 1, 1 - slot)
            if l > 0:
                xin = y_sc[...].reshape(T * Bp, 2 * Hp)   # already bf16
            run_layer(l, slot, xin)

        # Head fused in-kernel.  PyTorch output[:, -1, :] semantics: fwd state after the
        # full pass || bwd state after its first step, both at t = T-1.
        last_h = y_sc[T - 1]                        # (Bp, 2Hp) bf16
        ffn = jnp.dot(last_h, w_ffn_ref[...],
                      preferred_element_type=jnp.float32) + b_ffn_ref[...]
        ffn = jnp.maximum(ffn, 0.0).astype(jnp.bfloat16)      # ReLU
        out_ref[...] = (jnp.dot(ffn, w_cls_ref[...],
                                preferred_element_type=jnp.float32)
                        + b_cls_ref[...])

    return kernel


# ----------------------------------------------------------------------------
# Forward wrapper (single pallas_call per forward pass)
# ----------------------------------------------------------------------------
def bilstm_forward(token_ids, params, num_outputs):
    """token_ids: (B, T) int32 -> logits (B, num_outputs) float32."""
    B, T = token_ids.shape
    embed_table = params["embed_table"]                    # (V, Ep) f32
    Ep = embed_table.shape[1]
    Hp = params["lstm_layers"][0]["whh_fb"].shape[1] // 4  # padded hidden
    Dp = params["w_ffn"].shape[1]
    Cp = params["w_cls"].shape[1]
    Bp = max(_round_up(B, 16), 16)                         # bf16: 16 sublanes / vreg
    num_layers = len(params["lstm_layers"])
    max_in = max(Ep, 2 * Hp)
    use_fori = T > _UNROLL_T_MAX

    # Embedding gather (glue), time-major layout, batch padded, flattened so the
    # layer-0 input projection is one big matmul inside the kernel.
    # TODO(synk): fuse the embedding gather into the kernel via scalar-prefetched ids.
    x = jnp.take(embed_table, token_ids, axis=0)           # (B, T, Ep)
    x = jnp.transpose(x, (1, 0, 2))                        # (T, B, Ep)
    x = jnp.pad(x, ((0, 0), (0, Bp - B), (0, 0)))          # (T, Bp, Ep)
    x = x.reshape(T * Bp, Ep).astype(jnp.bfloat16)

    kernel = _make_fused_kernel(num_layers, T, Bp, Hp, Ep, use_fori)

    vmem = pl.BlockSpec(memory_space=pltpu.MemorySpace.VMEM)
    hbm = pl.BlockSpec(memory_space=pl.ANY)                # streamed weights stay in HBM

    inputs = [x]
    in_specs = [vmem]
    for lp in params["lstm_layers"]:
        inputs += [lp["wih_fb"], lp["whh_fb"], lp["b_fb"]]
        in_specs += [hbm, hbm, vmem]
    inputs += [params["w_ffn"], params["b_ffn"], params["w_cls"], params["b_cls"]]
    in_specs += [vmem] * 4

    scratch = [
        pltpu.VMEM((T, Bp, 2 * Hp), jnp.bfloat16),          # y (fwd || bwd), bf16
        pltpu.VMEM((2, max_in, 8 * Hp), jnp.bfloat16),      # W_ih double buffer
        pltpu.VMEM((2, 2 * Hp, 4 * Hp), jnp.bfloat16),      # W_hh double buffer
        pltpu.SemaphoreType.DMA((2, 2)),
    ]
    if use_fori:
        scratch.append(pltpu.VMEM((T, Bp, 8 * Hp), jnp.bfloat16))   # gx scratch (dynamic t)

    # Scoped-VMEM limit sized from the actual buffers (2x headroom, capped for v7x).
    bf16, f32 = 2, 4
    needed = (T * Bp * Ep * bf16 * 2                       # x (double-buffered input)
              + T * Bp * 2 * Hp * bf16 * 2                 # y scratch + xin value
              + 2 * (max_in * 8 * Hp + 2 * Hp * 4 * Hp) * bf16   # weight double buffers
              + T * Bp * 8 * Hp * (f32 + bf16)             # f32 projection + bf16 gx
              + (T * Bp * 8 * Hp * bf16 if use_fori else 0)
              + (2 * Hp * Dp + Dp * Cp) * bf16
              + (Dp + Cp + num_layers * 8 * Hp) * f32
              + 2 * Bp * Cp * f32)
    vmem_limit = int(min(max(2 * needed, 32 * 2 ** 20), 64 * 2 ** 20))

    logits_pad = pl.pallas_call(
        kernel,
        out_shape=jax.ShapeDtypeStruct((Bp, Cp), jnp.float32),
        in_specs=in_specs,
        out_specs=vmem,
        scratch_shapes=scratch,
        compiler_params=pltpu.CompilerParams(vmem_limit_bytes=vmem_limit),
    )(*inputs)
    return logits_pad[:B, :num_outputs]


# ----------------------------------------------------------------------------
# Deterministic parameter initialization (padded, kernel-ready layout)
# ----------------------------------------------------------------------------
def init_params(key, vocab_size, embed_size, hidden_size, num_layers,
                dense_hidden_size, num_outputs):
    H, E, D, C = hidden_size, embed_size, dense_hidden_size, num_outputs
    Hp = _round_up(H, 128)
    Ep = _round_up(E, 128)
    Dp = _round_up(D, 128)
    Cp = _round_up(C, 128)

    def uniform(k, shape, scale):
        return jax.random.uniform(k, shape, jnp.float32, -scale, scale)

    def pad_gate_cols(w):
        # (rows, 4H) -> (rows, 4Hp): each gate block (i,f,g,o) in its own Hp lane slot.
        blocks = [jnp.pad(w[:, k * H:(k + 1) * H], ((0, 0), (0, Hp - H)))
                  for k in range(4)]
        return jnp.concatenate(blocks, axis=1)

    def pad_rows_concat(w):
        # (2H, cols) rows [fwd(H), bwd(H)] -> (2Hp, cols) matching [fwd(Hp), bwd(Hp)].
        return jnp.concatenate(
            [jnp.pad(w[:H], ((0, Hp - H), (0, 0))),
             jnp.pad(w[H:], ((0, Hp - H), (0, 0)))], axis=0)

    keys = iter(jax.random.split(key, 5 + 8 * num_layers))
    params = {}
    params["embed_table"] = jnp.pad(
        jax.random.normal(next(keys), (vocab_size, E), jnp.float32) * 0.1,
        ((0, 0), (0, Ep - E)))

    s = 1.0 / float(H) ** 0.5
    layers = []
    in_size = E
    for layer_idx in range(num_layers):
        wih_p, whh_p, b_p = [], [], []
        for _d in range(2):   # fwd, bwd
            wih = uniform(next(keys), (in_size, 4 * H), s)     # pre-transposed for x @ W
            whh = uniform(next(keys), (H, 4 * H), s)
            bias = (uniform(next(keys), (1, 4 * H), s)
                    + uniform(next(keys), (1, 4 * H), s))      # b_ih + b_hh
            if layer_idx == 0:
                wih_pad = jnp.pad(wih, ((0, Ep - E), (0, 0)))
            else:
                wih_pad = pad_rows_concat(wih)
            wih_p.append(pad_gate_cols(wih_pad))
            whh_p.append(pad_gate_cols(jnp.pad(whh, ((0, Hp - H), (0, 0)))))
            b_p.append(pad_gate_cols(bias))
        layers.append({
            # fused fwd||bwd input projection weight: (in_p, 8Hp)
            "wih_fb": jnp.concatenate(wih_p, axis=1).astype(jnp.bfloat16),
            # stacked recurrent weight for block-diagonal K=2Hp matmul: (2Hp, 4Hp)
            "whh_fb": jnp.concatenate(whh_p, axis=0).astype(jnp.bfloat16),
            "b_fb": jnp.concatenate(b_p, axis=1),              # (1, 8Hp) f32
        })
        in_size = 2 * H
    params["lstm_layers"] = layers

    s_ffn = 1.0 / float(2 * H) ** 0.5
    w_ffn = uniform(next(keys), (2 * H, D), s_ffn)
    b_ffn = uniform(next(keys), (1, D), s_ffn)
    params["w_ffn"] = jnp.pad(pad_rows_concat(w_ffn),
                              ((0, 0), (0, Dp - D))).astype(jnp.bfloat16)
    params["b_ffn"] = jnp.pad(b_ffn, ((0, 0), (0, Dp - D)))

    s_cls = 1.0 / float(D) ** 0.5
    w_cls = uniform(next(keys), (D, C), s_cls)
    b_cls = uniform(next(keys), (1, C), s_cls)
    params["w_cls"] = jnp.pad(w_cls, ((0, Dp - D), (0, Cp - C))).astype(jnp.bfloat16)
    params["b_cls"] = jnp.pad(b_cls, ((0, 0), (0, Cp - C)))
    return params


# ----------------------------------------------------------------------------
if __name__ == "__main__":
    VOCAB = 32
    EMBED_SIZE = 16
    LSTM_HIDDEN = 32
    NUM_LAYERS = 2
    DENSE_HIDDEN = 32
    NUM_OUTPUTS = 4
    BATCH = 2

    key = jax.random.PRNGKey(0)
    k_params, k_inp1, k_inp2 = jax.random.split(key, 3)
    params = init_params(k_params, VOCAB, EMBED_SIZE, LSTM_HIDDEN,
                         NUM_LAYERS, DENSE_HIDDEN, NUM_OUTPUTS)
    fwd = jax.jit(bilstm_forward, static_argnums=2)

    # Short sequence: fully-unrolled time loop path.
    tok_short = jax.random.randint(k_inp1, (BATCH, 8), 0, VOCAB, jnp.int32)
    logits_short = fwd(tok_short, params, NUM_OUTPUTS)
    jax.block_until_ready(logits_short)
    assert logits_short.shape == (BATCH, NUM_OUTPUTS), logits_short.shape
    assert bool(jnp.all(jnp.isfinite(logits_short)))

    # Longer sequence: lax.fori_loop(unroll=4) recurrence path.
    tok_long = jax.random.randint(k_inp2, (BATCH, 24), 0, VOCAB, jnp.int32)
    logits_long = fwd(tok_long, params, NUM_OUTPUTS)
    jax.block_until_ready(logits_long)
    assert logits_long.shape == (BATCH, NUM_OUTPUTS), logits_long.shape
    assert bool(jnp.all(jnp.isfinite(logits_long)))

    print("KERNEL_OK")
</pallas_src>

<mosaic_0001>
module attributes {stable_mosaic.version = 11 : i64} {
  func.func @kernel(%arg0: memref<128x128xbf16, #tpu.memory_space<vmem>>, %arg1: memref<128x1024xbf16, #tpu.memory_space<any>>, %arg2: memref<256x512xbf16, #tpu.memory_space<any>>, %arg3: memref<1x1024xf32, #tpu.memory_space<vmem>>, %arg4: memref<256x1024xbf16, #tpu.memory_space<any>>, %arg5: memref<256x512xbf16, #tpu.memory_space<any>>, %arg6: memref<1x1024xf32, #tpu.memory_space<vmem>>, %arg7: memref<256x128xbf16, #tpu.memory_space<vmem>>, %arg8: memref<1x128xf32, #tpu.memory_space<vmem>>, %arg9: memref<128x128xbf16, #tpu.memory_space<vmem>>, %arg10: memref<1x128xf32, #tpu.memory_space<vmem>>, %arg11: memref<16x128xf32, #tpu.memory_space<vmem>>, %arg12: memref<8x16x256xbf16, #tpu.memory_space<vmem>>, %arg13: memref<2x256x1024xbf16, #tpu.memory_space<vmem>>, %arg14: memref<2x256x512xbf16, #tpu.memory_space<vmem>>, %arg15: memref<2x2x!tpu.dma_semaphore, #tpu.memory_space<semaphore_mem>>) attributes {dimension_semantics = [], scalar_prefetch = 0 : i64, scratch_operands = 4 : i64, tpu.core_type = #tpu.core_type<tc>} {
    %c0_i32 = arith.constant 0 : i32
    %c0_i32_0 = arith.constant 0 : i32
    %c0_i32_1 = arith.constant 0 : i32
    %c0_i32_2 = arith.constant 0 : i32
    %c0_i32_3 = arith.constant 0 : i32
    %0 = tpu.memref_slice %arg13[%c0_i32, %c0_i32_2, %c0_i32_3] : memref<2x256x1024xbf16, #tpu.memory_space<vmem>> -> memref<1x128x1024xbf16, #tpu.memory_space<vmem>>
    %1 = tpu.memref_squeeze %0 : memref<1x128x1024xbf16, #tpu.memory_space<vmem>> -> memref<128x1024xbf16, #tpu.memory_space<vmem>>
    %2 = tpu.memref_slice %arg15[%c0_i32_0, %c0_i32_1] : memref<2x2x!tpu.dma_semaphore, #tpu.memory_space<semaphore_mem>> -> memref<1x1x!tpu.dma_semaphore, #tpu.memory_space<semaphore_mem>>
    %3 = tpu.memref_squeeze %2 : memref<1x1x!tpu.dma_semaphore, #tpu.memory_space<semaphore_mem>> -> memref<!tpu.dma_semaphore, #tpu.memory_space<semaphore_mem>>
    tpu.enqueue_dma source(%arg1 : memref<128x1024xbf16, #tpu.memory_space<any>>) target(%1 : memref<128x1024xbf16, #tpu.memory_space<vmem>>) target_semaphore(%3 : memref<!tpu.dma_semaphore, #tpu.memory_space<semaphore_mem>>)
    %c0_i32_4 = arith.constant 0 : i32
    %c0_i32_5 = arith.constant 0 : i32
    %c1_i32 = arith.constant 1 : i32
    %c0_i32_6 = arith.constant 0 : i32
    %c0_i32_7 = arith.constant 0 : i32
    %4 = tpu.memref_slice %arg14[%c0_i32_4, %c0_i32_6, %c0_i32_7] : memref<2x256x512xbf16, #tpu.memory_space<vmem>> -> memref<1x256x512xbf16, #tpu.memory_space<vmem>>
    %5 = tpu.memref_squeeze %4 : memref<1x256x512xbf16, #tpu.memory_space<vmem>> -> memref<256x512xbf16, #tpu.memory_space<vmem>>
    %6 = tpu.memref_slice %arg15[%c0_i32_5, %c1_i32] : memref<2x2x!tpu.dma_semaphore, #tpu.memory_space<semaphore_mem>> -> memref<1x1x!tpu.dma_semaphore, #tpu.memory_space<semaphore_mem>>
    %7 = tpu.memref_squeeze %6 : memref<1x1x!tpu.dma_semaphore, #tpu.memory_space<semaphore_mem>> -> memref<!tpu.dma_semaphore, #tpu.memory_space<semaphore_mem>>
    tpu.enqueue_dma source(%arg2 : memref<256x512xbf16, #tpu.memory_space<any>>) target(%5 : memref<256x512xbf16, #tpu.memory_space<vmem>>) target_semaphore(%7 : memref<!tpu.dma_semaphore, #tpu.memory_space<semaphore_mem>>)
    %c0 = arith.constant 0 : index
    %c0_8 = arith.constant 0 : index
    %8 = vector.load %arg0[%c0, %c0_8] : memref<128x128xbf16, #tpu.memory_space<vmem>>, vector<128x128xbf16>
    %c0_i32_9 = arith.constant 0 : i32
    %c0_i32_10 = arith.constant 0 : i32
    %c0_i32_11 = arith.constant 0 : i32
    %c0_i32_12 = arith.constant 0 : i32
    %c0_i32_13 = arith.constant 0 : i32
    %9 = tpu.memref_slice %arg13[%c0_i32_9, %c0_i32_12, %c0_i32_13] : memref<2x256x1024xbf16, #tpu.memory_space<vmem>> -> memref<1x128x1024xbf16, #tpu.memory_space<vmem>>
    %10 = tpu.memref_squeeze %9 : memref<1x128x1024xbf16, #tpu.memory_space<vmem>> -> memref<128x1024xbf16, #tpu.memory_space<vmem>>
    %11 = tpu.memref_slice %arg15[%c0_i32_10, %c0_i32_11] : memref<2x2x!tpu.dma_semaphore, #tpu.memory_space<semaphore_mem>> -> memref<1x1x!tpu.dma_semaphore, #tpu.memory_space<semaphore_mem>>
    %12 = tpu.memref_squeeze %11 : memref<1x1x!tpu.dma_semaphore, #tpu.memory_space<semaphore_mem>> -> memref<!tpu.dma_semaphore, #tpu.memory_space<semaphore_mem>>
    tpu.wait_dma2 semaphore(%12 : memref<!tpu.dma_semaphore, #tpu.memory_space<semaphore_mem>>) src(%arg1 : memref<128x1024xbf16, #tpu.memory_space<any>>) dst(%10 : memref<128x1024xbf16, #tpu.memory_space<vmem>>)
    %c0_i32_14 = arith.constant 0 : i32
    %c0_i32_15 = arith.constant 0 : i32
    %c1_i32_16 = arith.constant 1 : i32
    %c0_i32_17 = arith.constant 0 : i32
    %c0_i32_18 = arith.constant 0 : i32
    %13 = tpu.memref_slice %arg14[%c0_i32_14, %c0_i32_17, %c0_i32_18] : memref<2x256x512xbf16, #tpu.memory_space<vmem>> -> memref<1x256x512xbf16, #tpu.memory_space<vmem>>
    %14 = tpu.memref_squeeze %13 : memref<1x256x512xbf16, #tpu.memory_space<vmem>> -> memref<256x512xbf16, #tpu.memory_space<vmem>>
    %15 = tpu.memref_slice %arg15[%c0_i32_15, %c1_i32_16] : memref<2x2x!tpu.dma_semaphore, #tpu.memory_space<semaphore_mem>> -> memref<1x1x!tpu.dma_semaphore, #tpu.memory_space<semaphore_mem>>
    %16 = tpu.memref_squeeze %15 : memref<1x1x!tpu.dma_semaphore, #tpu.memory_space<semaphore_mem>> -> memref<!tpu.dma_semaphore, #tpu.memory_space<semaphore_mem>>
    tpu.wait_dma2 semaphore(%16 : memref<!tpu.dma_semaphore, #tpu.memory_space<semaphore_mem>>) src(%arg2 : memref<256x512xbf16, #tpu.memory_space<any>>) dst(%14 : memref<256x512xbf16, #tpu.memory_space<vmem>>)
    %c1_i32_19 = arith.constant 1 : i32
    %c1_i32_20 = arith.constant 1 : i32
    %c0_i32_21 = arith.constant 0 : i32
    %c0_i32_22 = arith.constant 0 : i32
    %c0_i32_23 = arith.constant 0 : i32
    %17 = tpu.memref_slice %arg13[%c1_i32_19, %c0_i32_22, %c0_i32_23] : memref<2x256x1024xbf16, #tpu.memory_space<vmem>> -> memref<1x256x1024xbf16, #tpu.memory_space<vmem>>
    %18 = tpu.memref_squeeze %17 : memref<1x256x1024xbf16, #tpu.memory_space<vmem>> -> memref<256x1024xbf16, #tpu.memory_space<vmem>>
    %19 = tpu.memref_slice %arg15[%c1_i32_20, %c0_i32_21] : memref<2x2x!tpu.dma_semaphore, #tpu.memory_space<semaphore_mem>> -> memref<1x1x!tpu.dma_semaphore, #tpu.memory_space<semaphore_mem>>
    %20 = tpu.memref_squeeze %19 : memref<1x1x!tpu.dma_semaphore, #tpu.memory_space<semaphore_mem>> -> memref<!tpu.dma_semaphore, #tpu.memory_space<semaphore_mem>>
    tpu.enqueue_dma source(%arg4 : memref<256x1024xbf16, #tpu.memory_space<any>>) target(%18 : memref<256x1024xbf16, #tpu.memory_space<vmem>>) target_semaphore(%20 : memref<!tpu.dma_semaphore, #tpu.memory_space<semaphore_mem>>)
    %c1_i32_24 = arith.constant 1 : i32
    %c1_i32_25 = arith.constant 1 : i32
    %c1_i32_26 = arith.constant 1 : i32
    %c0_i32_27 = arith.constant 0 : i32
    %c0_i32_28 = arith.constant 0 : i32
    %21 = tpu.memref_slice %arg14[%c1_i32_24, %c0_i32_27, %c0_i32_28] : memref<2x256x512xbf16, #tpu.memory_space<vmem>> -> memref<1x256x512xbf16, #tpu.memory_space<vmem>>
    %22 = tpu.memref_squeeze %21 : memref<1x256x512xbf16, #tpu.memory_space<vmem>> -> memref<256x512xbf16, #tpu.memory_space<vmem>>
    %23 = tpu.memref_slice %arg15[%c1_i32_25, %c1_i32_26] : memref<2x2x!tpu.dma_semaphore, #tpu.memory_space<semaphore_mem>> -> memref<1x1x!tpu.dma_semaphore, #tpu.memory_space<semaphore_mem>>
    %24 = tpu.memref_squeeze %23 : memref<1x1x!tpu.dma_semaphore, #tpu.memory_space<semaphore_mem>> -> memref<!tpu.dma_semaphore, #tpu.memory_space<semaphore_mem>>
    tpu.enqueue_dma source(%arg5 : memref<256x512xbf16, #tpu.memory_space<any>>) target(%22 : memref<256x512xbf16, #tpu.memory_space<vmem>>) target_semaphore(%24 : memref<!tpu.dma_semaphore, #tpu.memory_space<semaphore_mem>>)
    %c0_29 = arith.constant 0 : index
    %c0_30 = arith.constant 0 : index
    %c0_31 = arith.constant 0 : index
    %25 = vector.load %arg13[%c0_29, %c0_30, %c0_31] : memref<2x256x1024xbf16, #tpu.memory_space<vmem>>, vector<1x128x1024xbf16>
    %26 = vector.shape_cast %25 : vector<1x128x1024xbf16> to vector<128x1024xbf16>
    %c0_32 = arith.constant 0 : index
    %c0_33 = arith.constant 0 : index
    %c0_34 = arith.constant 0 : index
    %27 = vector.load %arg14[%c0_32, %c0_33, %c0_34] : memref<2x256x512xbf16, #tpu.memory_space<vmem>>, vector<1x256x512xbf16>
    %28 = vector.shape_cast %27 : vector<1x256x512xbf16> to vector<256x512xbf16>
    %c0_35 = arith.constant 0 : index
    %c0_36 = arith.constant 0 : index
    %29 = vector.load %arg3[%c0_35, %c0_36] : memref<1x1024xf32, #tpu.memory_space<vmem>>, vector<1x1024xf32>
    %cst = arith.constant dense<0.000000e+00> : vector<128x1024xf32>
    %30 = tpu.matmul %8, %26, %cst {dimension_numbers = #tpu.dot_dimension_numbers<[1], [0], [0], [1], [0, 0, 1, 1], [], []>} : vector<128x128xbf16>, vector<128x1024xbf16>, vector<128x1024xf32> -> vector<128x1024xf32>
    %31 = vector.broadcast %29 : vector<1x1024xf32> to vector<128x1024xf32>
    %32 = arith.addf %30, %31 : vector<128x1024xf32>
    %33 = arith.truncf %32 : vector<128x1024xf32> to vector<128x1024xbf16>
    %cst_37 = arith.constant 0.000000e+00 : bf16
    %34 = vector.broadcast %cst_37 : bf16 to vector<16x128xbf16>
    %cst_38 = arith.constant 0.000000e+00 : bf16
    %35 = vector.broadcast %cst_38 : bf16 to vector<16x128xbf16>
    %cst_39 = arith.constant 0.000000e+00 : f32
    %36 = vector.broadcast %cst_39 : f32 to vector<16x128xf32>
    %37 = vector.extract_strided_slice %33 {offsets = [0, 0], sizes = [16, 512], strides = [1, 1]} : vector<128x1024xbf16> to vector<16x512xbf16>
    %38 = vector.extract_strided_slice %33 {offsets = [112, 512], sizes = [16, 512], strides = [1, 1]} : vector<128x1024xbf16> to vector<16x512xbf16>
    %39 = tpu.concatenate %35, %34 in 1 : vector<16x128xbf16>, vector<16x128xbf16> -> vector<16x256xbf16>
    %40 = tpu.concatenate %34, %35 in 1 : vector<16x128xbf16>, vector<16x128xbf16> -> vector<16x256xbf16>
    %41 = tpu.concatenate %39, %40 in 0 : vector<16x256xbf16>, vector<16x256xbf16> -> vector<32x256xbf16>
    %cst_40 = arith.constant dense<0.000000e+00> : vector<32x512xf32>
    %42 = tpu.matmul %41, %28, %cst_40 {dimension_numbers = #tpu.dot_dimension_numbers<[1], [0], [0], [1], [0, 0, 1, 1], [], []>} : vector<32x256xbf16>, vector<256x512xbf16>, vector<32x512xf32> -> vector<32x512xf32>
    %43 = arith.extf %37 : vector<16x512xbf16> to vector<16x512xf32>
    %44 = vector.extract_strided_slice %42 {offsets = [0, 0], sizes = [16, 512], strides = [1, 1]} : vector<32x512xf32> to vector<16x512xf32>
    %45 = arith.addf %43, %44 : vector<16x512xf32>
    %46 = arith.extf %38 : vector<16x512xbf16> to vector<16x512xf32>
    %47 = vector.extract_strided_slice %42 {offsets = [16, 0], sizes = [16, 512], strides = [1, 1]} : vector<32x512xf32> to vector<16x512xf32>
    %48 = arith.addf %46, %47 : vector<16x512xf32>
    %49 = vector.extract_strided_slice %45 {offsets = [0, 0], sizes = [16, 128], strides = [1, 1]} : vector<16x512xf32> to vector<16x128xf32>
    %cst_41 = arith.constant 5.000000e-01 : f32
    %50 = vector.broadcast %cst_41 : f32 to vector<16x128xf32>
    %51 = arith.mulf %50, %49 : vector<16x128xf32>
    %52 = math.tanh %51 : vector<16x128xf32>
    %cst_42 = arith.constant 5.000000e-01 : f32
    %53 = vector.broadcast %cst_42 : f32 to vector<16x128xf32>
    %54 = arith.mulf %53, %52 : vector<16x128xf32>
    %cst_43 = arith.constant 5.000000e-01 : f32
    %55 = vector.broadcast %cst_43 : f32 to vector<16x128xf32>
    %56 = arith.addf %54, %55 : vector<16x128xf32>
    %57 = vector.extract_strided_slice %45 {offsets = [0, 128], sizes = [16, 128], strides = [1, 1]} : vector<16x512xf32> to vector<16x128xf32>
    %cst_44 = arith.constant 5.000000e-01 : f32
    %58 = vector.broadcast %cst_44 : f32 to vector<16x128xf32>
    %59 = arith.mulf %58, %57 : vector<16x128xf32>
    %60 = math.tanh %59 : vector<16x128xf32>
    %cst_45 = arith.constant 5.000000e-01 : f32
    %61 = vector.broadcast %cst_45 : f32 to vector<16x128xf32>
    %62 = arith.mulf %61, %60 : vector<16x128xf32>
    %cst_46 = arith.constant 5.000000e-01 : f32
    %63 = vector.broadcast %cst_46 : f32 to vector<16x128xf32>
    %64 = arith.addf %62, %63 : vector<16x128xf32>
    %65 = vector.extract_strided_slice %45 {offsets = [0, 256], sizes = [16, 128], strides = [1, 1]} : vector<16x512xf32> to vector<16x128xf32>
    %66 = math.tanh %65 : vector<16x128xf32>
    %67 = vector.extract_strided_slice %45 {offsets = [0, 384], sizes = [16, 128], strides = [1, 1]} : vector<16x512xf32> to vector<16x128xf32>
    %cst_47 = arith.constant 5.000000e-01 : f32
    %68 = vector.broadcast %cst_47 : f32 to vector<16x128xf32>
    %69 = arith.mulf %68, %67 : vector<16x128xf32>
    %70 = math.tanh %69 : vector<16x128xf32>
    %cst_48 = arith.constant 5.000000e-01 : f32
    %71 = vector.broadcast %cst_48 : f32 to vector<16x128xf32>
    %72 = arith.mulf %71, %70 : vector<16x128xf32>
    %cst_49 = arith.constant 5.000000e-01 : f32
    %73 = vector.broadcast %cst_49 : f32 to vector<16x128xf32>
    %74 = arith.addf %72, %73 : vector<16x128xf32>
    %75 = arith.mulf %64, %36 : vector<16x128xf32>
    %76 = arith.mulf %56, %66 : vector<16x128xf32>
    %77 = arith.addf %75, %76 : vector<16x128xf32>
    %78 = math.tanh %77 : vector<16x128xf32>
    %79 = arith.mulf %74, %78 : vector<16x128xf32>
    %80 = arith.truncf %79 : vector<16x128xf32> to vector<16x128xbf16>
    %81 = vector.extract_strided_slice %48 {offsets = [0, 0], sizes = [16, 128], strides = [1, 1]} : vector<16x512xf32> to vector<16x128xf32>
    %cst_50 = arith.constant 5.000000e-01 : f32
    %82 = vector.broadcast %cst_50 : f32 to vector<16x128xf32>
    %83 = arith.mulf %82, %81 : vector<16x128xf32>
    %84 = math.tanh %83 : vector<16x128xf32>
    %cst_51 = arith.constant 5.000000e-01 : f32
    %85 = vector.broadcast %cst_51 : f32 to vector<16x128xf32>
    %86 = arith.mulf %85, %84 : vector<16x128xf32>
    %cst_52 = arith.constant 5.000000e-01 : f32
    %87 = vector.broadcast %cst_52 : f32 to vector<16x128xf32>
    %88 = arith.addf %86, %87 : vector<16x128xf32>
    %89 = vector.extract_strided_slice %48 {offsets = [0, 128], sizes = [16, 128], strides = [1, 1]} : vector<16x512xf32> to vector<16x128xf32>
    %cst_53 = arith.constant 5.000000e-01 : f32
    %90 = vector.broadcast %cst_53 : f32 to vector<16x128xf32>
    %91 = arith.mulf %90, %89 : vector<16x128xf32>
    %92 = math.tanh %91 : vector<16x128xf32>
    %cst_54 = arith.constant 5.000000e-01 : f32
    %93 = vector.broadcast %cst_54 : f32 to vector<16x128xf32>
    %94 = arith.mulf %93, %92 : vector<16x128xf32>
    %cst_55 = arith.constant 5.000000e-01 : f32
    %95 = vector.broadcast %cst_55 : f32 to vector<16x128xf32>
    %96 = arith.addf %94, %95 : vector<16x128xf32>
    %97 = vector.extract_strided_slice %48 {offsets = [0, 256], sizes = [16, 128], strides = [1, 1]} : vector<16x512xf32> to vector<16x128xf32>
    %98 = math.tanh %97 : vector<16x128xf32>
    %99 = vector.extract_strided_slice %48 {offsets = [0, 384], sizes = [16, 128], strides = [1, 1]} : vector<16x512xf32> to vector<16x128xf32>
    %cst_56 = arith.constant 5.000000e-01 : f32
    %100 = vector.broadcast %cst_56 : f32 to vector<16x128xf32>
    %101 = arith.mulf %100, %99 : vector<16x128xf32>
    %102 = math.tanh %101 : vector<16x128xf32>
    %cst_57 = arith.constant 5.000000e-01 : f32
    %103 = vector.broadcast %cst_57 : f32 to vector<16x128xf32>
    %104 = arith.mulf %103, %102 : vector<16x128xf32>
    %cst_58 = arith.constant 5.000000e-01 : f32
    %105 = vector.broadcast %cst_58 : f32 to vector<16x128xf32>
    %106 = arith.addf %104, %105 : vector<16x128xf32>
    %107 = arith.mulf %96, %36 : vector<16x128xf32>
    %108 = arith.mulf %88, %98 : vector<16x128xf32>
    %109 = arith.addf %107, %108 : vector<16x128xf32>
    %110 = math.tanh %109 : vector<16x128xf32>
    %111 = arith.mulf %106, %110 : vector<16x128xf32>
    %112 = arith.truncf %111 : vector<16x128xf32> to vector<16x128xbf16>
    %c0_59 = arith.constant 0 : index
    %c0_60 = arith.constant 0 : index
    %c0_61 = arith.constant 0 : index
    %113 = vector.load %arg12[%c0_59, %c0_60, %c0_61] : memref<8x16x256xbf16, #tpu.memory_space<vmem>>, vector<1x16x128xbf16>
    %114 = vector.shape_cast %113 : vector<1x16x128xbf16> to vector<16x128xbf16>
    %115 = vector.shape_cast %80 : vector<16x128xbf16> to vector<1x16x128xbf16>
    tpu.vector_store %arg12[%c0_59, %c0_60, %c0_61], %115 {strides = array<i32>} : memref<8x16x256xbf16, #tpu.memory_space<vmem>>, vector<1x16x128xbf16>,
    %c7 = arith.constant 7 : index
    %c0_62 = arith.constant 0 : index
    %c128 = arith.constant 128 : index
    %116 = vector.load %arg12[%c7, %c0_62, %c128] : memref<8x16x256xbf16, #tpu.memory_space<vmem>>, vector<1x16x128xbf16>
    %117 = vector.shape_cast %116 : vector<1x16x128xbf16> to vector<16x128xbf16>
    %118 = vector.shape_cast %112 : vector<16x128xbf16> to vector<1x16x128xbf16>
    tpu.vector_store %arg12[%c7, %c0_62, %c128], %118 {strides = array<i32>} : memref<8x16x256xbf16, #tpu.memory_space<vmem>>, vector<1x16x128xbf16>,
    %119 = vector.extract_strided_slice %33 {offsets = [16, 0], sizes = [16, 512], strides = [1, 1]} : vector<128x1024xbf16> to vector<16x512xbf16>
    %120 = vector.extract_strided_slice %33 {offsets = [96, 512], sizes = [16, 512], strides = [1, 1]} : vector<128x1024xbf16> to vector<16x512xbf16>
    %121 = tpu.concatenate %80, %34 in 1 : vector<16x128xbf16>, vector<16x128xbf16> -> vector<16x256xbf16>
    %122 = tpu.concatenate %34, %112 in 1 : vector<16x128xbf16>, vector<16x128xbf16> -> vector<16x256xbf16>
    %123 = tpu.concatenate %121, %122 in 0 : vector<16x256xbf16>, vector<16x256xbf16> -> vector<32x256xbf16>
    %cst_63 = arith.constant dense<0.000000e+00> : vector<32x512xf32>
    %124 = tpu.matmul %123, %28, %cst_63 {dimension_numbers = #tpu.dot_dimension_numbers<[1], [0], [0], [1], [0, 0, 1, 1], [], []>} : vector<32x256xbf16>, vector<256x512xbf16>, vector<32x512xf32> -> vector<32x512xf32>
    %125 = arith.extf %119 : vector<16x512xbf16> to vector<16x512xf32>
    %126 = vector.extract_strided_slice %124 {offsets = [0, 0], sizes = [16, 512], strides = [1, 1]} : vector<32x512xf32> to vector<16x512xf32>
    %127 = arith.addf %125, %126 : vector<16x512xf32>
    %128 = arith.extf %120 : vector<16x512xbf16> to vector<16x512xf32>
    %129 = vector.extract_strided_slice %124 {offsets = [16, 0], sizes = [16, 512], strides = [1, 1]} : vector<32x512xf32> to vector<16x512xf32>
    %130 = arith.addf %128, %129 : vector<16x512xf32>
    %131 = vector.extract_strided_slice %127 {offsets = [0, 0], sizes = [16, 128], strides = [1, 1]} : vector<16x512xf32> to vector<16x128xf32>
    %cst_64 = arith.constant 5.000000e-01 : f32
    %132 = vector.broadcast %cst_64 : f32 to vector<16x128xf32>
    %133 = arith.mulf %132, %131 : vector<16x128xf32>
    %134 = math.tanh %133 : vector<16x128xf32>
    %cst_65 = arith.constant 5.000000e-01 : f32
    %135 = vector.broadcast %cst_65 : f32 to vector<16x128xf32>
    %136 = arith.mulf %135, %134 : vector<16x128xf32>
    %cst_66 = arith.constant 5.000000e-01 : f32
    %137 = vector.broadcast %cst_66 : f32 to vector<16x128xf32>
    %138 = arith.addf %136, %137 : vector<16x128xf32>
    %139 = vector.extract_strided_slice %127 {offsets = [0, 128], sizes = [16, 128], strides = [1, 1]} : vector<16x512xf32> to vector<16x128xf32>
    %cst_67 = arith.constant 5.000000e-01 : f32
    %140 = vector.broadcast %cst_67 : f32 to vector<16x128xf32>
    %141 = arith.mulf %140, %139 : vector<16x128xf32>
    %142 = math.tanh %141 : vector<16x128xf32>
    %cst_68 = arith.constant 5.000000e-01 : f32
    %143 = vector.broadcast %cst_68 : f32 to vector<16x128xf32>
    %144 = arith.mulf %143, %142 : vector<16x128xf32>
    %cst_69 = arith.constant 5.000000e-01 : f32
    %145 = vector.broadcast %cst_69 : f32 to vector<16x128xf32>
    %146 = arith.addf %144, %145 : vector<16x128xf32>
    %147 = vector.extract_strided_slice %127 {offsets = [0, 256], sizes = [16, 128], strides = [1, 1]} : vector<16x512xf32> to vector<16x128xf32>
    %148 = math.tanh %147 : vector<16x128xf32>
    %149 = vector.extract_strided_slice %127 {offsets = [0, 384], sizes = [16, 128], strides = [1, 1]} : vector<16x512xf32> to vector<16x128xf32>
    %cst_70 = arith.constant 5.000000e-01 : f32
    %150 = vector.broadcast %cst_70 : f32 to vector<16x128xf32>
    %151 = arith.mulf %150, %149 : vector<16x128xf32>
    %152 = math.tanh %151 : vector<16x128xf32>
    %cst_71 = arith.constant 5.000000e-01 : f32
    %153 = vector.broadcast %cst_71 : f32 to vector<16x128xf32>
    %154 = arith.mulf %153, %152 : vector<16x128xf32>
    %cst_72 = arith.constant 5.000000e-01 : f32
    %155 = vector.broadcast %cst_72 : f32 to vector<16x128xf32>
    %156 = arith.addf %154, %155 : vector<16x128xf32>
    %157 = arith.mulf %146, %77 : vector<16x128xf32>
    %158 = arith.mulf %138, %148 : vector<16x128xf32>
    %159 = arith.addf %157, %158 : vector<16x128xf32>
    %160 = math.tanh %159 : vector<16x128xf32>
    %161 = arith.mulf %156, %160 : vector<16x128xf32>
    %162 = arith.truncf %161 : vector<16x128xf32> to vector<16x128xbf16>
    %163 = vector.extract_strided_slice %130 {offsets = [0, 0], sizes = [16, 128], strides = [1, 1]} : vector<16x512xf32> to vector<16x128xf32>
    %cst_73 = arith.constant 5.000000e-01 : f32
    %164 = vector.broadcast %cst_73 : f32 to vector<16x128xf32>
    %165 = arith.mulf %164, %163 : vector<16x128xf32>
    %166 = math.tanh %165 : vector<16x128xf32>
    %cst_74 = arith.constant 5.000000e-01 : f32
    %167 = vector.broadcast %cst_74 : f32 to vector<16x128xf32>
    %168 = arith.mulf %167, %166 : vector<16x128xf32>
    %cst_75 = arith.constant 5.000000e-01 : f32
    %169 = vector.broadcast %cst_75 : f32 to vector<16x128xf32>
    %170 = arith.addf %168, %169 : vector<16x128xf32>
    %171 = vector.extract_strided_slice %130 {offsets = [0, 128], sizes = [16, 128], strides = [1, 1]} : vector<16x512xf32> to vector<16x128xf32>
    %cst_76 = arith.constant 5.000000e-01 : f32
    %172 = vector.broadcast %cst_76 : f32 to vector<16x128xf32>
    %173 = arith.mulf %172, %171 : vector<16x128xf32>
    %174 = math.tanh %173 : vector<16x128xf32>
    %cst_77 = arith.constant 5.000000e-01 : f32
    %175 = vector.broadcast %cst_77 : f32 to vector<16x128xf32>
    %176 = arith.mulf %175, %174 : vector<16x128xf32>
    %cst_78 = arith.constant 5.000000e-01 : f32
    %177 = vector.broadcast %cst_78 : f32 to vector<16x128xf32>
    %178 = arith.addf %176, %177 : vector<16x128xf32>
    %179 = vector.extract_strided_slice %130 {offsets = [0, 256], sizes = [16, 128], strides = [1, 1]} : vector<16x512xf32> to vector<16x128xf32>
    %180 = math.tanh %179 : vector<16x128xf32>
    %181 = vector.extract_strided_slice %130 {offsets = [0, 384], sizes = [16, 128], strides = [1, 1]} : vector<16x512xf32> to vector<16x128xf32>
    %cst_79 = arith.constant 5.000000e-01 : f32
    %182 = vector.broadcast %cst_79 : f32 to vector<16x128xf32>
    %183 = arith.mulf %182, %181 : vector<16x128xf32>
    %184 = math.tanh %183 : vector<16x128xf32>
    %cst_80 = arith.constant 5.000000e-01 : f32
    %185 = vector.broadcast %cst_80 : f32 to vector<16x128xf32>
    %186 = arith.mulf %185, %184 : vector<16x128xf32>
    %cst_81 = arith.constant 5.000000e-01 : f32
    %187 = vector.broadcast %cst_81 : f32 to vector<16x128xf32>
    %188 = arith.addf %186, %187 : vector<16x128xf32>
    %189 = arith.mulf %178, %109 : vector<16x128xf32>
    %190 = arith.mulf %170, %180 : vector<16x128xf32>
    %191 = arith.addf %189, %190 : vector<16x128xf32>
    %192 = math.tanh %191 : vector<16x128xf32>
    %193 = arith.mulf %188, %192 : vector<16x128xf32>
    %194 = arith.truncf %193 : vector<16x128xf32> to vector<16x128xbf16>
    %c1 = arith.constant 1 : index
    %c0_82 = arith.constant 0 : index
    %c0_83 = arith.constant 0 : index
    %195 = vector.load %arg12[%c1, %c0_82, %c0_83] : memref<8x16x256xbf16, #tpu.memory_space<vmem>>, vector<1x16x128xbf16>
    %196 = vector.shape_cast %195 : vector<1x16x128xbf16> to vector<16x128xbf16>
    %197 = vector.shape_cast %162 : vector<16x128xbf16> to vector<1x16x128xbf16>
    tpu.vector_store %arg12[%c1, %c0_82, %c0_83], %197 {strides = array<i32>} : memref<8x16x256xbf16, #tpu.memory_space<vmem>>, vector<1x16x128xbf16>,
    %c6 = arith.constant 6 : index
    %c0_84 = arith.constant 0 : index
    %c128_85 = arith.constant 128 : index
    %198 = vector.load %arg12[%c6, %c0_84, %c128_85] : memref<8x16x256xbf16, #tpu.memory_space<vmem>>, vector<1x16x128xbf16>
    %199 = vector.shape_cast %198 : vector<1x16x128xbf16> to vector<16x128xbf16>
    %200 = vector.shape_cast %194 : vector<16x128xbf16> to vector<1x16x128xbf16>
    tpu.vector_store %arg12[%c6, %c0_84, %c128_85], %200 {strides = array<i32>} : memref<8x16x256xbf16, #tpu.memory_space<vmem>>, vector<1x16x128xbf16>,
    %201 = vector.extract_strided_slice %33 {offsets = [32, 0], sizes = [16, 512], strides = [1, 1]} : vector<128x1024xbf16> to vector<16x512xbf16>
    %202 = vector.extract_strided_slice %33 {offsets = [80, 512], sizes = [16, 512], strides = [1, 1]} : vector<128x1024xbf16> to vector<16x512xbf16>
    %203 = tpu.concatenate %162, %34 in 1 : vector<16x128xbf16>, vector<16x128xbf16> -> vector<16x256xbf16>
    %204 = tpu.concatenate %34, %194 in 1 : vector<16x128xbf16>, vector<16x128xbf16> -> vector<16x256xbf16>
    %205 = tpu.concatenate %203, %204 in 0 : vector<16x256xbf16>, vector<16x256xbf16> -> vector<32x256xbf16>
    %cst_86 = arith.constant dense<0.000000e+00> : vector<32x512xf32>
    %206 = tpu.matmul %205, %28, %cst_86 {dimension_numbers = #tpu.dot_dimension_numbers<[1], [0], [0], [1], [0, 0, 1, 1], [], []>} : vector<32x256xbf16>, vector<256x512xbf16>, vector<32x512xf32> -> vector<32x512xf32>
    %207 = arith.extf %201 : vector<16x512xbf16> to vector<16x512xf32>
    %208 = vector.extract_strided_slice %206 {offsets = [0, 0], sizes = [16, 512], strides = [1, 1]} : vector<32x512xf32> to vector<16x512xf32>
    %209 = arith.addf %207, %208 : vector<16x512xf32>
    %210 = arith.extf %202 : vector<16x512xbf16> to vector<16x512xf32>
    %211 = vector.extract_strided_slice %206 {offsets = [16, 0], sizes = [16, 512], strides = [1, 1]} : vector<32x512xf32> to vector<16x512xf32>
    %212 = arith.addf %210, %211 : vector<16x512xf32>
    %213 = vector.extract_strided_slice %209 {offsets = [0, 0], sizes = [16, 128], strides = [1, 1]} : vector<16x512xf32> to vector<16x128xf32>
    %cst_87 = arith.constant 5.000000e-01 : f32
    %214 = vector.broadcast %cst_87 : f32 to vector<16x128xf32>
    %215 = arith.mulf %214, %213 : vector<16x128xf32>
    %216 = math.tanh %215 : vector<16x128xf32>
    %cst_88 = arith.constant 5.000000e-01 : f32
    %217 = vector.broadcast %cst_88 : f32 to vector<16x128xf32>
    %218 = arith.mulf %217, %216 : vector<16x128xf32>
    %cst_89 = arith.constant 5.000000e-01 : f32
    %219 = vector.broadcast %cst_89 : f32 to vector<16x128xf32>
    %220 = arith.addf %218, %219 : vector<16x128xf32>
    %221 = vector.extract_strided_slice %209 {offsets = [0, 128], sizes = [16, 128], strides = [1, 1]} : vector<16x512xf32> to vector<16x128xf32>
    %cst_90 = arith.constant 5.000000e-01 : f32
    %222 = vector.broadcast %cst_90 : f32 to vector<16x128xf32>
    %223 = arith.mulf %222, %221 : vector<16x128xf32>
    %224 = math.tanh %223 : vector<16x128xf32>
    %cst_91 = arith.constant 5.000000e-01 : f32
    %225 = vector.broadcast %cst_91 : f32 to vector<16x128xf32>
    %226 = arith.mulf %225, %224 : vector<16x128xf32>
    %cst_92 = arith.constant 5.000000e-01 : f32
    %227 = vector.broadcast %cst_92 : f32 to vector<16x128xf32>
    %228 = arith.addf %226, %227 : vector<16x128xf32>
    %229 = vector.extract_strided_slice %209 {offsets = [0, 256], sizes = [16, 128], strides = [1, 1]} : vector<16x512xf32> to vector<16x128xf32>
    %230 = math.tanh %229 : vector<16x128xf32>
    %231 = vector.extract_strided_slice %209 {offsets = [0, 384], sizes = [16, 128], strides = [1, 1]} : vector<16x512xf32> to vector<16x128xf32>
    %cst_93 = arith.constant 5.000000e-01 : f32
    %232 = vector.broadcast %cst_93 : f32 to vector<16x128xf32>
    %233 = arith.mulf %232, %231 : vector<16x128xf32>
    %234 = math.tanh %233 : vector<16x128xf32>
    %cst_94 = arith.constant 5.000000e-01 : f32
    %235 = vector.broadcast %cst_94 : f32 to vector<16x128xf32>
    %236 = arith.mulf %235, %234 : vector<16x128xf32>
    %cst_95 = arith.constant 5.000000e-01 : f32
    %237 = vector.broadcast %cst_95 : f32 to vector<16x128xf32>
    %238 = arith.addf %236, %237 : vector<16x128xf32>
    %239 = arith.mulf %228, %159 : vector<16x128xf32>
    %240 = arith.mulf %220, %230 : vector<16x128xf32>
    %241 = arith.addf %239, %240 : vector<16x128xf32>
    %242 = math.tanh %241 : vector<16x128xf32>
    %243 = arith.mulf %238, %242 : vector<16x128xf32>
    %244 = arith.truncf %243 : vector<16x128xf32> to vector<16x128xbf16>
    %245 = vector.extract_strided_slice %212 {offsets = [0, 0], sizes = [16, 128], strides = [1, 1]} : vector<16x512xf32> to vector<16x128xf32>
    %cst_96 = arith.constant 5.000000e-01 : f32
    %246 = vector.broadcast %cst_96 : f32 to vector<16x128xf32>
    %247 = arith.mulf %246, %245 : vector<16x128xf32>
    %248 = math.tanh %247 : vector<16x128xf32>
    %cst_97 = arith.constant 5.000000e-01 : f32
    %249 = vector.broadcast %cst_97 : f32 to vector<16x128xf32>
    %250 = arith.mulf %249, %248 : vector<16x128xf32>
    %cst_98 = arith.constant 5.000000e-01 : f32
    %251 = vector.broadcast %cst_98 : f32 to vector<16x128xf32>
    %252 = arith.addf %250, %251 : vector<16x128xf32>
    %253 = vector.extract_strided_slice %212 {offsets = [0, 128], sizes = [16, 128], strides = [1, 1]} : vector<16x512xf32> to vector<16x128xf32>
    %cst_99 = arith.constant 5.000000e-01 : f32
    %254 = vector.broadcast %cst_99 : f32 to vector<16x128xf32>
    %255 = arith.mulf %254, %253 : vector<16x128xf32>
    %256 = math.tanh %255 : vector<16x128xf32>
    %cst_100 = arith.constant 5.000000e-01 : f32
    %257 = vector.broadcast %cst_100 : f32 to vector<16x128xf32>
    %258 = arith.mulf %257, %256 : vector<16x128xf32>
    %cst_101 = arith.constant 5.000000e-01 : f32
    %259 = vector.broadcast %cst_101 : f32 to vector<16x128xf32>
    %260 = arith.addf %258, %259 : vector<16x128xf32>
    %261 = vector.extract_strided_slice %212 {offsets = [0, 256], sizes = [16, 128], strides = [1, 1]} : vector<16x512xf32> to vector<16x128xf32>
    %262 = math.tanh %261 : vector<16x128xf32>
    %263 = vector.extract_strided_slice %212 {offsets = [0, 384], sizes = [16, 128], strides = [1, 1]} : vector<16x512xf32> to vector<16x128xf32>
    %cst_102 = arith.constant 5.000000e-01 : f32
    %264 = vector.broadcast %cst_102 : f32 to vector<16x128xf32>
    %265 = arith.mulf %264, %263 : vector<16x128xf32>
    %266 = math.tanh %265 : vector<16x128xf32>
    %cst_103 = arith.constant 5.000000e-01 : f32
    %267 = vector.broadcast %cst_103 : f32 to vector<16x128xf32>
    %268 = arith.mulf %267, %266 : vector<16x128xf32>
    %cst_104 = arith.constant 5.000000e-01 : f32
    %269 = vector.broadcast %cst_104 : f32 to vector<16x128xf32>
    %270 = arith.addf %268, %269 : vector<16x128xf32>
    %271 = arith.mulf %260, %191 : vector<16x128xf32>
    %272 = arith.mulf %252, %262 : vector<16x128xf32>
    %273 = arith.addf %271, %272 : vector<16x128xf32>
    %274 = math.tanh %273 : vector<16x128xf32>
    %275 = arith.mulf %270, %274 : vector<16x128xf32>
    %276 = arith.truncf %275 : vector<16x128xf32> to vector<16x128xbf16>
    %c2 = arith.constant 2 : index
    %c0_105 = arith.constant 0 : index
    %c0_106 = arith.constant 0 : index
    %277 = vector.load %arg12[%c2, %c0_105, %c0_106] : memref<8x16x256xbf16, #tpu.memory_space<vmem>>, vector<1x16x128xbf16>
    %278 = vector.shape_cast %277 : vector<1x16x128xbf16> to vector<16x128xbf16>
    %279 = vector.shape_cast %244 : vector<16x128xbf16> to vector<1x16x128xbf16>
    tpu.vector_store %arg12[%c2, %c0_105, %c0_106], %279 {strides = array<i32>} : memref<8x16x256xbf16, #tpu.memory_space<vmem>>, vector<1x16x128xbf16>,
    %c5 = arith.constant 5 : index
    %c0_107 = arith.constant 0 : index
    %c128_108 = arith.constant 128 : index
    %280 = vector.load %arg12[%c5, %c0_107, %c128_108] : memref<8x16x256xbf16, #tpu.memory_space<vmem>>, vector<1x16x128xbf16>
    %281 = vector.shape_cast %280 : vector<1x16x128xbf16> to vector<16x128xbf16>
    %282 = vector.shape_cast %276 : vector<16x128xbf16> to vector<1x16x128xbf16>
    tpu.vector_store %arg12[%c5, %c0_107, %c128_108], %282 {strides = array<i32>} : memref<8x16x256xbf16, #tpu.memory_space<vmem>>, vector<1x16x128xbf16>,
    %283 = vector.extract_strided_slice %33 {offsets = [48, 0], sizes = [16, 512], strides = [1, 1]} : vector<128x1024xbf16> to vector<16x512xbf16>
    %284 = vector.extract_strided_slice %33 {offsets = [64, 512], sizes = [16, 512], strides = [1, 1]} : vector<128x1024xbf16> to vector<16x512xbf16>
    %285 = tpu.concatenate %244, %34 in 1 : vector<16x128xbf16>, vector<16x128xbf16> -> vector<16x256xbf16>
    %286 = tpu.concatenate %34, %276 in 1 : vector<16x128xbf16>, vector<16x128xbf16> -> vector<16x256xbf16>
    %287 = tpu.concatenate %285, %286 in 0 : vector<16x256xbf16>, vector<16x256xbf16> -> vector<32x256xbf16>
    %cst_109 = arith.constant dense<0.000000e+00> : vector<32x512xf32>
    %288 = tpu.matmul %287, %28, %cst_109 {dimension_numbers = #tpu.dot_dimension_numbers<[1], [0], [0], [1], [0, 0, 1, 1], [], []>} : vector<32x256xbf16>, vector<256x512xbf16>, vector<32x512xf32> -> vector<32x512xf32>
    %289 = arith.extf %283 : vector<16x512xbf16> to vector<16x512xf32>
    %290 = vector.extract_strided_slice %288 {offsets = [0, 0], sizes = [16, 512], strides = [1, 1]} : vector<32x512xf32> to vector<16x512xf32>
    %291 = arith.addf %289, %290 : vector<16x512xf32>
    %292 = arith.extf %284 : vector<16x512xbf16> to vector<16x512xf32>
    %293 = vector.extract_strided_slice %288 {offsets = [16, 0], sizes = [16, 512], strides = [1, 1]} : vector<32x512xf32> to vector<16x512xf32>
    %294 = arith.addf %292, %293 : vector<16x512xf32>
    %295 = vector.extract_strided_slice %291 {offsets = [0, 0], sizes = [16, 128], strides = [1, 1]} : vector<16x512xf32> to vector<16x128xf32>
    %cst_110 = arith.constant 5.000000e-01 : f32
    %296 = vector.broadcast %cst_110 : f32 to vector<16x128xf32>
    %297 = arith.mulf %296, %295 : vector<16x128xf32>
    %298 = math.tanh %297 : vector<16x128xf32>
    %cst_111 = arith.constant 5.000000e-01 : f32
    %299 = vector.broadcast %cst_111 : f32 to vector<16x128xf32>
    %300 = arith.mulf %299, %298 : vector<16x128xf32>
    %cst_112 = arith.constant 5.000000e-01 : f32
    %301 = vector.broadcast %cst_112 : f32 to vector<16x128xf32>
    %302 = arith.addf %300, %301 : vector<16x128xf32>
    %303 = vector.extract_strided_slice %291 {offsets = [0, 128], sizes = [16, 128], strides = [1, 1]} : vector<16x512xf32> to vector<16x128xf32>
    %cst_113 = arith.constant 5.000000e-01 : f32
    %304 = vector.broadcast %cst_113 : f32 to vector<16x128xf32>
    %305 = arith.mulf %304, %303 : vector<16x128xf32>
    %306 = math.tanh %305 : vector<16x128xf32>
    %cst_114 = arith.constant 5.000000e-01 : f32
    %307 = vector.broadcast %cst_114 : f32 to vector<16x128xf32>
    %308 = arith.mulf %307, %306 : vector<16x128xf32>
    %cst_115 = arith.constant 5.000000e-01 : f32
    %309 = vector.broadcast %cst_115 : f32 to vector<16x128xf32>
    %310 = arith.addf %308, %309 : vector<16x128xf32>
    %311 = vector.extract_strided_slice %291 {offsets = [0, 256], sizes = [16, 128], strides = [1, 1]} : vector<16x512xf32> to vector<16x128xf32>
    %312 = math.tanh %311 : vector<16x128xf32>
    %313 = vector.extract_strided_slice %291 {offsets = [0, 384], sizes = [16, 128], strides = [1, 1]} : vector<16x512xf32> to vector<16x128xf32>
    %cst_116 = arith.constant 5.000000e-01 : f32
    %314 = vector.broadcast %cst_116 : f32 to vector<16x128xf32>
    %315 = arith.mulf %314, %313 : vector<16x128xf32>
    %316 = math.tanh %315 : vector<16x128xf32>
    %cst_117 = arith.constant 5.000000e-01 : f32
    %317 = vector.broadcast %cst_117 : f32 to vector<16x128xf32>
    %318 = arith.mulf %317, %316 : vector<16x128xf32>
    %cst_118 = arith.constant 5.000000e-01 : f32
    %319 = vector.broadcast %cst_118 : f32 to vector<16x128xf32>
    %320 = arith.addf %318, %319 : vector<16x128xf32>
    %321 = arith.mulf %310, %241 : vector<16x128xf32>
    %322 = arith.mulf %302, %312 : vector<16x128xf32>
    %323 = arith.addf %321, %322 : vector<16x128xf32>
    %324 = math.tanh %323 : vector<16x128xf32>
    %325 = arith.mulf %320, %324 : vector<16x128xf32>
    %326 = arith.truncf %325 : vector<16x128xf32> to vector<16x128xbf16>
    %327 = vector.extract_strided_slice %294 {offsets = [0, 0], sizes = [16, 128], strides = [1, 1]} : vector<16x512xf32> to vector<16x128xf32>
    %cst_119 = arith.constant 5.000000e-01 : f32
    %328 = vector.broadcast %cst_119 : f32 to vector<16x128xf32>
    %329 = arith.mulf %328, %327 : vector<16x128xf32>
    %330 = math.tanh %329 : vector<16x128xf32>
    %cst_120 = arith.constant 5.000000e-01 : f32
    %331 = vector.broadcast %cst_120 : f32 to vector<16x128xf32>
    %332 = arith.mulf %331, %330 : vector<16x128xf32>
    %cst_121 = arith.constant 5.000000e-01 : f32
    %333 = vector.broadcast %cst_121 : f32 to vector<16x128xf32>
    %334 = arith.addf %332, %333 : vector<16x128xf32>
    %335 = vector.extract_strided_slice %294 {offsets = [0, 128], sizes = [16, 128], strides = [1, 1]} : vector<16x512xf32> to vector<16x128xf32>
    %cst_122 = arith.constant 5.000000e-01 : f32
    %336 = vector.broadcast %cst_122 : f32 to vector<16x128xf32>
    %337 = arith.mulf %336, %335 : vector<16x128xf32>
    %338 = math.tanh %337 : vector<16x128xf32>
    %cst_123 = arith.constant 5.000000e-01 : f32
    %339 = vector.broadcast %cst_123 : f32 to vector<16x128xf32>
    %340 = arith.mulf %339, %338 : vector<16x128xf32>
    %cst_124 = arith.constant 5.000000e-01 : f32
    %341 = vector.broadcast %cst_124 : f32 to vector<16x128xf32>
    %342 = arith.addf %340, %341 : vector<16x128xf32>
    %343 = vector.extract_strided_slice %294 {offsets = [0, 256], sizes = [16, 128], strides = [1, 1]} : vector<16x512xf32> to vector<16x128xf32>
    %344 = math.tanh %343 : vector<16x128xf32>
    %345 = vector.extract_strided_slice %294 {offsets = [0, 384], sizes = [16, 128], strides = [1, 1]} : vector<16x512xf32> to vector<16x128xf32>
    %cst_125 = arith.constant 5.000000e-01 : f32
    %346 = vector.broadcast %cst_125 : f32 to vector<16x128xf32>
    %347 = arith.mulf %346, %345 : vector<16x128xf32>
    %348 = math.tanh %347 : vector<16x128xf32>
    %cst_126 = arith.constant 5.000000e-01 : f32
    %349 = vector.broadcast %cst_126 : f32 to vector<16x128xf32>
    %350 = arith.mulf %349, %348 : vector<16x128xf32>
    %cst_127 = arith.constant 5.000000e-01 : f32
    %351 = vector.broadcast %cst_127 : f32 to vector<16x128xf32>
    %352 = arith.addf %350, %351 : vector<16x128xf32>
    %353 = arith.mulf %342, %273 : vector<16x128xf32>
    %354 = arith.mulf %334, %344 : vector<16x128xf32>
    %355 = arith.addf %353, %354 : vector<16x128xf32>
    %356 = math.tanh %355 : vector<16x128xf32>
    %357 = arith.mulf %352, %356 : vector<16x128xf32>
    %358 = arith.truncf %357 : vector<16x128xf32> to vector<16x128xbf16>
    %c3 = arith.constant 3 : index
    %c0_128 = arith.constant 0 : index
    %c0_129 = arith.constant 0 : index
    %359 = vector.load %arg12[%c3, %c0_128, %c0_129] : memref<8x16x256xbf16, #tpu.memory_space<vmem>>, vector<1x16x128xbf16>
    %360 = vector.shape_cast %359 : vector<1x16x128xbf16> to vector<16x128xbf16>
    %361 = vector.shape_cast %326 : vector<16x128xbf16> to vector<1x16x128xbf16>
    tpu.vector_store %arg12[%c3, %c0_128, %c0_129], %361 {strides = array<i32>} : memref<8x16x256xbf16, #tpu.memory_space<vmem>>, vector<1x16x128xbf16>,
    %c4 = arith.constant 4 : index
    %c0_130 = arith.constant 0 : index
    %c128_131 = arith.constant 128 : index
    %362 = vector.load %arg12[%c4, %c0_130, %c128_131] : memref<8x16x256xbf16, #tpu.memory_space<vmem>>, vector<1x16x128xbf16>
    %363 = vector.shape_cast %362 : vector<1x16x128xbf16> to vector<16x128xbf16>
    %364 = vector.shape_cast %358 : vector<16x128xbf16> to vector<1x16x128xbf16>
    tpu.vector_store %arg12[%c4, %c0_130, %c128_131], %364 {strides = array<i32>} : memref<8x16x256xbf16, #tpu.memory_space<vmem>>, vector<1x16x128xbf16>,
    %365 = vector.extract_strided_slice %33 {offsets = [64, 0], sizes = [16, 512], strides = [1, 1]} : vector<128x1024xbf16> to vector<16x512xbf16>
    %366 = vector.extract_strided_slice %33 {offsets = [48, 512], sizes = [16, 512], strides = [1, 1]} : vector<128x1024xbf16> to vector<16x512xbf16>
    %367 = tpu.concatenate %326, %34 in 1 : vector<16x128xbf16>, vector<16x128xbf16> -> vector<16x256xbf16>
    %368 = tpu.concatenate %34, %358 in 1 : vector<16x128xbf16>, vector<16x128xbf16> -> vector<16x256xbf16>
    %369 = tpu.concatenate %367, %368 in 0 : vector<16x256xbf16>, vector<16x256xbf16> -> vector<32x256xbf16>
    %cst_132 = arith.constant dense<0.000000e+00> : vector<32x512xf32>
    %370 = tpu.matmul %369, %28, %cst_132 {dimension_numbers = #tpu.dot_dimension_numbers<[1], [0], [0], [1], [0, 0, 1, 1], [], []>} : vector<32x256xbf16>, vector<256x512xbf16>, vector<32x512xf32> -> vector<32x512xf32>
    %371 = arith.extf %365 : vector<16x512xbf16> to vector<16x512xf32>
    %372 = vector.extract_strided_slice %370 {offsets = [0, 0], sizes = [16, 512], strides = [1, 1]} : vector<32x512xf32> to vector<16x512xf32>
    %373 = arith.addf %371, %372 : vector<16x512xf32>
    %374 = arith.extf %366 : vector<16x512xbf16> to vector<16x512xf32>
    %375 = vector.extract_strided_slice %370 {offsets = [16, 0], sizes = [16, 512], strides = [1, 1]} : vector<32x512xf32> to vector<16x512xf32>
    %376 = arith.addf %374, %375 : vector<16x512xf32>
    %377 = vector.extract_strided_slice %373 {offsets = [0, 0], sizes = [16, 128], strides = [1, 1]} : vector<16x512xf32> to vector<16x128xf32>
    %cst_133 = arith.constant 5.000000e-01 : f32
    %378 = vector.broadcast %cst_133 : f32 to vector<16x128xf32>
    %379 = arith.mulf %378, %377 : vector<16x128xf32>
    %380 = math.tanh %379 : vector<16x128xf32>
    %cst_134 = arith.constant 5.000000e-01 : f32
    %381 = vector.broadcast %cst_134 : f32 to vector<16x128xf32>
    %382 = arith.mulf %381, %380 : vector<16x128xf32>
    %cst_135 = arith.constant 5.000000e-01 : f32
    %383 = vector.broadcast %cst_135 : f32 to vector<16x128xf32>
    %384 = arith.addf %382, %383 : vector<16x128xf32>
    %385 = vector.extract_strided_slice %373 {offsets = [0, 128], sizes = [16, 128], strides = [1, 1]} : vector<16x512xf32> to vector<16x128xf32>
    %cst_136 = arith.constant 5.000000e-01 : f32
    %386 = vector.broadcast %cst_136 : f32 to vector<16x128xf32>
    %387 = arith.mulf %386, %385 : vector<16x128xf32>
    %388 = math.tanh %387 : vector<16x128xf32>
    %cst_137 = arith.constant 5.000000e-01 : f32
    %389 = vector.broadcast %cst_137 : f32 to vector<16x128xf32>
    %390 = arith.mulf %389, %388 : vector<16x128xf32>
    %cst_138 = arith.constant 5.000000e-01 : f32
    %391 = vector.broadcast %cst_138 : f32 to vector<16x128xf32>
    %392 = arith.addf %390, %391 : vector<16x128xf32>
    %393 = vector.extract_strided_slice %373 {offsets = [0, 256], sizes = [16, 128], strides = [1, 1]} : vector<16x512xf32> to vector<16x128xf32>
    %394 = math.tanh %393 : vector<16x128xf32>
    %395 = vector.extract_strided_slice %373 {offsets = [0, 384], sizes = [16, 128], strides = [1, 1]} : vector<16x512xf32> to vector<16x128xf32>
    %cst_139 = arith.constant 5.000000e-01 : f32
    %396 = vector.broadcast %cst_139 : f32 to vector<16x128xf32>
    %397 = arith.mulf %396, %395 : vector<16x128xf32>
    %398 = math.tanh %397 : vector<16x128xf32>
    %cst_140 = arith.constant 5.000000e-01 : f32
    %399 = vector.broadcast %cst_140 : f32 to vector<16x128xf32>
    %400 = arith.mulf %399, %398 : vector<16x128xf32>
    %cst_141 = arith.constant 5.000000e-01 : f32
    %401 = vector.broadcast %cst_141 : f32 to vector<16x128xf32>
    %402 = arith.addf %400, %401 : vector<16x128xf32>
    %403 = arith.mulf %392, %323 : vector<16x128xf32>
    %404 = arith.mulf %384, %394 : vector<16x128xf32>
    %405 = arith.addf %403, %404 : vector<16x128xf32>
    %406 = math.tanh %405 : vector<16x128xf32>
    %407 = arith.mulf %402, %406 : vector<16x128xf32>
    %408 = arith.truncf %407 : vector<16x128xf32> to vector<16x128xbf16>
    %409 = vector.extract_strided_slice %376 {offsets = [0, 0], sizes = [16, 128], strides = [1, 1]} : vector<16x512xf32> to vector<16x128xf32>
    %cst_142 = arith.constant 5.000000e-01 : f32
    %410 = vector.broadcast %cst_142 : f32 to vector<16x128xf32>
    %411 = arith.mulf %410, %409 : vector<16x128xf32>
    %412 = math.tanh %411 : vector<16x128xf32>
    %cst_143 = arith.constant 5.000000e-01 : f32
    %413 = vector.broadcast %cst_143 : f32 to vector<16x128xf32>
    %414 = arith.mulf %413, %412 : vector<16x128xf32>
    %cst_144 = arith.constant 5.000000e-01 : f32
    %415 = vector.broadcast %cst_144 : f32 to vector<16x128xf32>
    %416 = arith.addf %414, %415 : vector<16x128xf32>
    %417 = vector.extract_strided_slice %376 {offsets = [0, 128], sizes = [16, 128], strides = [1, 1]} : vector<16x512xf32> to vector<16x128xf32>
    %cst_145 = arith.constant 5.000000e-01 : f32
    %418 = vector.broadcast %cst_145 : f32 to vector<16x128xf32>
    %419 = arith.mulf %418, %417 : vector<16x128xf32>
    %420 = math.tanh %419 : vector<16x128xf32>
    %cst_146 = arith.constant 5.000000e-01 : f32
    %421 = vector.broadcast %cst_146 : f32 to vector<16x128xf32>
    %422 = arith.mulf %421, %420 : vector<16x128xf32>
    %cst_147 = arith.constant 5.000000e-01 : f32
    %423 = vector.broadcast %cst_147 : f32 to vector<16x128xf32>
    %424 = arith.addf %422, %423 : vector<16x128xf32>
    %425 = vector.extract_strided_slice %376 {offsets = [0, 256], sizes = [16, 128], strides = [1, 1]} : vector<16x512xf32> to vector<16x128xf32>
    %426 = math.tanh %425 : vector<16x128xf32>
    %427 = vector.extract_strided_slice %376 {offsets = [0, 384], sizes = [16, 128], strides = [1, 1]} : vector<16x512xf32> to vector<16x128xf32>
    %cst_148 = arith.constant 5.000000e-01 : f32
    %428 = vector.broadcast %cst_148 : f32 to vector<16x128xf32>
    %429 = arith.mulf %428, %427 : vector<16x128xf32>
    %430 = math.tanh %429 : vector<16x128xf32>
    %cst_149 = arith.constant 5.000000e-01 : f32
    %431 = vector.broadcast %cst_149 : f32 to vector<16x128xf32>
    %432 = arith.mulf %431, %430 : vector<16x128xf32>
    %cst_150 = arith.constant 5.000000e-01 : f32
    %433 = vector.broadcast %cst_150 : f32 to vector<16x128xf32>
    %434 = arith.addf %432, %433 : vector<16x128xf32>
    %435 = arith.mulf %424, %355 : vector<16x128xf32>
    %436 = arith.mulf %416, %426 : vector<16x128xf32>
    %437 = arith.addf %435, %436 : vector<16x128xf32>
    %438 = math.tanh %437 : vector<16x128xf32>
    %439 = arith.mulf %434, %438 : vector<16x128xf32>
    %440 = arith.truncf %439 : vector<16x128xf32> to vector<16x128xbf16>
    %c4_151 = arith.constant 4 : index
    %c0_152 = arith.constant 0 : index
    %c0_153 = arith.constant 0 : index
    %441 = vector.load %arg12[%c4_151, %c0_152, %c0_153] : memref<8x16x256xbf16, #tpu.memory_space<vmem>>, vector<1x16x128xbf16>
    %442 = vector.shape_cast %441 : vector<1x16x128xbf16> to vector<16x128xbf16>
    %443 = vector.shape_cast %408 : vector<16x128xbf16> to vector<1x16x128xbf16>
    tpu.vector_store %arg12[%c4_151, %c0_152, %c0_153], %443 {strides = array<i32>} : memref<8x16x256xbf16, #tpu.memory_space<vmem>>, vector<1x16x128xbf16>,
    %c3_154 = arith.constant 3 : index
    %c0_155 = arith.constant 0 : index
    %c128_156 = arith.constant 128 : index
    %444 = vector.load %arg12[%c3_154, %c0_155, %c128_156] : memref<8x16x256xbf16, #tpu.memory_space<vmem>>, vector<1x16x128xbf16>
    %445 = vector.shape_cast %444 : vector<1x16x128xbf16> to vector<16x128xbf16>
    %446 = vector.shape_cast %440 : vector<16x128xbf16> to vector<1x16x128xbf16>
    tpu.vector_store %arg12[%c3_154, %c0_155, %c128_156], %446 {strides = array<i32>} : memref<8x16x256xbf16, #tpu.memory_space<vmem>>, vector<1x16x128xbf16>,
    %447 = vector.extract_strided_slice %33 {offsets = [80, 0], sizes = [16, 512], strides = [1, 1]} : vector<128x1024xbf16> to vector<16x512xbf16>
    %448 = vector.extract_strided_slice %33 {offsets = [32, 512], sizes = [16, 512], strides = [1, 1]} : vector<128x1024xbf16> to vector<16x512xbf16>
    %449 = tpu.concatenate %408, %34 in 1 : vector<16x128xbf16>, vector<16x128xbf16> -> vector<16x256xbf16>
    %450 = tpu.concatenate %34, %440 in 1 : vector<16x128xbf16>, vector<16x128xbf16> -> vector<16x256xbf16>
    %451 = tpu.concatenate %449, %450 in 0 : vector<16x256xbf16>, vector<16x256xbf16> -> vector<32x256xbf16>
    %cst_157 = arith.constant dense<0.000000e+00> : vector<32x512xf32>
    %452 = tpu.matmul %451, %28, %cst_157 {dimension_numbers = #tpu.dot_dimension_numbers<[1], [0], [0], [1], [0, 0, 1, 1], [], []>} : vector<32x256xbf16>, vector<256x512xbf16>, vector<32x512xf32> -> vector<32x512xf32>
    %453 = arith.extf %447 : vector<16x512xbf16> to vector<16x512xf32>
    %454 = vector.extract_strided_slice %452 {offsets = [0, 0], sizes = [16, 512], strides = [1, 1]} : vector<32x512xf32> to vector<16x512xf32>
    %455 = arith.addf %453, %454 : vector<16x512xf32>
    %456 = arith.extf %448 : vector<16x512xbf16> to vector<16x512xf32>
    %457 = vector.extract_strided_slice %452 {offsets = [16, 0], sizes = [16, 512], strides = [1, 1]} : vector<32x512xf32> to vector<16x512xf32>
    %458 = arith.addf %456, %457 : vector<16x512xf32>
    %459 = vector.extract_strided_slice %455 {offsets = [0, 0], sizes = [16, 128], strides = [1, 1]} : vector<16x512xf32> to vector<16x128xf32>
    %cst_158 = arith.constant 5.000000e-01 : f32
    %460 = vector.broadcast %cst_158 : f32 to vector<16x128xf32>
    %461 = arith.mulf %460, %459 : vector<16x128xf32>
    %462 = math.tanh %461 : vector<16x128xf32>
    %cst_159 = arith.constant 5.000000e-01 : f32
    %463 = vector.broadcast %cst_159 : f32 to vector<16x128xf32>
    %464 = arith.mulf %463, %462 : vector<16x128xf32>
    %cst_160 = arith.constant 5.000000e-01 : f32
    %465 = vector.broadcast %cst_160 : f32 to vector<16x128xf32>
    %466 = arith.addf %464, %465 : vector<16x128xf32>
    %467 = vector.extract_strided_slice %455 {offsets = [0, 128], sizes = [16, 128], strides = [1, 1]} : vector<16x512xf32> to vector<16x128xf32>
    %cst_161 = arith.constant 5.000000e-01 : f32
    %468 = vector.broadcast %cst_161 : f32 to vector<16x128xf32>
    %469 = arith.mulf %468, %467 : vector<16x128xf32>
    %470 = math.tanh %469 : vector<16x128xf32>
    %cst_162 = arith.constant 5.000000e-01 : f32
    %471 = vector.broadcast %cst_162 : f32 to vector<16x128xf32>
    %472 = arith.mulf %471, %470 : vector<16x128xf32>
    %cst_163 = arith.constant 5.000000e-01 : f32
    %473 = vector.broadcast %cst_163 : f32 to vector<16x128xf32>
    %474 = arith.addf %472, %473 : vector<16x128xf32>
    %475 = vector.extract_strided_slice %455 {offsets = [0, 256], sizes = [16, 128], strides = [1, 1]} : vector<16x512xf32> to vector<16x128xf32>
    %476 = math.tanh %475 : vector<16x128xf32>
    %477 = vector.extract_strided_slice %455 {offsets = [0, 384], sizes = [16, 128], strides = [1, 1]} : vector<16x512xf32> to vector<16x128xf32>
    %cst_164 = arith.constant 5.000000e-01 : f32
    %478 = vector.broadcast %cst_164 : f32 to vector<16x128xf32>
    %479 = arith.mulf %478, %477 : vector<16x128xf32>
    %480 = math.tanh %479 : vector<16x128xf32>
    %cst_165 = arith.constant 5.000000e-01 : f32
    %481 = vector.broadcast %cst_165 : f32 to vector<16x128xf32>
    %482 = arith.mulf %481, %480 : vector<16x128xf32>
    %cst_166 = arith.constant 5.000000e-01 : f32
    %483 = vector.broadcast %cst_166 : f32 to vector<16x128xf32>
    %484 = arith.addf %482, %483 : vector<16x128xf32>
    %485 = arith.mulf %474, %405 : vector<16x128xf32>
    %486 = arith.mulf %466, %476 : vector<16x128xf32>
    %487 = arith.addf %485, %486 : vector<16x128xf32>
    %488 = math.tanh %487 : vector<16x128xf32>
    %489 = arith.mulf %484, %488 : vector<16x128xf32>
    %490 = arith.truncf %489 : vector<16x128xf32> to vector<16x128xbf16>
    %491 = vector.extract_strided_slice %458 {offsets = [0, 0], sizes = [16, 128], strides = [1, 1]} : vector<16x512xf32> to vector<16x128xf32>
    %cst_167 = arith.constant 5.000000e-01 : f32
    %492 = vector.broadcast %cst_167 : f32 to vector<16x128xf32>
    %493 = arith.mulf %492, %491 : vector<16x128xf32>
    %494 = math.tanh %493 : vector<16x128xf32>
    %cst_168 = arith.constant 5.000000e-01 : f32
    %495 = vector.broadcast %cst_168 : f32 to vector<16x128xf32>
    %496 = arith.mulf %495, %494 : vector<16x128xf32>
    %cst_169 = arith.constant 5.000000e-01 : f32
    %497 = vector.broadcast %cst_169 : f32 to vector<16x128xf32>
    %498 = arith.addf %496, %497 : vector<16x128xf32>
    %499 = vector.extract_strided_slice %458 {offsets = [0, 128], sizes = [16, 128], strides = [1, 1]} : vector<16x512xf32> to vector<16x128xf32>
    %cst_170 = arith.constant 5.000000e-01 : f32
    %500 = vector.broadcast %cst_170 : f32 to vector<16x128xf32>
    %501 = arith.mulf %500, %499 : vector<16x128xf32>
    %502 = math.tanh %501 : vector<16x128xf32>
    %cst_171 = arith.constant 5.000000e-01 : f32
    %503 = vector.broadcast %cst_171 : f32 to vector<16x128xf32>
    %504 = arith.mulf %503, %502 : vector<16x128xf32>
    %cst_172 = arith.constant 5.000000e-01 : f32
    %505 = vector.broadcast %cst_172 : f32 to vector<16x128xf32>
    %506 = arith.addf %504, %505 : vector<16x128xf32>
    %507 = vector.extract_strided_slice %458 {offsets = [0, 256], sizes = [16, 128], strides = [1, 1]} : vector<16x512xf32> to vector<16x128xf32>
    %508 = math.tanh %507 : vector<16x128xf32>
    %509 = vector.extract_strided_slice %458 {offsets = [0, 384], sizes = [16, 128], strides = [1, 1]} : vector<16x512xf32> to vector<16x128xf32>
    %cst_173 = arith.constant 5.000000e-01 : f32
    %510 = vector.broadcast %cst_173 : f32 to vector<16x128xf32>
    %511 = arith.mulf %510, %509 : vector<16x128xf32>
    %512 = math.tanh %511 : vector<16x128xf32>
    %cst_174 = arith.constant 5.000000e-01 : f32
    %513 = vector.broadcast %cst_174 : f32 to vector<16x128xf32>
    %514 = arith.mulf %513, %512 : vector<16x128xf32>
    %cst_175 = arith.constant 5.000000e-01 : f32
    %515 = vector.broadcast %cst_175 : f32 to vector<16x128xf32>
    %516 = arith.addf %514, %515 : vector<16x128xf32>
    %517 = arith.mulf %506, %437 : vector<16x128xf32>
    %518 = arith.mulf %498, %508 : vector<16x128xf32>
    %519 = arith.addf %517, %518 : vector<16x128xf32>
    %520 = math.tanh %519 : vector<16x128xf32>
    %521 = arith.mulf %516, %520 : vector<16x128xf32>
    %522 = arith.truncf %521 : vector<16x128xf32> to vector<16x128xbf16>
    %c5_176 = arith.constant 5 : index
    %c0_177 = arith.constant 0 : index
    %c0_178 = arith.constant 0 : index
    %523 = vector.load %arg12[%c5_176, %c0_177, %c0_178] : memref<8x16x256xbf16, #tpu.memory_space<vmem>>, vector<1x16x128xbf16>
    %524 = vector.shape_cast %523 : vector<1x16x128xbf16> to vector<16x128xbf16>
    %525 = vector.shape_cast %490 : vector<16x128xbf16> to vector<1x16x128xbf16>
    tpu.vector_store %arg12[%c5_176, %c0_177, %c0_178], %525 {strides = array<i32>} : memref<8x16x256xbf16, #tpu.memory_space<vmem>>, vector<1x16x128xbf16>,
    %c2_179 = arith.constant 2 : index
    %c0_180 = arith.constant 0 : index
    %c128_181 = arith.constant 128 : index
    %526 = vector.load %arg12[%c2_179, %c0_180, %c128_181] : memref<8x16x256xbf16, #tpu.memory_space<vmem>>, vector<1x16x128xbf16>
    %527 = vector.shape_cast %526 : vector<1x16x128xbf16> to vector<16x128xbf16>
    %528 = vector.shape_cast %522 : vector<16x128xbf16> to vector<1x16x128xbf16>
    tpu.vector_store %arg12[%c2_179, %c0_180, %c128_181], %528 {strides = array<i32>} : memref<8x16x256xbf16, #tpu.memory_space<vmem>>, vector<1x16x128xbf16>,
    %529 = vector.extract_strided_slice %33 {offsets = [96, 0], sizes = [16, 512], strides = [1, 1]} : vector<128x1024xbf16> to vector<16x512xbf16>
    %530 = vector.extract_strided_slice %33 {offsets = [16, 512], sizes = [16, 512], strides = [1, 1]} : vector<128x1024xbf16> to vector<16x512xbf16>
    %531 = tpu.concatenate %490, %34 in 1 : vector<16x128xbf16>, vector<16x128xbf16> -> vector<16x256xbf16>
    %532 = tpu.concatenate %34, %522 in 1 : vector<16x128xbf16>, vector<16x128xbf16> -> vector<16x256xbf16>
    %533 = tpu.concatenate %531, %532 in 0 : vector<16x256xbf16>, vector<16x256xbf16> -> vector<32x256xbf16>
    %cst_182 = arith.constant dense<0.000000e+00> : vector<32x512xf32>
    %534 = tpu.matmul %533, %28, %cst_182 {dimension_numbers = #tpu.dot_dimension_numbers<[1], [0], [0], [1], [0, 0, 1, 1], [], []>} : vector<32x256xbf16>, vector<256x512xbf16>, vector<32x512xf32> -> vector<32x512xf32>
    %535 = arith.extf %529 : vector<16x512xbf16> to vector<16x512xf32>
    %536 = vector.extract_strided_slice %534 {offsets = [0, 0], sizes = [16, 512], strides = [1, 1]} : vector<32x512xf32> to vector<16x512xf32>
    %537 = arith.addf %535, %536 : vector<16x512xf32>
    %538 = arith.extf %530 : vector<16x512xbf16> to vector<16x512xf32>
    %539 = vector.extract_strided_slice %534 {offsets = [16, 0], sizes = [16, 512], strides = [1, 1]} : vector<32x512xf32> to vector<16x512xf32>
    %540 = arith.addf %538, %539 : vector<16x512xf32>
    %541 = vector.extract_strided_slice %537 {offsets = [0, 0], sizes = [16, 128], strides = [1, 1]} : vector<16x512xf32> to vector<16x128xf32>
    %cst_183 = arith.constant 5.000000e-01 : f32
    %542 = vector.broadcast %cst_183 : f32 to vector<16x128xf32>
    %543 = arith.mulf %542, %541 : vector<16x128xf32>
    %544 = math.tanh %543 : vector<16x128xf32>
    %cst_184 = arith.constant 5.000000e-01 : f32
    %545 = vector.broadcast %cst_184 : f32 to vector<16x128xf32>
    %546 = arith.mulf %545, %544 : vector<16x128xf32>
    %cst_185 = arith.constant 5.000000e-01 : f32
    %547 = vector.broadcast %cst_185 : f32 to vector<16x128xf32>
    %548 = arith.addf %546, %547 : vector<16x128xf32>
    %549 = vector.extract_strided_slice %537 {offsets = [0, 128], sizes = [16, 128], strides = [1, 1]} : vector<16x512xf32> to vector<16x128xf32>
    %cst_186 = arith.constant 5.000000e-01 : f32
    %550 = vector.broadcast %cst_186 : f32 to vector<16x128xf32>
    %551 = arith.mulf %550, %549 : vector<16x128xf32>
    %552 = math.tanh %551 : vector<16x128xf32>
    %cst_187 = arith.constant 5.000000e-01 : f32
    %553 = vector.broadcast %cst_187 : f32 to vector<16x128xf32>
    %554 = arith.mulf %553, %552 : vector<16x128xf32>
    %cst_188 = arith.constant 5.000000e-01 : f32
    %555 = vector.broadcast %cst_188 : f32 to vector<16x128xf32>
    %556 = arith.addf %554, %555 : vector<16x128xf32>
    %557 = vector.extract_strided_slice %537 {offsets = [0, 256], sizes = [16, 128], strides = [1, 1]} : vector<16x512xf32> to vector<16x128xf32>
    %558 = math.tanh %557 : vector<16x128xf32>
    %559 = vector.extract_strided_slice %537 {offsets = [0, 384], sizes = [16, 128], strides = [1, 1]} : vector<16x512xf32> to vector<16x128xf32>
    %cst_189 = arith.constant 5.000000e-01 : f32
    %560 = vector.broadcast %cst_189 : f32 to vector<16x128xf32>
    %561 = arith.mulf %560, %559 : vector<16x128xf32>
    %562 = math.tanh %561 : vector<16x128xf32>
    %cst_190 = arith.constant 5.000000e-01 : f32
    %563 = vector.broadcast %cst_190 : f32 to vector<16x128xf32>
    %564 = arith.mulf %563, %562 : vector<16x128xf32>
    %cst_191 = arith.constant 5.000000e-01 : f32
    %565 = vector.broadcast %cst_191 : f32 to vector<16x128xf32>
    %566 = arith.addf %564, %565 : vector<16x128xf32>
    %567 = arith.mulf %556, %487 : vector<16x128xf32>
    %568 = arith.mulf %548, %558 : vector<16x128xf32>
    %569 = arith.addf %567, %568 : vector<16x128xf32>
    %570 = math.tanh %569 : vector<16x128xf32>
    %571 = arith.mulf %566, %570 : vector<16x128xf32>
    %572 = arith.truncf %571 : vector<16x128xf32> to vector<16x128xbf16>
    %573 = vector.extract_strided_slice %540 {offsets = [0, 0], sizes = [16, 128], strides = [1, 1]} : vector<16x512xf32> to vector<16x128xf32>
    %cst_192 = arith.constant 5.000000e-01 : f32
    %574 = vector.broadcast %cst_192 : f32 to vector<16x128xf32>
    %575 = arith.mulf %574, %573 : vector<16x128xf32>
    %576 = math.tanh %575 : vector<16x128xf32>
    %cst_193 = arith.constant 5.000000e-01 : f32
    %577 = vector.broadcast %cst_193 : f32 to vector<16x128xf32>
    %578 = arith.mulf %577, %576 : vector<16x128xf32>
    %cst_194 = arith.constant 5.000000e-01 : f32
    %579 = vector.broadcast %cst_194 : f32 to vector<16x128xf32>
    %580 = arith.addf %578, %579 : vector<16x128xf32>
    %581 = vector.extract_strided_slice %540 {offsets = [0, 128], sizes = [16, 128], strides = [1, 1]} : vector<16x512xf32> to vector<16x128xf32>
    %cst_195 = arith.constant 5.000000e-01 : f32
    %582 = vector.broadcast %cst_195 : f32 to vector<16x128xf32>
    %583 = arith.mulf %582, %581 : vector<16x128xf32>
    %584 = math.tanh %583 : vector<16x128xf32>
    %cst_196 = arith.constant 5.000000e-01 : f32
    %585 = vector.broadcast %cst_196 : f32 to vector<16x128xf32>
    %586 = arith.mulf %585, %584 : vector<16x128xf32>
    %cst_197 = arith.constant 5.000000e-01 : f32
    %587 = vector.broadcast %cst_197 : f32 to vector<16x128xf32>
    %588 = arith.addf %586, %587 : vector<16x128xf32>
    %589 = vector.extract_strided_slice %540 {offsets = [0, 256], sizes = [16, 128], strides = [1, 1]} : vector<16x512xf32> to vector<16x128xf32>
    %590 = math.tanh %589 : vector<16x128xf32>
    %591 = vector.extract_strided_slice %540 {offsets = [0, 384], sizes = [16, 128], strides = [1, 1]} : vector<16x512xf32> to vector<16x128xf32>
    %cst_198 = arith.constant 5.000000e-01 : f32
    %592 = vector.broadcast %cst_198 : f32 to vector<16x128xf32>
    %593 = arith.mulf %592, %591 : vector<16x128xf32>
    %594 = math.tanh %593 : vector<16x128xf32>
    %cst_199 = arith.constant 5.000000e-01 : f32
    %595 = vector.broadcast %cst_199 : f32 to vector<16x128xf32>
    %596 = arith.mulf %595, %594 : vector<16x128xf32>
    %cst_200 = arith.constant 5.000000e-01 : f32
    %597 = vector.broadcast %cst_200 : f32 to vector<16x128xf32>
    %598 = arith.addf %596, %597 : vector<16x128xf32>
    %599 = arith.mulf %588, %519 : vector<16x128xf32>
    %600 = arith.mulf %580, %590 : vector<16x128xf32>
    %601 = arith.addf %599, %600 : vector<16x128xf32>
    %602 = math.tanh %601 : vector<16x128xf32>
    %603 = arith.mulf %598, %602 : vector<16x128xf32>
    %604 = arith.truncf %603 : vector<16x128xf32> to vector<16x128xbf16>
    %c6_201 = arith.constant 6 : index
    %c0_202 = arith.constant 0 : index
    %c0_203 = arith.constant 0 : index
    %605 = vector.load %arg12[%c6_201, %c0_202, %c0_203] : memref<8x16x256xbf16, #tpu.memory_space<vmem>>, vector<1x16x128xbf16>
    %606 = vector.shape_cast %605 : vector<1x16x128xbf16> to vector<16x128xbf16>
    %607 = vector.shape_cast %572 : vector<16x128xbf16> to vector<1x16x128xbf16>
    tpu.vector_store %arg12[%c6_201, %c0_202, %c0_203], %607 {strides = array<i32>} : memref<8x16x256xbf16, #tpu.memory_space<vmem>>, vector<1x16x128xbf16>,
    %c1_204 = arith.constant 1 : index
    %c0_205 = arith.constant 0 : index
    %c128_206 = arith.constant 128 : index
    %608 = vector.load %arg12[%c1_204, %c0_205, %c128_206] : memref<8x16x256xbf16, #tpu.memory_space<vmem>>, vector<1x16x128xbf16>
    %609 = vector.shape_cast %608 : vector<1x16x128xbf16> to vector<16x128xbf16>
    %610 = vector.shape_cast %604 : vector<16x128xbf16> to vector<1x16x128xbf16>
    tpu.vector_store %arg12[%c1_204, %c0_205, %c128_206], %610 {strides = array<i32>} : memref<8x16x256xbf16, #tpu.memory_space<vmem>>, vector<1x16x128xbf16>,
    %611 = vector.extract_strided_slice %33 {offsets = [112, 0], sizes = [16, 512], strides = [1, 1]} : vector<128x1024xbf16> to vector<16x512xbf16>
    %612 = vector.extract_strided_slice %33 {offsets = [0, 512], sizes = [16, 512], strides = [1, 1]} : vector<128x1024xbf16> to vector<16x512xbf16>
    %613 = tpu.concatenate %572, %34 in 1 : vector<16x128xbf16>, vector<16x128xbf16> -> vector<16x256xbf16>
    %614 = tpu.concatenate %34, %604 in 1 : vector<16x128xbf16>, vector<16x128xbf16> -> vector<16x256xbf16>
    %615 = tpu.concatenate %613, %614 in 0 : vector<16x256xbf16>, vector<16x256xbf16> -> vector<32x256xbf16>
    %cst_207 = arith.constant dense<0.000000e+00> : vector<32x512xf32>
    %616 = tpu.matmul %615, %28, %cst_207 {dimension_numbers = #tpu.dot_dimension_numbers<[1], [0], [0], [1], [0, 0, 1, 1], [], []>} : vector<32x256xbf16>, vector<256x512xbf16>, vector<32x512xf32> -> vector<32x512xf32>
    %617 = arith.extf %611 : vector<16x512xbf16> to vector<16x512xf32>
    %618 = vector.extract_strided_slice %616 {offsets = [0, 0], sizes = [16, 512], strides = [1, 1]} : vector<32x512xf32> to vector<16x512xf32>
    %619 = arith.addf %617, %618 : vector<16x512xf32>
    %620 = arith.extf %612 : vector<16x512xbf16> to vector<16x512xf32>
    %621 = vector.extract_strided_slice %616 {offsets = [16, 0], sizes = [16, 512], strides = [1, 1]} : vector<32x512xf32> to vector<16x512xf32>
    %622 = arith.addf %620, %621 : vector<16x512xf32>
    %623 = vector.extract_strided_slice %619 {offsets = [0, 0], sizes = [16, 128], strides = [1, 1]} : vector<16x512xf32> to vector<16x128xf32>
    %cst_208 = arith.constant 5.000000e-01 : f32
    %624 = vector.broadcast %cst_208 : f32 to vector<16x128xf32>
    %625 = arith.mulf %624, %623 : vector<16x128xf32>
    %626 = math.tanh %625 : vector<16x128xf32>
    %cst_209 = arith.constant 5.000000e-01 : f32
    %627 = vector.broadcast %cst_209 : f32 to vector<16x128xf32>
    %628 = arith.mulf %627, %626 : vector<16x128xf32>
    %cst_210 = arith.constant 5.000000e-01 : f32
    %629 = vector.broadcast %cst_210 : f32 to vector<16x128xf32>
    %630 = arith.addf %628, %629 : vector<16x128xf32>
    %631 = vector.extract_strided_slice %619 {offsets = [0, 128], sizes = [16, 128], strides = [1, 1]} : vector<16x512xf32> to vector<16x128xf32>
    %cst_211 = arith.constant 5.000000e-01 : f32
    %632 = vector.broadcast %cst_211 : f32 to vector<16x128xf32>
    %633 = arith.mulf %632, %631 : vector<16x128xf32>
    %634 = math.tanh %633 : vector<16x128xf32>
    %cst_212 = arith.constant 5.000000e-01 : f32
    %635 = vector.broadcast %cst_212 : f32 to vector<16x128xf32>
    %636 = arith.mulf %635, %634 : vector<16x128xf32>
    %cst_213 = arith.constant 5.000000e-01 : f32
    %637 = vector.broadcast %cst_213 : f32 to vector<16x128xf32>
    %638 = arith.addf %636, %637 : vector<16x128xf32>
    %639 = vector.extract_strided_slice %619 {offsets = [0, 256], sizes = [16, 128], strides = [1, 1]} : vector<16x512xf32> to vector<16x128xf32>
    %640 = math.tanh %639 : vector<16x128xf32>
    %641 = vector.extract_strided_slice %619 {offsets = [0, 384], sizes = [16, 128], strides = [1, 1]} : vector<16x512xf32> to vector<16x128xf32>
    %cst_214 = arith.constant 5.000000e-01 : f32
    %642 = vector.broadcast %cst_214 : f32 to vector<16x128xf32>
    %643 = arith.mulf %642, %641 : vector<16x128xf32>
    %644 = math.tanh %643 : vector<16x128xf32>
    %cst_215 = arith.constant 5.000000e-01 : f32
    %645 = vector.broadcast %cst_215 : f32 to vector<16x128xf32>
    %646 = arith.mulf %645, %644 : vector<16x128xf32>
    %cst_216 = arith.constant 5.000000e-01 : f32
    %647 = vector.broadcast %cst_216 : f32 to vector<16x128xf32>
    %648 = arith.addf %646, %647 : vector<16x128xf32>
    %649 = arith.mulf %638, %569 : vector<16x128xf32>
    %650 = arith.mulf %630, %640 : vector<16x128xf32>
    %651 = arith.addf %649, %650 : vector<16x128xf32>
    %652 = math.tanh %651 : vector<16x128xf32>
    %653 = arith.mulf %648, %652 : vector<16x128xf32>
    %654 = arith.truncf %653 : vector<16x128xf32> to vector<16x128xbf16>
    %655 = vector.extract_strided_slice %622 {offsets = [0, 0], sizes = [16, 128], strides = [1, 1]} : vector<16x512xf32> to vector<16x128xf32>
    %cst_217 = arith.constant 5.000000e-01 : f32
    %656 = vector.broadcast %cst_217 : f32 to vector<16x128xf32>
    %657 = arith.mulf %656, %655 : vector<16x128xf32>
    %658 = math.tanh %657 : vector<16x128xf32>
    %cst_218 = arith.constant 5.000000e-01 : f32
    %659 = vector.broadcast %cst_218 : f32 to vector<16x128xf32>
    %660 = arith.mulf %659, %658 : vector<16x128xf32>
    %cst_219 = arith.constant 5.000000e-01 : f32
    %661 = vector.broadcast %cst_219 : f32 to vector<16x128xf32>
    %662 = arith.addf %660, %661 : vector<16x128xf32>
    %663 = vector.extract_strided_slice %622 {offsets = [0, 128], sizes = [16, 128], strides = [1, 1]} : vector<16x512xf32> to vector<16x128xf32>
    %cst_220 = arith.constant 5.000000e-01 : f32
    %664 = vector.broadcast %cst_220 : f32 to vector<16x128xf32>
    %665 = arith.mulf %664, %663 : vector<16x128xf32>
    %666 = math.tanh %665 : vector<16x128xf32>
    %cst_221 = arith.constant 5.000000e-01 : f32
    %667 = vector.broadcast %cst_221 : f32 to vector<16x128xf32>
    %668 = arith.mulf %667, %666 : vector<16x128xf32>
    %cst_222 = arith.constant 5.000000e-01 : f32
    %669 = vector.broadcast %cst_222 : f32 to vector<16x128xf32>
    %670 = arith.addf %668, %669 : vector<16x128xf32>
    %671 = vector.extract_strided_slice %622 {offsets = [0, 256], sizes = [16, 128], strides = [1, 1]} : vector<16x512xf32> to vector<16x128xf32>
    %672 = math.tanh %671 : vector<16x128xf32>
    %673 = vector.extract_strided_slice %622 {offsets = [0, 384], sizes = [16, 128], strides = [1, 1]} : vector<16x512xf32> to vector<16x128xf32>
    %cst_223 = arith.constant 5.000000e-01 : f32
    %674 = vector.broadcast %cst_223 : f32 to vector<16x128xf32>
    %675 = arith.mulf %674, %673 : vector<16x128xf32>
    %676 = math.tanh %675 : vector<16x128xf32>
    %cst_224 = arith.constant 5.000000e-01 : f32
    %677 = vector.broadcast %cst_224 : f32 to vector<16x128xf32>
    %678 = arith.mulf %677, %676 : vector<16x128xf32>
    %cst_225 = arith.constant 5.000000e-01 : f32
    %679 = vector.broadcast %cst_225 : f32 to vector<16x128xf32>
    %680 = arith.addf %678, %679 : vector<16x128xf32>
    %681 = arith.mulf %670, %601 : vector<16x128xf32>
    %682 = arith.mulf %662, %672 : vector<16x128xf32>
    %683 = arith.addf %681, %682 : vector<16x128xf32>
    %684 = math.tanh %683 : vector<16x128xf32>
    %685 = arith.mulf %680, %684 : vector<16x128xf32>
    %686 = arith.truncf %685 : vector<16x128xf32> to vector<16x128xbf16>
    %c7_226 = arith.constant 7 : index
    %c0_227 = arith.constant 0 : index
    %c0_228 = arith.constant 0 : index
    %687 = vector.load %arg12[%c7_226, %c0_227, %c0_228] : memref<8x16x256xbf16, #tpu.memory_space<vmem>>, vector<1x16x128xbf16>
    %688 = vector.shape_cast %687 : vector<1x16x128xbf16> to vector<16x128xbf16>
    %689 = vector.shape_cast %654 : vector<16x128xbf16> to vector<1x16x128xbf16>
    tpu.vector_store %arg12[%c7_226, %c0_227, %c0_228], %689 {strides = array<i32>} : memref<8x16x256xbf16, #tpu.memory_space<vmem>>, vector<1x16x128xbf16>,
    %c0_229 = arith.constant 0 : index
    %c0_230 = arith.constant 0 : index
    %c128_231 = arith.constant 128 : index
    %690 = vector.load %arg12[%c0_229, %c0_230, %c128_231] : memref<8x16x256xbf16, #tpu.memory_space<vmem>>, vector<1x16x128xbf16>
    %691 = vector.shape_cast %690 : vector<1x16x128xbf16> to vector<16x128xbf16>
    %692 = vector.shape_cast %686 : vector<16x128xbf16> to vector<1x16x128xbf16>
    tpu.vector_store %arg12[%c0_229, %c0_230, %c128_231], %692 {strides = array<i32>} : memref<8x16x256xbf16, #tpu.memory_space<vmem>>, vector<1x16x128xbf16>,
    %c1_i32_232 = arith.constant 1 : i32
    %c1_i32_233 = arith.constant 1 : i32
    %c0_i32_234 = arith.constant 0 : i32
    %c0_i32_235 = arith.constant 0 : i32
    %c0_i32_236 = arith.constant 0 : i32
    %693 = tpu.memref_slice %arg13[%c1_i32_232, %c0_i32_235, %c0_i32_236] : memref<2x256x1024xbf16, #tpu.memory_space<vmem>> -> memref<1x256x1024xbf16, #tpu.memory_space<vmem>>
    %694 = tpu.memref_squeeze %693 : memref<1x256x1024xbf16, #tpu.memory_space<vmem>> -> memref<256x1024xbf16, #tpu.memory_space<vmem>>
    %695 = tpu.memref_slice %arg15[%c1_i32_233, %c0_i32_234] : memref<2x2x!tpu.dma_semaphore, #tpu.memory_space<semaphore_mem>> -> memref<1x1x!tpu.dma_semaphore, #tpu.memory_space<semaphore_mem>>
    %696 = tpu.memref_squeeze %695 : memref<1x1x!tpu.dma_semaphore, #tpu.memory_space<semaphore_mem>> -> memref<!tpu.dma_semaphore, #tpu.memory_space<semaphore_mem>>
    tpu.wait_dma2 semaphore(%696 : memref<!tpu.dma_semaphore, #tpu.memory_space<semaphore_mem>>) src(%arg4 : memref<256x1024xbf16, #tpu.memory_space<any>>) dst(%694 : memref<256x1024xbf16, #tpu.memory_space<vmem>>)
    %c1_i32_237 = arith.constant 1 : i32
    %c1_i32_238 = arith.constant 1 : i32
    %c1_i32_239 = arith.constant 1 : i32
    %c0_i32_240 = arith.constant 0 : i32
    %c0_i32_241 = arith.constant 0 : i32
    %697 = tpu.memref_slice %arg14[%c1_i32_237, %c0_i32_240, %c0_i32_241] : memref<2x256x512xbf16, #tpu.memory_space<vmem>> -> memref<1x256x512xbf16, #tpu.memory_space<vmem>>
    %698 = tpu.memref_squeeze %697 : memref<1x256x512xbf16, #tpu.memory_space<vmem>> -> memref<256x512xbf16, #tpu.memory_space<vmem>>
    %699 = tpu.memref_slice %arg15[%c1_i32_238, %c1_i32_239] : memref<2x2x!tpu.dma_semaphore, #tpu.memory_space<semaphore_mem>> -> memref<1x1x!tpu.dma_semaphore, #tpu.memory_space<semaphore_mem>>
    %700 = tpu.memref_squeeze %699 : memref<1x1x!tpu.dma_semaphore, #tpu.memory_space<semaphore_mem>> -> memref<!tpu.dma_semaphore, #tpu.memory_space<semaphore_mem>>
    tpu.wait_dma2 semaphore(%700 : memref<!tpu.dma_semaphore, #tpu.memory_space<semaphore_mem>>) src(%arg5 : memref<256x512xbf16, #tpu.memory_space<any>>) dst(%698 : memref<256x512xbf16, #tpu.memory_space<vmem>>)
    %c0_242 = arith.constant 0 : index
    %c0_243 = arith.constant 0 : index
    %c0_244 = arith.constant 0 : index
    %701 = vector.load %arg12[%c0_242, %c0_243, %c0_244] : memref<8x16x256xbf16, #tpu.memory_space<vmem>>, vector<8x16x256xbf16>
    %702 = vector.shape_cast %701 : vector<8x16x256xbf16> to vector<128x256xbf16>
    %c1_245 = arith.constant 1 : index
    %c0_246 = arith.constant 0 : index
    %c0_247 = arith.constant 0 : index
    %703 = vector.load %arg13[%c1_245, %c0_246, %c0_247] : memref<2x256x1024xbf16, #tpu.memory_space<vmem>>, vector<1x256x1024xbf16>
    %704 = vector.shape_cast %703 : vector<1x256x1024xbf16> to vector<256x1024xbf16>
    %c1_248 = arith.constant 1 : index
    %c0_249 = arith.constant 0 : index
    %c0_250 = arith.constant 0 : index
    %705 = vector.load %arg14[%c1_248, %c0_249, %c0_250] : memref<2x256x512xbf16, #tpu.memory_space<vmem>>, vector<1x256x512xbf16>
    %706 = vector.shape_cast %705 : vector<1x256x512xbf16> to vector<256x512xbf16>
    %c0_251 = arith.constant 0 : index
    %c0_252 = arith.constant 0 : index
    %707 = vector.load %arg6[%c0_251, %c0_252] : memref<1x1024xf32, #tpu.memory_space<vmem>>, vector<1x1024xf32>
    %cst_253 = arith.constant dense<0.000000e+00> : vector<128x1024xf32>
    %708 = tpu.matmul %702, %704, %cst_253 {dimension_numbers = #tpu.dot_dimension_numbers<[1], [0], [0], [1], [0, 0, 1, 1], [], []>} : vector<128x256xbf16>, vector<256x1024xbf16>, vector<128x1024xf32> -> vector<128x1024xf32>
    %709 = vector.broadcast %707 : vector<1x1024xf32> to vector<128x1024xf32>
    %710 = arith.addf %708, %709 : vector<128x1024xf32>
    %711 = arith.truncf %710 : vector<128x1024xf32> to vector<128x1024xbf16>
    %cst_254 = arith.constant 0.000000e+00 : bf16
    %712 = vector.broadcast %cst_254 : bf16 to vector<16x128xbf16>
    %cst_255 = arith.constant 0.000000e+00 : bf16
    %713 = vector.broadcast %cst_255 : bf16 to vector<16x128xbf16>
    %cst_256 = arith.constant 0.000000e+00 : f32
    %714 = vector.broadcast %cst_256 : f32 to vector<16x128xf32>
    %715 = vector.extract_strided_slice %711 {offsets = [0, 0], sizes = [16, 512], strides = [1, 1]} : vector<128x1024xbf16> to vector<16x512xbf16>
    %716 = vector.extract_strided_slice %711 {offsets = [112, 512], sizes = [16, 512], strides = [1, 1]} : vector<128x1024xbf16> to vector<16x512xbf16>
    %717 = tpu.concatenate %713, %712 in 1 : vector<16x128xbf16>, vector<16x128xbf16> -> vector<16x256xbf16>
    %718 = tpu.concatenate %712, %713 in 1 : vector<16x128xbf16>, vector<16x128xbf16> -> vector<16x256xbf16>
    %719 = tpu.concatenate %717, %718 in 0 : vector<16x256xbf16>, vector<16x256xbf16> -> vector<32x256xbf16>
    %cst_257 = arith.constant dense<0.000000e+00> : vector<32x512xf32>
    %720 = tpu.matmul %719, %706, %cst_257 {dimension_numbers = #tpu.dot_dimension_numbers<[1], [0], [0], [1], [0, 0, 1, 1], [], []>} : vector<32x256xbf16>, vector<256x512xbf16>, vector<32x512xf32> -> vector<32x512xf32>
    %721 = arith.extf %715 : vector<16x512xbf16> to vector<16x512xf32>
    %722 = vector.extract_strided_slice %720 {offsets = [0, 0], sizes = [16, 512], strides = [1, 1]} : vector<32x512xf32> to vector<16x512xf32>
    %723 = arith.addf %721, %722 : vector<16x512xf32>
    %724 = arith.extf %716 : vector<16x512xbf16> to vector<16x512xf32>
    %725 = vector.extract_strided_slice %720 {offsets = [16, 0], sizes = [16, 512], strides = [1, 1]} : vector<32x512xf32> to vector<16x512xf32>
    %726 = arith.addf %724, %725 : vector<16x512xf32>
    %727 = vector.extract_strided_slice %723 {offsets = [0, 0], sizes = [16, 128], strides = [1, 1]} : vector<16x512xf32> to vector<16x128xf32>
    %cst_258 = arith.constant 5.000000e-01 : f32
    %728 = vector.broadcast %cst_258 : f32 to vector<16x128xf32>
    %729 = arith.mulf %728, %727 : vector<16x128xf32>
    %730 = math.tanh %729 : vector<16x128xf32>
    %cst_259 = arith.constant 5.000000e-01 : f32
    %731 = vector.broadcast %cst_259 : f32 to vector<16x128xf32>
    %732 = arith.mulf %731, %730 : vector<16x128xf32>
    %cst_260 = arith.constant 5.000000e-01 : f32
    %733 = vector.broadcast %cst_260 : f32 to vector<16x128xf32>
    %734 = arith.addf %732, %733 : vector<16x128xf32>
    %735 = vector.extract_strided_slice %723 {offsets = [0, 128], sizes = [16, 128], strides = [1, 1]} : vector<16x512xf32> to vector<16x128xf32>
    %cst_261 = arith.constant 5.000000e-01 : f32
    %736 = vector.broadcast %cst_261 : f32 to vector<16x128xf32>
    %737 = arith.mulf %736, %735 : vector<16x128xf32>
    %738 = math.tanh %737 : vector<16x128xf32>
    %cst_262 = arith.constant 5.000000e-01 : f32
    %739 = vector.broadcast %cst_262 : f32 to vector<16x128xf32>
    %740 = arith.mulf %739, %738 : vector<16x128xf32>
    %cst_263 = arith.constant 5.000000e-01 : f32
    %741 = vector.broadcast %cst_263 : f32 to vector<16x128xf32>
    %742 = arith.addf %740, %741 : vector<16x128xf32>
    %743 = vector.extract_strided_slice %723 {offsets = [0, 256], sizes = [16, 128], strides = [1, 1]} : vector<16x512xf32> to vector<16x128xf32>
    %744 = math.tanh %743 : vector<16x128xf32>
    %745 = vector.extract_strided_slice %723 {offsets = [0, 384], sizes = [16, 128], strides = [1, 1]} : vector<16x512xf32> to vector<16x128xf32>
    %cst_264 = arith.constant 5.000000e-01 : f32
    %746 = vector.broadcast %cst_264 : f32 to vector<16x128xf32>
    %747 = arith.mulf %746, %745 : vector<16x128xf32>
    %748 = math.tanh %747 : vector<16x128xf32>
    %cst_265 = arith.constant 5.000000e-01 : f32
    %749 = vector.broadcast %cst_265 : f32 to vector<16x128xf32>
    %750 = arith.mulf %749, %748 : vector<16x128xf32>
    %cst_266 = arith.constant 5.000000e-01 : f32
    %751 = vector.broadcast %cst_266 : f32 to vector<16x128xf32>
    %752 = arith.addf %750, %751 : vector<16x128xf32>
    %753 = arith.mulf %742, %714 : vector<16x128xf32>
    %754 = arith.mulf %734, %744 : vector<16x128xf32>
    %755 = arith.addf %753, %754 : vector<16x128xf32>
    %756 = math.tanh %755 : vector<16x128xf32>
    %757 = arith.mulf %752, %756 : vector<16x128xf32>
    %758 = arith.truncf %757 : vector<16x128xf32> to vector<16x128xbf16>
    %759 = vector.extract_strided_slice %726 {offsets = [0, 0], sizes = [16, 128], strides = [1, 1]} : vector<16x512xf32> to vector<16x128xf32>
    %cst_267 = arith.constant 5.000000e-01 : f32
    %760 = vector.broadcast %cst_267 : f32 to vector<16x128xf32>
    %761 = arith.mulf %760, %759 : vector<16x128xf32>
    %762 = math.tanh %761 : vector<16x128xf32>
    %cst_268 = arith.constant 5.000000e-01 : f32
    %763 = vector.broadcast %cst_268 : f32 to vector<16x128xf32>
    %764 = arith.mulf %763, %762 : vector<16x128xf32>
    %cst_269 = arith.constant 5.000000e-01 : f32
    %765 = vector.broadcast %cst_269 : f32 to vector<16x128xf32>
    %766 = arith.addf %764, %765 : vector<16x128xf32>
    %767 = vector.extract_strided_slice %726 {offsets = [0, 128], sizes = [16, 128], strides = [1, 1]} : vector<16x512xf32> to vector<16x128xf32>
    %cst_270 = arith.constant 5.000000e-01 : f32
    %768 = vector.broadcast %cst_270 : f32 to vector<16x128xf32>
    %769 = arith.mulf %768, %767 : vector<16x128xf32>
    %770 = math.tanh %769 : vector<16x128xf32>
    %cst_271 = arith.constant 5.000000e-01 : f32
    %771 = vector.broadcast %cst_271 : f32 to vector<16x128xf32>
    %772 = arith.mulf %771, %770 : vector<16x128xf32>
    %cst_272 = arith.constant 5.000000e-01 : f32
    %773 = vector.broadcast %cst_272 : f32 to vector<16x128xf32>
    %774 = arith.addf %772, %773 : vector<16x128xf32>
    %775 = vector.extract_strided_slice %726 {offsets = [0, 256], sizes = [16, 128], strides = [1, 1]} : vector<16x512xf32> to vector<16x128xf32>
    %776 = math.tanh %775 : vector<16x128xf32>
    %777 = vector.extract_strided_slice %726 {offsets = [0, 384], sizes = [16, 128], strides = [1, 1]} : vector<16x512xf32> to vector<16x128xf32>
    %cst_273 = arith.constant 5.000000e-01 : f32
    %778 = vector.broadcast %cst_273 : f32 to vector<16x128xf32>
    %779 = arith.mulf %778, %777 : vector<16x128xf32>
    %780 = math.tanh %779 : vector<16x128xf32>
    %cst_274 = arith.constant 5.000000e-01 : f32
    %781 = vector.broadcast %cst_274 : f32 to vector<16x128xf32>
    %782 = arith.mulf %781, %780 : vector<16x128xf32>
    %cst_275 = arith.constant 5.000000e-01 : f32
    %783 = vector.broadcast %cst_275 : f32 to vector<16x128xf32>
    %784 = arith.addf %782, %783 : vector<16x128xf32>
    %785 = arith.mulf %774, %714 : vector<16x128xf32>
    %786 = arith.mulf %766, %776 : vector<16x128xf32>
    %787 = arith.addf %785, %786 : vector<16x128xf32>
    %788 = math.tanh %787 : vector<16x128xf32>
    %789 = arith.mulf %784, %788 : vector<16x128xf32>
    %790 = arith.truncf %789 : vector<16x128xf32> to vector<16x128xbf16>
    %c0_276 = arith.constant 0 : index
    %c0_277 = arith.constant 0 : index
    %c0_278 = arith.constant 0 : index
    %791 = vector.load %arg12[%c0_276, %c0_277, %c0_278] : memref<8x16x256xbf16, #tpu.memory_space<vmem>>, vector<1x16x128xbf16>
    %792 = vector.shape_cast %791 : vector<1x16x128xbf16> to vector<16x128xbf16>
    %793 = vector.shape_cast %758 : vector<16x128xbf16> to vector<1x16x128xbf16>
    tpu.vector_store %arg12[%c0_276, %c0_277, %c0_278], %793 {strides = array<i32>} : memref<8x16x256xbf16, #tpu.memory_space<vmem>>, vector<1x16x128xbf16>,
    %c7_279 = arith.constant 7 : index
    %c0_280 = arith.constant 0 : index
    %c128_281 = arith.constant 128 : index
    %794 = vector.load %arg12[%c7_279, %c0_280, %c128_281] : memref<8x16x256xbf16, #tpu.memory_space<vmem>>, vector<1x16x128xbf16>
    %795 = vector.shape_cast %794 : vector<1x16x128xbf16> to vector<16x128xbf16>
    %796 = vector.shape_cast %790 : vector<16x128xbf16> to vector<1x16x128xbf16>
    tpu.vector_store %arg12[%c7_279, %c0_280, %c128_281], %796 {strides = array<i32>} : memref<8x16x256xbf16, #tpu.memory_space<vmem>>, vector<1x16x128xbf16>,
    %797 = vector.extract_strided_slice %711 {offsets = [16, 0], sizes = [16, 512], strides = [1, 1]} : vector<128x1024xbf16> to vector<16x512xbf16>
    %798 = vector.extract_strided_slice %711 {offsets = [96, 512], sizes = [16, 512], strides = [1, 1]} : vector<128x1024xbf16> to vector<16x512xbf16>
    %799 = tpu.concatenate %758, %712 in 1 : vector<16x128xbf16>, vector<16x128xbf16> -> vector<16x256xbf16>
    %800 = tpu.concatenate %712, %790 in 1 : vector<16x128xbf16>, vector<16x128xbf16> -> vector<16x256xbf16>
    %801 = tpu.concatenate %799, %800 in 0 : vector<16x256xbf16>, vector<16x256xbf16> -> vector<32x256xbf16>
    %cst_282 = arith.constant dense<0.000000e+00> : vector<32x512xf32>
    %802 = tpu.matmul %801, %706, %cst_282 {dimension_numbers = #tpu.dot_dimension_numbers<[1], [0], [0], [1], [0, 0, 1, 1], [], []>} : vector<32x256xbf16>, vector<256x512xbf16>, vector<32x512xf32> -> vector<32x512xf32>
    %803 = arith.extf %797 : vector<16x512xbf16> to vector<16x512xf32>
    %804 = vector.extract_strided_slice %802 {offsets = [0, 0], sizes = [16, 512], strides = [1, 1]} : vector<32x512xf32> to vector<16x512xf32>
    %805 = arith.addf %803, %804 : vector<16x512xf32>
    %806 = arith.extf %798 : vector<16x512xbf16> to vector<16x512xf32>
    %807 = vector.extract_strided_slice %802 {offsets = [16, 0], sizes = [16, 512], strides = [1, 1]} : vector<32x512xf32> to vector<16x512xf32>
    %808 = arith.addf %806, %807 : vector<16x512xf32>
    %809 = vector.extract_strided_slice %805 {offsets = [0, 0], sizes = [16, 128], strides = [1, 1]} : vector<16x512xf32> to vector<16x128xf32>
    %cst_283 = arith.constant 5.000000e-01 : f32
    %810 = vector.broadcast %cst_283 : f32 to vector<16x128xf32>
    %811 = arith.mulf %810, %809 : vector<16x128xf32>
    %812 = math.tanh %811 : vector<16x128xf32>
    %cst_284 = arith.constant 5.000000e-01 : f32
    %813 = vector.broadcast %cst_284 : f32 to vector<16x128xf32>
    %814 = arith.mulf %813, %812 : vector<16x128xf32>
    %cst_285 = arith.constant 5.000000e-01 : f32
    %815 = vector.broadcast %cst_285 : f32 to vector<16x128xf32>
    %816 = arith.addf %814, %815 : vector<16x128xf32>
    %817 = vector.extract_strided_slice %805 {offsets = [0, 128], sizes = [16, 128], strides = [1, 1]} : vector<16x512xf32> to vector<16x128xf32>
    %cst_286 = arith.constant 5.000000e-01 : f32
    %818 = vector.broadcast %cst_286 : f32 to vector<16x128xf32>
    %819 = arith.mulf %818, %817 : vector<16x128xf32>
    %820 = math.tanh %819 : vector<16x128xf32>
    %cst_287 = arith.constant 5.000000e-01 : f32
    %821 = vector.broadcast %cst_287 : f32 to vector<16x128xf32>
    %822 = arith.mulf %821, %820 : vector<16x128xf32>
    %cst_288 = arith.constant 5.000000e-01 : f32
    %823 = vector.broadcast %cst_288 : f32 to vector<16x128xf32>
    %824 = arith.addf %822, %823 : vector<16x128xf32>
    %825 = vector.extract_strided_slice %805 {offsets = [0, 256], sizes = [16, 128], strides = [1, 1]} : vector<16x512xf32> to vector<16x128xf32>
    %826 = math.tanh %825 : vector<16x128xf32>
    %827 = vector.extract_strided_slice %805 {offsets = [0, 384], sizes = [16, 128], strides = [1, 1]} : vector<16x512xf32> to vector<16x128xf32>
    %cst_289 = arith.constant 5.000000e-01 : f32
    %828 = vector.broadcast %cst_289 : f32 to vector<16x128xf32>
    %829 = arith.mulf %828, %827 : vector<16x128xf32>
    %830 = math.tanh %829 : vector<16x128xf32>
    %cst_290 = arith.constant 5.000000e-01 : f32
    %831 = vector.broadcast %cst_290 : f32 to vector<16x128xf32>
    %832 = arith.mulf %831, %830 : vector<16x128xf32>
    %cst_291 = arith.constant 5.000000e-01 : f32
    %833 = vector.broadcast %cst_291 : f32 to vector<16x128xf32>
    %834 = arith.addf %832, %833 : vector<16x128xf32>
    %835 = arith.mulf %824, %755 : vector<16x128xf32>
    %836 = arith.mulf %816, %826 : vector<16x128xf32>
    %837 = arith.addf %835, %836 : vector<16x128xf32>
    %838 = math.tanh %837 : vector<16x128xf32>
    %839 = arith.mulf %834, %838 : vector<16x128xf32>
    %840 = arith.truncf %839 : vector<16x128xf32> to vector<16x128xbf16>
    %841 = vector.extract_strided_slice %808 {offsets = [0, 0], sizes = [16, 128], strides = [1, 1]} : vector<16x512xf32> to vector<16x128xf32>
    %cst_292 = arith.constant 5.000000e-01 : f32
    %842 = vector.broadcast %cst_292 : f32 to vector<16x128xf32>
    %843 = arith.mulf %842, %841 : vector<16x128xf32>
    %844 = math.tanh %843 : vector<16x128xf32>
    %cst_293 = arith.constant 5.000000e-01 : f32
    %845 = vector.broadcast %cst_293 : f32 to vector<16x128xf32>
    %846 = arith.mulf %845, %844 : vector<16x128xf32>
    %cst_294 = arith.constant 5.000000e-01 : f32
    %847 = vector.broadcast %cst_294 : f32 to vector<16x128xf32>
    %848 = arith.addf %846, %847 : vector<16x128xf32>
    %849 = vector.extract_strided_slice %808 {offsets = [0, 128], sizes = [16, 128], strides = [1, 1]} : vector<16x512xf32> to vector<16x128xf32>
    %cst_295 = arith.constant 5.000000e-01 : f32
    %850 = vector.broadcast %cst_295 : f32 to vector<16x128xf32>
    %851 = arith.mulf %850, %849 : vector<16x128xf32>
    %852 = math.tanh %851 : vector<16x128xf32>
    %cst_296 = arith.constant 5.000000e-01 : f32
    %853 = vector.broadcast %cst_296 : f32 to vector<16x128xf32>
    %854 = arith.mulf %853, %852 : vector<16x128xf32>
    %cst_297 = arith.constant 5.000000e-01 : f32
    %855 = vector.broadcast %cst_297 : f32 to vector<16x128xf32>
    %856 = arith.addf %854, %855 : vector<16x128xf32>
    %857 = vector.extract_strided_slice %808 {offsets = [0, 256], sizes = [16, 128], strides = [1, 1]} : vector<16x512xf32> to vector<16x128xf32>
    %858 = math.tanh %857 : vector<16x128xf32>
    %859 = vector.extract_strided_slice %808 {offsets = [0, 384], sizes = [16, 128], strides = [1, 1]} : vector<16x512xf32> to vector<16x128xf32>
    %cst_298 = arith.constant 5.000000e-01 : f32
    %860 = vector.broadcast %cst_298 : f32 to vector<16x128xf32>
    %861 = arith.mulf %860, %859 : vector<16x128xf32>
    %862 = math.tanh %861 : vector<16x128xf32>
    %cst_299 = arith.constant 5.000000e-01 : f32
    %863 = vector.broadcast %cst_299 : f32 to vector<16x128xf32>
    %864 = arith.mulf %863, %862 : vector<16x128xf32>
    %cst_300 = arith.constant 5.000000e-01 : f32
    %865 = vector.broadcast %cst_300 : f32 to vector<16x128xf32>
    %866 = arith.addf %864, %865 : vector<16x128xf32>
    %867 = arith.mulf %856, %787 : vector<16x128xf32>
    %868 = arith.mulf %848, %858 : vector<16x128xf32>
    %869 = arith.addf %867, %868 : vector<16x128xf32>
    %870 = math.tanh %869 : vector<16x128xf32>
    %871 = arith.mulf %866, %870 : vector<16x128xf32>
    %872 = arith.truncf %871 : vector<16x128xf32> to vector<16x128xbf16>
    %c1_301 = arith.constant 1 : index
    %c0_302 = arith.constant 0 : index
    %c0_303 = arith.constant 0 : index
    %873 = vector.load %arg12[%c1_301, %c0_302, %c0_303] : memref<8x16x256xbf16, #tpu.memory_space<vmem>>, vector<1x16x128xbf16>
    %874 = vector.shape_cast %873 : vector<1x16x128xbf16> to vector<16x128xbf16>
    %875 = vector.shape_cast %840 : vector<16x128xbf16> to vector<1x16x128xbf16>
    tpu.vector_store %arg12[%c1_301, %c0_302, %c0_303], %875 {strides = array<i32>} : memref<8x16x256xbf16, #tpu.memory_space<vmem>>, vector<1x16x128xbf16>,
    %c6_304 = arith.constant 6 : index
    %c0_305 = arith.constant 0 : index
    %c128_306 = arith.constant 128 : index
    %876 = vector.load %arg12[%c6_304, %c0_305, %c128_306] : memref<8x16x256xbf16, #tpu.memory_space<vmem>>, vector<1x16x128xbf16>
    %877 = vector.shape_cast %876 : vector<1x16x128xbf16> to vector<16x128xbf16>
    %878 = vector.shape_cast %872 : vector<16x128xbf16> to vector<1x16x128xbf16>
    tpu.vector_store %arg12[%c6_304, %c0_305, %c128_306], %878 {strides = array<i32>} : memref<8x16x256xbf16, #tpu.memory_space<vmem>>, vector<1x16x128xbf16>,
    %879 = vector.extract_strided_slice %711 {offsets = [32, 0], sizes = [16, 512], strides = [1, 1]} : vector<128x1024xbf16> to vector<16x512xbf16>
    %880 = vector.extract_strided_slice %711 {offsets = [80, 512], sizes = [16, 512], strides = [1, 1]} : vector<128x1024xbf16> to vector<16x512xbf16>
    %881 = tpu.concatenate %840, %712 in 1 : vector<16x128xbf16>, vector<16x128xbf16> -> vector<16x256xbf16>
    %882 = tpu.concatenate %712, %872 in 1 : vector<16x128xbf16>, vector<16x128xbf16> -> vector<16x256xbf16>
    %883 = tpu.concatenate %881, %882 in 0 : vector<16x256xbf16>, vector<16x256xbf16> -> vector<32x256xbf16>
    %cst_307 = arith.constant dense<0.000000e+00> : vector<32x512xf32>
    %884 = tpu.matmul %883, %706, %cst_307 {dimension_numbers = #tpu.dot_dimension_numbers<[1], [0], [0], [1], [0, 0, 1, 1], [], []>} : vector<32x256xbf16>, vector<256x512xbf16>, vector<32x512xf32> -> vector<32x512xf32>
    %885 = arith.extf %879 : vector<16x512xbf16> to vector<16x512xf32>
    %886 = vector.extract_strided_slice %884 {offsets = [0, 0], sizes = [16, 512], strides = [1, 1]} : vector<32x512xf32> to vector<16x512xf32>
    %887 = arith.addf %885, %886 : vector<16x512xf32>
    %888 = arith.extf %880 : vector<16x512xbf16> to vector<16x512xf32>
    %889 = vector.extract_strided_slice %884 {offsets = [16, 0], sizes = [16, 512], strides = [1, 1]} : vector<32x512xf32> to vector<16x512xf32>
    %890 = arith.addf %888, %889 : vector<16x512xf32>
    %891 = vector.extract_strided_slice %887 {offsets = [0, 0], sizes = [16, 128], strides = [1, 1]} : vector<16x512xf32> to vector<16x128xf32>
    %cst_308 = arith.constant 5.000000e-01 : f32
    %892 = vector.broadcast %cst_308 : f32 to vector<16x128xf32>
    %893 = arith.mulf %892, %891 : vector<16x128xf32>
    %894 = math.tanh %893 : vector<16x128xf32>
    %cst_309 = arith.constant 5.000000e-01 : f32
    %895 = vector.broadcast %cst_309 : f32 to vector<16x128xf32>
    %896 = arith.mulf %895, %894 : vector<16x128xf32>
    %cst_310 = arith.constant 5.000000e-01 : f32
    %897 = vector.broadcast %cst_310 : f32 to vector<16x128xf32>
    %898 = arith.addf %896, %897 : vector<16x128xf32>
    %899 = vector.extract_strided_slice %887 {offsets = [0, 128], sizes = [16, 128], strides = [1, 1]} : vector<16x512xf32> to vector<16x128xf32>
    %cst_311 = arith.constant 5.000000e-01 : f32
    %900 = vector.broadcast %cst_311 : f32 to vector<16x128xf32>
    %901 = arith.mulf %900, %899 : vector<16x128xf32>
    %902 = math.tanh %901 : vector<16x128xf32>
    %cst_312 = arith.constant 5.000000e-01 : f32
    %903 = vector.broadcast %cst_312 : f32 to vector<16x128xf32>
    %904 = arith.mulf %903, %902 : vector<16x128xf32>
    %cst_313 = arith.constant 5.000000e-01 : f32
    %905 = vector.broadcast %cst_313 : f32 to vector<16x128xf32>
    %906 = arith.addf %904, %905 : vector<16x128xf32>
    %907 = vector.extract_strided_slice %887 {offsets = [0, 256], sizes = [16, 128], strides = [1, 1]} : vector<16x512xf32> to vector<16x128xf32>
    %908 = math.tanh %907 : vector<16x128xf32>
    %909 = vector.extract_strided_slice %887 {offsets = [0, 384], sizes = [16, 128], strides = [1, 1]} : vector<16x512xf32> to vector<16x128xf32>
    %cst_314 = arith.constant 5.000000e-01 : f32
    %910 = vector.broadcast %cst_314 : f32 to vector<16x128xf32>
    %911 = arith.mulf %910, %909 : vector<16x128xf32>
    %912 = math.tanh %911 : vector<16x128xf32>
    %cst_315 = arith.constant 5.000000e-01 : f32
    %913 = vector.broadcast %cst_315 : f32 to vector<16x128xf32>
    %914 = arith.mulf %913, %912 : vector<16x128xf32>
    %cst_316 = arith.constant 5.000000e-01 : f32
    %915 = vector.broadcast %cst_316 : f32 to vector<16x128xf32>
    %916 = arith.addf %914, %915 : vector<16x128xf32>
    %917 = arith.mulf %906, %837 : vector<16x128xf32>
    %918 = arith.mulf %898, %908 : vector<16x128xf32>
    %919 = arith.addf %917, %918 : vector<16x128xf32>
    %920 = math.tanh %919 : vector<16x128xf32>
    %921 = arith.mulf %916, %920 : vector<16x128xf32>
    %922 = arith.truncf %921 : vector<16x128xf32> to vector<16x128xbf16>
    %923 = vector.extract_strided_slice %890 {offsets = [0, 0], sizes = [16, 128], strides = [1, 1]} : vector<16x512xf32> to vector<16x128xf32>
    %cst_317 = arith.constant 5.000000e-01 : f32
    %924 = vector.broadcast %cst_317 : f32 to vector<16x128xf32>
    %925 = arith.mulf %924, %923 : vector<16x128xf32>
    %926 = math.tanh %925 : vector<16x128xf32>
    %cst_318 = arith.constant 5.000000e-01 : f32
    %927 = vector.broadcast %cst_318 : f32 to vector<16x128xf32>
    %928 = arith.mulf %927, %926 : vector<16x128xf32>
    %cst_319 = arith.constant 5.000000e-01 : f32
    %929 = vector.broadcast %cst_319 : f32 to vector<16x128xf32>
    %930 = arith.addf %928, %929 : vector<16x128xf32>
    %931 = vector.extract_strided_slice %890 {offsets = [0, 128], sizes = [16, 128], strides = [1, 1]} : vector<16x512xf32> to vector<16x128xf32>
    %cst_320 = arith.constant 5.000000e-01 : f32
    %932 = vector.broadcast %cst_320 : f32 to vector<16x128xf32>
    %933 = arith.mulf %932, %931 : vector<16x128xf32>
    %934 = math.tanh %933 : vector<16x128xf32>
    %cst_321 = arith.constant 5.000000e-01 : f32
    %935 = vector.broadcast %cst_321 : f32 to vector<16x128xf32>
    %936 = arith.mulf %935, %934 : vector<16x128xf32>
    %cst_322 = arith.constant 5.000000e-01 : f32
    %937 = vector.broadcast %cst_322 : f32 to vector<16x128xf32>
    %938 = arith.addf %936, %937 : vector<16x128xf32>
    %939 = vector.extract_strided_slice %890 {offsets = [0, 256], sizes = [16, 128], strides = [1, 1]} : vector<16x512xf32> to vector<16x128xf32>
    %940 = math.tanh %939 : vector<16x128xf32>
    %941 = vector.extract_strided_slice %890 {offsets = [0, 384], sizes = [16, 128], strides = [1, 1]} : vector<16x512xf32> to vector<16x128xf32>
    %cst_323 = arith.constant 5.000000e-01 : f32
    %942 = vector.broadcast %cst_323 : f32 to vector<16x128xf32>
    %943 = arith.mulf %942, %941 : vector<16x128xf32>
    %944 = math.tanh %943 : vector<16x128xf32>
    %cst_324 = arith.constant 5.000000e-01 : f32
    %945 = vector.broadcast %cst_324 : f32 to vector<16x128xf32>
    %946 = arith.mulf %945, %944 : vector<16x128xf32>
    %cst_325 = arith.constant 5.000000e-01 : f32
    %947 = vector.broadcast %cst_325 : f32 to vector<16x128xf32>
    %948 = arith.addf %946, %947 : vector<16x128xf32>
    %949 = arith.mulf %938, %869 : vector<16x128xf32>
    %950 = arith.mulf %930, %940 : vector<16x128xf32>
    %951 = arith.addf %949, %950 : vector<16x128xf32>
    %952 = math.tanh %951 : vector<16x128xf32>
    %953 = arith.mulf %948, %952 : vector<16x128xf32>
    %954 = arith.truncf %953 : vector<16x128xf32> to vector<16x128xbf16>
    %c2_326 = arith.constant 2 : index
    %c0_327 = arith.constant 0 : index
    %c0_328 = arith.constant 0 : index
    %955 = vector.load %arg12[%c2_326, %c0_327, %c0_328] : memref<8x16x256xbf16, #tpu.memory_space<vmem>>, vector<1x16x128xbf16>
    %956 = vector.shape_cast %955 : vector<1x16x128xbf16> to vector<16x128xbf16>
    %957 = vector.shape_cast %922 : vector<16x128xbf16> to vector<1x16x128xbf16>
    tpu.vector_store %arg12[%c2_326, %c0_327, %c0_328], %957 {strides = array<i32>} : memref<8x16x256xbf16, #tpu.memory_space<vmem>>, vector<1x16x128xbf16>,
    %c5_329 = arith.constant 5 : index
    %c0_330 = arith.constant 0 : index
    %c128_331 = arith.constant 128 : index
    %958 = vector.load %arg12[%c5_329, %c0_330, %c128_331] : memref<8x16x256xbf16, #tpu.memory_space<vmem>>, vector<1x16x128xbf16>
    %959 = vector.shape_cast %958 : vector<1x16x128xbf16> to vector<16x128xbf16>
    %960 = vector.shape_cast %954 : vector<16x128xbf16> to vector<1x16x128xbf16>
    tpu.vector_store %arg12[%c5_329, %c0_330, %c128_331], %960 {strides = array<i32>} : memref<8x16x256xbf16, #tpu.memory_space<vmem>>, vector<1x16x128xbf16>,
    %961 = vector.extract_strided_slice %711 {offsets = [48, 0], sizes = [16, 512], strides = [1, 1]} : vector<128x1024xbf16> to vector<16x512xbf16>
    %962 = vector.extract_strided_slice %711 {offsets = [64, 512], sizes = [16, 512], strides = [1, 1]} : vector<128x1024xbf16> to vector<16x512xbf16>
    %963 = tpu.concatenate %922, %712 in 1 : vector<16x128xbf16>, vector<16x128xbf16> -> vector<16x256xbf16>
    %964 = tpu.concatenate %712, %954 in 1 : vector<16x128xbf16>, vector<16x128xbf16> -> vector<16x256xbf16>
    %965 = tpu.concatenate %963, %964 in 0 : vector<16x256xbf16>, vector<16x256xbf16> -> vector<32x256xbf16>
    %cst_332 = arith.constant dense<0.000000e+00> : vector<32x512xf32>
    %966 = tpu.matmul %965, %706, %cst_332 {dimension_numbers = #tpu.dot_dimension_numbers<[1], [0], [0], [1], [0, 0, 1, 1], [], []>} : vector<32x256xbf16>, vector<256x512xbf16>, vector<32x512xf32> -> vector<32x512xf32>
    %967 = arith.extf %961 : vector<16x512xbf16> to vector<16x512xf32>
    %968 = vector.extract_strided_slice %966 {offsets = [0, 0], sizes = [16, 512], strides = [1, 1]} : vector<32x512xf32> to vector<16x512xf32>
    %969 = arith.addf %967, %968 : vector<16x512xf32>
    %970 = arith.extf %962 : vector<16x512xbf16> to vector<16x512xf32>
    %971 = vector.extract_strided_slice %966 {offsets = [16, 0], sizes = [16, 512], strides = [1, 1]} : vector<32x512xf32> to vector<16x512xf32>
    %972 = arith.addf %970, %971 : vector<16x512xf32>
    %973 = vector.extract_strided_slice %969 {offsets = [0, 0], sizes = [16, 128], strides = [1, 1]} : vector<16x512xf32> to vector<16x128xf32>
    %cst_333 = arith.constant 5.000000e-01 : f32
    %974 = vector.broadcast %cst_333 : f32 to vector<16x128xf32>
    %975 = arith.mulf %974, %973 : vector<16x128xf32>
    %976 = math.tanh %975 : vector<16x128xf32>
    %cst_334 = arith.constant 5.000000e-01 : f32
    %977 = vector.broadcast %cst_334 : f32 to vector<16x128xf32>
    %978 = arith.mulf %977, %976 : vector<16x128xf32>
    %cst_335 = arith.constant 5.000000e-01 : f32
    %979 = vector.broadcast %cst_335 : f32 to vector<16x128xf32>
    %980 = arith.addf %978, %979 : vector<16x128xf32>
    %981 = vector.extract_strided_slice %969 {offsets = [0, 128], sizes = [16, 128], strides = [1, 1]} : vector<16x512xf32> to vector<16x128xf32>
    %cst_336 = arith.constant 5.000000e-01 : f32
    %982 = vector.broadcast %cst_336 : f32 to vector<16x128xf32>
    %983 = arith.mulf %982, %981 : vector<16x128xf32>
    %984 = math.tanh %983 : vector<16x128xf32>
    %cst_337 = arith.constant 5.000000e-01 : f32
    %985 = vector.broadcast %cst_337 : f32 to vector<16x128xf32>
    %986 = arith.mulf %985, %984 : vector<16x128xf32>
    %cst_338 = arith.constant 5.000000e-01 : f32
    %987 = vector.broadcast %cst_338 : f32 to vector<16x128xf32>
    %988 = arith.addf %986, %987 : vector<16x128xf32>
    %989 = vector.extract_strided_slice %969 {offsets = [0, 256], sizes = [16, 128], strides = [1, 1]} : vector<16x512xf32> to vector<16x128xf32>
    %990 = math.tanh %989 : vector<16x128xf32>
    %991 = vector.extract_strided_slice %969 {offsets = [0, 384], sizes = [16, 128], strides = [1, 1]} : vector<16x512xf32> to vector<16x128xf32>
    %cst_339 = arith.constant 5.000000e-01 : f32
    %992 = vector.broadcast %cst_339 : f32 to vector<16x128xf32>
    %993 = arith.mulf %992, %991 : vector<16x128xf32>
    %994 = math.tanh %993 : vector<16x128xf32>
    %cst_340 = arith.constant 5.000000e-01 : f32
    %995 = vector.broadcast %cst_340 : f32 to vector<16x128xf32>
    %996 = arith.mulf %995, %994 : vector<16x128xf32>
    %cst_341 = arith.constant 5.000000e-01 : f32
    %997 = vector.broadcast %cst_341 : f32 to vector<16x128xf32>
    %998 = arith.addf %996, %997 : vector<16x128xf32>
    %999 = arith.mulf %988, %919 : vector<16x128xf32>
    %1000 = arith.mulf %980, %990 : vector<16x128xf32>
    %1001 = arith.addf %999, %1000 : vector<16x128xf32>
    %1002 = math.tanh %1001 : vector<16x128xf32>
    %1003 = arith.mulf %998, %1002 : vector<16x128xf32>
    %1004 = arith.truncf %1003 : vector<16x128xf32> to vector<16x128xbf16>
    %1005 = vector.extract_strided_slice %972 {offsets = [0, 0], sizes = [16, 128], strides = [1, 1]} : vector<16x512xf32> to vector<16x128xf32>
    %cst_342 = arith.constant 5.000000e-01 : f32
    %1006 = vector.broadcast %cst_342 : f32 to vector<16x128xf32>
    %1007 = arith.mulf %1006, %1005 : vector<16x128xf32>
    %1008 = math.tanh %1007 : vector<16x128xf32>
    %cst_343 = arith.constant 5.000000e-01 : f32
    %1009 = vector.broadcast %cst_343 : f32 to vector<16x128xf32>
    %1010 = arith.mulf %1009, %1008 : vector<16x128xf32>
    %cst_344 = arith.constant 5.000000e-01 : f32
    %1011 = vector.broadcast %cst_344 : f32 to vector<16x128xf32>
    %1012 = arith.addf %1010, %1011 : vector<16x128xf32>
    %1013 = vector.extract_strided_slice %972 {offsets = [0, 128], sizes = [16, 128], strides = [1, 1]} : vector<16x512xf32> to vector<16x128xf32>
    %cst_345 = arith.constant 5.000000e-01 : f32
    %1014 = vector.broadcast %cst_345 : f32 to vector<16x128xf32>
    %1015 = arith.mulf %1014, %1013 : vector<16x128xf32>
    %1016 = math.tanh %1015 : vector<16x128xf32>
    %cst_346 = arith.constant 5.000000e-01 : f32
    %1017 = vector.broadcast %cst_346 : f32 to vector<16x128xf32>
    %1018 = arith.mulf %1017, %1016 : vector<16x128xf32>
    %cst_347 = arith.constant 5.000000e-01 : f32
    %1019 = vector.broadcast %cst_347 : f32 to vector<16x128xf32>
    %1020 = arith.addf %1018, %1019 : vector<16x128xf32>
    %1021 = vector.extract_strided_slice %972 {offsets = [0, 256], sizes = [16, 128], strides = [1, 1]} : vector<16x512xf32> to vector<16x128xf32>
    %1022 = math.tanh %1021 : vector<16x128xf32>
    %1023 = vector.extract_strided_slice %972 {offsets = [0, 384], sizes = [16, 128], strides = [1, 1]} : vector<16x512xf32> to vector<16x128xf32>
    %cst_348 = arith.constant 5.000000e-01 : f32
    %1024 = vector.broadcast %cst_348 : f32 to vector<16x128xf32>
    %1025 = arith.mulf %1024, %1023 : vector<16x128xf32>
    %1026 = math.tanh %1025 : vector<16x128xf32>
    %cst_349 = arith.constant 5.000000e-01 : f32
    %1027 = vector.broadcast %cst_349 : f32 to vector<16x128xf32>
    %1028 = arith.mulf %1027, %1026 : vector<16x128xf32>
    %cst_350 = arith.constant 5.000000e-01 : f32
    %1029 = vector.broadcast %cst_350 : f32 to vector<16x128xf32>
    %1030 = arith.addf %1028, %1029 : vector<16x128xf32>
    %1031 = arith.mulf %1020, %951 : vector<16x128xf32>
    %1032 = arith.mulf %1012, %1022 : vector<16x128xf32>
    %1033 = arith.addf %1031, %1032 : vector<16x128xf32>
    %1034 = math.tanh %1033 : vector<16x128xf32>
    %1035 = arith.mulf %1030, %1034 : vector<16x128xf32>
    %1036 = arith.truncf %1035 : vector<16x128xf32> to vector<16x128xbf16>
    %c3_351 = arith.constant 3 : index
    %c0_352 = arith.constant 0 : index
    %c0_353 = arith.constant 0 : index
    %1037 = vector.load %arg12[%c3_351, %c0_352, %c0_353] : memref<8x16x256xbf16, #tpu.memory_space<vmem>>, vector<1x16x128xbf16>
    %1038 = vector.shape_cast %1037 : vector<1x16x128xbf16> to vector<16x128xbf16>
    %1039 = vector.shape_cast %1004 : vector<16x128xbf16> to vector<1x16x128xbf16>
    tpu.vector_store %arg12[%c3_351, %c0_352, %c0_353], %1039 {strides = array<i32>} : memref<8x16x256xbf16, #tpu.memory_space<vmem>>, vector<1x16x128xbf16>,
    %c4_354 = arith.constant 4 : index
    %c0_355 = arith.constant 0 : index
    %c128_356 = arith.constant 128 : index
    %1040 = vector.load %arg12[%c4_354, %c0_355, %c128_356] : memref<8x16x256xbf16, #tpu.memory_space<vmem>>, vector<1x16x128xbf16>
    %1041 = vector.shape_cast %1040 : vector<1x16x128xbf16> to vector<16x128xbf16>
    %1042 = vector.shape_cast %1036 : vector<16x128xbf16> to vector<1x16x128xbf16>
    tpu.vector_store %arg12[%c4_354, %c0_355, %c128_356], %1042 {strides = array<i32>} : memref<8x16x256xbf16, #tpu.memory_space<vmem>>, vector<1x16x128xbf16>,
    %1043 = vector.extract_strided_slice %711 {offsets = [64, 0], sizes = [16, 512], strides = [1, 1]} : vector<128x1024xbf16> to vector<16x512xbf16>
    %1044 = vector.extract_strided_slice %711 {offsets = [48, 512], sizes = [16, 512], strides = [1, 1]} : vector<128x1024xbf16> to vector<16x512xbf16>
    %1045 = tpu.concatenate %1004, %712 in 1 : vector<16x128xbf16>, vector<16x128xbf16> -> vector<16x256xbf16>
    %1046 = tpu.concatenate %712, %1036 in 1 : vector<16x128xbf16>, vector<16x128xbf16> -> vector<16x256xbf16>
    %1047 = tpu.concatenate %1045, %1046 in 0 : vector<16x256xbf16>, vector<16x256xbf16> -> vector<32x256xbf16>
    %cst_357 = arith.constant dense<0.000000e+00> : vector<32x512xf32>
    %1048 = tpu.matmul %1047, %706, %cst_357 {dimension_numbers = #tpu.dot_dimension_numbers<[1], [0], [0], [1], [0, 0, 1, 1], [], []>} : vector<32x256xbf16>, vector<256x512xbf16>, vector<32x512xf32> -> vector<32x512xf32>
    %1049 = arith.extf %1043 : vector<16x512xbf16> to vector<16x512xf32>
    %1050 = vector.extract_strided_slice %1048 {offsets = [0, 0], sizes = [16, 512], strides = [1, 1]} : vector<32x512xf32> to vector<16x512xf32>
    %1051 = arith.addf %1049, %1050 : vector<16x512xf32>
    %1052 = arith.extf %1044 : vector<16x512xbf16> to vector<16x512xf32>
    %1053 = vector.extract_strided_slice %1048 {offsets = [16, 0], sizes = [16, 512], strides = [1, 1]} : vector<32x512xf32> to vector<16x512xf32>
    %1054 = arith.addf %1052, %1053 : vector<16x512xf32>
    %1055 = vector.extract_strided_slice %1051 {offsets = [0, 0], sizes = [16, 128], strides = [1, 1]} : vector<16x512xf32> to vector<16x128xf32>
    %cst_358 = arith.constant 5.000000e-01 : f32
    %1056 = vector.broadcast %cst_358 : f32 to vector<16x128xf32>
    %1057 = arith.mulf %1056, %1055 : vector<16x128xf32>
    %1058 = math.tanh %1057 : vector<16x128xf32>
    %cst_359 = arith.constant 5.000000e-01 : f32
    %1059 = vector.broadcast %cst_359 : f32 to vector<16x128xf32>
    %1060 = arith.mulf %1059, %1058 : vector<16x128xf32>
    %cst_360 = arith.constant 5.000000e-01 : f32
    %1061 = vector.broadcast %cst_360 : f32 to vector<16x128xf32>
    %1062 = arith.addf %1060, %1061 : vector<16x128xf32>
    %1063 = vector.extract_strided_slice %1051 {offsets = [0, 128], sizes = [16, 128], strides = [1, 1]} : vector<16x512xf32> to vector<16x128xf32>
    %cst_361 = arith.constant 5.000000e-01 : f32
    %1064 = vector.broadcast %cst_361 : f32 to vector<16x128xf32>
    %1065 = arith.mulf %1064, %1063 : vector<16x128xf32>
    %1066 = math.tanh %1065 : vector<16x128xf32>
    %cst_362 = arith.constant 5.000000e-01 : f32
    %1067 = vector.broadcast %cst_362 : f32 to vector<16x128xf32>
    %1068 = arith.mulf %1067, %1066 : vector<16x128xf32>
    %cst_363 = arith.constant 5.000000e-01 : f32
    %1069 = vector.broadcast %cst_363 : f32 to vector<16x128xf32>
    %1070 = arith.addf %1068, %1069 : vector<16x128xf32>
    %1071 = vector.extract_strided_slice %1051 {offsets = [0, 256], sizes = [16, 128], strides = [1, 1]} : vector<16x512xf32> to vector<16x128xf32>
    %1072 = math.tanh %1071 : vector<16x128xf32>
    %1073 = vector.extract_strided_slice %1051 {offsets = [0, 384], sizes = [16, 128], strides = [1, 1]} : vector<16x512xf32> to vector<16x128xf32>
    %cst_364 = arith.constant 5.000000e-01 : f32
    %1074 = vector.broadcast %cst_364 : f32 to vector<16x128xf32>
    %1075 = arith.mulf %1074, %1073 : vector<16x128xf32>
    %1076 = math.tanh %1075 : vector<16x128xf32>
    %cst_365 = arith.constant 5.000000e-01 : f32
    %1077 = vector.broadcast %cst_365 : f32 to vector<16x128xf32>
    %1078 = arith.mulf %1077, %1076 : vector<16x128xf32>
    %cst_366 = arith.constant 5.000000e-01 : f32
    %1079 = vector.broadcast %cst_366 : f32 to vector<16x128xf32>
    %1080 = arith.addf %1078, %1079 : vector<16x128xf32>
    %1081 = arith.mulf %1070, %1001 : vector<16x128xf32>
    %1082 = arith.mulf %1062, %1072 : vector<16x128xf32>
    %1083 = arith.addf %1081, %1082 : vector<16x128xf32>
    %1084 = math.tanh %1083 : vector<16x128xf32>
    %1085 = arith.mulf %1080, %1084 : vector<16x128xf32>
    %1086 = arith.truncf %1085 : vector<16x128xf32> to vector<16x128xbf16>
    %1087 = vector.extract_strided_slice %1054 {offsets = [0, 0], sizes = [16, 128], strides = [1, 1]} : vector<16x512xf32> to vector<16x128xf32>
    %cst_367 = arith.constant 5.000000e-01 : f32
    %1088 = vector.broadcast %cst_367 : f32 to vector<16x128xf32>
    %1089 = arith.mulf %1088, %1087 : vector<16x128xf32>
    %1090 = math.tanh %1089 : vector<16x128xf32>
    %cst_368 = arith.constant 5.000000e-01 : f32
    %1091 = vector.broadcast %cst_368 : f32 to vector<16x128xf32>
    %1092 = arith.mulf %1091, %1090 : vector<16x128xf32>
    %cst_369 = arith.constant 5.000000e-01 : f32
    %1093 = vector.broadcast %cst_369 : f32 to vector<16x128xf32>
    %1094 = arith.addf %1092, %1093 : vector<16x128xf32>
    %1095 = vector.extract_strided_slice %1054 {offsets = [0, 128], sizes = [16, 128], strides = [1, 1]} : vector<16x512xf32> to vector<16x128xf32>
    %cst_370 = arith.constant 5.000000e-01 : f32
    %1096 = vector.broadcast %cst_370 : f32 to vector<16x128xf32>
    %1097 = arith.mulf %1096, %1095 : vector<16x128xf32>
    %1098 = math.tanh %1097 : vector<16x128xf32>
    %cst_371 = arith.constant 5.000000e-01 : f32
    %1099 = vector.broadcast %cst_371 : f32 to vector<16x128xf32>
    %1100 = arith.mulf %1099, %1098 : vector<16x128xf32>
    %cst_372 = arith.constant 5.000000e-01 : f32
    %1101 = vector.broadcast %cst_372 : f32 to vector<16x128xf32>
    %1102 = arith.addf %1100, %1101 : vector<16x128xf32>
    %1103 = vector.extract_strided_slice %1054 {offsets = [0, 256], sizes = [16, 128], strides = [1, 1]} : vector<16x512xf32> to vector<16x128xf32>
    %1104 = math.tanh %1103 : vector<16x128xf32>
    %1105 = vector.extract_strided_slice %1054 {offsets = [0, 384], sizes = [16, 128], strides = [1, 1]} : vector<16x512xf32> to vector<16x128xf32>
    %cst_373 = arith.constant 5.000000e-01 : f32
    %1106 = vector.broadcast %cst_373 : f32 to vector<16x128xf32>
    %1107 = arith.mulf %1106, %1105 : vector<16x128xf32>
    %1108 = math.tanh %1107 : vector<16x128xf32>
    %cst_374 = arith.constant 5.000000e-01 : f32
    %1109 = vector.broadcast %cst_374 : f32 to vector<16x128xf32>
    %1110 = arith.mulf %1109, %1108 : vector<16x128xf32>
    %cst_375 = arith.constant 5.000000e-01 : f32
    %1111 = vector.broadcast %cst_375 : f32 to vector<16x128xf32>
    %1112 = arith.addf %1110, %1111 : vector<16x128xf32>
    %1113 = arith.mulf %1102, %1033 : vector<16x128xf32>
    %1114 = arith.mulf %1094, %1104 : vector<16x128xf32>
    %1115 = arith.addf %1113, %1114 : vector<16x128xf32>
    %1116 = math.tanh %1115 : vector<16x128xf32>
    %1117 = arith.mulf %1112, %1116 : vector<16x128xf32>
    %1118 = arith.truncf %1117 : vector<16x128xf32> to vector<16x128xbf16>
    %c4_376 = arith.constant 4 : index
    %c0_377 = arith.constant 0 : index
    %c0_378 = arith.constant 0 : index
    %1119 = vector.load %arg12[%c4_376, %c0_377, %c0_378] : memref<8x16x256xbf16, #tpu.memory_space<vmem>>, vector<1x16x128xbf16>
    %1120 = vector.shape_cast %1119 : vector<1x16x128xbf16> to vector<16x128xbf16>
    %1121 = vector.shape_cast %1086 : vector<16x128xbf16> to vector<1x16x128xbf16>
    tpu.vector_store %arg12[%c4_376, %c0_377, %c0_378], %1121 {strides = array<i32>} : memref<8x16x256xbf16, #tpu.memory_space<vmem>>, vector<1x16x128xbf16>,
    %c3_379 = arith.constant 3 : index
    %c0_380 = arith.constant 0 : index
    %c128_381 = arith.constant 128 : index
    %1122 = vector.load %arg12[%c3_379, %c0_380, %c128_381] : memref<8x16x256xbf16, #tpu.memory_space<vmem>>, vector<1x16x128xbf16>
    %1123 = vector.shape_cast %1122 : vector<1x16x128xbf16> to vector<16x128xbf16>
    %1124 = vector.shape_cast %1118 : vector<16x128xbf16> to vector<1x16x128xbf16>
    tpu.vector_store %arg12[%c3_379, %c0_380, %c128_381], %1124 {strides = array<i32>} : memref<8x16x256xbf16, #tpu.memory_space<vmem>>, vector<1x16x128xbf16>,
    %1125 = vector.extract_strided_slice %711 {offsets = [80, 0], sizes = [16, 512], strides = [1, 1]} : vector<128x1024xbf16> to vector<16x512xbf16>
    %1126 = vector.extract_strided_slice %711 {offsets = [32, 512], sizes = [16, 512], strides = [1, 1]} : vector<128x1024xbf16> to vector<16x512xbf16>
    %1127 = tpu.concatenate %1086, %712 in 1 : vector<16x128xbf16>, vector<16x128xbf16> -> vector<16x256xbf16>
    %1128 = tpu.concatenate %712, %1118 in 1 : vector<16x128xbf16>, vector<16x128xbf16> -> vector<16x256xbf16>
    %1129 = tpu.concatenate %1127, %1128 in 0 : vector<16x256xbf16>, vector<16x256xbf16> -> vector<32x256xbf16>
    %cst_382 = arith.constant dense<0.000000e+00> : vector<32x512xf32>
    %1130 = tpu.matmul %1129, %706, %cst_382 {dimension_numbers = #tpu.dot_dimension_numbers<[1], [0], [0], [1], [0, 0, 1, 1], [], []>} : vector<32x256xbf16>, vector<256x512xbf16>, vector<32x512xf32> -> vector<32x512xf32>
    %1131 = arith.extf %1125 : vector<16x512xbf16> to vector<16x512xf32>
    %1132 = vector.extract_strided_slice %1130 {offsets = [0, 0], sizes = [16, 512], strides = [1, 1]} : vector<32x512xf32> to vector<16x512xf32>
    %1133 = arith.addf %1131, %1132 : vector<16x512xf32>
    %1134 = arith.extf %1126 : vector<16x512xbf16> to vector<16x512xf32>
    %1135 = vector.extract_strided_slice %1130 {offsets = [16, 0], sizes = [16, 512], strides = [1, 1]} : vector<32x512xf32> to vector<16x512xf32>
    %1136 = arith.addf %1134, %1135 : vector<16x512xf32>
    %1137 = vector.extract_strided_slice %1133 {offsets = [0, 0], sizes = [16, 128], strides = [1, 1]} : vector<16x512xf32> to vector<16x128xf32>
    %cst_383 = arith.constant 5.000000e-01 : f32
    %1138 = vector.broadcast %cst_383 : f32 to vector<16x128xf32>
    %1139 = arith.mulf %1138, %1137 : vector<16x128xf32>
    %1140 = math.tanh %1139 : vector<16x128xf32>
    %cst_384 = arith.constant 5.000000e-01 : f32
    %1141 = vector.broadcast %cst_384 : f32 to vector<16x128xf32>
    %1142 = arith.mulf %1141, %1140 : vector<16x128xf32>
    %cst_385 = arith.constant 5.000000e-01 : f32
    %1143 = vector.broadcast %cst_385 : f32 to vector<16x128xf32>
    %1144 = arith.addf %1142, %1143 : vector<16x128xf32>
    %1145 = vector.extract_strided_slice %1133 {offsets = [0, 128], sizes = [16, 128], strides = [1, 1]} : vector<16x512xf32> to vector<16x128xf32>
    %cst_386 = arith.constant 5.000000e-01 : f32
    %1146 = vector.broadcast %cst_386 : f32 to vector<16x128xf32>
    %1147 = arith.mulf %1146, %1145 : vector<16x128xf32>
    %1148 = math.tanh %1147 : vector<16x128xf32>
    %cst_387 = arith.constant 5.000000e-01 : f32
    %1149 = vector.broadcast %cst_387 : f32 to vector<16x128xf32>
    %1150 = arith.mulf %1149, %1148 : vector<16x128xf32>
    %cst_388 = arith.constant 5.000000e-01 : f32
    %1151 = vector.broadcast %cst_388 : f32 to vector<16x128xf32>
    %1152 = arith.addf %1150, %1151 : vector<16x128xf32>
    %1153 = vector.extract_strided_slice %1133 {offsets = [0, 256], sizes = [16, 128], strides = [1, 1]} : vector<16x512xf32> to vector<16x128xf32>
    %1154 = math.tanh %1153 : vector<16x128xf32>
    %1155 = vector.extract_strided_slice %1133 {offsets = [0, 384], sizes = [16, 128], strides = [1, 1]} : vector<16x512xf32> to vector<16x128xf32>
    %cst_389 = arith.constant 5.000000e-01 : f32
    %1156 = vector.broadcast %cst_389 : f32 to vector<16x128xf32>
    %1157 = arith.mulf %1156, %1155 : vector<16x128xf32>
    %1158 = math.tanh %1157 : vector<16x128xf32>
    %cst_390 = arith.constant 5.000000e-01 : f32
    %1159 = vector.broadcast %cst_390 : f32 to vector<16x128xf32>
    %1160 = arith.mulf %1159, %1158 : vector<16x128xf32>
    %cst_391 = arith.constant 5.000000e-01 : f32
    %1161 = vector.broadcast %cst_391 : f32 to vector<16x128xf32>
    %1162 = arith.addf %1160, %1161 : vector<16x128xf32>
    %1163 = arith.mulf %1152, %1083 : vector<16x128xf32>
    %1164 = arith.mulf %1144, %1154 : vector<16x128xf32>
    %1165 = arith.addf %1163, %1164 : vector<16x128xf32>
    %1166 = math.tanh %1165 : vector<16x128xf32>
    %1167 = arith.mulf %1162, %1166 : vector<16x128xf32>
    %1168 = arith.truncf %1167 : vector<16x128xf32> to vector<16x128xbf16>
    %1169 = vector.extract_strided_slice %1136 {offsets = [0, 0], sizes = [16, 128], strides = [1, 1]} : vector<16x512xf32> to vector<16x128xf32>
    %cst_392 = arith.constant 5.000000e-01 : f32
    %1170 = vector.broadcast %cst_392 : f32 to vector<16x128xf32>
    %1171 = arith.mulf %1170, %1169 : vector<16x128xf32>
    %1172 = math.tanh %1171 : vector<16x128xf32>
    %cst_393 = arith.constant 5.000000e-01 : f32
    %1173 = vector.broadcast %cst_393 : f32 to vector<16x128xf32>
    %1174 = arith.mulf %1173, %1172 : vector<16x128xf32>
    %cst_394 = arith.constant 5.000000e-01 : f32
    %1175 = vector.broadcast %cst_394 : f32 to vector<16x128xf32>
    %1176 = arith.addf %1174, %1175 : vector<16x128xf32>
    %1177 = vector.extract_strided_slice %1136 {offsets = [0, 128], sizes = [16, 128], strides = [1, 1]} : vector<16x512xf32> to vector<16x128xf32>
    %cst_395 = arith.constant 5.000000e-01 : f32
    %1178 = vector.broadcast %cst_395 : f32 to vector<16x128xf32>
    %1179 = arith.mulf %1178, %1177 : vector<16x128xf32>
    %1180 = math.tanh %1179 : vector<16x128xf32>
    %cst_396 = arith.constant 5.000000e-01 : f32
    %1181 = vector.broadcast %cst_396 : f32 to vector<16x128xf32>
    %1182 = arith.mulf %1181, %1180 : vector<16x128xf32>
    %cst_397 = arith.constant 5.000000e-01 : f32
    %1183 = vector.broadcast %cst_397 : f32 to vector<16x128xf32>
    %1184 = arith.addf %1182, %1183 : vector<16x128xf32>
    %1185 = vector.extract_strided_slice %1136 {offsets = [0, 256], sizes = [16, 128], strides = [1, 1]} : vector<16x512xf32> to vector<16x128xf32>
    %1186 = math.tanh %1185 : vector<16x128xf32>
    %1187 = vector.extract_strided_slice %1136 {offsets = [0, 384], sizes = [16, 128], strides = [1, 1]} : vector<16x512xf32> to vector<16x128xf32>
    %cst_398 = arith.constant 5.000000e-01 : f32
    %1188 = vector.broadcast %cst_398 : f32 to vector<16x128xf32>
    %1189 = arith.mulf %1188, %1187 : vector<16x128xf32>
    %1190 = math.tanh %1189 : vector<16x128xf32>
    %cst_399 = arith.constant 5.000000e-01 : f32
    %1191 = vector.broadcast %cst_399 : f32 to vector<16x128xf32>
    %1192 = arith.mulf %1191, %1190 : vector<16x128xf32>
    %cst_400 = arith.constant 5.000000e-01 : f32
    %1193 = vector.broadcast %cst_400 : f32 to vector<16x128xf32>
    %1194 = arith.addf %1192, %1193 : vector<16x128xf32>
    %1195 = arith.mulf %1184, %1115 : vector<16x128xf32>
    %1196 = arith.mulf %1176, %1186 : vector<16x128xf32>
    %1197 = arith.addf %1195, %1196 : vector<16x128xf32>
    %1198 = math.tanh %1197 : vector<16x128xf32>
    %1199 = arith.mulf %1194, %1198 : vector<16x128xf32>
    %1200 = arith.truncf %1199 : vector<16x128xf32> to vector<16x128xbf16>
    %c5_401 = arith.constant 5 : index
    %c0_402 = arith.constant 0 : index
    %c0_403 = arith.constant 0 : index
    %1201 = vector.load %arg12[%c5_401, %c0_402, %c0_403] : memref<8x16x256xbf16, #tpu.memory_space<vmem>>, vector<1x16x128xbf16>
    %1202 = vector.shape_cast %1201 : vector<1x16x128xbf16> to vector<16x128xbf16>
    %1203 = vector.shape_cast %1168 : vector<16x128xbf16> to vector<1x16x128xbf16>
    tpu.vector_store %arg12[%c5_401, %c0_402, %c0_403], %1203 {strides = array<i32>} : memref<8x16x256xbf16, #tpu.memory_space<vmem>>, vector<1x16x128xbf16>,
    %c2_404 = arith.constant 2 : index
    %c0_405 = arith.constant 0 : index
    %c128_406 = arith.constant 128 : index
    %1204 = vector.load %arg12[%c2_404, %c0_405, %c128_406] : memref<8x16x256xbf16, #tpu.memory_space<vmem>>, vector<1x16x128xbf16>
    %1205 = vector.shape_cast %1204 : vector<1x16x128xbf16> to vector<16x128xbf16>
    %1206 = vector.shape_cast %1200 : vector<16x128xbf16> to vector<1x16x128xbf16>
    tpu.vector_store %arg12[%c2_404, %c0_405, %c128_406], %1206 {strides = array<i32>} : memref<8x16x256xbf16, #tpu.memory_space<vmem>>, vector<1x16x128xbf16>,
    %1207 = vector.extract_strided_slice %711 {offsets = [96, 0], sizes = [16, 512], strides = [1, 1]} : vector<128x1024xbf16> to vector<16x512xbf16>
    %1208 = vector.extract_strided_slice %711 {offsets = [16, 512], sizes = [16, 512], strides = [1, 1]} : vector<128x1024xbf16> to vector<16x512xbf16>
    %1209 = tpu.concatenate %1168, %712 in 1 : vector<16x128xbf16>, vector<16x128xbf16> -> vector<16x256xbf16>
    %1210 = tpu.concatenate %712, %1200 in 1 : vector<16x128xbf16>, vector<16x128xbf16> -> vector<16x256xbf16>
    %1211 = tpu.concatenate %1209, %1210 in 0 : vector<16x256xbf16>, vector<16x256xbf16> -> vector<32x256xbf16>
    %cst_407 = arith.constant dense<0.000000e+00> : vector<32x512xf32>
    %1212 = tpu.matmul %1211, %706, %cst_407 {dimension_numbers = #tpu.dot_dimension_numbers<[1], [0], [0], [1], [0, 0, 1, 1], [], []>} : vector<32x256xbf16>, vector<256x512xbf16>, vector<32x512xf32> -> vector<32x512xf32>
    %1213 = arith.extf %1207 : vector<16x512xbf16> to vector<16x512xf32>
    %1214 = vector.extract_strided_slice %1212 {offsets = [0, 0], sizes = [16, 512], strides = [1, 1]} : vector<32x512xf32> to vector<16x512xf32>
    %1215 = arith.addf %1213, %1214 : vector<16x512xf32>
    %1216 = arith.extf %1208 : vector<16x512xbf16> to vector<16x512xf32>
    %1217 = vector.extract_strided_slice %1212 {offsets = [16, 0], sizes = [16, 512], strides = [1, 1]} : vector<32x512xf32> to vector<16x512xf32>
    %1218 = arith.addf %1216, %1217 : vector<16x512xf32>
    %1219 = vector.extract_strided_slice %1215 {offsets = [0, 0], sizes = [16, 128], strides = [1, 1]} : vector<16x512xf32> to vector<16x128xf32>
    %cst_408 = arith.constant 5.000000e-01 : f32
    %1220 = vector.broadcast %cst_408 : f32 to vector<16x128xf32>
    %1221 = arith.mulf %1220, %1219 : vector<16x128xf32>
    %1222 = math.tanh %1221 : vector<16x128xf32>
    %cst_409 = arith.constant 5.000000e-01 : f32
    %1223 = vector.broadcast %cst_409 : f32 to vector<16x128xf32>
    %1224 = arith.mulf %1223, %1222 : vector<16x128xf32>
    %cst_410 = arith.constant 5.000000e-01 : f32
    %1225 = vector.broadcast %cst_410 : f32 to vector<16x128xf32>
    %1226 = arith.addf %1224, %1225 : vector<16x128xf32>
    %1227 = vector.extract_strided_slice %1215 {offsets = [0, 128], sizes = [16, 128], strides = [1, 1]} : vector<16x512xf32> to vector<16x128xf32>
    %cst_411 = arith.constant 5.000000e-01 : f32
    %1228 = vector.broadcast %cst_411 : f32 to vector<16x128xf32>
    %1229 = arith.mulf %1228, %1227 : vector<16x128xf32>
    %1230 = math.tanh %1229 : vector<16x128xf32>
    %cst_412 = arith.constant 5.000000e-01 : f32
    %1231 = vector.broadcast %cst_412 : f32 to vector<16x128xf32>
    %1232 = arith.mulf %1231, %1230 : vector<16x128xf32>
    %cst_413 = arith.constant 5.000000e-01 : f32
    %1233 = vector.broadcast %cst_413 : f32 to vector<16x128xf32>
    %1234 = arith.addf %1232, %1233 : vector<16x128xf32>
    %1235 = vector.extract_strided_slice %1215 {offsets = [0, 256], sizes = [16, 128], strides = [1, 1]} : vector<16x512xf32> to vector<16x128xf32>
    %1236 = math.tanh %1235 : vector<16x128xf32>
    %1237 = vector.extract_strided_slice %1215 {offsets = [0, 384], sizes = [16, 128], strides = [1, 1]} : vector<16x512xf32> to vector<16x128xf32>
    %cst_414 = arith.constant 5.000000e-01 : f32
    %1238 = vector.broadcast %cst_414 : f32 to vector<16x128xf32>
    %1239 = arith.mulf %1238, %1237 : vector<16x128xf32>
    %1240 = math.tanh %1239 : vector<16x128xf32>
    %cst_415 = arith.constant 5.000000e-01 : f32
    %1241 = vector.broadcast %cst_415 : f32 to vector<16x128xf32>
    %1242 = arith.mulf %1241, %1240 : vector<16x128xf32>
    %cst_416 = arith.constant 5.000000e-01 : f32
    %1243 = vector.broadcast %cst_416 : f32 to vector<16x128xf32>
    %1244 = arith.addf %1242, %1243 : vector<16x128xf32>
    %1245 = arith.mulf %1234, %1165 : vector<16x128xf32>
    %1246 = arith.mulf %1226, %1236 : vector<16x128xf32>
    %1247 = arith.addf %1245, %1246 : vector<16x128xf32>
    %1248 = math.tanh %1247 : vector<16x128xf32>
    %1249 = arith.mulf %1244, %1248 : vector<16x128xf32>
    %1250 = arith.truncf %1249 : vector<16x128xf32> to vector<16x128xbf16>
    %1251 = vector.extract_strided_slice %1218 {offsets = [0, 0], sizes = [16, 128], strides = [1, 1]} : vector<16x512xf32> to vector<16x128xf32>
    %cst_417 = arith.constant 5.000000e-01 : f32
    %1252 = vector.broadcast %cst_417 : f32 to vector<16x128xf32>
    %1253 = arith.mulf %1252, %1251 : vector<16x128xf32>
    %1254 = math.tanh %1253 : vector<16x128xf32>
    %cst_418 = arith.constant 5.000000e-01 : f32
    %1255 = vector.broadcast %cst_418 : f32 to vector<16x128xf32>
    %1256 = arith.mulf %1255, %1254 : vector<16x128xf32>
    %cst_419 = arith.constant 5.000000e-01 : f32
    %1257 = vector.broadcast %cst_419 : f32 to vector<16x128xf32>
    %1258 = arith.addf %1256, %1257 : vector<16x128xf32>
    %1259 = vector.extract_strided_slice %1218 {offsets = [0, 128], sizes = [16, 128], strides = [1, 1]} : vector<16x512xf32> to vector<16x128xf32>
    %cst_420 = arith.constant 5.000000e-01 : f32
    %1260 = vector.broadcast %cst_420 : f32 to vector<16x128xf32>
    %1261 = arith.mulf %1260, %1259 : vector<16x128xf32>
    %1262 = math.tanh %1261 : vector<16x128xf32>
    %cst_421 = arith.constant 5.000000e-01 : f32
    %1263 = vector.broadcast %cst_421 : f32 to vector<16x128xf32>
    %1264 = arith.mulf %1263, %1262 : vector<16x128xf32>
    %cst_422 = arith.constant 5.000000e-01 : f32
    %1265 = vector.broadcast %cst_422 : f32 to vector<16x128xf32>
    %1266 = arith.addf %1264, %1265 : vector<16x128xf32>
    %1267 = vector.extract_strided_slice %1218 {offsets = [0, 256], sizes = [16, 128], strides = [1, 1]} : vector<16x512xf32> to vector<16x128xf32>
    %1268 = math.tanh %1267 : vector<16x128xf32>
    %1269 = vector.extract_strided_slice %1218 {offsets = [0, 384], sizes = [16, 128], strides = [1, 1]} : vector<16x512xf32> to vector<16x128xf32>
    %cst_423 = arith.constant 5.000000e-01 : f32
    %1270 = vector.broadcast %cst_423 : f32 to vector<16x128xf32>
    %1271 = arith.mulf %1270, %1269 : vector<16x128xf32>
    %1272 = math.tanh %1271 : vector<16x128xf32>
    %cst_424 = arith.constant 5.000000e-01 : f32
    %1273 = vector.broadcast %cst_424 : f32 to vector<16x128xf32>
    %1274 = arith.mulf %1273, %1272 : vector<16x128xf32>
    %cst_425 = arith.constant 5.000000e-01 : f32
    %1275 = vector.broadcast %cst_425 : f32 to vector<16x128xf32>
    %1276 = arith.addf %1274, %1275 : vector<16x128xf32>
    %1277 = arith.mulf %1266, %1197 : vector<16x128xf32>
    %1278 = arith.mulf %1258, %1268 : vector<16x128xf32>
    %1279 = arith.addf %1277, %1278 : vector<16x128xf32>
    %1280 = math.tanh %1279 : vector<16x128xf32>
    %1281 = arith.mulf %1276, %1280 : vector<16x128xf32>
    %1282 = arith.truncf %1281 : vector<16x128xf32> to vector<16x128xbf16>
    %c6_426 = arith.constant 6 : index
    %c0_427 = arith.constant 0 : index
    %c0_428 = arith.constant 0 : index
    %1283 = vector.load %arg12[%c6_426, %c0_427, %c0_428] : memref<8x16x256xbf16, #tpu.memory_space<vmem>>, vector<1x16x128xbf16>
    %1284 = vector.shape_cast %1283 : vector<1x16x128xbf16> to vector<16x128xbf16>
    %1285 = vector.shape_cast %1250 : vector<16x128xbf16> to vector<1x16x128xbf16>
    tpu.vector_store %arg12[%c6_426, %c0_427, %c0_428], %1285 {strides = array<i32>} : memref<8x16x256xbf16, #tpu.memory_space<vmem>>, vector<1x16x128xbf16>,
    %c1_429 = arith.constant 1 : index
    %c0_430 = arith.constant 0 : index
    %c128_431 = arith.constant 128 : index
    %1286 = vector.load %arg12[%c1_429, %c0_430, %c128_431] : memref<8x16x256xbf16, #tpu.memory_space<vmem>>, vector<1x16x128xbf16>
    %1287 = vector.shape_cast %1286 : vector<1x16x128xbf16> to vector<16x128xbf16>
    %1288 = vector.shape_cast %1282 : vector<16x128xbf16> to vector<1x16x128xbf16>
    tpu.vector_store %arg12[%c1_429, %c0_430, %c128_431], %1288 {strides = array<i32>} : memref<8x16x256xbf16, #tpu.memory_space<vmem>>, vector<1x16x128xbf16>,
    %1289 = vector.extract_strided_slice %711 {offsets = [112, 0], sizes = [16, 512], strides = [1, 1]} : vector<128x1024xbf16> to vector<16x512xbf16>
    %1290 = vector.extract_strided_slice %711 {offsets = [0, 512], sizes = [16, 512], strides = [1, 1]} : vector<128x1024xbf16> to vector<16x512xbf16>
    %1291 = tpu.concatenate %1250, %712 in 1 : vector<16x128xbf16>, vector<16x128xbf16> -> vector<16x256xbf16>
    %1292 = tpu.concatenate %712, %1282 in 1 : vector<16x128xbf16>, vector<16x128xbf16> -> vector<16x256xbf16>
    %1293 = tpu.concatenate %1291, %1292 in 0 : vector<16x256xbf16>, vector<16x256xbf16> -> vector<32x256xbf16>
    %cst_432 = arith.constant dense<0.000000e+00> : vector<32x512xf32>
    %1294 = tpu.matmul %1293, %706, %cst_432 {dimension_numbers = #tpu.dot_dimension_numbers<[1], [0], [0], [1], [0, 0, 1, 1], [], []>} : vector<32x256xbf16>, vector<256x512xbf16>, vector<32x512xf32> -> vector<32x512xf32>
    %1295 = arith.extf %1289 : vector<16x512xbf16> to vector<16x512xf32>
    %1296 = vector.extract_strided_slice %1294 {offsets = [0, 0], sizes = [16, 512], strides = [1, 1]} : vector<32x512xf32> to vector<16x512xf32>
    %1297 = arith.addf %1295, %1296 : vector<16x512xf32>
    %1298 = arith.extf %1290 : vector<16x512xbf16> to vector<16x512xf32>
    %1299 = vector.extract_strided_slice %1294 {offsets = [16, 0], sizes = [16, 512], strides = [1, 1]} : vector<32x512xf32> to vector<16x512xf32>
    %1300 = arith.addf %1298, %1299 : vector<16x512xf32>
    %1301 = vector.extract_strided_slice %1297 {offsets = [0, 0], sizes = [16, 128], strides = [1, 1]} : vector<16x512xf32> to vector<16x128xf32>
    %cst_433 = arith.constant 5.000000e-01 : f32
    %1302 = vector.broadcast %cst_433 : f32 to vector<16x128xf32>
    %1303 = arith.mulf %1302, %1301 : vector<16x128xf32>
    %1304 = math.tanh %1303 : vector<16x128xf32>
    %cst_434 = arith.constant 5.000000e-01 : f32
    %1305 = vector.broadcast %cst_434 : f32 to vector<16x128xf32>
    %1306 = arith.mulf %1305, %1304 : vector<16x128xf32>
    %cst_435 = arith.constant 5.000000e-01 : f32
    %1307 = vector.broadcast %cst_435 : f32 to vector<16x128xf32>
    %1308 = arith.addf %1306, %1307 : vector<16x128xf32>
    %1309 = vector.extract_strided_slice %1297 {offsets = [0, 128], sizes = [16, 128], strides = [1, 1]} : vector<16x512xf32> to vector<16x128xf32>
    %cst_436 = arith.constant 5.000000e-01 : f32
    %1310 = vector.broadcast %cst_436 : f32 to vector<16x128xf32>
    %1311 = arith.mulf %1310, %1309 : vector<16x128xf32>
    %1312 = math.tanh %1311 : vector<16x128xf32>
    %cst_437 = arith.constant 5.000000e-01 : f32
    %1313 = vector.broadcast %cst_437 : f32 to vector<16x128xf32>
    %1314 = arith.mulf %1313, %1312 : vector<16x128xf32>
    %cst_438 = arith.constant 5.000000e-01 : f32
    %1315 = vector.broadcast %cst_438 : f32 to vector<16x128xf32>
    %1316 = arith.addf %1314, %1315 : vector<16x128xf32>
    %1317 = vector.extract_strided_slice %1297 {offsets = [0, 256], sizes = [16, 128], strides = [1, 1]} : vector<16x512xf32> to vector<16x128xf32>
    %1318 = math.tanh %1317 : vector<16x128xf32>
    %1319 = vector.extract_strided_slice %1297 {offsets = [0, 384], sizes = [16, 128], strides = [1, 1]} : vector<16x512xf32> to vector<16x128xf32>
    %cst_439 = arith.constant 5.000000e-01 : f32
    %1320 = vector.broadcast %cst_439 : f32 to vector<16x128xf32>
    %1321 = arith.mulf %1320, %1319 : vector<16x128xf32>
    %1322 = math.tanh %1321 : vector<16x128xf32>
    %cst_440 = arith.constant 5.000000e-01 : f32
    %1323 = vector.broadcast %cst_440 : f32 to vector<16x128xf32>
    %1324 = arith.mulf %1323, %1322 : vector<16x128xf32>
    %cst_441 = arith.constant 5.000000e-01 : f32
    %1325 = vector.broadcast %cst_441 : f32 to vector<16x128xf32>
    %1326 = arith.addf %1324, %1325 : vector<16x128xf32>
    %1327 = arith.mulf %1316, %1247 : vector<16x128xf32>
    %1328 = arith.mulf %1308, %1318 : vector<16x128xf32>
    %1329 = arith.addf %1327, %1328 : vector<16x128xf32>
    %1330 = math.tanh %1329 : vector<16x128xf32>
    %1331 = arith.mulf %1326, %1330 : vector<16x128xf32>
    %1332 = arith.truncf %1331 : vector<16x128xf32> to vector<16x128xbf16>
    %1333 = vector.extract_strided_slice %1300 {offsets = [0, 0], sizes = [16, 128], strides = [1, 1]} : vector<16x512xf32> to vector<16x128xf32>
    %cst_442 = arith.constant 5.000000e-01 : f32
    %1334 = vector.broadcast %cst_442 : f32 to vector<16x128xf32>
    %1335 = arith.mulf %1334, %1333 : vector<16x128xf32>
    %1336 = math.tanh %1335 : vector<16x128xf32>
    %cst_443 = arith.constant 5.000000e-01 : f32
    %1337 = vector.broadcast %cst_443 : f32 to vector<16x128xf32>
    %1338 = arith.mulf %1337, %1336 : vector<16x128xf32>
    %cst_444 = arith.constant 5.000000e-01 : f32
    %1339 = vector.broadcast %cst_444 : f32 to vector<16x128xf32>
    %1340 = arith.addf %1338, %1339 : vector<16x128xf32>
    %1341 = vector.extract_strided_slice %1300 {offsets = [0, 128], sizes = [16, 128], strides = [1, 1]} : vector<16x512xf32> to vector<16x128xf32>
    %cst_445 = arith.constant 5.000000e-01 : f32
    %1342 = vector.broadcast %cst_445 : f32 to vector<16x128xf32>
    %1343 = arith.mulf %1342, %1341 : vector<16x128xf32>
    %1344 = math.tanh %1343 : vector<16x128xf32>
    %cst_446 = arith.constant 5.000000e-01 : f32
    %1345 = vector.broadcast %cst_446 : f32 to vector<16x128xf32>
    %1346 = arith.mulf %1345, %1344 : vector<16x128xf32>
    %cst_447 = arith.constant 5.000000e-01 : f32
    %1347 = vector.broadcast %cst_447 : f32 to vector<16x128xf32>
    %1348 = arith.addf %1346, %1347 : vector<16x128xf32>
    %1349 = vector.extract_strided_slice %1300 {offsets = [0, 256], sizes = [16, 128], strides = [1, 1]} : vector<16x512xf32> to vector<16x128xf32>
    %1350 = math.tanh %1349 : vector<16x128xf32>
    %1351 = vector.extract_strided_slice %1300 {offsets = [0, 384], sizes = [16, 128], strides = [1, 1]} : vector<16x512xf32> to vector<16x128xf32>
    %cst_448 = arith.constant 5.000000e-01 : f32
    %1352 = vector.broadcast %cst_448 : f32 to vector<16x128xf32>
    %1353 = arith.mulf %1352, %1351 : vector<16x128xf32>
    %1354 = math.tanh %1353 : vector<16x128xf32>
    %cst_449 = arith.constant 5.000000e-01 : f32
    %1355 = vector.broadcast %cst_449 : f32 to vector<16x128xf32>
    %1356 = arith.mulf %1355, %1354 : vector<16x128xf32>
    %cst_450 = arith.constant 5.000000e-01 : f32
    %1357 = vector.broadcast %cst_450 : f32 to vector<16x128xf32>
    %1358 = arith.addf %1356, %1357 : vector<16x128xf32>
    %1359 = arith.mulf %1348, %1279 : vector<16x128xf32>
    %1360 = arith.mulf %1340, %1350 : vector<16x128xf32>
    %1361 = arith.addf %1359, %1360 : vector<16x128xf32>
    %1362 = math.tanh %1361 : vector<16x128xf32>
    %1363 = arith.mulf %1358, %1362 : vector<16x128xf32>
    %1364 = arith.truncf %1363 : vector<16x128xf32> to vector<16x128xbf16>
    %c7_451 = arith.constant 7 : index
    %c0_452 = arith.constant 0 : index
    %c0_453 = arith.constant 0 : index
    %1365 = vector.load %arg12[%c7_451, %c0_452, %c0_453] : memref<8x16x256xbf16, #tpu.memory_space<vmem>>, vector<1x16x128xbf16>
    %1366 = vector.shape_cast %1365 : vector<1x16x128xbf16> to vector<16x128xbf16>
    %1367 = vector.shape_cast %1332 : vector<16x128xbf16> to vector<1x16x128xbf16>
    tpu.vector_store %arg12[%c7_451, %c0_452, %c0_453], %1367 {strides = array<i32>} : memref<8x16x256xbf16, #tpu.memory_space<vmem>>, vector<1x16x128xbf16>,
    %c0_454 = arith.constant 0 : index
    %c0_455 = arith.constant 0 : index
    %c128_456 = arith.constant 128 : index
    %1368 = vector.load %arg12[%c0_454, %c0_455, %c128_456] : memref<8x16x256xbf16, #tpu.memory_space<vmem>>, vector<1x16x128xbf16>
    %1369 = vector.shape_cast %1368 : vector<1x16x128xbf16> to vector<16x128xbf16>
    %1370 = vector.shape_cast %1364 : vector<16x128xbf16> to vector<1x16x128xbf16>
    tpu.vector_store %arg12[%c0_454, %c0_455, %c128_456], %1370 {strides = array<i32>} : memref<8x16x256xbf16, #tpu.memory_space<vmem>>, vector<1x16x128xbf16>,
    %c7_457 = arith.constant 7 : index
    %c0_458 = arith.constant 0 : index
    %c0_459 = arith.constant 0 : index
    %1371 = vector.load %arg12[%c7_457, %c0_458, %c0_459] : memref<8x16x256xbf16, #tpu.memory_space<vmem>>, vector<1x16x256xbf16>
    %1372 = vector.shape_cast %1371 : vector<1x16x256xbf16> to vector<16x256xbf16>
    %c0_460 = arith.constant 0 : index
    %c0_461 = arith.constant 0 : index
    %1373 = vector.load %arg7[%c0_460, %c0_461] : memref<256x128xbf16, #tpu.memory_space<vmem>>, vector<256x128xbf16>
    %cst_462 = arith.constant dense<0.000000e+00> : vector<16x128xf32>
    %1374 = tpu.matmul %1372, %1373, %cst_462 {dimension_numbers = #tpu.dot_dimension_numbers<[1], [0], [0], [1], [0, 0, 1, 1], [], []>} : vector<16x256xbf16>, vector<256x128xbf16>, vector<16x128xf32> -> vector<16x128xf32>
    %c0_463 = arith.constant 0 : index
    %c0_464 = arith.constant 0 : index
    %1375 = vector.load %arg8[%c0_463, %c0_464] : memref<1x128xf32, #tpu.memory_space<vmem>>, vector<1x128xf32>
    %1376 = vector.broadcast %1375 : vector<1x128xf32> to vector<16x128xf32>
    %1377 = arith.addf %1374, %1376 : vector<16x128xf32>
    %cst_465 = arith.constant 0.000000e+00 : f32
    %1378 = vector.broadcast %cst_465 : f32 to vector<16x128xf32>
    %1379 = arith.maximumf %1377, %1378 : vector<16x128xf32>
    %1380 = arith.truncf %1379 : vector<16x128xf32> to vector<16x128xbf16>
    %c0_466 = arith.constant 0 : index
    %c0_467 = arith.constant 0 : index
    %1381 = vector.load %arg9[%c0_466, %c0_467] : memref<128x128xbf16, #tpu.memory_space<vmem>>, vector<128x128xbf16>
    %cst_468 = arith.constant dense<0.000000e+00> : vector<16x128xf32>
    %1382 = tpu.matmul %1380, %1381, %cst_468 {dimension_numbers = #tpu.dot_dimension_numbers<[1], [0], [0], [1], [0, 0, 1, 1], [], []>} : vector<16x128xbf16>, vector<128x128xbf16>, vector<16x128xf32> -> vector<16x128xf32>
    %c0_469 = arith.constant 0 : index
    %c0_470 = arith.constant 0 : index
    %1383 = vector.load %arg10[%c0_469, %c0_470] : memref<1x128xf32, #tpu.memory_space<vmem>>, vector<1x128xf32>
    %1384 = vector.broadcast %1383 : vector<1x128xf32> to vector<16x128xf32>
    %1385 = arith.addf %1382, %1384 : vector<16x128xf32>
    %c0_471 = arith.constant 0 : index
    %c0_472 = arith.constant 0 : index
    %1386 = vector.load %arg11[%c0_471, %c0_472] : memref<16x128xf32, #tpu.memory_space<vmem>>, vector<16x128xf32>
    tpu.vector_store %arg11[%c0_471, %c0_472], %1385 {strides = array<i32>} : memref<16x128xf32, #tpu.memory_space<vmem>>, vector<16x128xf32>,
    return
  }
}

</mosaic_0001>

<llo_original>
// kernel: bilstm_forward.1
$region0: #{bilstm_forward.1}
  #allocation0 [shape = 'u32[]', space=smem, size = 0x4, offset = 0x4, fixed_abs, tag = 'smem constant byte address 0x4 - core index']
  #allocation1 [shape = 'u32[144,128]{1,0:T(1,128)}', space=vmem, size = 0x12000, scoped, tag = 'internal scratch']
  #allocation2 [shape = 'bf16[8,16,256]{2,1,0:T(8,128)(2,1)}', space=vmem, size = 0x10000, scoped, tag = 'scratch operand']
  #allocation3 [shape = 'bf16[2,256,1024]{2,1,0:T(8,128)(2,1)}', space=vmem, size = 0x100000, scoped, tag = 'scratch operand']
  #allocation4 [shape = 'bf16[2,256,512]{2,1,0:T(8,128)(2,1)}', space=vmem, size = 0x80000, scoped, tag = 'scratch operand']
  #allocation5 [shape = 's32[4]{0}', space=sflag, size = 0x10, scoped, tag = 'scratch operand']
  #allocation10 [shape = 's32[]', space=sflag, size = 0x4, offset = 0, fixed_abs, tag = 'sflag constant byte address 0x0 - dummy sync flag']
  #allocation11 [shape = 's32[]', space=sflag, size = 0x4, offset = 0, fixed_abs, tag = 'sflag constant byte address 0x0 - dummy sync flag']
  #allocation12 [shape = 'u32[]', space=smem, size = 0x4, offset = 0x44, fixed_abs, tag = 'smem constant byte address 0x44 - assertion arg 0']
  #allocation13 [shape = 'u32[]', space=smem, size = 0x4, offset = 0x48, fixed_abs, tag = 'smem constant byte address 0x48 - assertion arg 1']
  #allocation14 [shape = 's32[]', space=sflag, size = 0x4, offset = 0, fixed_abs, tag = 'sflag constant byte address 0x0 - dummy sync flag']
  #allocation15 [shape = 's32[]', space=sflag, size = 0x4, offset = 0, fixed_abs, tag = 'sflag constant byte address 0x0 - dummy sync flag']
  #allocation16 [shape = 's32[]', space=sflag, size = 0x4, offset = 0, fixed_abs, tag = 'sflag constant byte address 0x0 - dummy sync flag']
  #allocation17 [shape = 's32[]', space=sflag, size = 0x4, offset = 0, fixed_abs, tag = 'sflag constant byte address 0x0 - dummy sync flag']
  #allocation18 [shape = 's32[]', space=sflag, size = 0x4, offset = 0, fixed_abs, tag = 'sflag constant byte address 0x0 - dummy sync flag']
  #allocation19 [shape = 's32[]', space=sflag, size = 0x4, offset = 0, fixed_abs, tag = 'sflag constant byte address 0x0 - dummy sync flag']
  %s0 = inlined_call_operand.vmem [shape: bf16[128,128], index: 0, kind: input, shape index: {}]
  %s1 = inlined_call_operand.hbm [shape: bf16[128,1024], index: 1, kind: input, shape index: {}]
  %s2 = inlined_call_operand.hbm [shape: bf16[256,512], index: 2, kind: input, shape index: {}]
  %s3 = inlined_call_operand.vmem [shape: f32[1,1024], index: 3, kind: input, shape index: {}]
  %s4 = inlined_call_operand.hbm [shape: bf16[256,1024], index: 4, kind: input, shape index: {}]
  %s5 = inlined_call_operand.hbm [shape: bf16[256,512], index: 5, kind: input, shape index: {}]
  %s6 = inlined_call_operand.vmem [shape: f32[1,1024], index: 6, kind: input, shape index: {}]
  %s7 = inlined_call_operand.vmem [shape: bf16[256,128], index: 7, kind: input, shape index: {}]
  %s8 = inlined_call_operand.hbm [shape: f32[1,128], index: 8, kind: input, shape index: {}]
  %s9 = inlined_call_operand.vmem [shape: bf16[128,128], index: 9, kind: input, shape index: {}]
  %s10 = inlined_call_operand.hbm [shape: f32[1,128], index: 10, kind: input, shape index: {}]
  %s11 = inlined_call_operand.vmem [shape: f32[16,128], index: 11, kind: output, shape index: {}]
  %s12 = sld [smem:[#allocation0]]
  $region62: #{bilstm_forward.1} parent=0
    _
  %s14 = ssub.s32 1, %s12
  %s15 = scalar_select 0, %s14, %s12
  $region1: #{bilstm_forward.1} parent=0
    #allocation6 [shape = 'u8[512]{0}', space=vmem, size = 0x400, scoped, tag = 'input window, operand 8, single buffered']
    #allocation7 [shape = 's32[1]{0}', space=sflag, size = 0x4, scoped, tag = 'scoped memory for bilstm_forward.1']
    #allocation8 [shape = 'u8[512]{0}', space=vmem, size = 0x400, scoped, tag = 'input window, operand 10, single buffered']
    #allocation9 [shape = 's32[1]{0}', space=sflag, size = 0x4, scoped, tag = 'scoped memory for bilstm_forward.1']
    %16 = vsyncpa [#allocation7], 0
    %17 = vsyncpa [#allocation9], 0
    // Predicated region
    $region2: #{bilstm_forward.1} parent=1 // pred_check
      _
    $region3: #{bilstm_forward.1} parent=1 // pred_check_branch
      %19 = sbr.rel (0) target = $region5
    $region4: #{bilstm_forward.1} parent=1 // pred_region
      _
    $region5: #{bilstm_forward.1} parent=1 // pred_fallthru
      _
    // Predicated region
    $region6: #{bilstm_forward.1} parent=1 // pred_check
      _
    $region7: #{bilstm_forward.1} parent=1 // pred_check_branch
      %21 = sbr.rel (0) target = $region9
    $region8: #{bilstm_forward.1} parent=1 // pred_region
      _
    $region9: #{bilstm_forward.1} parent=1 // pred_fallthru
      _
    // Predicated region
    $region10: #{bilstm_forward.1} parent=1 // pred_check
      _
    $region11: #{bilstm_forward.1} parent=1 // pred_check_branch
      %23 = sbr.rel (0) target = $region13
    $region12: #{bilstm_forward.1} parent=1 // pred_region
      _
    $region13: #{bilstm_forward.1} parent=1 // pred_fallthru
      _
    // Predicated region
    $region14: #{bilstm_forward.1} parent=1 // pred_check
      _
    $region15: #{bilstm_forward.1} parent=1 // pred_check_branch
      %25 = sbr.rel (0) target = $region17
    $region16: #{bilstm_forward.1} parent=1 // pred_region
      _
    $region17: #{bilstm_forward.1} parent=1 // pred_fallthru
      _
    // Predicated region
    $region18: #{bilstm_forward.1} parent=1 // pred_check
      _
    $region19: #{bilstm_forward.1} parent=1 // pred_check_branch
      %27 = sbr.rel (0) target = $region21
    $region20: #{bilstm_forward.1} parent=1 // pred_region
      %s29 = ssub.s32 16, 16
      %30 = vsyncadd [#allocation7], %s29
      %s32 = sshll.u32 [#allocation6], 4
      %s33 = int_to_ptr.vmem [resolvable:$true] %s32
      %35 = dma.hbm_to_vmem [thread:$0]  %s8, 16, %s33, [#allocation7]
    $region21: #{bilstm_forward.1} parent=1 // pred_fallthru
      _
    // Predicated region
    $region22: #{bilstm_forward.1} parent=1 // pred_check
      _
    $region23: #{bilstm_forward.1} parent=1 // pred_check_branch
      %37 = sbr.rel (0) target = $region25
    $region24: #{bilstm_forward.1} parent=1 // pred_region
      _
    $region25: #{bilstm_forward.1} parent=1 // pred_fallthru
      _
    // Predicated region
    $region26: #{bilstm_forward.1} parent=1 // pred_check
      _
    $region27: #{bilstm_forward.1} parent=1 // pred_check_branch
      %39 = sbr.rel (0) target = $region29
    $region28: #{bilstm_forward.1} parent=1 // pred_region
      %s41 = ssub.s32 16, 16
      %42 = vsyncadd [#allocation9], %s41
      %s44 = sshll.u32 [#allocation8], 4
      %s45 = int_to_ptr.vmem [resolvable:$true] %s44
      %47 = dma.hbm_to_vmem [thread:$0]  %s10, 16, %s45, [#allocation9]
    $region29: #{bilstm_forward.1} parent=1 // pred_fallthru
      _
    // Predicated region
    $region30: #{bilstm_forward.1} parent=1 // pred_check
      _
    $region31: #{bilstm_forward.1} parent=1 // pred_check_branch
      %49 = sbr.rel (0) target = $region33
    $region32: #{bilstm_forward.1} parent=1 // pred_region
      %50 = dma.done [#allocation7], 16
    $region33: #{bilstm_forward.1} parent=1 // pred_fallthru
      _
    // Predicated region
    $region34: #{bilstm_forward.1} parent=1 // pred_check
      _
    $region35: #{bilstm_forward.1} parent=1 // pred_check_branch
      %52 = sbr.rel (0) target = $region37
    $region36: #{bilstm_forward.1} parent=1 // pred_region
      %53 = dma.done [#allocation9], 16
    $region37: #{bilstm_forward.1} parent=1 // pred_fallthru
      _
    // Predicated region
    $region38: #{bilstm_forward.1} parent=1 // pred_check
      _
    $region39: #{bilstm_forward.1} parent=1 // pred_check_branch
      %56 = sbr.rel target = $region41
    $region40: #{bilstm_forward.1} parent=1 // pred_region
      %57 = sst [smem:[#allocation12]] [#allocation11]
      %58 = sst [smem:[#allocation13]] [#allocation10]
    $region41: #{bilstm_forward.1} parent=1 // pred_fallthru
      _
    %60 = shalt.err (0)
    %s62 = sshll.u32 [#allocation3], 4
    %s63 = int_to_ptr.vmem [resolvable:$true] %s62
    %65 = dma.hbm_to_vmem [thread:$0]  %s1, 8192, %s63, [#allocation5]
    %s66 = scalar_lea.sflag [#allocation5], 1
    // Predicated region
    $region42: #{bilstm_forward.1} parent=1 // pred_check
      _
    $region43: #{bilstm_forward.1} parent=1 // pred_check_branch
      %68 = sbr.rel target = $region45
    $region44: #{bilstm_forward.1} parent=1 // pred_region
      %69 = sst [smem:[#allocation12]] [#allocation15]
      %70 = sst [smem:[#allocation13]] [#allocation14]
    $region45: #{bilstm_forward.1} parent=1 // pred_fallthru
      _
    %72 = shalt.err (0)
    %s74 = sshll.u32 [#allocation4], 4
    %s75 = int_to_ptr.vmem [resolvable:$true] %s74
    %77 = dma.hbm_to_vmem [thread:$0]  %s2, 8192, %s75, %s66
    %v78 = vld [vmem:[%s0] sm:$0xf]
    %v79 = vld [vmem:[%s0 + $0x4] sm:$0xf]
    %v80 = vld [vmem:[%s0 + $0x8] sm:$0xf]
    %v81 = vld [vmem:[%s0 + $0xc] sm:$0xf]
    %v82 = vld [vmem:[%s0 + $0x10] sm:$0xf]
    %v83 = vld [vmem:[%s0 + $0x14] sm:$0xf]
    %v84 = vld [vmem:[%s0 + $0x18] sm:$0xf]
    %v85 = vld [vmem:[%s0 + $0x1c] sm:$0xf]
    %v86 = vld [vmem:[%s0 + $0x20] sm:$0xf]
    %v87 = vld [vmem:[%s0 + $0x24] sm:$0xf]
    %v88 = vld [vmem:[%s0 + $0x28] sm:$0xf]
    %v89 = vld [vmem:[%s0 + $0x2c] sm:$0xf]
    %v90 = vld [vmem:[%s0 + $0x30] sm:$0xf]
    %v91 = vld [vmem:[%s0 + $0x34] sm:$0xf]
    %v92 = vld [vmem:[%s0 + $0x38] sm:$0xf]
    %v93 = vld [vmem:[%s0 + $0x3c] sm:$0xf]
    %s94 = smul.u32 4, 16
    %s95 = smul.u32 %s94, 8
    %s96 = sshll.u32 %s95, 4
    %97 = dma.done [#allocation5], %s96
    %s98 = smul.u32 4, 32
    %s99 = smul.u32 %s98, 4
    %s100 = sshll.u32 %s99, 4
    %101 = dma.done %s66, %s100
    %s102 = scalar_lea.vmem [#allocation3], 1024
    %s103 = scalar_lea.sflag [#allocation5], 2
    // Predicated region
    $region46: #{bilstm_forward.1} parent=1 // pred_check
      _
    $region47: #{bilstm_forward.1} parent=1 // pred_check_branch
      %105 = sbr.rel target = $region49
    $region48: #{bilstm_forward.1} parent=1 // pred_region
      %106 = sst [smem:[#allocation12]] [#allocation17]
      %107 = sst [smem:[#allocation13]] [#allocation16]
    $region49: #{bilstm_forward.1} parent=1 // pred_fallthru
      _
    %109 = shalt.err (0)
    %s111 = sshll.u32 %s102, 4
    %s112 = int_to_ptr.vmem [resolvable:$true] %s111
    %114 = dma.hbm_to_vmem [thread:$0]  %s4, 16384, %s112, %s103
    %s115 = scalar_lea.vmem [#allocation4], 512
    %s116 = scalar_lea.sflag [#allocation5], 3
    // Predicated region
    $region50: #{bilstm_forward.1} parent=1 // pred_check
      _
    $region51: #{bilstm_forward.1} parent=1 // pred_check_branch
      %118 = sbr.rel target = $region53
    $region52: #{bilstm_forward.1} parent=1 // pred_region
      %119 = sst [smem:[#allocation12]] [#allocation19]
      %120 = sst [smem:[#allocation13]] [#allocation18]
    $region53: #{bilstm_forward.1} parent=1 // pred_fallthru
      _
    %122 = shalt.err (0)
    %s124 = sshll.u32 %s115, 4
    %s125 = int_to_ptr.vmem [resolvable:$true] %s124
    %127 = dma.hbm_to_vmem [thread:$0]  %s5, 8192, %s125, %s116
    %v128 = vld [vmem:[#allocation3] sm:$0xff]
    %v129 = vld [vmem:[#allocation3 + $0x8] sm:$0xff]
    %v130 = vld [vmem:[#allocation3 + $0x10] sm:$0xff]
    %v131 = vld [vmem:[#allocation3 + $0x18] sm:$0xff]
    %v132 = vld [vmem:[#allocation3 + $0x20] sm:$0xff]
    %v133 = vld [vmem:[#allocation3 + $0x28] sm:$0xff]
    %v134 = vld [vmem:[#allocation3 + $0x30] sm:$0xff]
    %v135 = vld [vmem:[#allocation3 + $0x38] sm:$0xff]
    %v136 = vld [vmem:[#allocation3 + $0x40] sm:$0xff]
    %v137 = vld [vmem:[#allocation3 + $0x48] sm:$0xff]
    %v138 = vld [vmem:[#allocation3 + $0x50] sm:$0xff]
    %v139 = vld [vmem:[#allocation3 + $0x58] sm:$0xff]
    %v140 = vld [vmem:[#allocation3 + $0x60] sm:$0xff]
    %v141 = vld [vmem:[#allocation3 + $0x68] sm:$0xff]
    %v142 = vld [vmem:[#allocation3 + $0x70] sm:$0xff]
    %v143 = vld [vmem:[#allocation3 + $0x78] sm:$0xff]
    %v144 = vld [vmem:[#allocation3 + $0x80] sm:$0xff]
    %v145 = vld [vmem:[#allocation3 + $0x88] sm:$0xff]
    %v146 = vld [vmem:[#allocation3 + $0x90] sm:$0xff]
    %v147 = vld [vmem:[#allocation3 + $0x98] sm:$0xff]
    %v148 = vld [vmem:[#allocation3 + $0xa0] sm:$0xff]
    %v149 = vld [vmem:[#allocation3 + $0xa8] sm:$0xff]
    %v150 = vld [vmem:[#allocation3 + $0xb0] sm:$0xff]
    %v151 = vld [vmem:[#allocation3 + $0xb8] sm:$0xff]
    %v152 = vld [vmem:[#allocation3 + $0xc0] sm:$0xff]
    %v153 = vld [vmem:[#allocation3 + $0xc8] sm:$0xff]
    %v154 = vld [vmem:[#allocation3 + $0xd0] sm:$0xff]
    %v155 = vld [vmem:[#allocation3 + $0xd8] sm:$0xff]
    %v156 = vld [vmem:[#allocation3 + $0xe0] sm:$0xff]
    %v157 = vld [vmem:[#allocation3 + $0xe8] sm:$0xff]
    %v158 = vld [vmem:[#allocation3 + $0xf0] sm:$0xff]
    %v159 = vld [vmem:[#allocation3 + $0xf8] sm:$0xff]
    %v160 = vld [vmem:[#allocation3 + $0x100] sm:$0xff]
    %v161 = vld [vmem:[#allocation3 + $0x108] sm:$0xff]
    %v162 = vld [vmem:[#allocation3 + $0x110] sm:$0xff]
    %v163 = vld [vmem:[#allocation3 + $0x118] sm:$0xff]
    %v164 = vld [vmem:[#allocation3 + $0x120] sm:$0xff]
    %v165 = vld [vmem:[#allocation3 + $0x128] sm:$0xff]
    %v166 = vld [vmem:[#allocation3 + $0x130] sm:$0xff]
    %v167 = vld [vmem:[#allocation3 + $0x138] sm:$0xff]
    %v168 = vld [vmem:[#allocation3 + $0x140] sm:$0xff]
    %v169 = vld [vmem:[#allocation3 + $0x148] sm:$0xff]
    %v170 = vld [vmem:[#allocation3 + $0x150] sm:$0xff]
    %v171 = vld [vmem:[#allocation3 + $0x158] sm:$0xff]
    %v172 = vld [vmem:[#allocation3 + $0x160] sm:$0xff]
    %v173 = vld [vmem:[#allocation3 + $0x168] sm:$0xff]
    %v174 = vld [vmem:[#allocation3 + $0x170] sm:$0xff]
    %v175 = vld [vmem:[#allocation3 + $0x178] sm:$0xff]
    %v176 = vld [vmem:[#allocation3 + $0x180] sm:$0xff]
    %v177 = vld [vmem:[#allocation3 + $0x188] sm:$0xff]
    %v178 = vld [vmem:[#allocation3 + $0x190] sm:$0xff]
    %v179 = vld [vmem:[#allocation3 + $0x198] sm:$0xff]
    %v180 = vld [vmem:[#allocation3 + $0x1a0] sm:$0xff]
    %v181 = vld [vmem:[#allocation3 + $0x1a8] sm:$0xff]
    %v182 = vld [vmem:[#allocation3 + $0x1b0] sm:$0xff]
    %v183 = vld [vmem:[#allocation3 + $0x1b8] sm:$0xff]
    %v184 = vld [vmem:[#allocation3 + $0x1c0] sm:$0xff]
    %v185 = vld [vmem:[#allocation3 + $0x1c8] sm:$0xff]
    %v186 = vld [vmem:[#allocation3 + $0x1d0] sm:$0xff]
    %v187 = vld [vmem:[#allocation3 + $0x1d8] sm:$0xff]
    %v188 = vld [vmem:[#allocation3 + $0x1e0] sm:$0xff]
    %v189 = vld [vmem:[#allocation3 + $0x1e8] sm:$0xff]
    %v190 = vld [vmem:[#allocation3 + $0x1f0] sm:$0xff]
    %v191 = vld [vmem:[#allocation3 + $0x1f8] sm:$0xff]
    %v192 = vld [vmem:[#allocation4] sm:$0xff]
    %v193 = vld [vmem:[#allocation4 + $0x8] sm:$0xff]
    %v194 = vld [vmem:[#allocation4 + $0x10] sm:$0xff]
    %v195 = vld [vmem:[#allocation4 + $0x18] sm:$0xff]
    %v196 = vld [vmem:[#allocation4 + $0x20] sm:$0xff]
    %v197 = vld [vmem:[#allocation4 + $0x28] sm:$0xff]
    %v198 = vld [vmem:[#allocation4 + $0x30] sm:$0xff]
    %v199 = vld [vmem:[#allocation4 + $0x38] sm:$0xff]
    %v200 = vld [vmem:[#allocation4 + $0x40] sm:$0xff]
    %v201 = vld [vmem:[#allocation4 + $0x48] sm:$0xff]
    %v202 = vld [vmem:[#allocation4 + $0x50] sm:$0xff]
    %v203 = vld [vmem:[#allocation4 + $0x58] sm:$0xff]
    %v204 = vld [vmem:[#allocation4 + $0x60] sm:$0xff]
    %v205 = vld [vmem:[#allocation4 + $0x68] sm:$0xff]
    %v206 = vld [vmem:[#allocation4 + $0x70] sm:$0xff]
    %v207 = vld [vmem:[#allocation4 + $0x78] sm:$0xff]
    %v208 = vld [vmem:[#allocation4 + $0x80] sm:$0xff]
    %v209 = vld [vmem:[#allocation4 + $0x88] sm:$0xff]
    %v210 = vld [vmem:[#allocation4 + $0x90] sm:$0xff]
    %v211 = vld [vmem:[#allocation4 + $0x98] sm:$0xff]
    %v212 = vld [vmem:[#allocation4 + $0xa0] sm:$0xff]
    %v213 = vld [vmem:[#allocation4 + $0xa8] sm:$0xff]
    %v214 = vld [vmem:[#allocation4 + $0xb0] sm:$0xff]
    %v215 = vld [vmem:[#allocation4 + $0xb8] sm:$0xff]
    %v216 = vld [vmem:[#allocation4 + $0xc0] sm:$0xff]
    %v217 = vld [vmem:[#allocation4 + $0xc8] sm:$0xff]
    %v218 = vld [vmem:[#allocation4 + $0xd0] sm:$0xff]
    %v219 = vld [vmem:[#allocation4 + $0xd8] sm:$0xff]
    %v220 = vld [vmem:[#allocation4 + $0xe0] sm:$0xff]
    %v221 = vld [vmem:[#allocation4 + $0xe8] sm:$0xff]
    %v222 = vld [vmem:[#allocation4 + $0xf0] sm:$0xff]
    %v223 = vld [vmem:[#allocation4 + $0xf8] sm:$0xff]
    %v224 = vld [vmem:[#allocation4 + $0x100] sm:$0xff]
    %v225 = vld [vmem:[#allocation4 + $0x108] sm:$0xff]
    %v226 = vld [vmem:[#allocation4 + $0x110] sm:$0xff]
    %v227 = vld [vmem:[#allocation4 + $0x118] sm:$0xff]
    %v228 = vld [vmem:[#allocation4 + $0x120] sm:$0xff]
    %v229 = vld [vmem:[#allocation4 + $0x128] sm:$0xff]
    %v230 = vld [vmem:[#allocation4 + $0x130] sm:$0xff]
    %v231 = vld [vmem:[#allocation4 + $0x138] sm:$0xff]
    %v232 = vld [vmem:[#allocation4 + $0x140] sm:$0xff]
    %v233 = vld [vmem:[#allocation4 + $0x148] sm:$0xff]
    %v234 = vld [vmem:[#allocation4 + $0x150] sm:$0xff]
    %v235 = vld [vmem:[#allocation4 + $0x158] sm:$0xff]
    %v236 = vld [vmem:[#allocation4 + $0x160] sm:$0xff]
    %v237 = vld [vmem:[#allocation4 + $0x168] sm:$0xff]
    %v238 = vld [vmem:[#allocation4 + $0x170] sm:$0xff]
    %v239 = vld [vmem:[#allocation4 + $0x178] sm:$0xff]
    %v240 = vld [vmem:[#allocation4 + $0x180] sm:$0xff]
    %v241 = vld [vmem:[#allocation4 + $0x188] sm:$0xff]
    %v242 = vld [vmem:[#allocation4 + $0x190] sm:$0xff]
    %v243 = vld [vmem:[#allocation4 + $0x198] sm:$0xff]
    %v244 = vld [vmem:[#allocation4 + $0x1a0] sm:$0xff]
    %v245 = vld [vmem:[#allocation4 + $0x1a8] sm:$0xff]
    %v246 = vld [vmem:[#allocation4 + $0x1b0] sm:$0xff]
    %v247 = vld [vmem:[#allocation4 + $0x1b8] sm:$0xff]
    %v248 = vld [vmem:[#allocation4 + $0x1c0] sm:$0xff]
    %v249 = vld [vmem:[#allocation4 + $0x1c8] sm:$0xff]
    %v250 = vld [vmem:[#allocation4 + $0x1d0] sm:$0xff]
    %v251 = vld [vmem:[#allocation4 + $0x1d8] sm:$0xff]
    %v252 = vld [vmem:[#allocation4 + $0x1e0] sm:$0xff]
    %v253 = vld [vmem:[#allocation4 + $0x1e8] sm:$0xff]
    %v254 = vld [vmem:[#allocation4 + $0x1f0] sm:$0xff]
    %v255 = vld [vmem:[#allocation4 + $0x1f8] sm:$0xff]
    %v256 = vld [vmem:[%s3] sm:$0xff]
    %v258 = vlaneseq
    %v259 = vshrl.u32 %v258, 7
    %v260 = vsub.s32 0, %v259
    %v261 = vrot.slane %v256, %v260
    %v262 = vlaneseq
    %v263 = vshrl.u32 %v262, 7
    %v264 = vsub.s32 1, %v263
    %v265 = vrot.slane %v256, %v264
    %v266 = vlaneseq
    %v267 = vshrl.u32 %v266, 7
    %v268 = vsub.s32 2, %v267
    %v269 = vrot.slane %v256, %v268
    %v270 = vlaneseq
    %v271 = vshrl.u32 %v270, 7
    %v272 = vsub.s32 3, %v271
    %v273 = vrot.slane %v256, %v272
    %v274 = vlaneseq
    %v275 = vshrl.u32 %v274, 7
    %v276 = vsub.s32 4, %v275
    %v277 = vrot.slane %v256, %v276
    %v278 = vlaneseq
    %v279 = vshrl.u32 %v278, 7
    %v280 = vsub.s32 5, %v279
    %v281 = vrot.slane %v256, %v280
    %v282 = vlaneseq
    %v283 = vshrl.u32 %v282, 7
    %v284 = vsub.s32 6, %v283
    %v285 = vrot.slane %v256, %v284
    %v286 = vlaneseq
    %v287 = vshrl.u32 %v286, 7
    %v288 = vsub.s32 7, %v287
    %v289 = vrot.slane %v256, %v288
    %v314 = vunpack.c.l.b16 %v78
    %v315 = vunpack.c.l.b16 %v79
    %v316 = vunpack.c.l.b16 %v80
    %v317 = vunpack.c.l.b16 %v81
    %v318 = vunpack.c.l.b16 %v82
    %v319 = vunpack.c.l.b16 %v83
    %v320 = vunpack.c.l.b16 %v84
    %v321 = vunpack.c.l.b16 %v85
    %v322 = vunpack.c.l.b16 %v86
    %v323 = vunpack.c.l.b16 %v87
    %v324 = vunpack.c.l.b16 %v88
    %v325 = vunpack.c.l.b16 %v89
    %v326 = vunpack.c.l.b16 %v90
    %v327 = vunpack.c.l.b16 %v91
    %v328 = vunpack.c.l.b16 %v92
    %v329 = vunpack.c.l.b16 %v93
    %v330 = vpack.c.b16 %v315, %v314
    %v331 = vpack.c.b16 %v317, %v316
    %v332 = vpack.c.b16 %v319, %v318
    %v333 = vpack.c.b16 %v321, %v320
    %v334 = vpack.c.b16 %v323, %v322
    %v335 = vpack.c.b16 %v325, %v324
    %v336 = vpack.c.b16 %v327, %v326
    %v337 = vpack.c.b16 %v329, %v328
    %v410 = vunpack.c.l.b16 %v128
    %v411 = vunpack.c.h.b16 %v128
    %v412 = vunpack.c.l.b16 %v129
    %v413 = vunpack.c.h.b16 %v129
    %v414 = vunpack.c.l.b16 %v130
    %v415 = vunpack.c.h.b16 %v130
    %v416 = vunpack.c.l.b16 %v131
    %v417 = vunpack.c.h.b16 %v131
    %v418 = vunpack.c.l.b16 %v132
    %v419 = vunpack.c.h.b16 %v132
    %v420 = vunpack.c.l.b16 %v133
    %v421 = vunpack.c.h.b16 %v133
    %v422 = vunpack.c.l.b16 %v134
    %v423 = vunpack.c.h.b16 %v134
    %v424 = vunpack.c.l.b16 %v135
    %v425 = vunpack.c.h.b16 %v135
    %v426 = vunpack.c.l.b16 %v136
    %v427 = vunpack.c.h.b16 %v136
    %v428 = vunpack.c.l.b16 %v137
    %v429 = vunpack.c.h.b16 %v137
    %v430 = vunpack.c.l.b16 %v138
    %v431 = vunpack.c.h.b16 %v138
    %v432 = vunpack.c.l.b16 %v139
    %v433 = vunpack.c.h.b16 %v139
    %v434 = vunpack.c.l.b16 %v140
    %v435 = vunpack.c.h.b16 %v140
    %v436 = vunpack.c.l.b16 %v141
    %v437 = vunpack.c.h.b16 %v141
    %v438 = vunpack.c.l.b16 %v142
    %v439 = vunpack.c.h.b16 %v142
    %v440 = vunpack.c.l.b16 %v143
    %v441 = vunpack.c.h.b16 %v143
    %v442 = vunpack.c.l.b16 %v144
    %v443 = vunpack.c.h.b16 %v144
    %v444 = vunpack.c.l.b16 %v145
    %v445 = vunpack.c.h.b16 %v145
    %v446 = vunpack.c.l.b16 %v146
    %v447 = vunpack.c.h.b16 %v146
    %v448 = vunpack.c.l.b16 %v147
    %v449 = vunpack.c.h.b16 %v147
    %v450 = vunpack.c.l.b16 %v148
    %v451 = vunpack.c.h.b16 %v148
    %v452 = vunpack.c.l.b16 %v149
    %v453 = vunpack.c.h.b16 %v149
    %v454 = vunpack.c.l.b16 %v150
    %v455 = vunpack.c.h.b16 %v150
    %v456 = vunpack.c.l.b16 %v151
    %v457 = vunpack.c.h.b16 %v151
    %v458 = vunpack.c.l.b16 %v152
    %v459 = vunpack.c.h.b16 %v152
    %v460 = vunpack.c.l.b16 %v153
    %v461 = vunpack.c.h.b16 %v153
    %v462 = vunpack.c.l.b16 %v154
    %v463 = vunpack.c.h.b16 %v154
    %v464 = vunpack.c.l.b16 %v155
    %v465 = vunpack.c.h.b16 %v155
    %v466 = vunpack.c.l.b16 %v156
    %v467 = vunpack.c.h.b16 %v156
    %v468 = vunpack.c.l.b16 %v157
    %v469 = vunpack.c.h.b16 %v157
    %v470 = vunpack.c.l.b16 %v158
    %v471 = vunpack.c.h.b16 %v158
    %v472 = vunpack.c.l.b16 %v159
    %v473 = vunpack.c.h.b16 %v159
    %v474 = vunpack.c.l.b16 %v160
    %v475 = vunpack.c.h.b16 %v160
    %v476 = vunpack.c.l.b16 %v161
    %v477 = vunpack.c.h.b16 %v161
    %v478 = vunpack.c.l.b16 %v162
    %v479 = vunpack.c.h.b16 %v162
    %v480 = vunpack.c.l.b16 %v163
    %v481 = vunpack.c.h.b16 %v163
    %v482 = vunpack.c.l.b16 %v164
    %v483 = vunpack.c.h.b16 %v164
    %v484 = vunpack.c.l.b16 %v165
    %v485 = vunpack.c.h.b16 %v165
    %v486 = vunpack.c.l.b16 %v166
    %v487 = vunpack.c.h.b16 %v166
    %v488 = vunpack.c.l.b16 %v167
    %v489 = vunpack.c.h.b16 %v167
    %v490 = vunpack.c.l.b16 %v168
    %v491 = vunpack.c.h.b16 %v168
    %v492 = vunpack.c.l.b16 %v169
    %v493 = vunpack.c.h.b16 %v169
    %v494 = vunpack.c.l.b16 %v170
    %v495 = vunpack.c.h.b16 %v170
    %v496 = vunpack.c.l.b16 %v171
    %v497 = vunpack.c.h.b16 %v171
    %v498 = vunpack.c.l.b16 %v172
    %v499 = vunpack.c.h.b16 %v172
    %v500 = vunpack.c.l.b16 %v173
    %v501 = vunpack.c.h.b16 %v173
    %v502 = vunpack.c.l.b16 %v174
    %v503 = vunpack.c.h.b16 %v174
    %v504 = vunpack.c.l.b16 %v175
    %v505 = vunpack.c.h.b16 %v175
    %v506 = vunpack.c.l.b16 %v176
    %v507 = vunpack.c.h.b16 %v176
    %v508 = vunpack.c.l.b16 %v177
    %v509 = vunpack.c.h.b16 %v177
    %v510 = vunpack.c.l.b16 %v178
    %v511 = vunpack.c.h.b16 %v178
    %v512 = vunpack.c.l.b16 %v179
    %v513 = vunpack.c.h.b16 %v179
    %v514 = vunpack.c.l.b16 %v180
    %v515 = vunpack.c.h.b16 %v180
    %v516 = vunpack.c.l.b16 %v181
    %v517 = vunpack.c.h.b16 %v181
    %v518 = vunpack.c.l.b16 %v182
    %v519 = vunpack.c.h.b16 %v182
    %v520 = vunpack.c.l.b16 %v183
    %v521 = vunpack.c.h.b16 %v183
    %v522 = vunpack.c.l.b16 %v184
    %v523 = vunpack.c.h.b16 %v184
    %v524 = vunpack.c.l.b16 %v185
    %v525 = vunpack.c.h.b16 %v185
    %v526 = vunpack.c.l.b16 %v186
    %v527 = vunpack.c.h.b16 %v186
    %v528 = vunpack.c.l.b16 %v187
    %v529 = vunpack.c.h.b16 %v187
    %v530 = vunpack.c.l.b16 %v188
    %v531 = vunpack.c.h.b16 %v188
    %v532 = vunpack.c.l.b16 %v189
    %v533 = vunpack.c.h.b16 %v189
    %v534 = vunpack.c.l.b16 %v190
    %v535 = vunpack.c.h.b16 %v190
    %v536 = vunpack.c.l.b16 %v191
    %v537 = vunpack.c.h.b16 %v191
    %v538 = vpack.c.b16 %v418, %v410
    %v539 = vpack.c.b16 %v419, %v411
    %v540 = vpack.c.b16 %v420, %v412
    %v541 = vpack.c.b16 %v421, %v413
    %v542 = vpack.c.b16 %v422, %v414
    %v543 = vpack.c.b16 %v423, %v415
    %v544 = vpack.c.b16 %v424, %v416
    %v545 = vpack.c.b16 %v425, %v417
    %v546 = vpack.c.b16 %v434, %v426
    %v547 = vpack.c.b16 %v435, %v427
    %v548 = vpack.c.b16 %v436, %v428
    %v549 = vpack.c.b16 %v437, %v429
    %v550 = vpack.c.b16 %v438, %v430
    %v551 = vpack.c.b16 %v439, %v431
    %v552 = vpack.c.b16 %v440, %v432
    %v553 = vpack.c.b16 %v441, %v433
    %v554 = vpack.c.b16 %v450, %v442
    %v555 = vpack.c.b16 %v451, %v443
    %v556 = vpack.c.b16 %v452, %v444
    %v557 = vpack.c.b16 %v453, %v445
    %v558 = vpack.c.b16 %v454, %v446
    %v559 = vpack.c.b16 %v455, %v447
    %v560 = vpack.c.b16 %v456, %v448
    %v561 = vpack.c.b16 %v457, %v449
    %v562 = vpack.c.b16 %v466, %v458
    %v563 = vpack.c.b16 %v467, %v459
    %v564 = vpack.c.b16 %v468, %v460
    %v565 = vpack.c.b16 %v469, %v461
    %v566 = vpack.c.b16 %v470, %v462
    %v567 = vpack.c.b16 %v471, %v463
    %v568 = vpack.c.b16 %v472, %v464
    %v569 = vpack.c.b16 %v473, %v465
    %v570 = vpack.c.b16 %v482, %v474
    %v571 = vpack.c.b16 %v483, %v475
    %v572 = vpack.c.b16 %v484, %v476
    %v573 = vpack.c.b16 %v485, %v477
    %v574 = vpack.c.b16 %v486, %v478
    %v575 = vpack.c.b16 %v487, %v479
    %v576 = vpack.c.b16 %v488, %v480
    %v577 = vpack.c.b16 %v489, %v481
    %v578 = vpack.c.b16 %v498, %v490
    %v579 = vpack.c.b16 %v499, %v491
    %v580 = vpack.c.b16 %v500, %v492
    %v581 = vpack.c.b16 %v501, %v493
    %v582 = vpack.c.b16 %v502, %v494
    %v583 = vpack.c.b16 %v503, %v495
    %v584 = vpack.c.b16 %v504, %v496
    %v585 = vpack.c.b16 %v505, %v497
    %v586 = vpack.c.b16 %v514, %v506
    %v587 = vpack.c.b16 %v515, %v507
    %v588 = vpack.c.b16 %v516, %v508
    %v589 = vpack.c.b16 %v517, %v509
    %v590 = vpack.c.b16 %v518, %v510
    %v591 = vpack.c.b16 %v519, %v511
    %v592 = vpack.c.b16 %v520, %v512
    %v593 = vpack.c.b16 %v521, %v513
    %v594 = vpack.c.b16 %v530, %v522
    %v595 = vpack.c.b16 %v531, %v523
    %v596 = vpack.c.b16 %v532, %v524
    %v597 = vpack.c.b16 %v533, %v525
    %v598 = vpack.c.b16 %v534, %v526
    %v599 = vpack.c.b16 %v535, %v527
    %v600 = vpack.c.b16 %v536, %v528
    %v601 = vpack.c.b16 %v537, %v529
    %666 = vmatprep.subr.bf16.mxu0 %v595
    %667 = vmatpush1.bf16.msra.mxu0 %v594
    %668 = vmatprep.subr.bf16.mxu0 %v587
    %669 = vmatpush1.bf16.msra.mxu0 %v586
    %670 = vmatprep.subr.bf16.mxu0 %v579
    %671 = vmatpush1.bf16.msra.mxu0 %v578
    %672 = vmatprep.subr.bf16.mxu0 %v571
    %673 = vmatpush1.bf16.msra.mxu0 %v570
    %674 = vmatprep.subr.bf16.mxu0 %v563
    %675 = vmatpush1.bf16.msra.mxu0 %v562
    %676 = vmatprep.subr.bf16.mxu0 %v555
    %677 = vmatpush1.bf16.msra.mxu0 %v554
    %678 = vmatprep.subr.bf16.mxu0 %v547
    %679 = vmatpush1.bf16.msra.mxu0 %v546
    %680 = vmatprep.subr.bf16.mxu0 %v539
    %681 = vmatpush1.bf16.msra.mxu0 %v538
    %682 = vmatprep.subr.bf16.mxu0 0
    %683 = vmatpush2.bf16.msra.mxu0 0
    %684 = vmatprep.subr.bf16.mxu0 0
    %685 = vmatpush2.bf16.msra.mxu0 0
    %686 = vmatprep.subr.bf16.mxu0 0
    %687 = vmatpush2.bf16.msra.mxu0 0
    %688 = vmatprep.subr.bf16.mxu0 0
    %689 = vmatpush2.bf16.msra.mxu0 0
    %690 = vmatprep.subr.bf16.mxu0 0
    %691 = vmatpush2.bf16.msra.mxu0 0
    %692 = vmatprep.subr.bf16.mxu0 0
    %693 = vmatpush2.bf16.msra.mxu0 0
    %694 = vmatprep.subr.bf16.mxu0 0
    %695 = vmatpush2.bf16.msra.mxu0 0
    %696 = vmatprep.subr.bf16.mxu0 0
    %697 = vmatpush2.bf16.msra.mxu0 0
    %698 = vmatprep.mubr.bf16.mxu0 0
    %699 = vmatmul.mubr.bf16.gmra.mxu0 %v330
    %v700 = vpop.f32.mrf.mxu0
    %v701 = vadd.f32 %v261, %v700
    %v702 = vpop.f32.mrf.mxu0
    %v703 = vadd.f32 %v265, %v702
    %v704 = vpop.f32.mrf.mxu0
    %v705 = vadd.f32 %v261, %v704
    %v706 = vpop.f32.mrf.mxu0
    %v707 = vadd.f32 %v265, %v706
    %708 = vmatprep.mubr.bf16.mxu0 0
    %709 = vmatmul.mubr.bf16.gmra.mxu0 %v331
    %v710 = vpop.f32.mrf.mxu0
    %v711 = vadd.f32 %v261, %v710
    %v712 = vpop.f32.mrf.mxu0
    %v713 = vadd.f32 %v265, %v712
    %v714 = vpop.f32.mrf.mxu0
    %v715 = vadd.f32 %v261, %v714
    %v716 = vpop.f32.mrf.mxu0
    %v717 = vadd.f32 %v265, %v716
    %718 = vmatprep.mubr.bf16.mxu0 0
    %719 = vmatmul.mubr.bf16.gmra.mxu0 %v332
    %v720 = vpop.f32.mrf.mxu0
    %v721 = vadd.f32 %v261, %v720
    %v722 = vpop.f32.mrf.mxu0
    %v723 = vadd.f32 %v265, %v722
    %v724 = vpop.f32.mrf.mxu0
    %v725 = vadd.f32 %v261, %v724
    %v726 = vpop.f32.mrf.mxu0
    %v727 = vadd.f32 %v265, %v726
    %728 = vmatprep.mubr.bf16.mxu0 0
    %729 = vmatmul.mubr.bf16.gmra.mxu0 %v333
    %v730 = vpop.f32.mrf.mxu0
    %v731 = vadd.f32 %v261, %v730
    %v732 = vpop.f32.mrf.mxu0
    %v733 = vadd.f32 %v265, %v732
    %v734 = vpop.f32.mrf.mxu0
    %v735 = vadd.f32 %v261, %v734
    %v736 = vpop.f32.mrf.mxu0
    %v737 = vadd.f32 %v265, %v736
    %738 = vmatprep.mubr.bf16.mxu0 0
    %739 = vmatmul.mubr.bf16.gmra.mxu0 %v334
    %v740 = vpop.f32.mrf.mxu0
    %v741 = vadd.f32 %v261, %v740
    %v742 = vpop.f32.mrf.mxu0
    %v743 = vadd.f32 %v265, %v742
    %v744 = vpop.f32.mrf.mxu0
    %v745 = vadd.f32 %v261, %v744
    %v746 = vpop.f32.mrf.mxu0
    %v747 = vadd.f32 %v265, %v746
    %748 = vmatprep.mubr.bf16.mxu0 0
    %749 = vmatmul.mubr.bf16.gmra.mxu0 %v335
    %v750 = vpop.f32.mrf.mxu0
    %v751 = vadd.f32 %v261, %v750
    %v752 = vpop.f32.mrf.mxu0
    %v753 = vadd.f32 %v265, %v752
    %v754 = vpop.f32.mrf.mxu0
    %v755 = vadd.f32 %v261, %v754
    %v756 = vpop.f32.mrf.mxu0
    %v757 = vadd.f32 %v265, %v756
    %758 = vmatprep.mubr.bf16.mxu0 0
    %759 = vmatmul.mubr.bf16.gmra.mxu0 %v336
    %v760 = vpop.f32.mrf.mxu0
    %v761 = vadd.f32 %v261, %v760
    %v762 = vpop.f32.mrf.mxu0
    %v763 = vadd.f32 %v265, %v762
    %v764 = vpop.f32.mrf.mxu0
    %v765 = vadd.f32 %v261, %v764
    %v766 = vpop.f32.mrf.mxu0
    %v767 = vadd.f32 %v265, %v766
    %768 = vmatprep.mubr.bf16.mxu0 0
    %769 = vmatmul.mubr.bf16.gmra.mxu0 %v337
    %v770 = vpop.f32.mrf.mxu0
    %v771 = vadd.f32 %v261, %v770
    %v772 = vpop.f32.mrf.mxu0
    %v773 = vadd.f32 %v265, %v772
    %v774 = vpop.f32.mrf.mxu0
    %v775 = vadd.f32 %v261, %v774
    %v776 = vpop.f32.mrf.mxu0
    %v777 = vadd.f32 %v265, %v776
    %778 = vdwg.mxu0
    %779 = vmatprep.subr.bf16.mxu0 %v597
    %780 = vmatpush1.bf16.msra.mxu0 %v596
    %781 = vmatprep.subr.bf16.mxu0 %v589
    %782 = vmatpush1.bf16.msra.mxu0 %v588
    %783 = vmatprep.subr.bf16.mxu0 %v581
    %784 = vmatpush1.bf16.msra.mxu0 %v580
    %785 = vmatprep.subr.bf16.mxu0 %v573
    %786 = vmatpush1.bf16.msra.mxu0 %v572
    %787 = vmatprep.subr.bf16.mxu0 %v565
    %788 = vmatpush1.bf16.msra.mxu0 %v564
    %789 = vmatprep.subr.bf16.mxu0 %v557
    %790 = vmatpush1.bf16.msra.mxu0 %v556
    %791 = vmatprep.subr.bf16.mxu0 %v549
    %792 = vmatpush1.bf16.msra.mxu0 %v548
    %793 = vmatprep.subr.bf16.mxu0 %v541
    %794 = vmatpush1.bf16.msra.mxu0 %v540
    %795 = vmatprep.subr.bf16.mxu0 0
    %796 = vmatpush2.bf16.msra.mxu0 0
    %797 = vmatprep.subr.bf16.mxu0 0
    %798 = vmatpush2.bf16.msra.mxu0 0
    %799 = vmatprep.subr.bf16.mxu0 0
    %800 = vmatpush2.bf16.msra.mxu0 0
    %801 = vmatprep.subr.bf16.mxu0 0
    %802 = vmatpush2.bf16.msra.mxu0 0
    %803 = vmatprep.subr.bf16.mxu0 0
    %804 = vmatpush2.bf16.msra.mxu0 0
    %805 = vmatprep.subr.bf16.mxu0 0
    %806 = vmatpush2.bf16.msra.mxu0 0
    %807 = vmatprep.subr.bf16.mxu0 0
    %808 = vmatpush2.bf16.msra.mxu0 0
    %809 = vmatprep.subr.bf16.mxu0 0
    %810 = vmatpush2.bf16.msra.mxu0 0
    %811 = vmatprep.mubr.bf16.mxu0 0
    %812 = vmatmul.mubr.bf16.gmra.mxu0 %v330
    %v813 = vpop.f32.mrf.mxu0
    %v814 = vadd.f32 %v269, %v813
    %v815 = vpop.f32.mrf.mxu0
    %v816 = vadd.f32 %v273, %v815
    %v817 = vpop.f32.mrf.mxu0
    %v818 = vadd.f32 %v269, %v817
    %v819 = vpop.f32.mrf.mxu0
    %v820 = vadd.f32 %v273, %v819
    %821 = vmatprep.mubr.bf16.mxu0 0
    %822 = vmatmul.mubr.bf16.gmra.mxu0 %v331
    %v823 = vpop.f32.mrf.mxu0
    %v824 = vadd.f32 %v269, %v823
    %v825 = vpop.f32.mrf.mxu0
    %v826 = vadd.f32 %v273, %v825
    %v827 = vpop.f32.mrf.mxu0
    %v828 = vadd.f32 %v269, %v827
    %v829 = vpop.f32.mrf.mxu0
    %v830 = vadd.f32 %v273, %v829
    %831 = vmatprep.mubr.bf16.mxu0 0
    %832 = vmatmul.mubr.bf16.gmra.mxu0 %v332
    %v833 = vpop.f32.mrf.mxu0
    %v834 = vadd.f32 %v269, %v833
    %v835 = vpop.f32.mrf.mxu0
    %v836 = vadd.f32 %v273, %v835
    %v837 = vpop.f32.mrf.mxu0
    %v838 = vadd.f32 %v269, %v837
    %v839 = vpop.f32.mrf.mxu0
    %v840 = vadd.f32 %v273, %v839
    %841 = vmatprep.mubr.bf16.mxu0 0
    %842 = vmatmul.mubr.bf16.gmra.mxu0 %v333
    %v843 = vpop.f32.mrf.mxu0
    %v844 = vadd.f32 %v269, %v843
    %v845 = vpop.f32.mrf.mxu0
    %v846 = vadd.f32 %v273, %v845
    %v847 = vpop.f32.mrf.mxu0
    %v848 = vadd.f32 %v269, %v847
    %v849 = vpop.f32.mrf.mxu0
    %v850 = vadd.f32 %v273, %v849
    %851 = vmatprep.mubr.bf16.mxu0 0
    %852 = vmatmul.mubr.bf16.gmra.mxu0 %v334
    %v853 = vpop.f32.mrf.mxu0
    %v854 = vadd.f32 %v269, %v853
    %v855 = vpop.f32.mrf.mxu0
    %v856 = vadd.f32 %v273, %v855
    %v857 = vpop.f32.mrf.mxu0
    %v858 = vadd.f32 %v269, %v857
    %v859 = vpop.f32.mrf.mxu0
    %v860 = vadd.f32 %v273, %v859
    %861 = vmatprep.mubr.bf16.mxu0 0
    %862 = vmatmul.mubr.bf16.gmra.mxu0 %v335
    %v863 = vpop.f32.mrf.mxu0
    %v864 = vadd.f32 %v269, %v863
    %v865 = vpop.f32.mrf.mxu0
    %v866 = vadd.f32 %v273, %v865
    %v867 = vpop.f32.mrf.mxu0
    %v868 = vadd.f32 %v269, %v867
    %v869 = vpop.f32.mrf.mxu0
    %v870 = vadd.f32 %v273, %v869
    %871 = vmatprep.mubr.bf16.mxu0 0
    %872 = vmatmul.mubr.bf16.gmra.mxu0 %v336
    %v873 = vpop.f32.mrf.mxu0
    %v874 = vadd.f32 %v269, %v873
    %v875 = vpop.f32.mrf.mxu0
    %v876 = vadd.f32 %v273, %v875
    %v877 = vpop.f32.mrf.mxu0
    %v878 = vadd.f32 %v269, %v877
    %v879 = vpop.f32.mrf.mxu0
    %v880 = vadd.f32 %v273, %v879
    %881 = vmatprep.mubr.bf16.mxu0 0
    %882 = vmatmul.mubr.bf16.gmra.mxu0 %v337
    %v883 = vpop.f32.mrf.mxu0
    %v884 = vadd.f32 %v269, %v883
    %v885 = vpop.f32.mrf.mxu0
    %v886 = vadd.f32 %v273, %v885
    %v887 = vpop.f32.mrf.mxu0
    %v888 = vadd.f32 %v269, %v887
    %v889 = vpop.f32.mrf.mxu0
    %v890 = vadd.f32 %v273, %v889
    %891 = vdwg.mxu0
    %892 = vmatprep.subr.bf16.mxu0 %v599
    %893 = vmatpush1.bf16.msra.mxu0 %v598
    %894 = vmatprep.subr.bf16.mxu0 %v591
    %895 = vmatpush1.bf16.msra.mxu0 %v590
    %896 = vmatprep.subr.bf16.mxu0 %v583
    %897 = vmatpush1.bf16.msra.mxu0 %v582
    %898 = vmatprep.subr.bf16.mxu0 %v575
    %899 = vmatpush1.bf16.msra.mxu0 %v574
    %900 = vmatprep.subr.bf16.mxu0 %v567
    %901 = vmatpush1.bf16.msra.mxu0 %v566
    %902 = vmatprep.subr.bf16.mxu0 %v559
    %903 = vmatpush1.bf16.msra.mxu0 %v558
    %904 = vmatprep.subr.bf16.mxu0 %v551
    %905 = vmatpush1.bf16.msra.mxu0 %v550
    %906 = vmatprep.subr.bf16.mxu0 %v543
    %907 = vmatpush1.bf16.msra.mxu0 %v542
    %908 = vmatprep.subr.bf16.mxu0 0
    %909 = vmatpush2.bf16.msra.mxu0 0
    %910 = vmatprep.subr.bf16.mxu0 0
    %911 = vmatpush2.bf16.msra.mxu0 0
    %912 = vmatprep.subr.bf16.mxu0 0
    %913 = vmatpush2.bf16.msra.mxu0 0
    %914 = vmatprep.subr.bf16.mxu0 0
    %915 = vmatpush2.bf16.msra.mxu0 0
    %916 = vmatprep.subr.bf16.mxu0 0
    %917 = vmatpush2.bf16.msra.mxu0 0
    %918 = vmatprep.subr.bf16.mxu0 0
    %919 = vmatpush2.bf16.msra.mxu0 0
    %920 = vmatprep.subr.bf16.mxu0 0
    %921 = vmatpush2.bf16.msra.mxu0 0
    %922 = vmatprep.subr.bf16.mxu0 0
    %923 = vmatpush2.bf16.msra.mxu0 0
    %924 = vmatprep.mubr.bf16.mxu0 0
    %925 = vmatmul.mubr.bf16.gmra.mxu0 %v330
    %v926 = vpop.f32.mrf.mxu0
    %v927 = vadd.f32 %v277, %v926
    %v928 = vpop.f32.mrf.mxu0
    %v929 = vadd.f32 %v281, %v928
    %v930 = vpop.f32.mrf.mxu0
    %v931 = vadd.f32 %v277, %v930
    %v932 = vpop.f32.mrf.mxu0
    %v933 = vadd.f32 %v281, %v932
    %934 = vmatprep.mubr.bf16.mxu0 0
    %935 = vmatmul.mubr.bf16.gmra.mxu0 %v331
    %v936 = vpop.f32.mrf.mxu0
    %v937 = vadd.f32 %v277, %v936
    %v938 = vpop.f32.mrf.mxu0
    %v939 = vadd.f32 %v281, %v938
    %v940 = vpop.f32.mrf.mxu0
    %v941 = vadd.f32 %v277, %v940
    %v942 = vpop.f32.mrf.mxu0
    %v943 = vadd.f32 %v281, %v942
    %944 = vmatprep.mubr.bf16.mxu0 0
    %945 = vmatmul.mubr.bf16.gmra.mxu0 %v332
    %v946 = vpop.f32.mrf.mxu0
    %v947 = vadd.f32 %v277, %v946
    %v948 = vpop.f32.mrf.mxu0
    %v949 = vadd.f32 %v281, %v948
    %v950 = vpop.f32.mrf.mxu0
    %v951 = vadd.f32 %v277, %v950
    %v952 = vpop.f32.mrf.mxu0
    %v953 = vadd.f32 %v281, %v952
    %954 = vmatprep.mubr.bf16.mxu0 0
    %955 = vmatmul.mubr.bf16.gmra.mxu0 %v333
    %v956 = vpop.f32.mrf.mxu0
    %v957 = vadd.f32 %v277, %v956
    %v958 = vpop.f32.mrf.mxu0
    %v959 = vadd.f32 %v281, %v958
    %v960 = vpop.f32.mrf.mxu0
    %v961 = vadd.f32 %v277, %v960
    %v962 = vpop.f32.mrf.mxu0
    %v963 = vadd.f32 %v281, %v962
    %964 = vmatprep.mubr.bf16.mxu0 0
    %965 = vmatmul.mubr.bf16.gmra.mxu0 %v334
    %v966 = vpop.f32.mrf.mxu0
    %v967 = vadd.f32 %v277, %v966
    %v968 = vpop.f32.mrf.mxu0
    %v969 = vadd.f32 %v281, %v968
    %v970 = vpop.f32.mrf.mxu0
    %v971 = vadd.f32 %v277, %v970
    %v972 = vpop.f32.mrf.mxu0
    %v973 = vadd.f32 %v281, %v972
    %974 = vmatprep.mubr.bf16.mxu0 0
    %975 = vmatmul.mubr.bf16.gmra.mxu0 %v335
    %v976 = vpop.f32.mrf.mxu0
    %v977 = vadd.f32 %v277, %v976
    %v978 = vpop.f32.mrf.mxu0
    %v979 = vadd.f32 %v281, %v978
    %v980 = vpop.f32.mrf.mxu0
    %v981 = vadd.f32 %v277, %v980
    %v982 = vpop.f32.mrf.mxu0
    %v983 = vadd.f32 %v281, %v982
    %984 = vmatprep.mubr.bf16.mxu0 0
    %985 = vmatmul.mubr.bf16.gmra.mxu0 %v336
    %v986 = vpop.f32.mrf.mxu0
    %v987 = vadd.f32 %v277, %v986
    %v988 = vpop.f32.mrf.mxu0
    %v989 = vadd.f32 %v281, %v988
    %v990 = vpop.f32.mrf.mxu0
    %v991 = vadd.f32 %v277, %v990
    %v992 = vpop.f32.mrf.mxu0
    %v993 = vadd.f32 %v281, %v992
    %994 = vmatprep.mubr.bf16.mxu0 0
    %995 = vmatmul.mubr.bf16.gmra.mxu0 %v337
    %v996 = vpop.f32.mrf.mxu0
    %v997 = vadd.f32 %v277, %v996
    %v998 = vpop.f32.mrf.mxu0
    %v999 = vadd.f32 %v281, %v998
    %v1000 = vpop.f32.mrf.mxu0
    %v1001 = vadd.f32 %v277, %v1000
    %v1002 = vpop.f32.mrf.mxu0
    %v1003 = vadd.f32 %v281, %v1002
    %1004 = vdwg.mxu0
    %1005 = vmatprep.subr.bf16.mxu0 %v601
    %1006 = vmatpush1.bf16.msra.mxu0 %v600
    %1007 = vmatprep.subr.bf16.mxu0 %v593
    %1008 = vmatpush1.bf16.msra.mxu0 %v592
    %1009 = vmatprep.subr.bf16.mxu0 %v585
    %1010 = vmatpush1.bf16.msra.mxu0 %v584
    %1011 = vmatprep.subr.bf16.mxu0 %v577
    %1012 = vmatpush1.bf16.msra.mxu0 %v576
    %1013 = vmatprep.subr.bf16.mxu0 %v569
    %1014 = vmatpush1.bf16.msra.mxu0 %v568
    %1015 = vmatprep.subr.bf16.mxu0 %v561
    %1016 = vmatpush1.bf16.msra.mxu0 %v560
    %1017 = vmatprep.subr.bf16.mxu0 %v553
    %1018 = vmatpush1.bf16.msra.mxu0 %v552
    %1019 = vmatprep.subr.bf16.mxu0 %v545
    %1020 = vmatpush1.bf16.msra.mxu0 %v544
    %1021 = vmatprep.subr.bf16.mxu0 0
    %1022 = vmatpush2.bf16.msra.mxu0 0
    %1023 = vmatprep.subr.bf16.mxu0 0
    %1024 = vmatpush2.bf16.msra.mxu0 0
    %1025 = vmatprep.subr.bf16.mxu0 0
    %1026 = vmatpush2.bf16.msra.mxu0 0
    %1027 = vmatprep.subr.bf16.mxu0 0
    %1028 = vmatpush2.bf16.msra.mxu0 0
    %1029 = vmatprep.subr.bf16.mxu0 0
    %1030 = vmatpush2.bf16.msra.mxu0 0
    %1031 = vmatprep.subr.bf16.mxu0 0
    %1032 = vmatpush2.bf16.msra.mxu0 0
    %1033 = vmatprep.subr.bf16.mxu0 0
    %1034 = vmatpush2.bf16.msra.mxu0 0
    %1035 = vmatprep.subr.bf16.mxu0 0
    %1036 = vmatpush2.bf16.msra.mxu0 0
    %1037 = vmatprep.mubr.bf16.mxu0 0
    %1038 = vmatmul.mubr.bf16.gmra.mxu0 %v330
    %v1039 = vpop.f32.mrf.mxu0
    %v1040 = vadd.f32 %v285, %v1039
    %v1041 = vpop.f32.mrf.mxu0
    %v1042 = vadd.f32 %v289, %v1041
    %v1043 = vpop.f32.mrf.mxu0
    %v1044 = vadd.f32 %v285, %v1043
    %v1045 = vpop.f32.mrf.mxu0
    %v1046 = vadd.f32 %v289, %v1045
    %1047 = vmatprep.mubr.bf16.mxu0 0
    %1048 = vmatmul.mubr.bf16.gmra.mxu0 %v331
    %v1049 = vpop.f32.mrf.mxu0
    %v1050 = vadd.f32 %v285, %v1049
    %v1051 = vpop.f32.mrf.mxu0
    %v1052 = vadd.f32 %v289, %v1051
    %v1053 = vpop.f32.mrf.mxu0
    %v1054 = vadd.f32 %v285, %v1053
    %v1055 = vpop.f32.mrf.mxu0
    %v1056 = vadd.f32 %v289, %v1055
    %1057 = vmatprep.mubr.bf16.mxu0 0
    %1058 = vmatmul.mubr.bf16.gmra.mxu0 %v332
    %v1059 = vpop.f32.mrf.mxu0
    %v1060 = vadd.f32 %v285, %v1059
    %v1061 = vpop.f32.mrf.mxu0
    %v1062 = vadd.f32 %v289, %v1061
    %v1063 = vpop.f32.mrf.mxu0
    %v1064 = vadd.f32 %v285, %v1063
    %v1065 = vpop.f32.mrf.mxu0
    %v1066 = vadd.f32 %v289, %v1065
    %1067 = vmatprep.mubr.bf16.mxu0 0
    %1068 = vmatmul.mubr.bf16.gmra.mxu0 %v333
    %v1069 = vpop.f32.mrf.mxu0
    %v1070 = vadd.f32 %v285, %v1069
    %v1071 = vpop.f32.mrf.mxu0
    %v1072 = vadd.f32 %v289, %v1071
    %v1073 = vpop.f32.mrf.mxu0
    %v1074 = vadd.f32 %v285, %v1073
    %v1075 = vpop.f32.mrf.mxu0
    %v1076 = vadd.f32 %v289, %v1075
    %1077 = vmatprep.mubr.bf16.mxu0 0
    %1078 = vmatmul.mubr.bf16.gmra.mxu0 %v334
    %v1079 = vpop.f32.mrf.mxu0
    %v1080 = vadd.f32 %v285, %v1079
    %v1081 = vpop.f32.mrf.mxu0
    %v1082 = vadd.f32 %v289, %v1081
    %v1083 = vpop.f32.mrf.mxu0
    %v1084 = vadd.f32 %v285, %v1083
    %v1085 = vpop.f32.mrf.mxu0
    %v1086 = vadd.f32 %v289, %v1085
    %1087 = vmatprep.mubr.bf16.mxu0 0
    %1088 = vmatmul.mubr.bf16.gmra.mxu0 %v335
    %v1089 = vpop.f32.mrf.mxu0
    %v1090 = vadd.f32 %v285, %v1089
    %v1091 = vpop.f32.mrf.mxu0
    %v1092 = vadd.f32 %v289, %v1091
    %v1093 = vpop.f32.mrf.mxu0
    %v1094 = vadd.f32 %v285, %v1093
    %v1095 = vpop.f32.mrf.mxu0
    %v1096 = vadd.f32 %v289, %v1095
    %1097 = vmatprep.mubr.bf16.mxu0 0
    %1098 = vmatmul.mubr.bf16.gmra.mxu0 %v336
    %v1099 = vpop.f32.mrf.mxu0
    %v1100 = vadd.f32 %v285, %v1099
    %v1101 = vpop.f32.mrf.mxu0
    %v1102 = vadd.f32 %v289, %v1101
    %v1103 = vpop.f32.mrf.mxu0
    %v1104 = vadd.f32 %v285, %v1103
    %v1105 = vpop.f32.mrf.mxu0
    %v1106 = vadd.f32 %v289, %v1105
    %1107 = vmatprep.mubr.bf16.mxu0 0
    %1108 = vmatmul.mubr.bf16.gmra.mxu0 %v337
    %v1109 = vpop.f32.mrf.mxu0
    %v1110 = vadd.f32 %v285, %v1109
    %v1111 = vpop.f32.mrf.mxu0
    %v1112 = vadd.f32 %v289, %v1111
    %v1113 = vpop.f32.mrf.mxu0
    %v1114 = vadd.f32 %v285, %v1113
    %v1115 = vpop.f32.mrf.mxu0
    %v1116 = vadd.f32 %v289, %v1115
    %1117 = vdwg.mxu0
    %v1118 = vpack.c.bf16 %v705, %v701
    %v1119 = vpack.c.bf16 %v707, %v703
    %v1120 = vpack.c.bf16 %v818, %v814
    %v1121 = vpack.c.bf16 %v820, %v816
    %v1122 = vpack.c.bf16 %v931, %v927
    %v1123 = vpack.c.bf16 %v933, %v929
    %v1124 = vpack.c.bf16 %v1044, %v1040
    %v1125 = vpack.c.bf16 %v1046, %v1042
    %v1126 = vpack.c.bf16 %v715, %v711
    %v1127 = vpack.c.bf16 %v717, %v713
    %v1128 = vpack.c.bf16 %v828, %v824
    %v1129 = vpack.c.bf16 %v830, %v826
    %v1130 = vpack.c.bf16 %v941, %v937
    %v1131 = vpack.c.bf16 %v943, %v939
    %v1132 = vpack.c.bf16 %v1054, %v1050
    %v1133 = vpack.c.bf16 %v1056, %v1052
    %v1134 = vpack.c.bf16 %v725, %v721
    %v1135 = vpack.c.bf16 %v727, %v723
    %v1136 = vpack.c.bf16 %v838, %v834
    %v1137 = vpack.c.bf16 %v840, %v836
    %v1138 = vpack.c.bf16 %v951, %v947
    %v1139 = vpack.c.bf16 %v953, %v949
    %v1140 = vpack.c.bf16 %v1064, %v1060
    %v1141 = vpack.c.bf16 %v1066, %v1062
    %v1142 = vpack.c.bf16 %v735, %v731
    %v1143 = vpack.c.bf16 %v737, %v733
    %v1144 = vpack.c.bf16 %v848, %v844
    %v1145 = vpack.c.bf16 %v850, %v846
    %v1146 = vpack.c.bf16 %v961, %v957
    %v1147 = vpack.c.bf16 %v963, %v959
    %v1148 = vpack.c.bf16 %v1074, %v1070
    %v1149 = vpack.c.bf16 %v1076, %v1072
    %v1150 = vpack.c.bf16 %v745, %v741
    %v1151 = vpack.c.bf16 %v747, %v743
    %v1152 = vpack.c.bf16 %v858, %v854
    %v1153 = vpack.c.bf16 %v860, %v856
    %v1154 = vpack.c.bf16 %v971, %v967
    %v1155 = vpack.c.bf16 %v973, %v969
    %v1156 = vpack.c.bf16 %v1084, %v1080
    %v1157 = vpack.c.bf16 %v1086, %v1082
    %v1158 = vpack.c.bf16 %v755, %v751
    %v1159 = vpack.c.bf16 %v757, %v753
    %v1160 = vpack.c.bf16 %v868, %v864
    %v1161 = vpack.c.bf16 %v870, %v866
    %v1162 = vpack.c.bf16 %v981, %v977
    %v1163 = vpack.c.bf16 %v983, %v979
    %v1164 = vpack.c.bf16 %v1094, %v1090
    %v1165 = vpack.c.bf16 %v1096, %v1092
    %v1166 = vpack.c.bf16 %v765, %v761
    %v1167 = vpack.c.bf16 %v767, %v763
    %v1168 = vpack.c.bf16 %v878, %v874
    %v1169 = vpack.c.bf16 %v880, %v876
    %v1170 = vpack.c.bf16 %v991, %v987
    %v1171 = vpack.c.bf16 %v993, %v989
    %v1172 = vpack.c.bf16 %v1104, %v1100
    %v1173 = vpack.c.bf16 %v1106, %v1102
    %v1174 = vpack.c.bf16 %v775, %v771
    %v1175 = vpack.c.bf16 %v777, %v773
    %v1176 = vpack.c.bf16 %v888, %v884
    %v1177 = vpack.c.bf16 %v890, %v886
    %v1178 = vpack.c.bf16 %v1001, %v997
    %v1179 = vpack.c.bf16 %v1003, %v999
    %v1180 = vpack.c.bf16 %v1114, %v1110
    %v1181 = vpack.c.bf16 %v1116, %v1112
    %v1246 = vunpack.c.l.b16 %v192
    %v1247 = vunpack.c.h.b16 %v192
    %v1248 = vunpack.c.l.b16 %v193
    %v1249 = vunpack.c.h.b16 %v193
    %v1250 = vunpack.c.l.b16 %v194
    %v1251 = vunpack.c.h.b16 %v194
    %v1252 = vunpack.c.l.b16 %v195
    %v1253 = vunpack.c.h.b16 %v195
    %v1254 = vunpack.c.l.b16 %v196
    %v1255 = vunpack.c.h.b16 %v196
    %v1256 = vunpack.c.l.b16 %v197
    %v1257 = vunpack.c.h.b16 %v197
    %v1258 = vunpack.c.l.b16 %v198
    %v1259 = vunpack.c.h.b16 %v198
    %v1260 = vunpack.c.l.b16 %v199
    %v1261 = vunpack.c.h.b16 %v199
    %v1262 = vunpack.c.l.b16 %v200
    %v1263 = vunpack.c.h.b16 %v200
    %v1264 = vunpack.c.l.b16 %v201
    %v1265 = vunpack.c.h.b16 %v201
    %v1266 = vunpack.c.l.b16 %v202
    %v1267 = vunpack.c.h.b16 %v202
    %v1268 = vunpack.c.l.b16 %v203
    %v1269 = vunpack.c.h.b16 %v203
    %v1270 = vunpack.c.l.b16 %v204
    %v1271 = vunpack.c.h.b16 %v204
    %v1272 = vunpack.c.l.b16 %v205
    %v1273 = vunpack.c.h.b16 %v205
    %v1274 = vunpack.c.l.b16 %v206
    %v1275 = vunpack.c.h.b16 %v206
    %v1276 = vunpack.c.l.b16 %v207
    %v1277 = vunpack.c.h.b16 %v207
    %v1278 = vunpack.c.l.b16 %v208
    %v1279 = vunpack.c.h.b16 %v208
    %v1280 = vunpack.c.l.b16 %v209
    %v1281 = vunpack.c.h.b16 %v209
    %v1282 = vunpack.c.l.b16 %v210
    %v1283 = vunpack.c.h.b16 %v210
    %v1284 = vunpack.c.l.b16 %v211
    %v1285 = vunpack.c.h.b16 %v211
    %v1286 = vunpack.c.l.b16 %v212
    %v1287 = vunpack.c.h.b16 %v212
    %v1288 = vunpack.c.l.b16 %v213
    %v1289 = vunpack.c.h.b16 %v213
    %v1290 = vunpack.c.l.b16 %v214
    %v1291 = vunpack.c.h.b16 %v214
    %v1292 = vunpack.c.l.b16 %v215
    %v1293 = vunpack.c.h.b16 %v215
    %v1294 = vunpack.c.l.b16 %v216
    %v1295 = vunpack.c.h.b16 %v216
    %v1296 = vunpack.c.l.b16 %v217
    %v1297 = vunpack.c.h.b16 %v217
    %v1298 = vunpack.c.l.b16 %v218
    %v1299 = vunpack.c.h.b16 %v218
    %v1300 = vunpack.c.l.b16 %v219
    %v1301 = vunpack.c.h.b16 %v219
    %v1302 = vunpack.c.l.b16 %v220
    %v1303 = vunpack.c.h.b16 %v220
    %v1304 = vunpack.c.l.b16 %v221
    %v1305 = vunpack.c.h.b16 %v221
    %v1306 = vunpack.c.l.b16 %v222
    %v1307 = vunpack.c.h.b16 %v222
    %v1308 = vunpack.c.l.b16 %v223
    %v1309 = vunpack.c.h.b16 %v223
    %v1310 = vunpack.c.l.b16 %v224
    %v1311 = vunpack.c.h.b16 %v224
    %v1312 = vunpack.c.l.b16 %v225
    %v1313 = vunpack.c.h.b16 %v225
    %v1314 = vunpack.c.l.b16 %v226
    %v1315 = vunpack.c.h.b16 %v226
    %v1316 = vunpack.c.l.b16 %v227
    %v1317 = vunpack.c.h.b16 %v227
    %v1318 = vunpack.c.l.b16 %v228
    %v1319 = vunpack.c.h.b16 %v228
    %v1320 = vunpack.c.l.b16 %v229
    %v1321 = vunpack.c.h.b16 %v229
    %v1322 = vunpack.c.l.b16 %v230
    %v1323 = vunpack.c.h.b16 %v230
    %v1324 = vunpack.c.l.b16 %v231
    %v1325 = vunpack.c.h.b16 %v231
    %v1326 = vunpack.c.l.b16 %v232
    %v1327 = vunpack.c.h.b16 %v232
    %v1328 = vunpack.c.l.b16 %v233
    %v1329 = vunpack.c.h.b16 %v233
    %v1330 = vunpack.c.l.b16 %v234
    %v1331 = vunpack.c.h.b16 %v234
    %v1332 = vunpack.c.l.b16 %v235
    %v1333 = vunpack.c.h.b16 %v235
    %v1334 = vunpack.c.l.b16 %v236
    %v1335 = vunpack.c.h.b16 %v236
    %v1336 = vunpack.c.l.b16 %v237
    %v1337 = vunpack.c.h.b16 %v237
    %v1338 = vunpack.c.l.b16 %v238
    %v1339 = vunpack.c.h.b16 %v238
    %v1340 = vunpack.c.l.b16 %v239
    %v1341 = vunpack.c.h.b16 %v239
    %v1342 = vunpack.c.l.b16 %v240
    %v1343 = vunpack.c.h.b16 %v240
    %v1344 = vunpack.c.l.b16 %v241
    %v1345 = vunpack.c.h.b16 %v241
    %v1346 = vunpack.c.l.b16 %v242
    %v1347 = vunpack.c.h.b16 %v242
    %v1348 = vunpack.c.l.b16 %v243
    %v1349 = vunpack.c.h.b16 %v243
    %v1350 = vunpack.c.l.b16 %v244
    %v1351 = vunpack.c.h.b16 %v244
    %v1352 = vunpack.c.l.b16 %v245
    %v1353 = vunpack.c.h.b16 %v245
    %v1354 = vunpack.c.l.b16 %v246
    %v1355 = vunpack.c.h.b16 %v246
    %v1356 = vunpack.c.l.b16 %v247
    %v1357 = vunpack.c.h.b16 %v247
    %v1358 = vunpack.c.l.b16 %v248
    %v1359 = vunpack.c.h.b16 %v248
    %v1360 = vunpack.c.l.b16 %v249
    %v1361 = vunpack.c.h.b16 %v249
    %v1362 = vunpack.c.l.b16 %v250
    %v1363 = vunpack.c.h.b16 %v250
    %v1364 = vunpack.c.l.b16 %v251
    %v1365 = vunpack.c.h.b16 %v251
    %v1366 = vunpack.c.l.b16 %v252
    %v1367 = vunpack.c.h.b16 %v252
    %v1368 = vunpack.c.l.b16 %v253
    %v1369 = vunpack.c.h.b16 %v253
    %v1370 = vunpack.c.l.b16 %v254
    %v1371 = vunpack.c.h.b16 %v254
    %v1372 = vunpack.c.l.b16 %v255
    %v1373 = vunpack.c.h.b16 %v255
    %v1374 = vpack.c.b16 %v1250, %v1246
    %v1375 = vpack.c.b16 %v1251, %v1247
    %v1376 = vpack.c.b16 %v1252, %v1248
    %v1377 = vpack.c.b16 %v1253, %v1249
    %v1378 = vpack.c.b16 %v1258, %v1254
    %v1379 = vpack.c.b16 %v1259, %v1255
    %v1380 = vpack.c.b16 %v1260, %v1256
    %v1381 = vpack.c.b16 %v1261, %v1257
    %v1382 = vpack.c.b16 %v1266, %v1262
    %v1383 = vpack.c.b16 %v1267, %v1263
    %v1384 = vpack.c.b16 %v1268, %v1264
    %v1385 = vpack.c.b16 %v1269, %v1265
    %v1386 = vpack.c.b16 %v1274, %v1270
    %v1387 = vpack.c.b16 %v1275, %v1271
    %v1388 = vpack.c.b16 %v1276, %v1272
    %v1389 = vpack.c.b16 %v1277, %v1273
    %v1390 = vpack.c.b16 %v1282, %v1278
    %v1391 = vpack.c.b16 %v1283, %v1279
    %v1392 = vpack.c.b16 %v1284, %v1280
    %v1393 = vpack.c.b16 %v1285, %v1281
    %v1394 = vpack.c.b16 %v1290, %v1286
    %v1395 = vpack.c.b16 %v1291, %v1287
    %v1396 = vpack.c.b16 %v1292, %v1288
    %v1397 = vpack.c.b16 %v1293, %v1289
    %v1398 = vpack.c.b16 %v1298, %v1294
    %v1399 = vpack.c.b16 %v1299, %v1295
    %v1400 = vpack.c.b16 %v1300, %v1296
    %v1401 = vpack.c.b16 %v1301, %v1297
    %v1402 = vpack.c.b16 %v1306, %v1302
    %v1403 = vpack.c.b16 %v1307, %v1303
    %v1404 = vpack.c.b16 %v1308, %v1304
    %v1405 = vpack.c.b16 %v1309, %v1305
    %v1406 = vpack.c.b16 %v1314, %v1310
    %v1407 = vpack.c.b16 %v1315, %v1311
    %v1408 = vpack.c.b16 %v1316, %v1312
    %v1409 = vpack.c.b16 %v1317, %v1313
    %v1410 = vpack.c.b16 %v1322, %v1318
    %v1411 = vpack.c.b16 %v1323, %v1319
    %v1412 = vpack.c.b16 %v1324, %v1320
    %v1413 = vpack.c.b16 %v1325, %v1321
    %v1414 = vpack.c.b16 %v1330, %v1326
    %v1415 = vpack.c.b16 %v1331, %v1327
    %v1416 = vpack.c.b16 %v1332, %v1328
    %v1417 = vpack.c.b16 %v1333, %v1329
    %v1418 = vpack.c.b16 %v1338, %v1334
    %v1419 = vpack.c.b16 %v1339, %v1335
    %v1420 = vpack.c.b16 %v1340, %v1336
    %v1421 = vpack.c.b16 %v1341, %v1337
    %v1422 = vpack.c.b16 %v1346, %v1342
    %v1423 = vpack.c.b16 %v1347, %v1343
    %v1424 = vpack.c.b16 %v1348, %v1344
    %v1425 = vpack.c.b16 %v1349, %v1345
    %v1426 = vpack.c.b16 %v1354, %v1350
    %v1427 = vpack.c.b16 %v1355, %v1351
    %v1428 = vpack.c.b16 %v1356, %v1352
    %v1429 = vpack.c.b16 %v1357, %v1353
    %v1430 = vpack.c.b16 %v1362, %v1358
    %v1431 = vpack.c.b16 %v1363, %v1359
    %v1432 = vpack.c.b16 %v1364, %v1360
    %v1433 = vpack.c.b16 %v1365, %v1361
    %v1434 = vpack.c.b16 %v1370, %v1366
    %v1435 = vpack.c.b16 %v1371, %v1367
    %v1436 = vpack.c.b16 %v1372, %v1368
    %v1437 = vpack.c.b16 %v1373, %v1369
    %1502 = vmatprep.subr.bf16.mxu0 %v1403
    %1503 = vmatpush1.bf16.msra.mxu0 %v1402
    %1504 = vmatprep.subr.bf16.mxu0 %v1399
    %1505 = vmatpush1.bf16.msra.mxu0 %v1398
    %1506 = vmatprep.subr.bf16.mxu0 %v1395
    %1507 = vmatpush1.bf16.msra.mxu0 %v1394
    %1508 = vmatprep.subr.bf16.mxu0 %v1391
    %1509 = vmatpush1.bf16.msra.mxu0 %v1390
    %1510 = vmatprep.subr.bf16.mxu0 %v1387
    %1511 = vmatpush1.bf16.msra.mxu0 %v1386
    %1512 = vmatprep.subr.bf16.mxu0 %v1383
    %1513 = vmatpush1.bf16.msra.mxu0 %v1382
    %1514 = vmatprep.subr.bf16.mxu0 %v1379
    %1515 = vmatpush1.bf16.msra.mxu0 %v1378
    %1516 = vmatprep.subr.bf16.mxu0 %v1375
    %1517 = vmatpush1.bf16.msra.mxu0 %v1374
    %1518 = vmatprep.subr.bf16.mxu0 %v1435
    %1519 = vmatpush2.bf16.msra.mxu0 %v1434
    %1520 = vmatprep.subr.bf16.mxu0 %v1431
    %1521 = vmatpush2.bf16.msra.mxu0 %v1430
    %1522 = vmatprep.subr.bf16.mxu0 %v1427
    %1523 = vmatpush2.bf16.msra.mxu0 %v1426
    %1524 = vmatprep.subr.bf16.mxu0 %v1423
    %1525 = vmatpush2.bf16.msra.mxu0 %v1422
    %1526 = vmatprep.subr.bf16.mxu0 %v1419
    %1527 = vmatpush2.bf16.msra.mxu0 %v1418
    %1528 = vmatprep.subr.bf16.mxu0 %v1415
    %1529 = vmatpush2.bf16.msra.mxu0 %v1414
    %1530 = vmatprep.subr.bf16.mxu0 %v1411
    %1531 = vmatpush2.bf16.msra.mxu0 %v1410
    %1532 = vmatprep.subr.bf16.mxu0 %v1407
    %1533 = vmatpush2.bf16.msra.mxu0 %v1406
    %1534 = vmatprep.mubr.bf16.mxu0 0
    %1535 = vmatmul.mubr.bf16.gmra.mxu0 0
    %v1536 = vpop.f32.mrf.mxu0
    %v1537 = vadd.f32 0.0, %v1536
    %v1538 = vpop.f32.mrf.mxu0
    %v1539 = vadd.f32 0.0, %v1538
    %v1540 = vpop.f32.mrf.mxu0
    %v1541 = vadd.f32 0.0, %v1540
    %v1542 = vpop.f32.mrf.mxu0
    %v1543 = vadd.f32 0.0, %v1542
    %1544 = vmatprep.mubr.bf16.mxu0 0
    %1545 = vmatmul.mubr.bf16.gmra.mxu0 0
    %v1546 = vpop.f32.mrf.mxu0
    %v1547 = vadd.f32 0.0, %v1546
    %v1548 = vpop.f32.mrf.mxu0
    %v1549 = vadd.f32 0.0, %v1548
    %v1550 = vpop.f32.mrf.mxu0
    %v1551 = vadd.f32 0.0, %v1550
    %v1552 = vpop.f32.mrf.mxu0
    %v1553 = vadd.f32 0.0, %v1552
    %1554 = vdwg.mxu0
    %1555 = vmatprep.subr.bf16.mxu0 %v1405
    %1556 = vmatpush1.bf16.msra.mxu0 %v1404
    %1557 = vmatprep.subr.bf16.mxu0 %v1401
    %1558 = vmatpush1.bf16.msra.mxu0 %v1400
    %1559 = vmatprep.subr.bf16.mxu0 %v1397
    %1560 = vmatpush1.bf16.msra.mxu0 %v1396
    %1561 = vmatprep.subr.bf16.mxu0 %v1393
    %1562 = vmatpush1.bf16.msra.mxu0 %v1392
    %1563 = vmatprep.subr.bf16.mxu0 %v1389
    %1564 = vmatpush1.bf16.msra.mxu0 %v1388
    %1565 = vmatprep.subr.bf16.mxu0 %v1385
    %1566 = vmatpush1.bf16.msra.mxu0 %v1384
    %1567 = vmatprep.subr.bf16.mxu0 %v1381
    %1568 = vmatpush1.bf16.msra.mxu0 %v1380
    %1569 = vmatprep.subr.bf16.mxu0 %v1377
    %1570 = vmatpush1.bf16.msra.mxu0 %v1376
    %1571 = vmatprep.subr.bf16.mxu0 %v1437
    %1572 = vmatpush2.bf16.msra.mxu0 %v1436
    %1573 = vmatprep.subr.bf16.mxu0 %v1433
    %1574 = vmatpush2.bf16.msra.mxu0 %v1432
    %1575 = vmatprep.subr.bf16.mxu0 %v1429
    %1576 = vmatpush2.bf16.msra.mxu0 %v1428
    %1577 = vmatprep.subr.bf16.mxu0 %v1425
    %1578 = vmatpush2.bf16.msra.mxu0 %v1424
    %1579 = vmatprep.subr.bf16.mxu0 %v1421
    %1580 = vmatpush2.bf16.msra.mxu0 %v1420
    %1581 = vmatprep.subr.bf16.mxu0 %v1417
    %1582 = vmatpush2.bf16.msra.mxu0 %v1416
    %1583 = vmatprep.subr.bf16.mxu0 %v1413
    %1584 = vmatpush2.bf16.msra.mxu0 %v1412
    %1585 = vmatprep.subr.bf16.mxu0 %v1409
    %1586 = vmatpush2.bf16.msra.mxu0 %v1408
    %1587 = vmatprep.mubr.bf16.mxu0 0
    %1588 = vmatmul.mubr.bf16.gmra.mxu0 0
    %v1589 = vpop.f32.mrf.mxu0
    %v1590 = vadd.f32 0.0, %v1589
    %v1591 = vpop.f32.mrf.mxu0
    %v1592 = vadd.f32 0.0, %v1591
    %v1593 = vpop.f32.mrf.mxu0
    %v1594 = vadd.f32 0.0, %v1593
    %v1595 = vpop.f32.mrf.mxu0
    %v1596 = vadd.f32 0.0, %v1595
    %1597 = vmatprep.mubr.bf16.mxu0 0
    %1598 = vmatmul.mubr.bf16.gmra.mxu0 0
    %v1599 = vpop.f32.mrf.mxu0
    %v1600 = vadd.f32 0.0, %v1599
    %v1601 = vpop.f32.mrf.mxu0
    %v1602 = vadd.f32 0.0, %v1601
    %v1603 = vpop.f32.mrf.mxu0
    %v1604 = vadd.f32 0.0, %v1603
    %v1605 = vpop.f32.mrf.mxu0
    %v1606 = vadd.f32 0.0, %v1605
    %1607 = vdwg.mxu0
    %v1608 = vunpack.c.l.bf16 %v1118
    %v1609 = vunpack.c.l.bf16 %v1119
    %v1610 = vunpack.c.l.bf16 %v1120
    %v1611 = vunpack.c.l.bf16 %v1121
    %v1612 = vunpack.c.h.bf16 %v1118
    %v1613 = vunpack.c.h.bf16 %v1119
    %v1614 = vunpack.c.h.bf16 %v1120
    %v1615 = vunpack.c.h.bf16 %v1121
    %v1616 = vadd.f32 %v1608, %v1537
    %v1617 = vadd.f32 %v1609, %v1539
    %v1618 = vadd.f32 %v1610, %v1590
    %v1619 = vadd.f32 %v1611, %v1592
    %v1620 = vadd.f32 %v1612, %v1541
    %v1621 = vadd.f32 %v1613, %v1543
    %v1622 = vadd.f32 %v1614, %v1594
    %v1623 = vadd.f32 %v1615, %v1596
    %v1624 = vunpack.c.l.bf16 %v1178
    %v1625 = vunpack.c.l.bf16 %v1179
    %v1626 = vunpack.c.l.bf16 %v1180
    %v1627 = vunpack.c.l.bf16 %v1181
    %v1628 = vunpack.c.h.bf16 %v1178
    %v1629 = vunpack.c.h.bf16 %v1179
    %v1630 = vunpack.c.h.bf16 %v1180
    %v1631 = vunpack.c.h.bf16 %v1181
    %v1632 = vadd.f32 %v1624, %v1547
    %v1633 = vadd.f32 %v1625, %v1549
    %v1634 = vadd.f32 %v1626, %v1600
    %v1635 = vadd.f32 %v1627, %v1602
    %v1636 = vadd.f32 %v1628, %v1551
    %v1637 = vadd.f32 %v1629, %v1553
    %v1638 = vadd.f32 %v1630, %v1604
    %v1639 = vadd.f32 %v1631, %v1606
    %v1640 = vmul.f32 %v1616, 0.5
    %v1641 = vmul.f32 %v1620, 0.5
    %v1642 = vtanh.pop %v1640
    %v1643 = vtanh.pop %v1641
    %v1644 = vmul.f32 %v1642, 0.5
    %v1645 = vmul.f32 %v1643, 0.5
    %v1646 = vadd.f32 %v1644, 0.5
    %v1647 = vadd.f32 %v1645, 0.5
    %v1648 = vmul.f32 %v1617, 0.5
    %v1649 = vmul.f32 %v1621, 0.5
    %v1650 = vtanh.pop %v1648
    %v1651 = vtanh.pop %v1649
    %v1652 = vmul.f32 %v1650, 0.5
    %v1653 = vmul.f32 %v1651, 0.5
    %v1654 = vadd.f32 %v1652, 0.5
    %v1655 = vadd.f32 %v1653, 0.5
    %v1656 = vtanh.pop %v1618
    %v1657 = vtanh.pop %v1622
    %v1658 = vmul.f32 %v1619, 0.5
    %v1659 = vmul.f32 %v1623, 0.5
    %v1660 = vtanh.pop %v1658
    %v1661 = vtanh.pop %v1659
    %v1662 = vmul.f32 %v1660, 0.5
    %v1663 = vmul.f32 %v1661, 0.5
    %v1664 = vadd.f32 %v1662, 0.5
    %v1665 = vadd.f32 %v1663, 0.5
    %v1666 = vmul.f32 %v1654, 0.0
    %v1667 = vmul.f32 %v1655, 0.0
    %v1668 = vmul.f32 %v1646, %v1656
    %v1669 = vmul.f32 %v1647, %v1657
    %v1670 = vadd.f32 %v1666, %v1668
    %v1671 = vadd.f32 %v1667, %v1669
    %v1672 = vtanh.pop %v1670
    %v1673 = vtanh.pop %v1671
    %v1674 = vmul.f32 %v1664, %v1672
    %v1675 = vmul.f32 %v1665, %v1673
    %v1676 = vpack.c.bf16 %v1675, %v1674
    %v1677 = vmul.f32 %v1632, 0.5
    %v1678 = vmul.f32 %v1636, 0.5
    %v1679 = vtanh.pop %v1677
    %v1680 = vtanh.pop %v1678
    %v1681 = vmul.f32 %v1679, 0.5
    %v1682 = vmul.f32 %v1680, 0.5
    %v1683 = vadd.f32 %v1681, 0.5
    %v1684 = vadd.f32 %v1682, 0.5
    %v1685 = vmul.f32 %v1633, 0.5
    %v1686 = vmul.f32 %v1637, 0.5
    %v1687 = vtanh.pop %v1685
    %v1688 = vtanh.pop %v1686
    %v1689 = vmul.f32 %v1687, 0.5
    %v1690 = vmul.f32 %v1688, 0.5
    %v1691 = vadd.f32 %v1689, 0.5
    %v1692 = vadd.f32 %v1690, 0.5
    %v1693 = vtanh.pop %v1634
    %v1694 = vtanh.pop %v1638
    %v1695 = vmul.f32 %v1635, 0.5
    %v1696 = vmul.f32 %v1639, 0.5
    %v1697 = vtanh.pop %v1695
    %v1698 = vtanh.pop %v1696
    %v1699 = vmul.f32 %v1697, 0.5
    %v1700 = vmul.f32 %v1698, 0.5
    %v1701 = vadd.f32 %v1699, 0.5
    %v1702 = vadd.f32 %v1700, 0.5
    %v1703 = vmul.f32 %v1691, 0.0
    %v1704 = vmul.f32 %v1692, 0.0
    %v1705 = vmul.f32 %v1683, %v1693
    %v1706 = vmul.f32 %v1684, %v1694
    %v1707 = vadd.f32 %v1703, %v1705
    %v1708 = vadd.f32 %v1704, %v1706
    %v1709 = vtanh.pop %v1707
    %v1710 = vtanh.pop %v1708
    %v1711 = vmul.f32 %v1701, %v1709
    %v1712 = vmul.f32 %v1702, %v1710
    %v1713 = vpack.c.bf16 %v1712, %v1711
    %v1715 = vunpack.c.l.b16 %v1676
    %v1716 = vunpack.c.h.b16 %v1676
    %v1717 = vpack.c.b16 %v1715, %v1715
    %v1718 = vpack.c.b16 %v1716, %v1716
    %1721 = vst [vmem:[#allocation2] sm:$0xf] %v1717
    %1722 = vst [vmem:[#allocation2 + $0x8] sm:$0xf] %v1718
    %v1724 = vunpack.c.l.b16 %v1713
    %v1725 = vunpack.c.h.b16 %v1713
    %v1726 = vpack.c.b16 %v1724, %v1724
    %v1727 = vpack.c.b16 %v1725, %v1725
    %s1730 = scalar_lea.vmem [#allocation2], 112
    %1731 = vst [vmem:[%s1730 + $0x4] sm:$0xf] %v1726
    %1732 = vst [vmem:[%s1730 + $0xc] sm:$0xf] %v1727
    %1733 = vmatprep.subr.bf16.mxu0 %v1403
    %1734 = vmatpush1.bf16.msra.mxu0 %v1402
    %1735 = vmatprep.subr.bf16.mxu0 %v1399
    %1736 = vmatpush1.bf16.msra.mxu0 %v1398
    %1737 = vmatprep.subr.bf16.mxu0 %v1395
    %1738 = vmatpush1.bf16.msra.mxu0 %v1394
    %1739 = vmatprep.subr.bf16.mxu0 %v1391
    %1740 = vmatpush1.bf16.msra.mxu0 %v1390
    %1741 = vmatprep.subr.bf16.mxu0 %v1387
    %1742 = vmatpush1.bf16.msra.mxu0 %v1386
    %1743 = vmatprep.subr.bf16.mxu0 %v1383
    %1744 = vmatpush1.bf16.msra.mxu0 %v1382
    %1745 = vmatprep.subr.bf16.mxu0 %v1379
    %1746 = vmatpush1.bf16.msra.mxu0 %v1378
    %1747 = vmatprep.subr.bf16.mxu0 %v1375
    %1748 = vmatpush1.bf16.msra.mxu0 %v1374
    %1749 = vmatprep.subr.bf16.mxu0 %v1435
    %1750 = vmatpush2.bf16.msra.mxu0 %v1434
    %1751 = vmatprep.subr.bf16.mxu0 %v1431
    %1752 = vmatpush2.bf16.msra.mxu0 %v1430
    %1753 = vmatprep.subr.bf16.mxu0 %v1427
    %1754 = vmatpush2.bf16.msra.mxu0 %v1426
    %1755 = vmatprep.subr.bf16.mxu0 %v1423
    %1756 = vmatpush2.bf16.msra.mxu0 %v1422
    %1757 = vmatprep.subr.bf16.mxu0 %v1419
    %1758 = vmatpush2.bf16.msra.mxu0 %v1418
    %1759 = vmatprep.subr.bf16.mxu0 %v1415
    %1760 = vmatpush2.bf16.msra.mxu0 %v1414
    %1761 = vmatprep.subr.bf16.mxu0 %v1411
    %1762 = vmatpush2.bf16.msra.mxu0 %v1410
    %1763 = vmatprep.subr.bf16.mxu0 %v1407
    %1764 = vmatpush2.bf16.msra.mxu0 %v1406
    %1765 = vmatprep.mubr.bf16.mxu0 0
    %1766 = vmatmul.mubr.bf16.gmra.mxu0 %v1676
    %v1767 = vpop.f32.mrf.mxu0
    %v1768 = vadd.f32 0.0, %v1767
    %v1769 = vpop.f32.mrf.mxu0
    %v1770 = vadd.f32 0.0, %v1769
    %v1771 = vpop.f32.mrf.mxu0
    %v1772 = vadd.f32 0.0, %v1771
    %v1773 = vpop.f32.mrf.mxu0
    %v1774 = vadd.f32 0.0, %v1773
    %1775 = vmatprep.mubr.bf16.mxu0 %v1713
    %1776 = vmatmul.mubr.bf16.gmra.mxu0 0
    %v1777 = vpop.f32.mrf.mxu0
    %v1778 = vadd.f32 0.0, %v1777
    %v1779 = vpop.f32.mrf.mxu0
    %v1780 = vadd.f32 0.0, %v1779
    %v1781 = vpop.f32.mrf.mxu0
    %v1782 = vadd.f32 0.0, %v1781
    %v1783 = vpop.f32.mrf.mxu0
    %v1784 = vadd.f32 0.0, %v1783
    %1785 = vdwg.mxu0
    %1786 = vmatprep.subr.bf16.mxu0 %v1405
    %1787 = vmatpush1.bf16.msra.mxu0 %v1404
    %1788 = vmatprep.subr.bf16.mxu0 %v1401
    %1789 = vmatpush1.bf16.msra.mxu0 %v1400
    %1790 = vmatprep.subr.bf16.mxu0 %v1397
    %1791 = vmatpush1.bf16.msra.mxu0 %v1396
    %1792 = vmatprep.subr.bf16.mxu0 %v1393
    %1793 = vmatpush1.bf16.msra.mxu0 %v1392
    %1794 = vmatprep.subr.bf16.mxu0 %v1389
    %1795 = vmatpush1.bf16.msra.mxu0 %v1388
    %1796 = vmatprep.subr.bf16.mxu0 %v1385
    %1797 = vmatpush1.bf16.msra.mxu0 %v1384
    %1798 = vmatprep.subr.bf16.mxu0 %v1381
    %1799 = vmatpush1.bf16.msra.mxu0 %v1380
    %1800 = vmatprep.subr.bf16.mxu0 %v1377
    %1801 = vmatpush1.bf16.msra.mxu0 %v1376
    %1802 = vmatprep.subr.bf16.mxu0 %v1437
    %1803 = vmatpush2.bf16.msra.mxu0 %v1436
    %1804 = vmatprep.subr.bf16.mxu0 %v1433
    %1805 = vmatpush2.bf16.msra.mxu0 %v1432
    %1806 = vmatprep.subr.bf16.mxu0 %v1429
    %1807 = vmatpush2.bf16.msra.mxu0 %v1428
    %1808 = vmatprep.subr.bf16.mxu0 %v1425
    %1809 = vmatpush2.bf16.msra.mxu0 %v1424
    %1810 = vmatprep.subr.bf16.mxu0 %v1421
    %1811 = vmatpush2.bf16.msra.mxu0 %v1420
    %1812 = vmatprep.subr.bf16.mxu0 %v1417
    %1813 = vmatpush2.bf16.msra.mxu0 %v1416
    %1814 = vmatprep.subr.bf16.mxu0 %v1413
    %1815 = vmatpush2.bf16.msra.mxu0 %v1412
    %1816 = vmatprep.subr.bf16.mxu0 %v1409
    %1817 = vmatpush2.bf16.msra.mxu0 %v1408
    %1818 = vmatprep.mubr.bf16.mxu0 0
    %1819 = vmatmul.mubr.bf16.gmra.mxu0 %v1676
    %v1820 = vpop.f32.mrf.mxu0
    %v1821 = vadd.f32 0.0, %v1820
    %v1822 = vpop.f32.mrf.mxu0
    %v1823 = vadd.f32 0.0, %v1822
    %v1824 = vpop.f32.mrf.mxu0
    %v1825 = vadd.f32 0.0, %v1824
    %v1826 = vpop.f32.mrf.mxu0
    %v1827 = vadd.f32 0.0, %v1826
    %1828 = vmatprep.mubr.bf16.mxu0 %v1713
    %1829 = vmatmul.mubr.bf16.gmra.mxu0 0
    %v1830 = vpop.f32.mrf.mxu0
    %v1831 = vadd.f32 0.0, %v1830
    %v1832 = vpop.f32.mrf.mxu0
    %v1833 = vadd.f32 0.0, %v1832
    %v1834 = vpop.f32.mrf.mxu0
    %v1835 = vadd.f32 0.0, %v1834
    %v1836 = vpop.f32.mrf.mxu0
    %v1837 = vadd.f32 0.0, %v1836
    %1838 = vdwg.mxu0
    %v1839 = vunpack.c.l.bf16 %v1126
    %v1840 = vunpack.c.l.bf16 %v1127
    %v1841 = vunpack.c.l.bf16 %v1128
    %v1842 = vunpack.c.l.bf16 %v1129
    %v1843 = vunpack.c.h.bf16 %v1126
    %v1844 = vunpack.c.h.bf16 %v1127
    %v1845 = vunpack.c.h.bf16 %v1128
    %v1846 = vunpack.c.h.bf16 %v1129
    %v1847 = vadd.f32 %v1839, %v1768
    %v1848 = vadd.f32 %v1840, %v1770
    %v1849 = vadd.f32 %v1841, %v1821
    %v1850 = vadd.f32 %v1842, %v1823
    %v1851 = vadd.f32 %v1843, %v1772
    %v1852 = vadd.f32 %v1844, %v1774
    %v1853 = vadd.f32 %v1845, %v1825
    %v1854 = vadd.f32 %v1846, %v1827
    %v1855 = vunpack.c.l.bf16 %v1170
    %v1856 = vunpack.c.l.bf16 %v1171
    %v1857 = vunpack.c.l.bf16 %v1172
    %v1858 = vunpack.c.l.bf16 %v1173
    %v1859 = vunpack.c.h.bf16 %v1170
    %v1860 = vunpack.c.h.bf16 %v1171
    %v1861 = vunpack.c.h.bf16 %v1172
    %v1862 = vunpack.c.h.bf16 %v1173
    %v1863 = vadd.f32 %v1855, %v1778
    %v1864 = vadd.f32 %v1856, %v1780
    %v1865 = vadd.f32 %v1857, %v1831
    %v1866 = vadd.f32 %v1858, %v1833
    %v1867 = vadd.f32 %v1859, %v1782
    %v1868 = vadd.f32 %v1860, %v1784
    %v1869 = vadd.f32 %v1861, %v1835
    %v1870 = vadd.f32 %v1862, %v1837
    %v1871 = vmul.f32 %v1847, 0.5
    %v1872 = vmul.f32 %v1851, 0.5
    %v1873 = vtanh.pop %v1871
    %v1874 = vtanh.pop %v1872
    %v1875 = vmul.f32 %v1873, 0.5
    %v1876 = vmul.f32 %v1874, 0.5
    %v1877 = vadd.f32 %v1875, 0.5
    %v1878 = vadd.f32 %v1876, 0.5
    %v1879 = vmul.f32 %v1848, 0.5
    %v1880 = vmul.f32 %v1852, 0.5
    %v1881 = vtanh.pop %v1879
    %v1882 = vtanh.pop %v1880
    %v1883 = vmul.f32 %v1881, 0.5
    %v1884 = vmul.f32 %v1882, 0.5
    %v1885 = vadd.f32 %v1883, 0.5
    %v1886 = vadd.f32 %v1884, 0.5
    %v1887 = vtanh.pop %v1849
    %v1888 = vtanh.pop %v1853
    %v1889 = vmul.f32 %v1850, 0.5
    %v1890 = vmul.f32 %v1854, 0.5
    %v1891 = vtanh.pop %v1889
    %v1892 = vtanh.pop %v1890
    %v1893 = vmul.f32 %v1891, 0.5
    %v1894 = vmul.f32 %v1892, 0.5
    %v1895 = vadd.f32 %v1893, 0.5
    %v1896 = vadd.f32 %v1894, 0.5
    %v1897 = vmul.f32 %v1885, %v1670
    %v1898 = vmul.f32 %v1886, %v1671
    %v1899 = vmul.f32 %v1877, %v1887
    %v1900 = vmul.f32 %v1878, %v1888
    %v1901 = vadd.f32 %v1897, %v1899
    %v1902 = vadd.f32 %v1898, %v1900
    %v1903 = vtanh.pop %v1901
    %v1904 = vtanh.pop %v1902
    %v1905 = vmul.f32 %v1895, %v1903
    %v1906 = vmul.f32 %v1896, %v1904
    %v1907 = vpack.c.bf16 %v1906, %v1905
    %v1908 = vmul.f32 %v1863, 0.5
    %v1909 = vmul.f32 %v1867, 0.5
    %v1910 = vtanh.pop %v1908
    %v1911 = vtanh.pop %v1909
    %v1912 = vmul.f32 %v1910, 0.5
    %v1913 = vmul.f32 %v1911, 0.5
    %v1914 = vadd.f32 %v1912, 0.5
    %v1915 = vadd.f32 %v1913, 0.5
    %v1916 = vmul.f32 %v1864, 0.5
    %v1917 = vmul.f32 %v1868, 0.5
    %v1918 = vtanh.pop %v1916
    %v1919 = vtanh.pop %v1917
    %v1920 = vmul.f32 %v1918, 0.5
    %v1921 = vmul.f32 %v1919, 0.5
    %v1922 = vadd.f32 %v1920, 0.5
    %v1923 = vadd.f32 %v1921, 0.5
    %v1924 = vtanh.pop %v1865
    %v1925 = vtanh.pop %v1869
    %v1926 = vmul.f32 %v1866, 0.5
    %v1927 = vmul.f32 %v1870, 0.5
    %v1928 = vtanh.pop %v1926
    %v1929 = vtanh.pop %v1927
    %v1930 = vmul.f32 %v1928, 0.5
    %v1931 = vmul.f32 %v1929, 0.5
    %v1932 = vadd.f32 %v1930, 0.5
    %v1933 = vadd.f32 %v1931, 0.5
    %v1934 = vmul.f32 %v1922, %v1707
    %v1935 = vmul.f32 %v1923, %v1708
    %v1936 = vmul.f32 %v1914, %v1924
    %v1937 = vmul.f32 %v1915, %v1925
    %v1938 = vadd.f32 %v1934, %v1936
    %v1939 = vadd.f32 %v1935, %v1937
    %v1940 = vtanh.pop %v1938
    %v1941 = vtanh.pop %v1939
    %v1942 = vmul.f32 %v1932, %v1940
    %v1943 = vmul.f32 %v1933, %v1941
    %v1944 = vpack.c.bf16 %v1943, %v1942
    %v1946 = vunpack.c.l.b16 %v1907
    %v1947 = vunpack.c.h.b16 %v1907
    %v1948 = vpack.c.b16 %v1946, %v1946
    %v1949 = vpack.c.b16 %v1947, %v1947
    %s1952 = scalar_lea.vmem [#allocation2], 16
    %1953 = vst [vmem:[%s1952] sm:$0xf] %v1948
    %1954 = vst [vmem:[%s1952 + $0x8] sm:$0xf] %v1949
    %v1956 = vunpack.c.l.b16 %v1944
    %v1957 = vunpack.c.h.b16 %v1944
    %v1958 = vpack.c.b16 %v1956, %v1956
    %v1959 = vpack.c.b16 %v1957, %v1957
    %s1962 = scalar_lea.vmem [#allocation2], 96
    %1963 = vst [vmem:[%s1962 + $0x4] sm:$0xf] %v1958
    %1964 = vst [vmem:[%s1962 + $0xc] sm:$0xf] %v1959
    %1965 = vmatprep.subr.bf16.mxu0 %v1403
    %1966 = vmatpush1.bf16.msra.mxu0 %v1402
    %1967 = vmatprep.subr.bf16.mxu0 %v1399
    %1968 = vmatpush1.bf16.msra.mxu0 %v1398
    %1969 = vmatprep.subr.bf16.mxu0 %v1395
    %1970 = vmatpush1.bf16.msra.mxu0 %v1394
    %1971 = vmatprep.subr.bf16.mxu0 %v1391
    %1972 = vmatpush1.bf16.msra.mxu0 %v1390
    %1973 = vmatprep.subr.bf16.mxu0 %v1387
    %1974 = vmatpush1.bf16.msra.mxu0 %v1386
    %1975 = vmatprep.subr.bf16.mxu0 %v1383
    %1976 = vmatpush1.bf16.msra.mxu0 %v1382
    %1977 = vmatprep.subr.bf16.mxu0 %v1379
    %1978 = vmatpush1.bf16.msra.mxu0 %v1378
    %1979 = vmatprep.subr.bf16.mxu0 %v1375
    %1980 = vmatpush1.bf16.msra.mxu0 %v1374
    %1981 = vmatprep.subr.bf16.mxu0 %v1435
    %1982 = vmatpush2.bf16.msra.mxu0 %v1434
    %1983 = vmatprep.subr.bf16.mxu0 %v1431
    %1984 = vmatpush2.bf16.msra.mxu0 %v1430
    %1985 = vmatprep.subr.bf16.mxu0 %v1427
    %1986 = vmatpush2.bf16.msra.mxu0 %v1426
    %1987 = vmatprep.subr.bf16.mxu0 %v1423
    %1988 = vmatpush2.bf16.msra.mxu0 %v1422
    %1989 = vmatprep.subr.bf16.mxu0 %v1419
    %1990 = vmatpush2.bf16.msra.mxu0 %v1418
    %1991 = vmatprep.subr.bf16.mxu0 %v1415
    %1992 = vmatpush2.bf16.msra.mxu0 %v1414
    %1993 = vmatprep.subr.bf16.mxu0 %v1411
    %1994 = vmatpush2.bf16.msra.mxu0 %v1410
    %1995 = vmatprep.subr.bf16.mxu0 %v1407
    %1996 = vmatpush2.bf16.msra.mxu0 %v1406
    %1997 = vmatprep.mubr.bf16.mxu0 0
    %1998 = vmatmul.mubr.bf16.gmra.mxu0 %v1907
    %v1999 = vpop.f32.mrf.mxu0
    %v2000 = vadd.f32 0.0, %v1999
    %v2001 = vpop.f32.mrf.mxu0
    %v2002 = vadd.f32 0.0, %v2001
    %v2003 = vpop.f32.mrf.mxu0
    %v2004 = vadd.f32 0.0, %v2003
    %v2005 = vpop.f32.mrf.mxu0
    %v2006 = vadd.f32 0.0, %v2005
    %2007 = vmatprep.mubr.bf16.mxu0 %v1944
    %2008 = vmatmul.mubr.bf16.gmra.mxu0 0
    %v2009 = vpop.f32.mrf.mxu0
    %v2010 = vadd.f32 0.0, %v2009
    %v2011 = vpop.f32.mrf.mxu0
    %v2012 = vadd.f32 0.0, %v2011
    %v2013 = vpop.f32.mrf.mxu0
    %v2014 = vadd.f32 0.0, %v2013
    %v2015 = vpop.f32.mrf.mxu0
    %v2016 = vadd.f32 0.0, %v2015
    %2017 = vdwg.mxu0
    %2018 = vmatprep.subr.bf16.mxu0 %v1405
    %2019 = vmatpush1.bf16.msra.mxu0 %v1404
    %2020 = vmatprep.subr.bf16.mxu0 %v1401
    %2021 = vmatpush1.bf16.msra.mxu0 %v1400
    %2022 = vmatprep.subr.bf16.mxu0 %v1397
    %2023 = vmatpush1.bf16.msra.mxu0 %v1396
    %2024 = vmatprep.subr.bf16.mxu0 %v1393
    %2025 = vmatpush1.bf16.msra.mxu0 %v1392
    %2026 = vmatprep.subr.bf16.mxu0 %v1389
    %2027 = vmatpush1.bf16.msra.mxu0 %v1388
    %2028 = vmatprep.subr.bf16.mxu0 %v1385
    %2029 = vmatpush1.bf16.msra.mxu0 %v1384
    %2030 = vmatprep.subr.bf16.mxu0 %v1381
    %2031 = vmatpush1.bf16.msra.mxu0 %v1380
    %2032 = vmatprep.subr.bf16.mxu0 %v1377
    %2033 = vmatpush1.bf16.msra.mxu0 %v1376
    %2034 = vmatprep.subr.bf16.mxu0 %v1437
    %2035 = vmatpush2.bf16.msra.mxu0 %v1436
    %2036 = vmatprep.subr.bf16.mxu0 %v1433
    %2037 = vmatpush2.bf16.msra.mxu0 %v1432
    %2038 = vmatprep.subr.bf16.mxu0 %v1429
    %2039 = vmatpush2.bf16.msra.mxu0 %v1428
    %2040 = vmatprep.subr.bf16.mxu0 %v1425
    %2041 = vmatpush2.bf16.msra.mxu0 %v1424
    %2042 = vmatprep.subr.bf16.mxu0 %v1421
    %2043 = vmatpush2.bf16.msra.mxu0 %v1420
    %2044 = vmatprep.subr.bf16.mxu0 %v1417
    %2045 = vmatpush2.bf16.msra.mxu0 %v1416
    %2046 = vmatprep.subr.bf16.mxu0 %v1413
    %2047 = vmatpush2.bf16.msra.mxu0 %v1412
    %2048 = vmatprep.subr.bf16.mxu0 %v1409
    %2049 = vmatpush2.bf16.msra.mxu0 %v1408
    %2050 = vmatprep.mubr.bf16.mxu0 0
    %2051 = vmatmul.mubr.bf16.gmra.mxu0 %v1907
    %v2052 = vpop.f32.mrf.mxu0
    %v2053 = vadd.f32 0.0, %v2052
    %v2054 = vpop.f32.mrf.mxu0
    %v2055 = vadd.f32 0.0, %v2054
    %v2056 = vpop.f32.mrf.mxu0
    %v2057 = vadd.f32 0.0, %v2056
    %v2058 = vpop.f32.mrf.mxu0
    %v2059 = vadd.f32 0.0, %v2058
    %2060 = vmatprep.mubr.bf16.mxu0 %v1944
    %2061 = vmatmul.mubr.bf16.gmra.mxu0 0
    %v2062 = vpop.f32.mrf.mxu0
    %v2063 = vadd.f32 0.0, %v2062
    %v2064 = vpop.f32.mrf.mxu0
    %v2065 = vadd.f32 0.0, %v2064
    %v2066 = vpop.f32.mrf.mxu0
    %v2067 = vadd.f32 0.0, %v2066
    %v2068 = vpop.f32.mrf.mxu0
    %v2069 = vadd.f32 0.0, %v2068
    %2070 = vdwg.mxu0
    %v2071 = vunpack.c.l.bf16 %v1134
    %v2072 = vunpack.c.l.bf16 %v1135
    %v2073 = vunpack.c.l.bf16 %v1136
    %v2074 = vunpack.c.l.bf16 %v1137
    %v2075 = vunpack.c.h.bf16 %v1134
    %v2076 = vunpack.c.h.bf16 %v1135
    %v2077 = vunpack.c.h.bf16 %v1136
    %v2078 = vunpack.c.h.bf16 %v1137
    %v2079 = vadd.f32 %v2071, %v2000
    %v2080 = vadd.f32 %v2072, %v2002
    %v2081 = vadd.f32 %v2073, %v2053
    %v2082 = vadd.f32 %v2074, %v2055
    %v2083 = vadd.f32 %v2075, %v2004
    %v2084 = vadd.f32 %v2076, %v2006
    %v2085 = vadd.f32 %v2077, %v2057
    %v2086 = vadd.f32 %v2078, %v2059
    %v2087 = vunpack.c.l.bf16 %v1162
    %v2088 = vunpack.c.l.bf16 %v1163
    %v2089 = vunpack.c.l.bf16 %v1164
    %v2090 = vunpack.c.l.bf16 %v1165
    %v2091 = vunpack.c.h.bf16 %v1162
    %v2092 = vunpack.c.h.bf16 %v1163
    %v2093 = vunpack.c.h.bf16 %v1164
    %v2094 = vunpack.c.h.bf16 %v1165
    %v2095 = vadd.f32 %v2087, %v2010
    %v2096 = vadd.f32 %v2088, %v2012
    %v2097 = vadd.f32 %v2089, %v2063
    %v2098 = vadd.f32 %v2090, %v2065
    %v2099 = vadd.f32 %v2091, %v2014
    %v2100 = vadd.f32 %v2092, %v2016
    %v2101 = vadd.f32 %v2093, %v2067
    %v2102 = vadd.f32 %v2094, %v2069
    %v2103 = vmul.f32 %v2079, 0.5
    %v2104 = vmul.f32 %v2083, 0.5
    %v2105 = vtanh.pop %v2103
    %v2106 = vtanh.pop %v2104
    %v2107 = vmul.f32 %v2105, 0.5
    %v2108 = vmul.f32 %v2106, 0.5
    %v2109 = vadd.f32 %v2107, 0.5
    %v2110 = vadd.f32 %v2108, 0.5
    %v2111 = vmul.f32 %v2080, 0.5
    %v2112 = vmul.f32 %v2084, 0.5
    %v2113 = vtanh.pop %v2111
    %v2114 = vtanh.pop %v2112
    %v2115 = vmul.f32 %v2113, 0.5
    %v2116 = vmul.f32 %v2114, 0.5
    %v2117 = vadd.f32 %v2115, 0.5
    %v2118 = vadd.f32 %v2116, 0.5
    %v2119 = vtanh.pop %v2081
    %v2120 = vtanh.pop %v2085
    %v2121 = vmul.f32 %v2082, 0.5
    %v2122 = vmul.f32 %v2086, 0.5
    %v2123 = vtanh.pop %v2121
    %v2124 = vtanh.pop %v2122
    %v2125 = vmul.f32 %v2123, 0.5
    %v2126 = vmul.f32 %v2124, 0.5
    %v2127 = vadd.f32 %v2125, 0.5
    %v2128 = vadd.f32 %v2126, 0.5
    %v2129 = vmul.f32 %v2117, %v1901
    %v2130 = vmul.f32 %v2118, %v1902
    %v2131 = vmul.f32 %v2109, %v2119
    %v2132 = vmul.f32 %v2110, %v2120
    %v2133 = vadd.f32 %v2129, %v2131
    %v2134 = vadd.f32 %v2130, %v2132
    %v2135 = vtanh.pop %v2133
    %v2136 = vtanh.pop %v2134
    %v2137 = vmul.f32 %v2127, %v2135
    %v2138 = vmul.f32 %v2128, %v2136
    %v2139 = vpack.c.bf16 %v2138, %v2137
    %v2140 = vmul.f32 %v2095, 0.5
    %v2141 = vmul.f32 %v2099, 0.5
    %v2142 = vtanh.pop %v2140
    %v2143 = vtanh.pop %v2141
    %v2144 = vmul.f32 %v2142, 0.5
    %v2145 = vmul.f32 %v2143, 0.5
    %v2146 = vadd.f32 %v2144, 0.5
    %v2147 = vadd.f32 %v2145, 0.5
    %v2148 = vmul.f32 %v2096, 0.5
    %v2149 = vmul.f32 %v2100, 0.5
    %v2150 = vtanh.pop %v2148
    %v2151 = vtanh.pop %v2149
    %v2152 = vmul.f32 %v2150, 0.5
    %v2153 = vmul.f32 %v2151, 0.5
    %v2154 = vadd.f32 %v2152, 0.5
    %v2155 = vadd.f32 %v2153, 0.5
    %v2156 = vtanh.pop %v2097
    %v2157 = vtanh.pop %v2101
    %v2158 = vmul.f32 %v2098, 0.5
    %v2159 = vmul.f32 %v2102, 0.5
    %v2160 = vtanh.pop %v2158
    %v2161 = vtanh.pop %v2159
    %v2162 = vmul.f32 %v2160, 0.5
    %v2163 = vmul.f32 %v2161, 0.5
    %v2164 = vadd.f32 %v2162, 0.5
    %v2165 = vadd.f32 %v2163, 0.5
    %v2166 = vmul.f32 %v2154, %v1938
    %v2167 = vmul.f32 %v2155, %v1939
    %v2168 = vmul.f32 %v2146, %v2156
    %v2169 = vmul.f32 %v2147, %v2157
    %v2170 = vadd.f32 %v2166, %v2168
    %v2171 = vadd.f32 %v2167, %v2169
    %v2172 = vtanh.pop %v2170
    %v2173 = vtanh.pop %v2171
    %v2174 = vmul.f32 %v2164, %v2172
    %v2175 = vmul.f32 %v2165, %v2173
    %v2176 = vpack.c.bf16 %v2175, %v2174
    %v2178 = vunpack.c.l.b16 %v2139
    %v2179 = vunpack.c.h.b16 %v2139
    %v2180 = vpack.c.b16 %v2178, %v2178
    %v2181 = vpack.c.b16 %v2179, %v2179
    %s2184 = scalar_lea.vmem [#allocation2], 32
    %2185 = vst [vmem:[%s2184] sm:$0xf] %v2180
    %2186 = vst [vmem:[%s2184 + $0x8] sm:$0xf] %v2181
    %v2188 = vunpack.c.l.b16 %v2176
    %v2189 = vunpack.c.h.b16 %v2176
    %v2190 = vpack.c.b16 %v2188, %v2188
    %v2191 = vpack.c.b16 %v2189, %v2189
    %s2194 = scalar_lea.vmem [#allocation2], 80
    %2195 = vst [vmem:[%s2194 + $0x4] sm:$0xf] %v2190
    %2196 = vst [vmem:[%s2194 + $0xc] sm:$0xf] %v2191
    %2197 = vmatprep.subr.bf16.mxu0 %v1403
    %2198 = vmatpush1.bf16.msra.mxu0 %v1402
    %2199 = vmatprep.subr.bf16.mxu0 %v1399
    %2200 = vmatpush1.bf16.msra.mxu0 %v1398
    %2201 = vmatprep.subr.bf16.mxu0 %v1395
    %2202 = vmatpush1.bf16.msra.mxu0 %v1394
    %2203 = vmatprep.subr.bf16.mxu0 %v1391
    %2204 = vmatpush1.bf16.msra.mxu0 %v1390
    %2205 = vmatprep.subr.bf16.mxu0 %v1387
    %2206 = vmatpush1.bf16.msra.mxu0 %v1386
    %2207 = vmatprep.subr.bf16.mxu0 %v1383
    %2208 = vmatpush1.bf16.msra.mxu0 %v1382
    %2209 = vmatprep.subr.bf16.mxu0 %v1379
    %2210 = vmatpush1.bf16.msra.mxu0 %v1378
    %2211 = vmatprep.subr.bf16.mxu0 %v1375
    %2212 = vmatpush1.bf16.msra.mxu0 %v1374
    %2213 = vmatprep.subr.bf16.mxu0 %v1435
    %2214 = vmatpush2.bf16.msra.mxu0 %v1434
    %2215 = vmatprep.subr.bf16.mxu0 %v1431
    %2216 = vmatpush2.bf16.msra.mxu0 %v1430
    %2217 = vmatprep.subr.bf16.mxu0 %v1427
    %2218 = vmatpush2.bf16.msra.mxu0 %v1426
    %2219 = vmatprep.subr.bf16.mxu0 %v1423
    %2220 = vmatpush2.bf16.msra.mxu0 %v1422
    %2221 = vmatprep.subr.bf16.mxu0 %v1419
    %2222 = vmatpush2.bf16.msra.mxu0 %v1418
    %2223 = vmatprep.subr.bf16.mxu0 %v1415
    %2224 = vmatpush2.bf16.msra.mxu0 %v1414
    %2225 = vmatprep.subr.bf16.mxu0 %v1411
    %2226 = vmatpush2.bf16.msra.mxu0 %v1410
    %2227 = vmatprep.subr.bf16.mxu0 %v1407
    %2228 = vmatpush2.bf16.msra.mxu0 %v1406
    %2229 = vmatprep.mubr.bf16.mxu0 0
    %2230 = vmatmul.mubr.bf16.gmra.mxu0 %v2139
    %v2231 = vpop.f32.mrf.mxu0
    %v2232 = vadd.f32 0.0, %v2231
    %v2233 = vpop.f32.mrf.mxu0
    %v2234 = vadd.f32 0.0, %v2233
    %v2235 = vpop.f32.mrf.mxu0
    %v2236 = vadd.f32 0.0, %v2235
    %v2237 = vpop.f32.mrf.mxu0
    %v2238 = vadd.f32 0.0, %v2237
    %2239 = vmatprep.mubr.bf16.mxu0 %v2176
    %2240 = vmatmul.mubr.bf16.gmra.mxu0 0
    %v2241 = vpop.f32.mrf.mxu0
    %v2242 = vadd.f32 0.0, %v2241
    %v2243 = vpop.f32.mrf.mxu0
    %v2244 = vadd.f32 0.0, %v2243
    %v2245 = vpop.f32.mrf.mxu0
    %v2246 = vadd.f32 0.0, %v2245
    %v2247 = vpop.f32.mrf.mxu0
    %v2248 = vadd.f32 0.0, %v2247
    %2249 = vdwg.mxu0
    %2250 = vmatprep.subr.bf16.mxu0 %v1405
    %2251 = vmatpush1.bf16.msra.mxu0 %v1404
    %2252 = vmatprep.subr.bf16.mxu0 %v1401
    %2253 = vmatpush1.bf16.msra.mxu0 %v1400
    %2254 = vmatprep.subr.bf16.mxu0 %v1397
    %2255 = vmatpush1.bf16.msra.mxu0 %v1396
    %2256 = vmatprep.subr.bf16.mxu0 %v1393
    %2257 = vmatpush1.bf16.msra.mxu0 %v1392
    %2258 = vmatprep.subr.bf16.mxu0 %v1389
    %2259 = vmatpush1.bf16.msra.mxu0 %v1388
    %2260 = vmatprep.subr.bf16.mxu0 %v1385
    %2261 = vmatpush1.bf16.msra.mxu0 %v1384
    %2262 = vmatprep.subr.bf16.mxu0 %v1381
    %2263 = vmatpush1.bf16.msra.mxu0 %v1380
    %2264 = vmatprep.subr.bf16.mxu0 %v1377
    %2265 = vmatpush1.bf16.msra.mxu0 %v1376
    %2266 = vmatprep.subr.bf16.mxu0 %v1437
    %2267 = vmatpush2.bf16.msra.mxu0 %v1436
    %2268 = vmatprep.subr.bf16.mxu0 %v1433
    %2269 = vmatpush2.bf16.msra.mxu0 %v1432
    %2270 = vmatprep.subr.bf16.mxu0 %v1429
    %2271 = vmatpush2.bf16.msra.mxu0 %v1428
    %2272 = vmatprep.subr.bf16.mxu0 %v1425
    %2273 = vmatpush2.bf16.msra.mxu0 %v1424
    %2274 = vmatprep.subr.bf16.mxu0 %v1421
    %2275 = vmatpush2.bf16.msra.mxu0 %v1420
    %2276 = vmatprep.subr.bf16.mxu0 %v1417
    %2277 = vmatpush2.bf16.msra.mxu0 %v1416
    %2278 = vmatprep.subr.bf16.mxu0 %v1413
    %2279 = vmatpush2.bf16.msra.mxu0 %v1412
    %2280 = vmatprep.subr.bf16.mxu0 %v1409
    %2281 = vmatpush2.bf16.msra.mxu0 %v1408
    %2282 = vmatprep.mubr.bf16.mxu0 0
    %2283 = vmatmul.mubr.bf16.gmra.mxu0 %v2139
    %v2284 = vpop.f32.mrf.mxu0
    %v2285 = vadd.f32 0.0, %v2284
    %v2286 = vpop.f32.mrf.mxu0
    %v2287 = vadd.f32 0.0, %v2286
    %v2288 = vpop.f32.mrf.mxu0
    %v2289 = vadd.f32 0.0, %v2288
    %v2290 = vpop.f32.mrf.mxu0
    %v2291 = vadd.f32 0.0, %v2290
    %2292 = vmatprep.mubr.bf16.mxu0 %v2176
    %2293 = vmatmul.mubr.bf16.gmra.mxu0 0
    %v2294 = vpop.f32.mrf.mxu0
    %v2295 = vadd.f32 0.0, %v2294
    %v2296 = vpop.f32.mrf.mxu0
    %v2297 = vadd.f32 0.0, %v2296
    %v2298 = vpop.f32.mrf.mxu0
    %v2299 = vadd.f32 0.0, %v2298
    %v2300 = vpop.f32.mrf.mxu0
    %v2301 = vadd.f32 0.0, %v2300
    %2302 = vdwg.mxu0
    %v2303 = vunpack.c.l.bf16 %v1142
    %v2304 = vunpack.c.l.bf16 %v1143
    %v2305 = vunpack.c.l.bf16 %v1144
    %v2306 = vunpack.c.l.bf16 %v1145
    %v2307 = vunpack.c.h.bf16 %v1142
    %v2308 = vunpack.c.h.bf16 %v1143
    %v2309 = vunpack.c.h.bf16 %v1144
    %v2310 = vunpack.c.h.bf16 %v1145
    %v2311 = vadd.f32 %v2303, %v2232
    %v2312 = vadd.f32 %v2304, %v2234
    %v2313 = vadd.f32 %v2305, %v2285
    %v2314 = vadd.f32 %v2306, %v2287
    %v2315 = vadd.f32 %v2307, %v2236
    %v2316 = vadd.f32 %v2308, %v2238
    %v2317 = vadd.f32 %v2309, %v2289
    %v2318 = vadd.f32 %v2310, %v2291
    %v2319 = vunpack.c.l.bf16 %v1154
    %v2320 = vunpack.c.l.bf16 %v1155
    %v2321 = vunpack.c.l.bf16 %v1156
    %v2322 = vunpack.c.l.bf16 %v1157
    %v2323 = vunpack.c.h.bf16 %v1154
    %v2324 = vunpack.c.h.bf16 %v1155
    %v2325 = vunpack.c.h.bf16 %v1156
    %v2326 = vunpack.c.h.bf16 %v1157
    %v2327 = vadd.f32 %v2319, %v2242
    %v2328 = vadd.f32 %v2320, %v2244
    %v2329 = vadd.f32 %v2321, %v2295
    %v2330 = vadd.f32 %v2322, %v2297
    %v2331 = vadd.f32 %v2323, %v2246
    %v2332 = vadd.f32 %v2324, %v2248
    %v2333 = vadd.f32 %v2325, %v2299
    %v2334 = vadd.f32 %v2326, %v2301
    %v2335 = vmul.f32 %v2311, 0.5
    %v2336 = vmul.f32 %v2315, 0.5
    %v2337 = vtanh.pop %v2335
    %v2338 = vtanh.pop %v2336
    %v2339 = vmul.f32 %v2337, 0.5
    %v2340 = vmul.f32 %v2338, 0.5
    %v2341 = vadd.f32 %v2339, 0.5
    %v2342 = vadd.f32 %v2340, 0.5
    %v2343 = vmul.f32 %v2312, 0.5
    %v2344 = vmul.f32 %v2316, 0.5
    %v2345 = vtanh.pop %v2343
    %v2346 = vtanh.pop %v2344
    %v2347 = vmul.f32 %v2345, 0.5
    %v2348 = vmul.f32 %v2346, 0.5
    %v2349 = vadd.f32 %v2347, 0.5
    %v2350 = vadd.f32 %v2348, 0.5
    %v2351 = vtanh.pop %v2313
    %v2352 = vtanh.pop %v2317
    %v2353 = vmul.f32 %v2314, 0.5
    %v2354 = vmul.f32 %v2318, 0.5
    %v2355 = vtanh.pop %v2353
    %v2356 = vtanh.pop %v2354
    %v2357 = vmul.f32 %v2355, 0.5
    %v2358 = vmul.f32 %v2356, 0.5
    %v2359 = vadd.f32 %v2357, 0.5
    %v2360 = vadd.f32 %v2358, 0.5
    %v2361 = vmul.f32 %v2349, %v2133
    %v2362 = vmul.f32 %v2350, %v2134
    %v2363 = vmul.f32 %v2341, %v2351
    %v2364 = vmul.f32 %v2342, %v2352
    %v2365 = vadd.f32 %v2361, %v2363
    %v2366 = vadd.f32 %v2362, %v2364
    %v2367 = vtanh.pop %v2365
    %v2368 = vtanh.pop %v2366
    %v2369 = vmul.f32 %v2359, %v2367
    %v2370 = vmul.f32 %v2360, %v2368
    %v2371 = vpack.c.bf16 %v2370, %v2369
    %v2372 = vmul.f32 %v2327, 0.5
    %v2373 = vmul.f32 %v2331, 0.5
    %v2374 = vtanh.pop %v2372
    %v2375 = vtanh.pop %v2373
    %v2376 = vmul.f32 %v2374, 0.5
    %v2377 = vmul.f32 %v2375, 0.5
    %v2378 = vadd.f32 %v2376, 0.5
    %v2379 = vadd.f32 %v2377, 0.5
    %v2380 = vmul.f32 %v2328, 0.5
    %v2381 = vmul.f32 %v2332, 0.5
    %v2382 = vtanh.pop %v2380
    %v2383 = vtanh.pop %v2381
    %v2384 = vmul.f32 %v2382, 0.5
    %v2385 = vmul.f32 %v2383, 0.5
    %v2386 = vadd.f32 %v2384, 0.5
    %v2387 = vadd.f32 %v2385, 0.5
    %v2388 = vtanh.pop %v2329
    %v2389 = vtanh.pop %v2333
    %v2390 = vmul.f32 %v2330, 0.5
    %v2391 = vmul.f32 %v2334, 0.5
    %v2392 = vtanh.pop %v2390
    %v2393 = vtanh.pop %v2391
    %v2394 = vmul.f32 %v2392, 0.5
    %v2395 = vmul.f32 %v2393, 0.5
    %v2396 = vadd.f32 %v2394, 0.5
    %v2397 = vadd.f32 %v2395, 0.5
    %v2398 = vmul.f32 %v2386, %v2170
    %v2399 = vmul.f32 %v2387, %v2171
    %v2400 = vmul.f32 %v2378, %v2388
    %v2401 = vmul.f32 %v2379, %v2389
    %v2402 = vadd.f32 %v2398, %v2400
    %v2403 = vadd.f32 %v2399, %v2401
    %v2404 = vtanh.pop %v2402
    %v2405 = vtanh.pop %v2403
    %v2406 = vmul.f32 %v2396, %v2404
    %v2407 = vmul.f32 %v2397, %v2405
    %v2408 = vpack.c.bf16 %v2407, %v2406
    %v2410 = vunpack.c.l.b16 %v2371
    %v2411 = vunpack.c.h.b16 %v2371
    %v2412 = vpack.c.b16 %v2410, %v2410
    %v2413 = vpack.c.b16 %v2411, %v2411
    %s2416 = scalar_lea.vmem [#allocation2], 48
    %2417 = vst [vmem:[%s2416] sm:$0xf] %v2412
    %2418 = vst [vmem:[%s2416 + $0x8] sm:$0xf] %v2413
    %v2420 = vunpack.c.l.b16 %v2408
    %v2421 = vunpack.c.h.b16 %v2408
    %v2422 = vpack.c.b16 %v2420, %v2420
    %v2423 = vpack.c.b16 %v2421, %v2421
    %s2426 = scalar_lea.vmem [#allocation2], 64
    %2427 = vst [vmem:[%s2426 + $0x4] sm:$0xf] %v2422
    %2428 = vst [vmem:[%s2426 + $0xc] sm:$0xf] %v2423
    %2429 = vmatprep.subr.bf16.mxu0 %v1403
    %2430 = vmatpush1.bf16.msra.mxu0 %v1402
    %2431 = vmatprep.subr.bf16.mxu0 %v1399
    %2432 = vmatpush1.bf16.msra.mxu0 %v1398
    %2433 = vmatprep.subr.bf16.mxu0 %v1395
    %2434 = vmatpush1.bf16.msra.mxu0 %v1394
    %2435 = vmatprep.subr.bf16.mxu0 %v1391
    %2436 = vmatpush1.bf16.msra.mxu0 %v1390
    %2437 = vmatprep.subr.bf16.mxu0 %v1387
    %2438 = vmatpush1.bf16.msra.mxu0 %v1386
    %2439 = vmatprep.subr.bf16.mxu0 %v1383
    %2440 = vmatpush1.bf16.msra.mxu0 %v1382
    %2441 = vmatprep.subr.bf16.mxu0 %v1379
    %2442 = vmatpush1.bf16.msra.mxu0 %v1378
    %2443 = vmatprep.subr.bf16.mxu0 %v1375
    %2444 = vmatpush1.bf16.msra.mxu0 %v1374
    %2445 = vmatprep.subr.bf16.mxu0 %v1435
    %2446 = vmatpush2.bf16.msra.mxu0 %v1434
    %2447 = vmatprep.subr.bf16.mxu0 %v1431
    %2448 = vmatpush2.bf16.msra.mxu0 %v1430
    %2449 = vmatprep.subr.bf16.mxu0 %v1427
    %2450 = vmatpush2.bf16.msra.mxu0 %v1426
    %2451 = vmatprep.subr.bf16.mxu0 %v1423
    %2452 = vmatpush2.bf16.msra.mxu0 %v1422
    %2453 = vmatprep.subr.bf16.mxu0 %v1419
    %2454 = vmatpush2.bf16.msra.mxu0 %v1418
    %2455 = vmatprep.subr.bf16.mxu0 %v1415
    %2456 = vmatpush2.bf16.msra.mxu0 %v1414
    %2457 = vmatprep.subr.bf16.mxu0 %v1411
    %2458 = vmatpush2.bf16.msra.mxu0 %v1410
    %2459 = vmatprep.subr.bf16.mxu0 %v1407
    %2460 = vmatpush2.bf16.msra.mxu0 %v1406
    %2461 = vmatprep.mubr.bf16.mxu0 0
    %2462 = vmatmul.mubr.bf16.gmra.mxu0 %v2371
    %v2463 = vpop.f32.mrf.mxu0
    %v2464 = vadd.f32 0.0, %v2463
    %v2465 = vpop.f32.mrf.mxu0
    %v2466 = vadd.f32 0.0, %v2465
    %v2467 = vpop.f32.mrf.mxu0
    %v2468 = vadd.f32 0.0, %v2467
    %v2469 = vpop.f32.mrf.mxu0
    %v2470 = vadd.f32 0.0, %v2469
    %2471 = vmatprep.mubr.bf16.mxu0 %v2408
    %2472 = vmatmul.mubr.bf16.gmra.mxu0 0
    %v2473 = vpop.f32.mrf.mxu0
    %v2474 = vadd.f32 0.0, %v2473
    %v2475 = vpop.f32.mrf.mxu0
    %v2476 = vadd.f32 0.0, %v2475
    %v2477 = vpop.f32.mrf.mxu0
    %v2478 = vadd.f32 0.0, %v2477
    %v2479 = vpop.f32.mrf.mxu0
    %v2480 = vadd.f32 0.0, %v2479
    %2481 = vdwg.mxu0
    %2482 = vmatprep.subr.bf16.mxu0 %v1405
    %2483 = vmatpush1.bf16.msra.mxu0 %v1404
    %2484 = vmatprep.subr.bf16.mxu0 %v1401
    %2485 = vmatpush1.bf16.msra.mxu0 %v1400
    %2486 = vmatprep.subr.bf16.mxu0 %v1397
    %2487 = vmatpush1.bf16.msra.mxu0 %v1396
    %2488 = vmatprep.subr.bf16.mxu0 %v1393
    %2489 = vmatpush1.bf16.msra.mxu0 %v1392
    %2490 = vmatprep.subr.bf16.mxu0 %v1389
    %2491 = vmatpush1.bf16.msra.mxu0 %v1388
    %2492 = vmatprep.subr.bf16.mxu0 %v1385
    %2493 = vmatpush1.bf16.msra.mxu0 %v1384
    %2494 = vmatprep.subr.bf16.mxu0 %v1381
    %2495 = vmatpush1.bf16.msra.mxu0 %v1380
    %2496 = vmatprep.subr.bf16.mxu0 %v1377
    %2497 = vmatpush1.bf16.msra.mxu0 %v1376
    %2498 = vmatprep.subr.bf16.mxu0 %v1437
    %2499 = vmatpush2.bf16.msra.mxu0 %v1436
    %2500 = vmatprep.subr.bf16.mxu0 %v1433
    %2501 = vmatpush2.bf16.msra.mxu0 %v1432
    %2502 = vmatprep.subr.bf16.mxu0 %v1429
    %2503 = vmatpush2.bf16.msra.mxu0 %v1428
    %2504 = vmatprep.subr.bf16.mxu0 %v1425
    %2505 = vmatpush2.bf16.msra.mxu0 %v1424
    %2506 = vmatprep.subr.bf16.mxu0 %v1421
    %2507 = vmatpush2.bf16.msra.mxu0 %v1420
    %2508 = vmatprep.subr.bf16.mxu0 %v1417
    %2509 = vmatpush2.bf16.msra.mxu0 %v1416
    %2510 = vmatprep.subr.bf16.mxu0 %v1413
    %2511 = vmatpush2.bf16.msra.mxu0 %v1412
    %2512 = vmatprep.subr.bf16.mxu0 %v1409
    %2513 = vmatpush2.bf16.msra.mxu0 %v1408
    %2514 = vmatprep.mubr.bf16.mxu0 0
    %2515 = vmatmul.mubr.bf16.gmra.mxu0 %v2371
    %v2516 = vpop.f32.mrf.mxu0
    %v2517 = vadd.f32 0.0, %v2516
    %v2518 = vpop.f32.mrf.mxu0
    %v2519 = vadd.f32 0.0, %v2518
    %v2520 = vpop.f32.mrf.mxu0
    %v2521 = vadd.f32 0.0, %v2520
    %v2522 = vpop.f32.mrf.mxu0
    %v2523 = vadd.f32 0.0, %v2522
    %2524 = vmatprep.mubr.bf16.mxu0 %v2408
    %2525 = vmatmul.mubr.bf16.gmra.mxu0 0
    %v2526 = vpop.f32.mrf.mxu0
    %v2527 = vadd.f32 0.0, %v2526
    %v2528 = vpop.f32.mrf.mxu0
    %v2529 = vadd.f32 0.0, %v2528
    %v2530 = vpop.f32.mrf.mxu0
    %v2531 = vadd.f32 0.0, %v2530
    %v2532 = vpop.f32.mrf.mxu0
    %v2533 = vadd.f32 0.0, %v2532
    %2534 = vdwg.mxu0
    %v2535 = vunpack.c.l.bf16 %v1150
    %v2536 = vunpack.c.l.bf16 %v1151
    %v2537 = vunpack.c.l.bf16 %v1152
    %v2538 = vunpack.c.l.bf16 %v1153
    %v2539 = vunpack.c.h.bf16 %v1150
    %v2540 = vunpack.c.h.bf16 %v1151
    %v2541 = vunpack.c.h.bf16 %v1152
    %v2542 = vunpack.c.h.bf16 %v1153
    %v2543 = vadd.f32 %v2535, %v2464
    %v2544 = vadd.f32 %v2536, %v2466
    %v2545 = vadd.f32 %v2537, %v2517
    %v2546 = vadd.f32 %v2538, %v2519
    %v2547 = vadd.f32 %v2539, %v2468
    %v2548 = vadd.f32 %v2540, %v2470
    %v2549 = vadd.f32 %v2541, %v2521
    %v2550 = vadd.f32 %v2542, %v2523
    %v2551 = vunpack.c.l.bf16 %v1146
    %v2552 = vunpack.c.l.bf16 %v1147
    %v2553 = vunpack.c.l.bf16 %v1148
    %v2554 = vunpack.c.l.bf16 %v1149
    %v2555 = vunpack.c.h.bf16 %v1146
    %v2556 = vunpack.c.h.bf16 %v1147
    %v2557 = vunpack.c.h.bf16 %v1148
    %v2558 = vunpack.c.h.bf16 %v1149
    %v2559 = vadd.f32 %v2551, %v2474
    %v2560 = vadd.f32 %v2552, %v2476
    %v2561 = vadd.f32 %v2553, %v2527
    %v2562 = vadd.f32 %v2554, %v2529
    %v2563 = vadd.f32 %v2555, %v2478
    %v2564 = vadd.f32 %v2556, %v2480
    %v2565 = vadd.f32 %v2557, %v2531
    %v2566 = vadd.f32 %v2558, %v2533
    %v2567 = vmul.f32 %v2543, 0.5
    %v2568 = vmul.f32 %v2547, 0.5
    %v2569 = vtanh.pop %v2567
    %v2570 = vtanh.pop %v2568
    %v2571 = vmul.f32 %v2569, 0.5
    %v2572 = vmul.f32 %v2570, 0.5
    %v2573 = vadd.f32 %v2571, 0.5
    %v2574 = vadd.f32 %v2572, 0.5
    %v2575 = vmul.f32 %v2544, 0.5
    %v2576 = vmul.f32 %v2548, 0.5
    %v2577 = vtanh.pop %v2575
    %v2578 = vtanh.pop %v2576
    %v2579 = vmul.f32 %v2577, 0.5
    %v2580 = vmul.f32 %v2578, 0.5
    %v2581 = vadd.f32 %v2579, 0.5
    %v2582 = vadd.f32 %v2580, 0.5
    %v2583 = vtanh.pop %v2545
    %v2584 = vtanh.pop %v2549
    %v2585 = vmul.f32 %v2546, 0.5
    %v2586 = vmul.f32 %v2550, 0.5
    %v2587 = vtanh.pop %v2585
    %v2588 = vtanh.pop %v2586
    %v2589 = vmul.f32 %v2587, 0.5
    %v2590 = vmul.f32 %v2588, 0.5
    %v2591 = vadd.f32 %v2589, 0.5
    %v2592 = vadd.f32 %v2590, 0.5
    %v2593 = vmul.f32 %v2581, %v2365
    %v2594 = vmul.f32 %v2582, %v2366
    %v2595 = vmul.f32 %v2573, %v2583
    %v2596 = vmul.f32 %v2574, %v2584
    %v2597 = vadd.f32 %v2593, %v2595
    %v2598 = vadd.f32 %v2594, %v2596
    %v2599 = vtanh.pop %v2597
    %v2600 = vtanh.pop %v2598
    %v2601 = vmul.f32 %v2591, %v2599
    %v2602 = vmul.f32 %v2592, %v2600
    %v2603 = vpack.c.bf16 %v2602, %v2601
    %v2604 = vmul.f32 %v2559, 0.5
    %v2605 = vmul.f32 %v2563, 0.5
    %v2606 = vtanh.pop %v2604
    %v2607 = vtanh.pop %v2605
    %v2608 = vmul.f32 %v2606, 0.5
    %v2609 = vmul.f32 %v2607, 0.5
    %v2610 = vadd.f32 %v2608, 0.5
    %v2611 = vadd.f32 %v2609, 0.5
    %v2612 = vmul.f32 %v2560, 0.5
    %v2613 = vmul.f32 %v2564, 0.5
    %v2614 = vtanh.pop %v2612
    %v2615 = vtanh.pop %v2613
    %v2616 = vmul.f32 %v2614, 0.5
    %v2617 = vmul.f32 %v2615, 0.5
    %v2618 = vadd.f32 %v2616, 0.5
    %v2619 = vadd.f32 %v2617, 0.5
    %v2620 = vtanh.pop %v2561
    %v2621 = vtanh.pop %v2565
    %v2622 = vmul.f32 %v2562, 0.5
    %v2623 = vmul.f32 %v2566, 0.5
    %v2624 = vtanh.pop %v2622
    %v2625 = vtanh.pop %v2623
    %v2626 = vmul.f32 %v2624, 0.5
    %v2627 = vmul.f32 %v2625, 0.5
    %v2628 = vadd.f32 %v2626, 0.5
    %v2629 = vadd.f32 %v2627, 0.5
    %v2630 = vmul.f32 %v2618, %v2402
    %v2631 = vmul.f32 %v2619, %v2403
    %v2632 = vmul.f32 %v2610, %v2620
    %v2633 = vmul.f32 %v2611, %v2621
    %v2634 = vadd.f32 %v2630, %v2632
    %v2635 = vadd.f32 %v2631, %v2633
    %v2636 = vtanh.pop %v2634
    %v2637 = vtanh.pop %v2635
    %v2638 = vmul.f32 %v2628, %v2636
    %v2639 = vmul.f32 %v2629, %v2637
    %v2640 = vpack.c.bf16 %v2639, %v2638
    %v2642 = vunpack.c.l.b16 %v2603
    %v2643 = vunpack.c.h.b16 %v2603
    %v2644 = vpack.c.b16 %v2642, %v2642
    %v2645 = vpack.c.b16 %v2643, %v2643
    %2648 = vst [vmem:[%s2426] sm:$0xf] %v2644
    %2649 = vst [vmem:[%s2426 + $0x8] sm:$0xf] %v2645
    %v2651 = vunpack.c.l.b16 %v2640
    %v2652 = vunpack.c.h.b16 %v2640
    %v2653 = vpack.c.b16 %v2651, %v2651
    %v2654 = vpack.c.b16 %v2652, %v2652
    %2657 = vst [vmem:[%s2416 + $0x4] sm:$0xf] %v2653
    %2658 = vst [vmem:[%s2416 + $0xc] sm:$0xf] %v2654
    %2659 = vmatprep.subr.bf16.mxu0 %v1403
    %2660 = vmatpush1.bf16.msra.mxu0 %v1402
    %2661 = vmatprep.subr.bf16.mxu0 %v1399
    %2662 = vmatpush1.bf16.msra.mxu0 %v1398
    %2663 = vmatprep.subr.bf16.mxu0 %v1395
    %2664 = vmatpush1.bf16.msra.mxu0 %v1394
    %2665 = vmatprep.subr.bf16.mxu0 %v1391
    %2666 = vmatpush1.bf16.msra.mxu0 %v1390
    %2667 = vmatprep.subr.bf16.mxu0 %v1387
    %2668 = vmatpush1.bf16.msra.mxu0 %v1386
    %2669 = vmatprep.subr.bf16.mxu0 %v1383
    %2670 = vmatpush1.bf16.msra.mxu0 %v1382
    %2671 = vmatprep.subr.bf16.mxu0 %v1379
    %2672 = vmatpush1.bf16.msra.mxu0 %v1378
    %2673 = vmatprep.subr.bf16.mxu0 %v1375
    %2674 = vmatpush1.bf16.msra.mxu0 %v1374
    %2675 = vmatprep.subr.bf16.mxu0 %v1435
    %2676 = vmatpush2.bf16.msra.mxu0 %v1434
    %2677 = vmatprep.subr.bf16.mxu0 %v1431
    %2678 = vmatpush2.bf16.msra.mxu0 %v1430
    %2679 = vmatprep.subr.bf16.mxu0 %v1427
    %2680 = vmatpush2.bf16.msra.mxu0 %v1426
    %2681 = vmatprep.subr.bf16.mxu0 %v1423
    %2682 = vmatpush2.bf16.msra.mxu0 %v1422
    %2683 = vmatprep.subr.bf16.mxu0 %v1419
    %2684 = vmatpush2.bf16.msra.mxu0 %v1418
    %2685 = vmatprep.subr.bf16.mxu0 %v1415
    %2686 = vmatpush2.bf16.msra.mxu0 %v1414
    %2687 = vmatprep.subr.bf16.mxu0 %v1411
    %2688 = vmatpush2.bf16.msra.mxu0 %v1410
    %2689 = vmatprep.subr.bf16.mxu0 %v1407
    %2690 = vmatpush2.bf16.msra.mxu0 %v1406
    %2691 = vmatprep.mubr.bf16.mxu0 0
    %2692 = vmatmul.mubr.bf16.gmra.mxu0 %v2603
    %v2693 = vpop.f32.mrf.mxu0
    %v2694 = vadd.f32 0.0, %v2693
    %v2695 = vpop.f32.mrf.mxu0
    %v2696 = vadd.f32 0.0, %v2695
    %v2697 = vpop.f32.mrf.mxu0
    %v2698 = vadd.f32 0.0, %v2697
    %v2699 = vpop.f32.mrf.mxu0
    %v2700 = vadd.f32 0.0, %v2699
    %2701 = vmatprep.mubr.bf16.mxu0 %v2640
    %2702 = vmatmul.mubr.bf16.gmra.mxu0 0
    %v2703 = vpop.f32.mrf.mxu0
    %v2704 = vadd.f32 0.0, %v2703
    %v2705 = vpop.f32.mrf.mxu0
    %v2706 = vadd.f32 0.0, %v2705
    %v2707 = vpop.f32.mrf.mxu0
    %v2708 = vadd.f32 0.0, %v2707
    %v2709 = vpop.f32.mrf.mxu0
    %v2710 = vadd.f32 0.0, %v2709
    %2711 = vdwg.mxu0
    %2712 = vmatprep.subr.bf16.mxu0 %v1405
    %2713 = vmatpush1.bf16.msra.mxu0 %v1404
    %2714 = vmatprep.subr.bf16.mxu0 %v1401
    %2715 = vmatpush1.bf16.msra.mxu0 %v1400
    %2716 = vmatprep.subr.bf16.mxu0 %v1397
    %2717 = vmatpush1.bf16.msra.mxu0 %v1396
    %2718 = vmatprep.subr.bf16.mxu0 %v1393
    %2719 = vmatpush1.bf16.msra.mxu0 %v1392
    %2720 = vmatprep.subr.bf16.mxu0 %v1389
    %2721 = vmatpush1.bf16.msra.mxu0 %v1388
    %2722 = vmatprep.subr.bf16.mxu0 %v1385
    %2723 = vmatpush1.bf16.msra.mxu0 %v1384
    %2724 = vmatprep.subr.bf16.mxu0 %v1381
    %2725 = vmatpush1.bf16.msra.mxu0 %v1380
    %2726 = vmatprep.subr.bf16.mxu0 %v1377
    %2727 = vmatpush1.bf16.msra.mxu0 %v1376
    %2728 = vmatprep.subr.bf16.mxu0 %v1437
    %2729 = vmatpush2.bf16.msra.mxu0 %v1436
    %2730 = vmatprep.subr.bf16.mxu0 %v1433
    %2731 = vmatpush2.bf16.msra.mxu0 %v1432
    %2732 = vmatprep.subr.bf16.mxu0 %v1429
    %2733 = vmatpush2.bf16.msra.mxu0 %v1428
    %2734 = vmatprep.subr.bf16.mxu0 %v1425
    %2735 = vmatpush2.bf16.msra.mxu0 %v1424
    %2736 = vmatprep.subr.bf16.mxu0 %v1421
    %2737 = vmatpush2.bf16.msra.mxu0 %v1420
    %2738 = vmatprep.subr.bf16.mxu0 %v1417
    %2739 = vmatpush2.bf16.msra.mxu0 %v1416
    %2740 = vmatprep.subr.bf16.mxu0 %v1413
    %2741 = vmatpush2.bf16.msra.mxu0 %v1412
    %2742 = vmatprep.subr.bf16.mxu0 %v1409
    %2743 = vmatpush2.bf16.msra.mxu0 %v1408
    %2744 = vmatprep.mubr.bf16.mxu0 0
    %2745 = vmatmul.mubr.bf16.gmra.mxu0 %v2603
    %v2746 = vpop.f32.mrf.mxu0
    %v2747 = vadd.f32 0.0, %v2746
    %v2748 = vpop.f32.mrf.mxu0
    %v2749 = vadd.f32 0.0, %v2748
    %v2750 = vpop.f32.mrf.mxu0
    %v2751 = vadd.f32 0.0, %v2750
    %v2752 = vpop.f32.mrf.mxu0
    %v2753 = vadd.f32 0.0, %v2752
    %2754 = vmatprep.mubr.bf16.mxu0 %v2640
    %2755 = vmatmul.mubr.bf16.gmra.mxu0 0
    %v2756 = vpop.f32.mrf.mxu0
    %v2757 = vadd.f32 0.0, %v2756
    %v2758 = vpop.f32.mrf.mxu0
    %v2759 = vadd.f32 0.0, %v2758
    %v2760 = vpop.f32.mrf.mxu0
    %v2761 = vadd.f32 0.0, %v2760
    %v2762 = vpop.f32.mrf.mxu0
    %v2763 = vadd.f32 0.0, %v2762
    %2764 = vdwg.mxu0
    %v2765 = vunpack.c.l.bf16 %v1158
    %v2766 = vunpack.c.l.bf16 %v1159
    %v2767 = vunpack.c.l.bf16 %v1160
    %v2768 = vunpack.c.l.bf16 %v1161
    %v2769 = vunpack.c.h.bf16 %v1158
    %v2770 = vunpack.c.h.bf16 %v1159
    %v2771 = vunpack.c.h.bf16 %v1160
    %v2772 = vunpack.c.h.bf16 %v1161
    %v2773 = vadd.f32 %v2765, %v2694
    %v2774 = vadd.f32 %v2766, %v2696
    %v2775 = vadd.f32 %v2767, %v2747
    %v2776 = vadd.f32 %v2768, %v2749
    %v2777 = vadd.f32 %v2769, %v2698
    %v2778 = vadd.f32 %v2770, %v2700
    %v2779 = vadd.f32 %v2771, %v2751
    %v2780 = vadd.f32 %v2772, %v2753
    %v2781 = vunpack.c.l.bf16 %v1138
    %v2782 = vunpack.c.l.bf16 %v1139
    %v2783 = vunpack.c.l.bf16 %v1140
    %v2784 = vunpack.c.l.bf16 %v1141
    %v2785 = vunpack.c.h.bf16 %v1138
    %v2786 = vunpack.c.h.bf16 %v1139
    %v2787 = vunpack.c.h.bf16 %v1140
    %v2788 = vunpack.c.h.bf16 %v1141
    %v2789 = vadd.f32 %v2781, %v2704
    %v2790 = vadd.f32 %v2782, %v2706
    %v2791 = vadd.f32 %v2783, %v2757
    %v2792 = vadd.f32 %v2784, %v2759
    %v2793 = vadd.f32 %v2785, %v2708
    %v2794 = vadd.f32 %v2786, %v2710
    %v2795 = vadd.f32 %v2787, %v2761
    %v2796 = vadd.f32 %v2788, %v2763
    %v2797 = vmul.f32 %v2773, 0.5
    %v2798 = vmul.f32 %v2777, 0.5
    %v2799 = vtanh.pop %v2797
    %v2800 = vtanh.pop %v2798
    %v2801 = vmul.f32 %v2799, 0.5
    %v2802 = vmul.f32 %v2800, 0.5
    %v2803 = vadd.f32 %v2801, 0.5
    %v2804 = vadd.f32 %v2802, 0.5
    %v2805 = vmul.f32 %v2774, 0.5
    %v2806 = vmul.f32 %v2778, 0.5
    %v2807 = vtanh.pop %v2805
    %v2808 = vtanh.pop %v2806
    %v2809 = vmul.f32 %v2807, 0.5
    %v2810 = vmul.f32 %v2808, 0.5
    %v2811 = vadd.f32 %v2809, 0.5
    %v2812 = vadd.f32 %v2810, 0.5
    %v2813 = vtanh.pop %v2775
    %v2814 = vtanh.pop %v2779
    %v2815 = vmul.f32 %v2776, 0.5
    %v2816 = vmul.f32 %v2780, 0.5
    %v2817 = vtanh.pop %v2815
    %v2818 = vtanh.pop %v2816
    %v2819 = vmul.f32 %v2817, 0.5
    %v2820 = vmul.f32 %v2818, 0.5
    %v2821 = vadd.f32 %v2819, 0.5
    %v2822 = vadd.f32 %v2820, 0.5
    %v2823 = vmul.f32 %v2811, %v2597
    %v2824 = vmul.f32 %v2812, %v2598
    %v2825 = vmul.f32 %v2803, %v2813
    %v2826 = vmul.f32 %v2804, %v2814
    %v2827 = vadd.f32 %v2823, %v2825
    %v2828 = vadd.f32 %v2824, %v2826
    %v2829 = vtanh.pop %v2827
    %v2830 = vtanh.pop %v2828
    %v2831 = vmul.f32 %v2821, %v2829
    %v2832 = vmul.f32 %v2822, %v2830
    %v2833 = vpack.c.bf16 %v2832, %v2831
    %v2834 = vmul.f32 %v2789, 0.5
    %v2835 = vmul.f32 %v2793, 0.5
    %v2836 = vtanh.pop %v2834
    %v2837 = vtanh.pop %v2835
    %v2838 = vmul.f32 %v2836, 0.5
    %v2839 = vmul.f32 %v2837, 0.5
    %v2840 = vadd.f32 %v2838, 0.5
    %v2841 = vadd.f32 %v2839, 0.5
    %v2842 = vmul.f32 %v2790, 0.5
    %v2843 = vmul.f32 %v2794, 0.5
    %v2844 = vtanh.pop %v2842
    %v2845 = vtanh.pop %v2843
    %v2846 = vmul.f32 %v2844, 0.5
    %v2847 = vmul.f32 %v2845, 0.5
    %v2848 = vadd.f32 %v2846, 0.5
    %v2849 = vadd.f32 %v2847, 0.5
    %v2850 = vtanh.pop %v2791
    %v2851 = vtanh.pop %v2795
    %v2852 = vmul.f32 %v2792, 0.5
    %v2853 = vmul.f32 %v2796, 0.5
    %v2854 = vtanh.pop %v2852
    %v2855 = vtanh.pop %v2853
    %v2856 = vmul.f32 %v2854, 0.5
    %v2857 = vmul.f32 %v2855, 0.5
    %v2858 = vadd.f32 %v2856, 0.5
    %v2859 = vadd.f32 %v2857, 0.5
    %v2860 = vmul.f32 %v2848, %v2634
    %v2861 = vmul.f32 %v2849, %v2635
    %v2862 = vmul.f32 %v2840, %v2850
    %v2863 = vmul.f32 %v2841, %v2851
    %v2864 = vadd.f32 %v2860, %v2862
    %v2865 = vadd.f32 %v2861, %v2863
    %v2866 = vtanh.pop %v2864
    %v2867 = vtanh.pop %v2865
    %v2868 = vmul.f32 %v2858, %v2866
    %v2869 = vmul.f32 %v2859, %v2867
    %v2870 = vpack.c.bf16 %v2869, %v2868
    %v2872 = vunpack.c.l.b16 %v2833
    %v2873 = vunpack.c.h.b16 %v2833
    %v2874 = vpack.c.b16 %v2872, %v2872
    %v2875 = vpack.c.b16 %v2873, %v2873
    %2878 = vst [vmem:[%s2194] sm:$0xf] %v2874
    %2879 = vst [vmem:[%s2194 + $0x8] sm:$0xf] %v2875
    %v2881 = vunpack.c.l.b16 %v2870
    %v2882 = vunpack.c.h.b16 %v2870
    %v2883 = vpack.c.b16 %v2881, %v2881
    %v2884 = vpack.c.b16 %v2882, %v2882
    %2887 = vst [vmem:[%s2184 + $0x4] sm:$0xf] %v2883
    %2888 = vst [vmem:[%s2184 + $0xc] sm:$0xf] %v2884
    %2889 = vmatprep.subr.bf16.mxu0 %v1403
    %2890 = vmatpush1.bf16.msra.mxu0 %v1402
    %2891 = vmatprep.subr.bf16.mxu0 %v1399
    %2892 = vmatpush1.bf16.msra.mxu0 %v1398
    %2893 = vmatprep.subr.bf16.mxu0 %v1395
    %2894 = vmatpush1.bf16.msra.mxu0 %v1394
    %2895 = vmatprep.subr.bf16.mxu0 %v1391
    %2896 = vmatpush1.bf16.msra.mxu0 %v1390
    %2897 = vmatprep.subr.bf16.mxu0 %v1387
    %2898 = vmatpush1.bf16.msra.mxu0 %v1386
    %2899 = vmatprep.subr.bf16.mxu0 %v1383
    %2900 = vmatpush1.bf16.msra.mxu0 %v1382
    %2901 = vmatprep.subr.bf16.mxu0 %v1379
    %2902 = vmatpush1.bf16.msra.mxu0 %v1378
    %2903 = vmatprep.subr.bf16.mxu0 %v1375
    %2904 = vmatpush1.bf16.msra.mxu0 %v1374
    %2905 = vmatprep.subr.bf16.mxu0 %v1435
    %2906 = vmatpush2.bf16.msra.mxu0 %v1434
    %2907 = vmatprep.subr.bf16.mxu0 %v1431
    %2908 = vmatpush2.bf16.msra.mxu0 %v1430
    %2909 = vmatprep.subr.bf16.mxu0 %v1427
    %2910 = vmatpush2.bf16.msra.mxu0 %v1426
    %2911 = vmatprep.subr.bf16.mxu0 %v1423
    %2912 = vmatpush2.bf16.msra.mxu0 %v1422
    %2913 = vmatprep.subr.bf16.mxu0 %v1419
    %2914 = vmatpush2.bf16.msra.mxu0 %v1418
    %2915 = vmatprep.subr.bf16.mxu0 %v1415
    %2916 = vmatpush2.bf16.msra.mxu0 %v1414
    %2917 = vmatprep.subr.bf16.mxu0 %v1411
    %2918 = vmatpush2.bf16.msra.mxu0 %v1410
    %2919 = vmatprep.subr.bf16.mxu0 %v1407
    %2920 = vmatpush2.bf16.msra.mxu0 %v1406
    %2921 = vmatprep.mubr.bf16.mxu0 0
    %2922 = vmatmul.mubr.bf16.gmra.mxu0 %v2833
    %v2923 = vpop.f32.mrf.mxu0
    %v2924 = vadd.f32 0.0, %v2923
    %v2925 = vpop.f32.mrf.mxu0
    %v2926 = vadd.f32 0.0, %v2925
    %v2927 = vpop.f32.mrf.mxu0
    %v2928 = vadd.f32 0.0, %v2927
    %v2929 = vpop.f32.mrf.mxu0
    %v2930 = vadd.f32 0.0, %v2929
    %2931 = vmatprep.mubr.bf16.mxu0 %v2870
    %2932 = vmatmul.mubr.bf16.gmra.mxu0 0
    %v2933 = vpop.f32.mrf.mxu0
    %v2934 = vadd.f32 0.0, %v2933
    %v2935 = vpop.f32.mrf.mxu0
    %v2936 = vadd.f32 0.0, %v2935
    %v2937 = vpop.f32.mrf.mxu0
    %v2938 = vadd.f32 0.0, %v2937
    %v2939 = vpop.f32.mrf.mxu0
    %v2940 = vadd.f32 0.0, %v2939
    %2941 = vdwg.mxu0
    %2942 = vmatprep.subr.bf16.mxu0 %v1405
    %2943 = vmatpush1.bf16.msra.mxu0 %v1404
    %2944 = vmatprep.subr.bf16.mxu0 %v1401
    %2945 = vmatpush1.bf16.msra.mxu0 %v1400
    %2946 = vmatprep.subr.bf16.mxu0 %v1397
    %2947 = vmatpush1.bf16.msra.mxu0 %v1396
    %2948 = vmatprep.subr.bf16.mxu0 %v1393
    %2949 = vmatpush1.bf16.msra.mxu0 %v1392
    %2950 = vmatprep.subr.bf16.mxu0 %v1389
    %2951 = vmatpush1.bf16.msra.mxu0 %v1388
    %2952 = vmatprep.subr.bf16.mxu0 %v1385
    %2953 = vmatpush1.bf16.msra.mxu0 %v1384
    %2954 = vmatprep.subr.bf16.mxu0 %v1381
    %2955 = vmatpush1.bf16.msra.mxu0 %v1380
    %2956 = vmatprep.subr.bf16.mxu0 %v1377
    %2957 = vmatpush1.bf16.msra.mxu0 %v1376
    %2958 = vmatprep.subr.bf16.mxu0 %v1437
    %2959 = vmatpush2.bf16.msra.mxu0 %v1436
    %2960 = vmatprep.subr.bf16.mxu0 %v1433
    %2961 = vmatpush2.bf16.msra.mxu0 %v1432
    %2962 = vmatprep.subr.bf16.mxu0 %v1429
    %2963 = vmatpush2.bf16.msra.mxu0 %v1428
    %2964 = vmatprep.subr.bf16.mxu0 %v1425
    %2965 = vmatpush2.bf16.msra.mxu0 %v1424
    %2966 = vmatprep.subr.bf16.mxu0 %v1421
    %2967 = vmatpush2.bf16.msra.mxu0 %v1420
    %2968 = vmatprep.subr.bf16.mxu0 %v1417
    %2969 = vmatpush2.bf16.msra.mxu0 %v1416
    %2970 = vmatprep.subr.bf16.mxu0 %v1413
    %2971 = vmatpush2.bf16.msra.mxu0 %v1412
    %2972 = vmatprep.subr.bf16.mxu0 %v1409
    %2973 = vmatpush2.bf16.msra.mxu0 %v1408
    %2974 = vmatprep.mubr.bf16.mxu0 0
    %2975 = vmatmul.mubr.bf16.gmra.mxu0 %v2833
    %v2976 = vpop.f32.mrf.mxu0
    %v2977 = vadd.f32 0.0, %v2976
    %v2978 = vpop.f32.mrf.mxu0
    %v2979 = vadd.f32 0.0, %v2978
    %v2980 = vpop.f32.mrf.mxu0
    %v2981 = vadd.f32 0.0, %v2980
    %v2982 = vpop.f32.mrf.mxu0
    %v2983 = vadd.f32 0.0, %v2982
    %2984 = vmatprep.mubr.bf16.mxu0 %v2870
    %2985 = vmatmul.mubr.bf16.gmra.mxu0 0
    %v2986 = vpop.f32.mrf.mxu0
    %v2987 = vadd.f32 0.0, %v2986
    %v2988 = vpop.f32.mrf.mxu0
    %v2989 = vadd.f32 0.0, %v2988
    %v2990 = vpop.f32.mrf.mxu0
    %v2991 = vadd.f32 0.0, %v2990
    %v2992 = vpop.f32.mrf.mxu0
    %v2993 = vadd.f32 0.0, %v2992
    %2994 = vdwg.mxu0
    %v2995 = vunpack.c.l.bf16 %v1166
    %v2996 = vunpack.c.l.bf16 %v1167
    %v2997 = vunpack.c.l.bf16 %v1168
    %v2998 = vunpack.c.l.bf16 %v1169
    %v2999 = vunpack.c.h.bf16 %v1166
    %v3000 = vunpack.c.h.bf16 %v1167
    %v3001 = vunpack.c.h.bf16 %v1168
    %v3002 = vunpack.c.h.bf16 %v1169
    %v3003 = vadd.f32 %v2995, %v2924
    %v3004 = vadd.f32 %v2996, %v2926
    %v3005 = vadd.f32 %v2997, %v2977
    %v3006 = vadd.f32 %v2998, %v2979
    %v3007 = vadd.f32 %v2999, %v2928
    %v3008 = vadd.f32 %v3000, %v2930
    %v3009 = vadd.f32 %v3001, %v2981
    %v3010 = vadd.f32 %v3002, %v2983
    %v3011 = vunpack.c.l.bf16 %v1130
    %v3012 = vunpack.c.l.bf16 %v1131
    %v3013 = vunpack.c.l.bf16 %v1132
    %v3014 = vunpack.c.l.bf16 %v1133
    %v3015 = vunpack.c.h.bf16 %v1130
    %v3016 = vunpack.c.h.bf16 %v1131
    %v3017 = vunpack.c.h.bf16 %v1132
    %v3018 = vunpack.c.h.bf16 %v1133
    %v3019 = vadd.f32 %v3011, %v2934
    %v3020 = vadd.f32 %v3012, %v2936
    %v3021 = vadd.f32 %v3013, %v2987
    %v3022 = vadd.f32 %v3014, %v2989
    %v3023 = vadd.f32 %v3015, %v2938
    %v3024 = vadd.f32 %v3016, %v2940
    %v3025 = vadd.f32 %v3017, %v2991
    %v3026 = vadd.f32 %v3018, %v2993
    %v3027 = vmul.f32 %v3003, 0.5
    %v3028 = vmul.f32 %v3007, 0.5
    %v3029 = vtanh.pop %v3027
    %v3030 = vtanh.pop %v3028
    %v3031 = vmul.f32 %v3029, 0.5
    %v3032 = vmul.f32 %v3030, 0.5
    %v3033 = vadd.f32 %v3031, 0.5
    %v3034 = vadd.f32 %v3032, 0.5
    %v3035 = vmul.f32 %v3004, 0.5
    %v3036 = vmul.f32 %v3008, 0.5
    %v3037 = vtanh.pop %v3035
    %v3038 = vtanh.pop %v3036
    %v3039 = vmul.f32 %v3037, 0.5
    %v3040 = vmul.f32 %v3038, 0.5
    %v3041 = vadd.f32 %v3039, 0.5
    %v3042 = vadd.f32 %v3040, 0.5
    %v3043 = vtanh.pop %v3005
    %v3044 = vtanh.pop %v3009
    %v3045 = vmul.f32 %v3006, 0.5
    %v3046 = vmul.f32 %v3010, 0.5
    %v3047 = vtanh.pop %v3045
    %v3048 = vtanh.pop %v3046
    %v3049 = vmul.f32 %v3047, 0.5
    %v3050 = vmul.f32 %v3048, 0.5
    %v3051 = vadd.f32 %v3049, 0.5
    %v3052 = vadd.f32 %v3050, 0.5
    %v3053 = vmul.f32 %v3041, %v2827
    %v3054 = vmul.f32 %v3042, %v2828
    %v3055 = vmul.f32 %v3033, %v3043
    %v3056 = vmul.f32 %v3034, %v3044
    %v3057 = vadd.f32 %v3053, %v3055
    %v3058 = vadd.f32 %v3054, %v3056
    %v3059 = vtanh.pop %v3057
    %v3060 = vtanh.pop %v3058
    %v3061 = vmul.f32 %v3051, %v3059
    %v3062 = vmul.f32 %v3052, %v3060
    %v3063 = vpack.c.bf16 %v3062, %v3061
    %v3064 = vmul.f32 %v3019, 0.5
    %v3065 = vmul.f32 %v3023, 0.5
    %v3066 = vtanh.pop %v3064
    %v3067 = vtanh.pop %v3065
    %v3068 = vmul.f32 %v3066, 0.5
    %v3069 = vmul.f32 %v3067, 0.5
    %v3070 = vadd.f32 %v3068, 0.5
    %v3071 = vadd.f32 %v3069, 0.5
    %v3072 = vmul.f32 %v3020, 0.5
    %v3073 = vmul.f32 %v3024, 0.5
    %v3074 = vtanh.pop %v3072
    %v3075 = vtanh.pop %v3073
    %v3076 = vmul.f32 %v3074, 0.5
    %v3077 = vmul.f32 %v3075, 0.5
    %v3078 = vadd.f32 %v3076, 0.5
    %v3079 = vadd.f32 %v3077, 0.5
    %v3080 = vtanh.pop %v3021
    %v3081 = vtanh.pop %v3025
    %v3082 = vmul.f32 %v3022, 0.5
    %v3083 = vmul.f32 %v3026, 0.5
    %v3084 = vtanh.pop %v3082
    %v3085 = vtanh.pop %v3083
    %v3086 = vmul.f32 %v3084, 0.5
    %v3087 = vmul.f32 %v3085, 0.5
    %v3088 = vadd.f32 %v3086, 0.5
    %v3089 = vadd.f32 %v3087, 0.5
    %v3090 = vmul.f32 %v3078, %v2864
    %v3091 = vmul.f32 %v3079, %v2865
    %v3092 = vmul.f32 %v3070, %v3080
    %v3093 = vmul.f32 %v3071, %v3081
    %v3094 = vadd.f32 %v3090, %v3092
    %v3095 = vadd.f32 %v3091, %v3093
    %v3096 = vtanh.pop %v3094
    %v3097 = vtanh.pop %v3095
    %v3098 = vmul.f32 %v3088, %v3096
    %v3099 = vmul.f32 %v3089, %v3097
    %v3100 = vpack.c.bf16 %v3099, %v3098
    %v3102 = vunpack.c.l.b16 %v3063
    %v3103 = vunpack.c.h.b16 %v3063
    %v3104 = vpack.c.b16 %v3102, %v3102
    %v3105 = vpack.c.b16 %v3103, %v3103
    %3108 = vst [vmem:[%s1962] sm:$0xf] %v3104
    %3109 = vst [vmem:[%s1962 + $0x8] sm:$0xf] %v3105
    %v3111 = vunpack.c.l.b16 %v3100
    %v3112 = vunpack.c.h.b16 %v3100
    %v3113 = vpack.c.b16 %v3111, %v3111
    %v3114 = vpack.c.b16 %v3112, %v3112
    %3117 = vst [vmem:[%s1952 + $0x4] sm:$0xf] %v3113
    %3118 = vst [vmem:[%s1952 + $0xc] sm:$0xf] %v3114
    %3119 = vmatprep.subr.bf16.mxu0 %v1403
    %3120 = vmatpush1.bf16.msra.mxu0 %v1402
    %3121 = vmatprep.subr.bf16.mxu0 %v1399
    %3122 = vmatpush1.bf16.msra.mxu0 %v1398
    %3123 = vmatprep.subr.bf16.mxu0 %v1395
    %3124 = vmatpush1.bf16.msra.mxu0 %v1394
    %3125 = vmatprep.subr.bf16.mxu0 %v1391
    %3126 = vmatpush1.bf16.msra.mxu0 %v1390
    %3127 = vmatprep.subr.bf16.mxu0 %v1387
    %3128 = vmatpush1.bf16.msra.mxu0 %v1386
    %3129 = vmatprep.subr.bf16.mxu0 %v1383
    %3130 = vmatpush1.bf16.msra.mxu0 %v1382
    %3131 = vmatprep.subr.bf16.mxu0 %v1379
    %3132 = vmatpush1.bf16.msra.mxu0 %v1378
    %3133 = vmatprep.subr.bf16.mxu0 %v1375
    %3134 = vmatpush1.bf16.msra.mxu0 %v1374
    %3135 = vmatprep.subr.bf16.mxu0 %v1435
    %3136 = vmatpush2.bf16.msra.mxu0 %v1434
    %3137 = vmatprep.subr.bf16.mxu0 %v1431
    %3138 = vmatpush2.bf16.msra.mxu0 %v1430
    %3139 = vmatprep.subr.bf16.mxu0 %v1427
    %3140 = vmatpush2.bf16.msra.mxu0 %v1426
    %3141 = vmatprep.subr.bf16.mxu0 %v1423
    %3142 = vmatpush2.bf16.msra.mxu0 %v1422
    %3143 = vmatprep.subr.bf16.mxu0 %v1419
    %3144 = vmatpush2.bf16.msra.mxu0 %v1418
    %3145 = vmatprep.subr.bf16.mxu0 %v1415
    %3146 = vmatpush2.bf16.msra.mxu0 %v1414
    %3147 = vmatprep.subr.bf16.mxu0 %v1411
    %3148 = vmatpush2.bf16.msra.mxu0 %v1410
    %3149 = vmatprep.subr.bf16.mxu0 %v1407
    %3150 = vmatpush2.bf16.msra.mxu0 %v1406
    %3151 = vmatprep.mubr.bf16.mxu0 0
    %3152 = vmatmul.mubr.bf16.gmra.mxu0 %v3063
    %v3153 = vpop.f32.mrf.mxu0
    %v3154 = vadd.f32 0.0, %v3153
    %v3155 = vpop.f32.mrf.mxu0
    %v3156 = vadd.f32 0.0, %v3155
    %v3157 = vpop.f32.mrf.mxu0
    %v3158 = vadd.f32 0.0, %v3157
    %v3159 = vpop.f32.mrf.mxu0
    %v3160 = vadd.f32 0.0, %v3159
    %3161 = vmatprep.mubr.bf16.mxu0 %v3100
    %3162 = vmatmul.mubr.bf16.gmra.mxu0 0
    %v3163 = vpop.f32.mrf.mxu0
    %v3164 = vadd.f32 0.0, %v3163
    %v3165 = vpop.f32.mrf.mxu0
    %v3166 = vadd.f32 0.0, %v3165
    %v3167 = vpop.f32.mrf.mxu0
    %v3168 = vadd.f32 0.0, %v3167
    %v3169 = vpop.f32.mrf.mxu0
    %v3170 = vadd.f32 0.0, %v3169
    %3171 = vdwg.mxu0
    %3172 = vmatprep.subr.bf16.mxu0 %v1405
    %3173 = vmatpush1.bf16.msra.mxu0 %v1404
    %3174 = vmatprep.subr.bf16.mxu0 %v1401
    %3175 = vmatpush1.bf16.msra.mxu0 %v1400
    %3176 = vmatprep.subr.bf16.mxu0 %v1397
    %3177 = vmatpush1.bf16.msra.mxu0 %v1396
    %3178 = vmatprep.subr.bf16.mxu0 %v1393
    %3179 = vmatpush1.bf16.msra.mxu0 %v1392
    %3180 = vmatprep.subr.bf16.mxu0 %v1389
    %3181 = vmatpush1.bf16.msra.mxu0 %v1388
    %3182 = vmatprep.subr.bf16.mxu0 %v1385
    %3183 = vmatpush1.bf16.msra.mxu0 %v1384
    %3184 = vmatprep.subr.bf16.mxu0 %v1381
    %3185 = vmatpush1.bf16.msra.mxu0 %v1380
    %3186 = vmatprep.subr.bf16.mxu0 %v1377
    %3187 = vmatpush1.bf16.msra.mxu0 %v1376
    %3188 = vmatprep.subr.bf16.mxu0 %v1437
    %3189 = vmatpush2.bf16.msra.mxu0 %v1436
    %3190 = vmatprep.subr.bf16.mxu0 %v1433
    %3191 = vmatpush2.bf16.msra.mxu0 %v1432
    %3192 = vmatprep.subr.bf16.mxu0 %v1429
    %3193 = vmatpush2.bf16.msra.mxu0 %v1428
    %3194 = vmatprep.subr.bf16.mxu0 %v1425
    %3195 = vmatpush2.bf16.msra.mxu0 %v1424
    %3196 = vmatprep.subr.bf16.mxu0 %v1421
    %3197 = vmatpush2.bf16.msra.mxu0 %v1420
    %3198 = vmatprep.subr.bf16.mxu0 %v1417
    %3199 = vmatpush2.bf16.msra.mxu0 %v1416
    %3200 = vmatprep.subr.bf16.mxu0 %v1413
    %3201 = vmatpush2.bf16.msra.mxu0 %v1412
    %3202 = vmatprep.subr.bf16.mxu0 %v1409
    %3203 = vmatpush2.bf16.msra.mxu0 %v1408
    %3204 = vmatprep.mubr.bf16.mxu0 0
    %3205 = vmatmul.mubr.bf16.gmra.mxu0 %v3063
    %v3206 = vpop.f32.mrf.mxu0
    %v3207 = vadd.f32 0.0, %v3206
    %v3208 = vpop.f32.mrf.mxu0
    %v3209 = vadd.f32 0.0, %v3208
    %v3210 = vpop.f32.mrf.mxu0
    %v3211 = vadd.f32 0.0, %v3210
    %v3212 = vpop.f32.mrf.mxu0
    %v3213 = vadd.f32 0.0, %v3212
    %3214 = vmatprep.mubr.bf16.mxu0 %v3100
    %3215 = vmatmul.mubr.bf16.gmra.mxu0 0
    %v3216 = vpop.f32.mrf.mxu0
    %v3217 = vadd.f32 0.0, %v3216
    %v3218 = vpop.f32.mrf.mxu0
    %v3219 = vadd.f32 0.0, %v3218
    %v3220 = vpop.f32.mrf.mxu0
    %v3221 = vadd.f32 0.0, %v3220
    %v3222 = vpop.f32.mrf.mxu0
    %v3223 = vadd.f32 0.0, %v3222
    %3224 = vdwg.mxu0
    %v3225 = vunpack.c.l.bf16 %v1174
    %v3226 = vunpack.c.l.bf16 %v1175
    %v3227 = vunpack.c.l.bf16 %v1176
    %v3228 = vunpack.c.l.bf16 %v1177
    %v3229 = vunpack.c.h.bf16 %v1174
    %v3230 = vunpack.c.h.bf16 %v1175
    %v3231 = vunpack.c.h.bf16 %v1176
    %v3232 = vunpack.c.h.bf16 %v1177
    %v3233 = vadd.f32 %v3225, %v3154
    %v3234 = vadd.f32 %v3226, %v3156
    %v3235 = vadd.f32 %v3227, %v3207
    %v3236 = vadd.f32 %v3228, %v3209
    %v3237 = vadd.f32 %v3229, %v3158
    %v3238 = vadd.f32 %v3230, %v3160
    %v3239 = vadd.f32 %v3231, %v3211
    %v3240 = vadd.f32 %v3232, %v3213
    %v3241 = vunpack.c.l.bf16 %v1122
    %v3242 = vunpack.c.l.bf16 %v1123
    %v3243 = vunpack.c.l.bf16 %v1124
    %v3244 = vunpack.c.l.bf16 %v1125
    %v3245 = vunpack.c.h.bf16 %v1122
    %v3246 = vunpack.c.h.bf16 %v1123
    %v3247 = vunpack.c.h.bf16 %v1124
    %v3248 = vunpack.c.h.bf16 %v1125
    %v3249 = vadd.f32 %v3241, %v3164
    %v3250 = vadd.f32 %v3242, %v3166
    %v3251 = vadd.f32 %v3243, %v3217
    %v3252 = vadd.f32 %v3244, %v3219
    %v3253 = vadd.f32 %v3245, %v3168
    %v3254 = vadd.f32 %v3246, %v3170
    %v3255 = vadd.f32 %v3247, %v3221
    %v3256 = vadd.f32 %v3248, %v3223
    %v3257 = vmul.f32 %v3233, 0.5
    %v3258 = vmul.f32 %v3237, 0.5
    %v3259 = vtanh.pop %v3257
    %v3260 = vtanh.pop %v3258
    %v3261 = vmul.f32 %v3259, 0.5
    %v3262 = vmul.f32 %v3260, 0.5
    %v3263 = vadd.f32 %v3261, 0.5
    %v3264 = vadd.f32 %v3262, 0.5
    %v3265 = vmul.f32 %v3234, 0.5
    %v3266 = vmul.f32 %v3238, 0.5
    %v3267 = vtanh.pop %v3265
    %v3268 = vtanh.pop %v3266
    %v3269 = vmul.f32 %v3267, 0.5
    %v3270 = vmul.f32 %v3268, 0.5
    %v3271 = vadd.f32 %v3269, 0.5
    %v3272 = vadd.f32 %v3270, 0.5
    %v3273 = vtanh.pop %v3235
    %v3274 = vtanh.pop %v3239
    %v3275 = vmul.f32 %v3236, 0.5
    %v3276 = vmul.f32 %v3240, 0.5
    %v3277 = vtanh.pop %v3275
    %v3278 = vtanh.pop %v3276
    %v3279 = vmul.f32 %v3277, 0.5
    %v3280 = vmul.f32 %v3278, 0.5
    %v3281 = vadd.f32 %v3279, 0.5
    %v3282 = vadd.f32 %v3280, 0.5
    %v3283 = vmul.f32 %v3271, %v3057
    %v3284 = vmul.f32 %v3272, %v3058
    %v3285 = vmul.f32 %v3263, %v3273
    %v3286 = vmul.f32 %v3264, %v3274
    %v3287 = vadd.f32 %v3283, %v3285
    %v3288 = vadd.f32 %v3284, %v3286
    %v3289 = vtanh.pop %v3287
    %v3290 = vtanh.pop %v3288
    %v3291 = vmul.f32 %v3281, %v3289
    %v3292 = vmul.f32 %v3282, %v3290
    %v3293 = vpack.c.bf16 %v3292, %v3291
    %v3294 = vmul.f32 %v3249, 0.5
    %v3295 = vmul.f32 %v3253, 0.5
    %v3296 = vtanh.pop %v3294
    %v3297 = vtanh.pop %v3295
    %v3298 = vmul.f32 %v3296, 0.5
    %v3299 = vmul.f32 %v3297, 0.5
    %v3300 = vadd.f32 %v3298, 0.5
    %v3301 = vadd.f32 %v3299, 0.5
    %v3302 = vmul.f32 %v3250, 0.5
    %v3303 = vmul.f32 %v3254, 0.5
    %v3304 = vtanh.pop %v3302
    %v3305 = vtanh.pop %v3303
    %v3306 = vmul.f32 %v3304, 0.5
    %v3307 = vmul.f32 %v3305, 0.5
    %v3308 = vadd.f32 %v3306, 0.5
    %v3309 = vadd.f32 %v3307, 0.5
    %v3310 = vtanh.pop %v3251
    %v3311 = vtanh.pop %v3255
    %v3312 = vmul.f32 %v3252, 0.5
    %v3313 = vmul.f32 %v3256, 0.5
    %v3314 = vtanh.pop %v3312
    %v3315 = vtanh.pop %v3313
    %v3316 = vmul.f32 %v3314, 0.5
    %v3317 = vmul.f32 %v3315, 0.5
    %v3318 = vadd.f32 %v3316, 0.5
    %v3319 = vadd.f32 %v3317, 0.5
    %v3320 = vmul.f32 %v3308, %v3094
    %v3321 = vmul.f32 %v3309, %v3095
    %v3322 = vmul.f32 %v3300, %v3310
    %v3323 = vmul.f32 %v3301, %v3311
    %v3324 = vadd.f32 %v3320, %v3322
    %v3325 = vadd.f32 %v3321, %v3323
    %v3326 = vtanh.pop %v3324
    %v3327 = vtanh.pop %v3325
    %v3328 = vmul.f32 %v3318, %v3326
    %v3329 = vmul.f32 %v3319, %v3327
    %v3330 = vpack.c.bf16 %v3329, %v3328
    %v3332 = vunpack.c.l.b16 %v3293
    %v3333 = vunpack.c.h.b16 %v3293
    %v3334 = vpack.c.b16 %v3332, %v3332
    %v3335 = vpack.c.b16 %v3333, %v3333
    %3338 = vst [vmem:[%s1730] sm:$0xf] %v3334
    %3339 = vst [vmem:[%s1730 + $0x8] sm:$0xf] %v3335
    %v3341 = vunpack.c.l.b16 %v3330
    %v3342 = vunpack.c.h.b16 %v3330
    %v3343 = vpack.c.b16 %v3341, %v3341
    %v3344 = vpack.c.b16 %v3342, %v3342
    %3347 = vst [vmem:[#allocation2 + $0x4] sm:$0xf] %v3343
    %3348 = vst [vmem:[#allocation2 + $0xc] sm:$0xf] %v3344
    %s3349 = smul.u32 %s98, 8
    %s3350 = sshll.u32 %s3349, 4
    %3351 = dma.done %s103, %s3350
    %s3352 = sshll.u32 %s99, 4
    %3353 = dma.done %s116, %s3352
    %v3354 = vld [vmem:[#allocation2] sm:$0xff]
    %v3355 = vld [vmem:[#allocation2 + $0x8] sm:$0xff]
    %v3356 = vld [vmem:[#allocation2 + $0x10] sm:$0xff]
    %v3357 = vld [vmem:[#allocation2 + $0x18] sm:$0xff]
    %v3358 = vld [vmem:[#allocation2 + $0x20] sm:$0xff]
    %v3359 = vld [vmem:[#allocation2 + $0x28] sm:$0xff]
    %v3360 = vld [vmem:[#allocation2 + $0x30] sm:$0xff]
    %v3361 = vld [vmem:[#allocation2 + $0x38] sm:$0xff]
    %v3362 = vld [vmem:[#allocation2 + $0x40] sm:$0xff]
    %v3363 = vld [vmem:[#allocation2 + $0x48] sm:$0xff]
    %v3364 = vld [vmem:[#allocation2 + $0x50] sm:$0xff]
    %v3365 = vld [vmem:[#allocation2 + $0x58] sm:$0xff]
    %v3366 = vld [vmem:[#allocation2 + $0x60] sm:$0xff]
    %v3367 = vld [vmem:[#allocation2 + $0x68] sm:$0xff]
    %v3368 = vld [vmem:[#allocation2 + $0x70] sm:$0xff]
    %v3369 = vld [vmem:[#allocation2 + $0x78] sm:$0xff]
    %v3370 = vld [vmem:[%s102] sm:$0xff]
    %v3371 = vld [vmem:[%s102 + $0x8] sm:$0xff]
    %v3372 = vld [vmem:[%s102 + $0x10] sm:$0xff]
    %v3373 = vld [vmem:[%s102 + $0x18] sm:$0xff]
    %v3374 = vld [vmem:[%s102 + $0x20] sm:$0xff]
    %v3375 = vld [vmem:[%s102 + $0x28] sm:$0xff]
    %v3376 = vld [vmem:[%s102 + $0x30] sm:$0xff]
    %v3377 = vld [vmem:[%s102 + $0x38] sm:$0xff]
    %v3378 = vld [vmem:[%s102 + $0x40] sm:$0xff]
    %v3379 = vld [vmem:[%s102 + $0x48] sm:$0xff]
    %v3380 = vld [vmem:[%s102 + $0x50] sm:$0xff]
    %v3381 = vld [vmem:[%s102 + $0x58] sm:$0xff]
    %v3382 = vld [vmem:[%s102 + $0x60] sm:$0xff]
    %v3383 = vld [vmem:[%s102 + $0x68] sm:$0xff]
    %v3384 = vld [vmem:[%s102 + $0x70] sm:$0xff]
    %v3385 = vld [vmem:[%s102 + $0x78] sm:$0xff]
    %v3386 = vld [vmem:[%s102 + $0x80] sm:$0xff]
    %v3387 = vld [vmem:[%s102 + $0x88] sm:$0xff]
    %v3388 = vld [vmem:[%s102 + $0x90] sm:$0xff]
    %v3389 = vld [vmem:[%s102 + $0x98] sm:$0xff]
    %v3390 = vld [vmem:[%s102 + $0xa0] sm:$0xff]
    %v3391 = vld [vmem:[%s102 + $0xa8] sm:$0xff]
    %v3392 = vld [vmem:[%s102 + $0xb0] sm:$0xff]
    %v3393 = vld [vmem:[%s102 + $0xb8] sm:$0xff]
    %v3394 = vld [vmem:[%s102 + $0xc0] sm:$0xff]
    %v3395 = vld [vmem:[%s102 + $0xc8] sm:$0xff]
    %v3396 = vld [vmem:[%s102 + $0xd0] sm:$0xff]
    %v3397 = vld [vmem:[%s102 + $0xd8] sm:$0xff]
    %v3398 = vld [vmem:[%s102 + $0xe0] sm:$0xff]
    %v3399 = vld [vmem:[%s102 + $0xe8] sm:$0xff]
    %v3400 = vld [vmem:[%s102 + $0xf0] sm:$0xff]
    %v3401 = vld [vmem:[%s102 + $0xf8] sm:$0xff]
    %v3402 = vld [vmem:[%s102 + $0x100] sm:$0xff]
    %v3403 = vld [vmem:[%s102 + $0x108] sm:$0xff]
    %v3404 = vld [vmem:[%s102 + $0x110] sm:$0xff]
    %v3405 = vld [vmem:[%s102 + $0x118] sm:$0xff]
    %v3406 = vld [vmem:[%s102 + $0x120] sm:$0xff]
    %v3407 = vld [vmem:[%s102 + $0x128] sm:$0xff]
    %v3408 = vld [vmem:[%s102 + $0x130] sm:$0xff]
    %v3409 = vld [vmem:[%s102 + $0x138] sm:$0xff]
    %v3410 = vld [vmem:[%s102 + $0x140] sm:$0xff]
    %v3411 = vld [vmem:[%s102 + $0x148] sm:$0xff]
    %v3412 = vld [vmem:[%s102 + $0x150] sm:$0xff]
    %v3413 = vld [vmem:[%s102 + $0x158] sm:$0xff]
    %v3414 = vld [vmem:[%s102 + $0x160] sm:$0xff]
    %v3415 = vld [vmem:[%s102 + $0x168] sm:$0xff]
    %v3416 = vld [vmem:[%s102 + $0x170] sm:$0xff]
    %v3417 = vld [vmem:[%s102 + $0x178] sm:$0xff]
    %v3418 = vld [vmem:[%s102 + $0x180] sm:$0xff]
    %v3419 = vld [vmem:[%s102 + $0x188] sm:$0xff]
    %v3420 = vld [vmem:[%s102 + $0x190] sm:$0xff]
    %v3421 = vld [vmem:[%s102 + $0x198] sm:$0xff]
    %v3422 = vld [vmem:[%s102 + $0x1a0] sm:$0xff]
    %v3423 = vld [vmem:[%s102 + $0x1a8] sm:$0xff]
    %v3424 = vld [vmem:[%s102 + $0x1b0] sm:$0xff]
    %v3425 = vld [vmem:[%s102 + $0x1b8] sm:$0xff]
    %v3426 = vld [vmem:[%s102 + $0x1c0] sm:$0xff]
    %v3427 = vld [vmem:[%s102 + $0x1c8] sm:$0xff]
    %v3428 = vld [vmem:[%s102 + $0x1d0] sm:$0xff]
    %v3429 = vld [vmem:[%s102 + $0x1d8] sm:$0xff]
    %v3430 = vld [vmem:[%s102 + $0x1e0] sm:$0xff]
    %v3431 = vld [vmem:[%s102 + $0x1e8] sm:$0xff]
    %v3432 = vld [vmem:[%s102 + $0x1f0] sm:$0xff]
    %v3433 = vld [vmem:[%s102 + $0x1f8] sm:$0xff]
    %v3434 = vld [vmem:[%s102 + $0x200] sm:$0xff]
    %v3435 = vld [vmem:[%s102 + $0x208] sm:$0xff]
    %v3436 = vld [vmem:[%s102 + $0x210] sm:$0xff]
    %v3437 = vld [vmem:[%s102 + $0x218] sm:$0xff]
    %v3438 = vld [vmem:[%s102 + $0x220] sm:$0xff]
    %v3439 = vld [vmem:[%s102 + $0x228] sm:$0xff]
    %v3440 = vld [vmem:[%s102 + $0x230] sm:$0xff]
    %v3441 = vld [vmem:[%s102 + $0x238] sm:$0xff]
    %v3442 = vld [vmem:[%s102 + $0x240] sm:$0xff]
    %v3443 = vld [vmem:[%s102 + $0x248] sm:$0xff]
    %v3444 = vld [vmem:[%s102 + $0x250] sm:$0xff]
    %v3445 = vld [vmem:[%s102 + $0x258] sm:$0xff]
    %v3446 = vld [vmem:[%s102 + $0x260] sm:$0xff]
    %v3447 = vld [vmem:[%s102 + $0x268] sm:$0xff]
    %v3448 = vld [vmem:[%s102 + $0x270] sm:$0xff]
    %v3449 = vld [vmem:[%s102 + $0x278] sm:$0xff]
    %v3450 = vld [vmem:[%s102 + $0x280] sm:$0xff]
    %v3451 = vld [vmem:[%s102 + $0x288] sm:$0xff]
    %v3452 = vld [vmem:[%s102 + $0x290] sm:$0xff]
    %v3453 = vld [vmem:[%s102 + $0x298] sm:$0xff]
    %v3454 = vld [vmem:[%s102 + $0x2a0] sm:$0xff]
    %v3455 = vld [vmem:[%s102 + $0x2a8] sm:$0xff]
    %v3456 = vld [vmem:[%s102 + $0x2b0] sm:$0xff]
    %v3457 = vld [vmem:[%s102 + $0x2b8] sm:$0xff]
    %v3458 = vld [vmem:[%s102 + $0x2c0] sm:$0xff]
    %v3459 = vld [vmem:[%s102 + $0x2c8] sm:$0xff]
    %v3460 = vld [vmem:[%s102 + $0x2d0] sm:$0xff]
    %v3461 = vld [vmem:[%s102 + $0x2d8] sm:$0xff]
    %v3462 = vld [vmem:[%s102 + $0x2e0] sm:$0xff]
    %v3463 = vld [vmem:[%s102 + $0x2e8] sm:$0xff]
    %v3464 = vld [vmem:[%s102 + $0x2f0] sm:$0xff]
    %v3465 = vld [vmem:[%s102 + $0x2f8] sm:$0xff]
    %v3466 = vld [vmem:[%s102 + $0x300] sm:$0xff]
    %v3467 = vld [vmem:[%s102 + $0x308] sm:$0xff]
    %v3468 = vld [vmem:[%s102 + $0x310] sm:$0xff]
    %v3469 = vld [vmem:[%s102 + $0x318] sm:$0xff]
    %v3470 = vld [vmem:[%s102 + $0x320] sm:$0xff]
    %v3471 = vld [vmem:[%s102 + $0x328] sm:$0xff]
    %v3472 = vld [vmem:[%s102 + $0x330] sm:$0xff]
    %v3473 = vld [vmem:[%s102 + $0x338] sm:$0xff]
    %v3474 = vld [vmem:[%s102 + $0x340] sm:$0xff]
    %v3475 = vld [vmem:[%s102 + $0x348] sm:$0xff]
    %v3476 = vld [vmem:[%s102 + $0x350] sm:$0xff]
    %v3477 = vld [vmem:[%s102 + $0x358] sm:$0xff]
    %v3478 = vld [vmem:[%s102 + $0x360] sm:$0xff]
    %v3479 = vld [vmem:[%s102 + $0x368] sm:$0xff]
    %v3480 = vld [vmem:[%s102 + $0x370] sm:$0xff]
    %v3481 = vld [vmem:[%s102 + $0x378] sm:$0xff]
    %v3482 = vld [vmem:[%s102 + $0x380] sm:$0xff]
    %v3483 = vld [vmem:[%s102 + $0x388] sm:$0xff]
    %v3484 = vld [vmem:[%s102 + $0x390] sm:$0xff]
    %v3485 = vld [vmem:[%s102 + $0x398] sm:$0xff]
    %v3486 = vld [vmem:[%s102 + $0x3a0] sm:$0xff]
    %v3487 = vld [vmem:[%s102 + $0x3a8] sm:$0xff]
    %v3488 = vld [vmem:[%s102 + $0x3b0] sm:$0xff]
    %v3489 = vld [vmem:[%s102 + $0x3b8] sm:$0xff]
    %v3490 = vld [vmem:[%s102 + $0x3c0] sm:$0xff]
    %v3491 = vld [vmem:[%s102 + $0x3c8] sm:$0xff]
    %v3492 = vld [vmem:[%s102 + $0x3d0] sm:$0xff]
    %v3493 = vld [vmem:[%s102 + $0x3d8] sm:$0xff]
    %v3494 = vld [vmem:[%s102 + $0x3e0] sm:$0xff]
    %v3495 = vld [vmem:[%s102 + $0x3e8] sm:$0xff]
    %v3496 = vld [vmem:[%s102 + $0x3f0] sm:$0xff]
    %v3497 = vld [vmem:[%s102 + $0x3f8] sm:$0xff]
    %v3498 = vld [vmem:[%s115] sm:$0xff]
    %v3499 = vld [vmem:[%s115 + $0x8] sm:$0xff]
    %v3500 = vld [vmem:[%s115 + $0x10] sm:$0xff]
    %v3501 = vld [vmem:[%s115 + $0x18] sm:$0xff]
    %v3502 = vld [vmem:[%s115 + $0x20] sm:$0xff]
    %v3503 = vld [vmem:[%s115 + $0x28] sm:$0xff]
    %v3504 = vld [vmem:[%s115 + $0x30] sm:$0xff]
    %v3505 = vld [vmem:[%s115 + $0x38] sm:$0xff]
    %v3506 = vld [vmem:[%s115 + $0x40] sm:$0xff]
    %v3507 = vld [vmem:[%s115 + $0x48] sm:$0xff]
    %v3508 = vld [vmem:[%s115 + $0x50] sm:$0xff]
    %v3509 = vld [vmem:[%s115 + $0x58] sm:$0xff]
    %v3510 = vld [vmem:[%s115 + $0x60] sm:$0xff]
    %v3511 = vld [vmem:[%s115 + $0x68] sm:$0xff]
    %v3512 = vld [vmem:[%s115 + $0x70] sm:$0xff]
    %v3513 = vld [vmem:[%s115 + $0x78] sm:$0xff]
    %v3514 = vld [vmem:[%s115 + $0x80] sm:$0xff]
    %v3515 = vld [vmem:[%s115 + $0x88] sm:$0xff]
    %v3516 = vld [vmem:[%s115 + $0x90] sm:$0xff]
    %v3517 = vld [vmem:[%s115 + $0x98] sm:$0xff]
    %v3518 = vld [vmem:[%s115 + $0xa0] sm:$0xff]
    %v3519 = vld [vmem:[%s115 + $0xa8] sm:$0xff]
    %v3520 = vld [vmem:[%s115 + $0xb0] sm:$0xff]
    %v3521 = vld [vmem:[%s115 + $0xb8] sm:$0xff]
    %v3522 = vld [vmem:[%s115 + $0xc0] sm:$0xff]
    %v3523 = vld [vmem:[%s115 + $0xc8] sm:$0xff]
    %v3524 = vld [vmem:[%s115 + $0xd0] sm:$0xff]
    %v3525 = vld [vmem:[%s115 + $0xd8] sm:$0xff]
    %v3526 = vld [vmem:[%s115 + $0xe0] sm:$0xff]
    %v3527 = vld [vmem:[%s115 + $0xe8] sm:$0xff]
    %v3528 = vld [vmem:[%s115 + $0xf0] sm:$0xff]
    %v3529 = vld [vmem:[%s115 + $0xf8] sm:$0xff]
    %v3530 = vld [vmem:[%s115 + $0x100] sm:$0xff]
    %v3531 = vld [vmem:[%s115 + $0x108] sm:$0xff]
    %v3532 = vld [vmem:[%s115 + $0x110] sm:$0xff]
    %v3533 = vld [vmem:[%s115 + $0x118] sm:$0xff]
    %v3534 = vld [vmem:[%s115 + $0x120] sm:$0xff]
    %v3535 = vld [vmem:[%s115 + $0x128] sm:$0xff]
    %v3536 = vld [vmem:[%s115 + $0x130] sm:$0xff]
    %v3537 = vld [vmem:[%s115 + $0x138] sm:$0xff]
    %v3538 = vld [vmem:[%s115 + $0x140] sm:$0xff]
    %v3539 = vld [vmem:[%s115 + $0x148] sm:$0xff]
    %v3540 = vld [vmem:[%s115 + $0x150] sm:$0xff]
    %v3541 = vld [vmem:[%s115 + $0x158] sm:$0xff]
    %v3542 = vld [vmem:[%s115 + $0x160] sm:$0xff]
    %v3543 = vld [vmem:[%s115 + $0x168] sm:$0xff]
    %v3544 = vld [vmem:[%s115 + $0x170] sm:$0xff]
    %v3545 = vld [vmem:[%s115 + $0x178] sm:$0xff]
    %v3546 = vld [vmem:[%s115 + $0x180] sm:$0xff]
    %v3547 = vld [vmem:[%s115 + $0x188] sm:$0xff]
    %v3548 = vld [vmem:[%s115 + $0x190] sm:$0xff]
    %v3549 = vld [vmem:[%s115 + $0x198] sm:$0xff]
    %v3550 = vld [vmem:[%s115 + $0x1a0] sm:$0xff]
    %v3551 = vld [vmem:[%s115 + $0x1a8] sm:$0xff]
    %v3552 = vld [vmem:[%s115 + $0x1b0] sm:$0xff]
    %v3553 = vld [vmem:[%s115 + $0x1b8] sm:$0xff]
    %v3554 = vld [vmem:[%s115 + $0x1c0] sm:$0xff]
    %v3555 = vld [vmem:[%s115 + $0x1c8] sm:$0xff]
    %v3556 = vld [vmem:[%s115 + $0x1d0] sm:$0xff]
    %v3557 = vld [vmem:[%s115 + $0x1d8] sm:$0xff]
    %v3558 = vld [vmem:[%s115 + $0x1e0] sm:$0xff]
    %v3559 = vld [vmem:[%s115 + $0x1e8] sm:$0xff]
    %v3560 = vld [vmem:[%s115 + $0x1f0] sm:$0xff]
    %v3561 = vld [vmem:[%s115 + $0x1f8] sm:$0xff]
    %v3562 = vld [vmem:[%s6] sm:$0xff]
    %v3564 = vlaneseq
    %v3565 = vshrl.u32 %v3564, 7
    %v3566 = vsub.s32 0, %v3565
    %v3567 = vrot.slane %v3562, %v3566
    %v3568 = vlaneseq
    %v3569 = vshrl.u32 %v3568, 7
    %v3570 = vsub.s32 1, %v3569
    %v3571 = vrot.slane %v3562, %v3570
    %v3572 = vlaneseq
    %v3573 = vshrl.u32 %v3572, 7
    %v3574 = vsub.s32 2, %v3573
    %v3575 = vrot.slane %v3562, %v3574
    %v3576 = vlaneseq
    %v3577 = vshrl.u32 %v3576, 7
    %v3578 = vsub.s32 3, %v3577
    %v3579 = vrot.slane %v3562, %v3578
    %v3580 = vlaneseq
    %v3581 = vshrl.u32 %v3580, 7
    %v3582 = vsub.s32 4, %v3581
    %v3583 = vrot.slane %v3562, %v3582
    %v3584 = vlaneseq
    %v3585 = vshrl.u32 %v3584, 7
    %v3586 = vsub.s32 5, %v3585
    %v3587 = vrot.slane %v3562, %v3586
    %v3588 = vlaneseq
    %v3589 = vshrl.u32 %v3588, 7
    %v3590 = vsub.s32 6, %v3589
    %v3591 = vrot.slane %v3562, %v3590
    %v3592 = vlaneseq
    %v3593 = vshrl.u32 %v3592, 7
    %v3594 = vsub.s32 7, %v3593
    %v3595 = vrot.slane %v3562, %v3594
    %v3620 = vunpack.c.l.b16 %v3354
    %v3621 = vunpack.c.h.b16 %v3354
    %v3622 = vunpack.c.l.b16 %v3355
    %v3623 = vunpack.c.h.b16 %v3355
    %v3624 = vunpack.c.l.b16 %v3356
    %v3625 = vunpack.c.h.b16 %v3356
    %v3626 = vunpack.c.l.b16 %v3357
    %v3627 = vunpack.c.h.b16 %v3357
    %v3628 = vunpack.c.l.b16 %v3358
    %v3629 = vunpack.c.h.b16 %v3358
    %v3630 = vunpack.c.l.b16 %v3359
    %v3631 = vunpack.c.h.b16 %v3359
    %v3632 = vunpack.c.l.b16 %v3360
    %v3633 = vunpack.c.h.b16 %v3360
    %v3634 = vunpack.c.l.b16 %v3361
    %v3635 = vunpack.c.h.b16 %v3361
    %v3636 = vunpack.c.l.b16 %v3362
    %v3637 = vunpack.c.h.b16 %v3362
    %v3638 = vunpack.c.l.b16 %v3363
    %v3639 = vunpack.c.h.b16 %v3363
    %v3640 = vunpack.c.l.b16 %v3364
    %v3641 = vunpack.c.h.b16 %v3364
    %v3642 = vunpack.c.l.b16 %v3365
    %v3643 = vunpack.c.h.b16 %v3365
    %v3644 = vunpack.c.l.b16 %v3366
    %v3645 = vunpack.c.h.b16 %v3366
    %v3646 = vunpack.c.l.b16 %v3367
    %v3647 = vunpack.c.h.b16 %v3367
    %v3648 = vunpack.c.l.b16 %v3368
    %v3649 = vunpack.c.h.b16 %v3368
    %v3650 = vunpack.c.l.b16 %v3369
    %v3651 = vunpack.c.h.b16 %v3369
    %v3652 = vpack.c.b16 %v3622, %v3620
    %v3653 = vpack.c.b16 %v3623, %v3621
    %v3654 = vpack.c.b16 %v3626, %v3624
    %v3655 = vpack.c.b16 %v3627, %v3625
    %v3656 = vpack.c.b16 %v3630, %v3628
    %v3657 = vpack.c.b16 %v3631, %v3629
    %v3658 = vpack.c.b16 %v3634, %v3632
    %v3659 = vpack.c.b16 %v3635, %v3633
    %v3660 = vpack.c.b16 %v3638, %v3636
    %v3661 = vpack.c.b16 %v3639, %v3637
    %v3662 = vpack.c.b16 %v3642, %v3640
    %v3663 = vpack.c.b16 %v3643, %v3641
    %v3664 = vpack.c.b16 %v3646, %v3644
    %v3665 = vpack.c.b16 %v3647, %v3645
    %v3666 = vpack.c.b16 %v3650, %v3648
    %v3667 = vpack.c.b16 %v3651, %v3649
    %v3812 = vunpack.c.l.b16 %v3370
    %v3813 = vunpack.c.h.b16 %v3370
    %v3814 = vunpack.c.l.b16 %v3371
    %v3815 = vunpack.c.h.b16 %v3371
    %v3816 = vunpack.c.l.b16 %v3372
    %v3817 = vunpack.c.h.b16 %v3372
    %v3818 = vunpack.c.l.b16 %v3373
    %v3819 = vunpack.c.h.b16 %v3373
    %v3820 = vunpack.c.l.b16 %v3374
    %v3821 = vunpack.c.h.b16 %v3374
    %v3822 = vunpack.c.l.b16 %v3375
    %v3823 = vunpack.c.h.b16 %v3375
    %v3824 = vunpack.c.l.b16 %v3376
    %v3825 = vunpack.c.h.b16 %v3376
    %v3826 = vunpack.c.l.b16 %v3377
    %v3827 = vunpack.c.h.b16 %v3377
    %v3828 = vunpack.c.l.b16 %v3378
    %v3829 = vunpack.c.h.b16 %v3378
    %v3830 = vunpack.c.l.b16 %v3379
    %v3831 = vunpack.c.h.b16 %v3379
    %v3832 = vunpack.c.l.b16 %v3380
    %v3833 = vunpack.c.h.b16 %v3380
    %v3834 = vunpack.c.l.b16 %v3381
    %v3835 = vunpack.c.h.b16 %v3381
    %v3836 = vunpack.c.l.b16 %v3382
    %v3837 = vunpack.c.h.b16 %v3382
    %v3838 = vunpack.c.l.b16 %v3383
    %v3839 = vunpack.c.h.b16 %v3383
    %v3840 = vunpack.c.l.b16 %v3384
    %v3841 = vunpack.c.h.b16 %v3384
    %v3842 = vunpack.c.l.b16 %v3385
    %v3843 = vunpack.c.h.b16 %v3385
    %v3844 = vunpack.c.l.b16 %v3386
    %v3845 = vunpack.c.h.b16 %v3386
    %v3846 = vunpack.c.l.b16 %v3387
    %v3847 = vunpack.c.h.b16 %v3387
    %v3848 = vunpack.c.l.b16 %v3388
    %v3849 = vunpack.c.h.b16 %v3388
    %v3850 = vunpack.c.l.b16 %v3389
    %v3851 = vunpack.c.h.b16 %v3389
    %v3852 = vunpack.c.l.b16 %v3390
    %v3853 = vunpack.c.h.b16 %v3390
    %v3854 = vunpack.c.l.b16 %v3391
    %v3855 = vunpack.c.h.b16 %v3391
    %v3856 = vunpack.c.l.b16 %v3392
    %v3857 = vunpack.c.h.b16 %v3392
    %v3858 = vunpack.c.l.b16 %v3393
    %v3859 = vunpack.c.h.b16 %v3393
    %v3860 = vunpack.c.l.b16 %v3394
    %v3861 = vunpack.c.h.b16 %v3394
    %v3862 = vunpack.c.l.b16 %v3395
    %v3863 = vunpack.c.h.b16 %v3395
    %v3864 = vunpack.c.l.b16 %v3396
    %v3865 = vunpack.c.h.b16 %v3396
    %v3866 = vunpack.c.l.b16 %v3397
    %v3867 = vunpack.c.h.b16 %v3397
    %v3868 = vunpack.c.l.b16 %v3398
    %v3869 = vunpack.c.h.b16 %v3398
    %v3870 = vunpack.c.l.b16 %v3399
    %v3871 = vunpack.c.h.b16 %v3399
    %v3872 = vunpack.c.l.b16 %v3400
    %v3873 = vunpack.c.h.b16 %v3400
    %v3874 = vunpack.c.l.b16 %v3401
    %v3875 = vunpack.c.h.b16 %v3401
    %v3876 = vunpack.c.l.b16 %v3402
    %v3877 = vunpack.c.h.b16 %v3402
    %v3878 = vunpack.c.l.b16 %v3403
    %v3879 = vunpack.c.h.b16 %v3403
    %v3880 = vunpack.c.l.b16 %v3404
    %v3881 = vunpack.c.h.b16 %v3404
    %v3882 = vunpack.c.l.b16 %v3405
    %v3883 = vunpack.c.h.b16 %v3405
    %v3884 = vunpack.c.l.b16 %v3406
    %v3885 = vunpack.c.h.b16 %v3406
    %v3886 = vunpack.c.l.b16 %v3407
    %v3887 = vunpack.c.h.b16 %v3407
    %v3888 = vunpack.c.l.b16 %v3408
    %v3889 = vunpack.c.h.b16 %v3408
    %v3890 = vunpack.c.l.b16 %v3409
    %v3891 = vunpack.c.h.b16 %v3409
    %v3892 = vunpack.c.l.b16 %v3410
    %v3893 = vunpack.c.h.b16 %v3410
    %v3894 = vunpack.c.l.b16 %v3411
    %v3895 = vunpack.c.h.b16 %v3411
    %v3896 = vunpack.c.l.b16 %v3412
    %v3897 = vunpack.c.h.b16 %v3412
    %v3898 = vunpack.c.l.b16 %v3413
    %v3899 = vunpack.c.h.b16 %v3413
    %v3900 = vunpack.c.l.b16 %v3414
    %v3901 = vunpack.c.h.b16 %v3414
    %v3902 = vunpack.c.l.b16 %v3415
    %v3903 = vunpack.c.h.b16 %v3415
    %v3904 = vunpack.c.l.b16 %v3416
    %v3905 = vunpack.c.h.b16 %v3416
    %v3906 = vunpack.c.l.b16 %v3417
    %v3907 = vunpack.c.h.b16 %v3417
    %v3908 = vunpack.c.l.b16 %v3418
    %v3909 = vunpack.c.h.b16 %v3418
    %v3910 = vunpack.c.l.b16 %v3419
    %v3911 = vunpack.c.h.b16 %v3419
    %v3912 = vunpack.c.l.b16 %v3420
    %v3913 = vunpack.c.h.b16 %v3420
    %v3914 = vunpack.c.l.b16 %v3421
    %v3915 = vunpack.c.h.b16 %v3421
    %v3916 = vunpack.c.l.b16 %v3422
    %v3917 = vunpack.c.h.b16 %v3422
    %v3918 = vunpack.c.l.b16 %v3423
    %v3919 = vunpack.c.h.b16 %v3423
    %v3920 = vunpack.c.l.b16 %v3424
    %v3921 = vunpack.c.h.b16 %v3424
    %v3922 = vunpack.c.l.b16 %v3425
    %v3923 = vunpack.c.h.b16 %v3425
    %v3924 = vunpack.c.l.b16 %v3426
    %v3925 = vunpack.c.h.b16 %v3426
    %v3926 = vunpack.c.l.b16 %v3427
    %v3927 = vunpack.c.h.b16 %v3427
    %v3928 = vunpack.c.l.b16 %v3428
    %v3929 = vunpack.c.h.b16 %v3428
    %v3930 = vunpack.c.l.b16 %v3429
    %v3931 = vunpack.c.h.b16 %v3429
    %v3932 = vunpack.c.l.b16 %v3430
    %v3933 = vunpack.c.h.b16 %v3430
    %v3934 = vunpack.c.l.b16 %v3431
    %v3935 = vunpack.c.h.b16 %v3431
    %v3936 = vunpack.c.l.b16 %v3432
    %v3937 = vunpack.c.h.b16 %v3432
    %v3938 = vunpack.c.l.b16 %v3433
    %v3939 = vunpack.c.h.b16 %v3433
    %v3940 = vunpack.c.l.b16 %v3434
    %v3941 = vunpack.c.h.b16 %v3434
    %v3942 = vunpack.c.l.b16 %v3435
    %v3943 = vunpack.c.h.b16 %v3435
    %v3944 = vunpack.c.l.b16 %v3436
    %v3945 = vunpack.c.h.b16 %v3436
    %v3946 = vunpack.c.l.b16 %v3437
    %v3947 = vunpack.c.h.b16 %v3437
    %v3948 = vunpack.c.l.b16 %v3438
    %v3949 = vunpack.c.h.b16 %v3438
    %v3950 = vunpack.c.l.b16 %v3439
    %v3951 = vunpack.c.h.b16 %v3439
    %v3952 = vunpack.c.l.b16 %v3440
    %v3953 = vunpack.c.h.b16 %v3440
    %v3954 = vunpack.c.l.b16 %v3441
    %v3955 = vunpack.c.h.b16 %v3441
    %v3956 = vunpack.c.l.b16 %v3442
    %v3957 = vunpack.c.h.b16 %v3442
    %v3958 = vunpack.c.l.b16 %v3443
    %v3959 = vunpack.c.h.b16 %v3443
    %v3960 = vunpack.c.l.b16 %v3444
    %v3961 = vunpack.c.h.b16 %v3444
    %v3962 = vunpack.c.l.b16 %v3445
    %v3963 = vunpack.c.h.b16 %v3445
    %v3964 = vunpack.c.l.b16 %v3446
    %v3965 = vunpack.c.h.b16 %v3446
    %v3966 = vunpack.c.l.b16 %v3447
    %v3967 = vunpack.c.h.b16 %v3447
    %v3968 = vunpack.c.l.b16 %v3448
    %v3969 = vunpack.c.h.b16 %v3448
    %v3970 = vunpack.c.l.b16 %v3449
    %v3971 = vunpack.c.h.b16 %v3449
    %v3972 = vunpack.c.l.b16 %v3450
    %v3973 = vunpack.c.h.b16 %v3450
    %v3974 = vunpack.c.l.b16 %v3451
    %v3975 = vunpack.c.h.b16 %v3451
    %v3976 = vunpack.c.l.b16 %v3452
    %v3977 = vunpack.c.h.b16 %v3452
    %v3978 = vunpack.c.l.b16 %v3453
    %v3979 = vunpack.c.h.b16 %v3453
    %v3980 = vunpack.c.l.b16 %v3454
    %v3981 = vunpack.c.h.b16 %v3454
    %v3982 = vunpack.c.l.b16 %v3455
    %v3983 = vunpack.c.h.b16 %v3455
    %v3984 = vunpack.c.l.b16 %v3456
    %v3985 = vunpack.c.h.b16 %v3456
    %v3986 = vunpack.c.l.b16 %v3457
    %v3987 = vunpack.c.h.b16 %v3457
    %v3988 = vunpack.c.l.b16 %v3458
    %v3989 = vunpack.c.h.b16 %v3458
    %v3990 = vunpack.c.l.b16 %v3459
    %v3991 = vunpack.c.h.b16 %v3459
    %v3992 = vunpack.c.l.b16 %v3460
    %v3993 = vunpack.c.h.b16 %v3460
    %v3994 = vunpack.c.l.b16 %v3461
    %v3995 = vunpack.c.h.b16 %v3461
    %v3996 = vunpack.c.l.b16 %v3462
    %v3997 = vunpack.c.h.b16 %v3462
    %v3998 = vunpack.c.l.b16 %v3463
    %v3999 = vunpack.c.h.b16 %v3463
    %v4000 = vunpack.c.l.b16 %v3464
    %v4001 = vunpack.c.h.b16 %v3464
    %v4002 = vunpack.c.l.b16 %v3465
    %v4003 = vunpack.c.h.b16 %v3465
    %v4004 = vunpack.c.l.b16 %v3466
    %v4005 = vunpack.c.h.b16 %v3466
    %v4006 = vunpack.c.l.b16 %v3467
    %v4007 = vunpack.c.h.b16 %v3467
    %v4008 = vunpack.c.l.b16 %v3468
    %v4009 = vunpack.c.h.b16 %v3468
    %v4010 = vunpack.c.l.b16 %v3469
    %v4011 = vunpack.c.h.b16 %v3469
    %v4012 = vunpack.c.l.b16 %v3470
    %v4013 = vunpack.c.h.b16 %v3470
    %v4014 = vunpack.c.l.b16 %v3471
    %v4015 = vunpack.c.h.b16 %v3471
    %v4016 = vunpack.c.l.b16 %v3472
    %v4017 = vunpack.c.h.b16 %v3472
    %v4018 = vunpack.c.l.b16 %v3473
    %v4019 = vunpack.c.h.b16 %v3473
    %v4020 = vunpack.c.l.b16 %v3474
    %v4021 = vunpack.c.h.b16 %v3474
    %v4022 = vunpack.c.l.b16 %v3475
    %v4023 = vunpack.c.h.b16 %v3475
    %v4024 = vunpack.c.l.b16 %v3476
    %v4025 = vunpack.c.h.b16 %v3476
    %v4026 = vunpack.c.l.b16 %v3477
    %v4027 = vunpack.c.h.b16 %v3477
    %v4028 = vunpack.c.l.b16 %v3478
    %v4029 = vunpack.c.h.b16 %v3478
    %v4030 = vunpack.c.l.b16 %v3479
    %v4031 = vunpack.c.h.b16 %v3479
    %v4032 = vunpack.c.l.b16 %v3480
    %v4033 = vunpack.c.h.b16 %v3480
    %v4034 = vunpack.c.l.b16 %v3481
    %v4035 = vunpack.c.h.b16 %v3481
    %v4036 = vunpack.c.l.b16 %v3482
    %v4037 = vunpack.c.h.b16 %v3482
    %v4038 = vunpack.c.l.b16 %v3483
    %v4039 = vunpack.c.h.b16 %v3483
    %v4040 = vunpack.c.l.b16 %v3484
    %v4041 = vunpack.c.h.b16 %v3484
    %v4042 = vunpack.c.l.b16 %v3485
    %v4043 = vunpack.c.h.b16 %v3485
    %v4044 = vunpack.c.l.b16 %v3486
    %v4045 = vunpack.c.h.b16 %v3486
    %v4046 = vunpack.c.l.b16 %v3487
    %v4047 = vunpack.c.h.b16 %v3487
    %v4048 = vunpack.c.l.b16 %v3488
    %v4049 = vunpack.c.h.b16 %v3488
    %v4050 = vunpack.c.l.b16 %v3489
    %v4051 = vunpack.c.h.b16 %v3489
    %v4052 = vunpack.c.l.b16 %v3490
    %v4053 = vunpack.c.h.b16 %v3490
    %v4054 = vunpack.c.l.b16 %v3491
    %v4055 = vunpack.c.h.b16 %v3491
    %v4056 = vunpack.c.l.b16 %v3492
    %v4057 = vunpack.c.h.b16 %v3492
    %v4058 = vunpack.c.l.b16 %v3493
    %v4059 = vunpack.c.h.b16 %v3493
    %v4060 = vunpack.c.l.b16 %v3494
    %v4061 = vunpack.c.h.b16 %v3494
    %v4062 = vunpack.c.l.b16 %v3495
    %v4063 = vunpack.c.h.b16 %v3495
    %v4064 = vunpack.c.l.b16 %v3496
    %v4065 = vunpack.c.h.b16 %v3496
    %v4066 = vunpack.c.l.b16 %v3497
    %v4067 = vunpack.c.h.b16 %v3497
    %v4068 = vpack.c.b16 %v3820, %v3812
    %v4069 = vpack.c.b16 %v3821, %v3813
    %v4070 = vpack.c.b16 %v3822, %v3814
    %v4071 = vpack.c.b16 %v3823, %v3815
    %v4072 = vpack.c.b16 %v3824, %v3816
    %v4073 = vpack.c.b16 %v3825, %v3817
    %v4074 = vpack.c.b16 %v3826, %v3818
    %v4075 = vpack.c.b16 %v3827, %v3819
    %v4076 = vpack.c.b16 %v3836, %v3828
    %v4077 = vpack.c.b16 %v3837, %v3829
    %v4078 = vpack.c.b16 %v3838, %v3830
    %v4079 = vpack.c.b16 %v3839, %v3831
    %v4080 = vpack.c.b16 %v3840, %v3832
    %v4081 = vpack.c.b16 %v3841, %v3833
    %v4082 = vpack.c.b16 %v3842, %v3834
    %v4083 = vpack.c.b16 %v3843, %v3835
    %v4084 = vpack.c.b16 %v3852, %v3844
    %v4085 = vpack.c.b16 %v3853, %v3845
    %v4086 = vpack.c.b16 %v3854, %v3846
    %v4087 = vpack.c.b16 %v3855, %v3847
    %v4088 = vpack.c.b16 %v3856, %v3848
    %v4089 = vpack.c.b16 %v3857, %v3849
    %v4090 = vpack.c.b16 %v3858, %v3850
    %v4091 = vpack.c.b16 %v3859, %v3851
    %v4092 = vpack.c.b16 %v3868, %v3860
    %v4093 = vpack.c.b16 %v3869, %v3861
    %v4094 = vpack.c.b16 %v3870, %v3862
    %v4095 = vpack.c.b16 %v3871, %v3863
    %v4096 = vpack.c.b16 %v3872, %v3864
    %v4097 = vpack.c.b16 %v3873, %v3865
    %v4098 = vpack.c.b16 %v3874, %v3866
    %v4099 = vpack.c.b16 %v3875, %v3867
    %v4100 = vpack.c.b16 %v3884, %v3876
    %v4101 = vpack.c.b16 %v3885, %v3877
    %v4102 = vpack.c.b16 %v3886, %v3878
    %v4103 = vpack.c.b16 %v3887, %v3879
    %v4104 = vpack.c.b16 %v3888, %v3880
    %v4105 = vpack.c.b16 %v3889, %v3881
    %v4106 = vpack.c.b16 %v3890, %v3882
    %v4107 = vpack.c.b16 %v3891, %v3883
    %v4108 = vpack.c.b16 %v3900, %v3892
    %v4109 = vpack.c.b16 %v3901, %v3893
    %v4110 = vpack.c.b16 %v3902, %v3894
    %v4111 = vpack.c.b16 %v3903, %v3895
    %v4112 = vpack.c.b16 %v3904, %v3896
    %v4113 = vpack.c.b16 %v3905, %v3897
    %v4114 = vpack.c.b16 %v3906, %v3898
    %v4115 = vpack.c.b16 %v3907, %v3899
    %v4116 = vpack.c.b16 %v3916, %v3908
    %v4117 = vpack.c.b16 %v3917, %v3909
    %v4118 = vpack.c.b16 %v3918, %v3910
    %v4119 = vpack.c.b16 %v3919, %v3911
    %v4120 = vpack.c.b16 %v3920, %v3912
    %v4121 = vpack.c.b16 %v3921, %v3913
    %v4122 = vpack.c.b16 %v3922, %v3914
    %v4123 = vpack.c.b16 %v3923, %v3915
    %v4124 = vpack.c.b16 %v3932, %v3924
    %v4125 = vpack.c.b16 %v3933, %v3925
    %v4126 = vpack.c.b16 %v3934, %v3926
    %v4127 = vpack.c.b16 %v3935, %v3927
    %v4128 = vpack.c.b16 %v3936, %v3928
    %v4129 = vpack.c.b16 %v3937, %v3929
    %v4130 = vpack.c.b16 %v3938, %v3930
    %v4131 = vpack.c.b16 %v3939, %v3931
    %v4132 = vpack.c.b16 %v3948, %v3940
    %v4133 = vpack.c.b16 %v3949, %v3941
    %v4134 = vpack.c.b16 %v3950, %v3942
    %v4135 = vpack.c.b16 %v3951, %v3943
    %v4136 = vpack.c.b16 %v3952, %v3944
    %v4137 = vpack.c.b16 %v3953, %v3945
    %v4138 = vpack.c.b16 %v3954, %v3946
    %v4139 = vpack.c.b16 %v3955, %v3947
    %v4140 = vpack.c.b16 %v3964, %v3956
    %v4141 = vpack.c.b16 %v3965, %v3957
    %v4142 = vpack.c.b16 %v3966, %v3958
    %v4143 = vpack.c.b16 %v3967, %v3959
    %v4144 = vpack.c.b16 %v3968, %v3960
    %v4145 = vpack.c.b16 %v3969, %v3961
    %v4146 = vpack.c.b16 %v3970, %v3962
    %v4147 = vpack.c.b16 %v3971, %v3963
    %v4148 = vpack.c.b16 %v3980, %v3972
    %v4149 = vpack.c.b16 %v3981, %v3973
    %v4150 = vpack.c.b16 %v3982, %v3974
    %v4151 = vpack.c.b16 %v3983, %v3975
    %v4152 = vpack.c.b16 %v3984, %v3976
    %v4153 = vpack.c.b16 %v3985, %v3977
    %v4154 = vpack.c.b16 %v3986, %v3978
    %v4155 = vpack.c.b16 %v3987, %v3979
    %v4156 = vpack.c.b16 %v3996, %v3988
    %v4157 = vpack.c.b16 %v3997, %v3989
    %v4158 = vpack.c.b16 %v3998, %v3990
    %v4159 = vpack.c.b16 %v3999, %v3991
    %v4160 = vpack.c.b16 %v4000, %v3992
    %v4161 = vpack.c.b16 %v4001, %v3993
    %v4162 = vpack.c.b16 %v4002, %v3994
    %v4163 = vpack.c.b16 %v4003, %v3995
    %v4164 = vpack.c.b16 %v4012, %v4004
    %v4165 = vpack.c.b16 %v4013, %v4005
    %v4166 = vpack.c.b16 %v4014, %v4006
    %v4167 = vpack.c.b16 %v4015, %v4007
    %v4168 = vpack.c.b16 %v4016, %v4008
    %v4169 = vpack.c.b16 %v4017, %v4009
    %v4170 = vpack.c.b16 %v4018, %v4010
    %v4171 = vpack.c.b16 %v4019, %v4011
    %v4172 = vpack.c.b16 %v4028, %v4020
    %v4173 = vpack.c.b16 %v4029, %v4021
    %v4174 = vpack.c.b16 %v4030, %v4022
    %v4175 = vpack.c.b16 %v4031, %v4023
    %v4176 = vpack.c.b16 %v4032, %v4024
    %v4177 = vpack.c.b16 %v4033, %v4025
    %v4178 = vpack.c.b16 %v4034, %v4026
    %v4179 = vpack.c.b16 %v4035, %v4027
    %v4180 = vpack.c.b16 %v4044, %v4036
    %v4181 = vpack.c.b16 %v4045, %v4037
    %v4182 = vpack.c.b16 %v4046, %v4038
    %v4183 = vpack.c.b16 %v4047, %v4039
    %v4184 = vpack.c.b16 %v4048, %v4040
    %v4185 = vpack.c.b16 %v4049, %v4041
    %v4186 = vpack.c.b16 %v4050, %v4042
    %v4187 = vpack.c.b16 %v4051, %v4043
    %v4188 = vpack.c.b16 %v4060, %v4052
    %v4189 = vpack.c.b16 %v4061, %v4053
    %v4190 = vpack.c.b16 %v4062, %v4054
    %v4191 = vpack.c.b16 %v4063, %v4055
    %v4192 = vpack.c.b16 %v4064, %v4056
    %v4193 = vpack.c.b16 %v4065, %v4057
    %v4194 = vpack.c.b16 %v4066, %v4058
    %v4195 = vpack.c.b16 %v4067, %v4059
    %4324 = vmatprep.subr.bf16.mxu0 %v4125
    %4325 = vmatpush1.bf16.msra.mxu0 %v4124
    %4326 = vmatprep.subr.bf16.mxu0 %v4117
    %4327 = vmatpush1.bf16.msra.mxu0 %v4116
    %4328 = vmatprep.subr.bf16.mxu0 %v4109
    %4329 = vmatpush1.bf16.msra.mxu0 %v4108
    %4330 = vmatprep.subr.bf16.mxu0 %v4101
    %4331 = vmatpush1.bf16.msra.mxu0 %v4100
    %4332 = vmatprep.subr.bf16.mxu0 %v4093
    %4333 = vmatpush1.bf16.msra.mxu0 %v4092
    %4334 = vmatprep.subr.bf16.mxu0 %v4085
    %4335 = vmatpush1.bf16.msra.mxu0 %v4084
    %4336 = vmatprep.subr.bf16.mxu0 %v4077
    %4337 = vmatpush1.bf16.msra.mxu0 %v4076
    %4338 = vmatprep.subr.bf16.mxu0 %v4069
    %4339 = vmatpush1.bf16.msra.mxu0 %v4068
    %4340 = vmatprep.subr.bf16.mxu0 %v4189
    %4341 = vmatpush2.bf16.msra.mxu0 %v4188
    %4342 = vmatprep.subr.bf16.mxu0 %v4181
    %4343 = vmatpush2.bf16.msra.mxu0 %v4180
    %4344 = vmatprep.subr.bf16.mxu0 %v4173
    %4345 = vmatpush2.bf16.msra.mxu0 %v4172
    %4346 = vmatprep.subr.bf16.mxu0 %v4165
    %4347 = vmatpush2.bf16.msra.mxu0 %v4164
    %4348 = vmatprep.subr.bf16.mxu0 %v4157
    %4349 = vmatpush2.bf16.msra.mxu0 %v4156
    %4350 = vmatprep.subr.bf16.mxu0 %v4149
    %4351 = vmatpush2.bf16.msra.mxu0 %v4148
    %4352 = vmatprep.subr.bf16.mxu0 %v4141
    %4353 = vmatpush2.bf16.msra.mxu0 %v4140
    %4354 = vmatprep.subr.bf16.mxu0 %v4133
    %4355 = vmatpush2.bf16.msra.mxu0 %v4132
    %4356 = vmatprep.mubr.bf16.mxu0 %v3653
    %4357 = vmatmul.mubr.bf16.gmra.mxu0 %v3652
    %v4358 = vpop.f32.mrf.mxu0
    %v4359 = vadd.f32 %v3567, %v4358
    %v4360 = vpop.f32.mrf.mxu0
    %v4361 = vadd.f32 %v3571, %v4360
    %v4362 = vpop.f32.mrf.mxu0
    %v4363 = vadd.f32 %v3567, %v4362
    %v4364 = vpop.f32.mrf.mxu0
    %v4365 = vadd.f32 %v3571, %v4364
    %4366 = vmatprep.mubr.bf16.mxu0 %v3655
    %4367 = vmatmul.mubr.bf16.gmra.mxu0 %v3654
    %v4368 = vpop.f32.mrf.mxu0
    %v4369 = vadd.f32 %v3567, %v4368
    %v4370 = vpop.f32.mrf.mxu0
    %v4371 = vadd.f32 %v3571, %v4370
    %v4372 = vpop.f32.mrf.mxu0
    %v4373 = vadd.f32 %v3567, %v4372
    %v4374 = vpop.f32.mrf.mxu0
    %v4375 = vadd.f32 %v3571, %v4374
    %4376 = vmatprep.mubr.bf16.mxu0 %v3657
    %4377 = vmatmul.mubr.bf16.gmra.mxu0 %v3656
    %v4378 = vpop.f32.mrf.mxu0
    %v4379 = vadd.f32 %v3567, %v4378
    %v4380 = vpop.f32.mrf.mxu0
    %v4381 = vadd.f32 %v3571, %v4380
    %v4382 = vpop.f32.mrf.mxu0
    %v4383 = vadd.f32 %v3567, %v4382
    %v4384 = vpop.f32.mrf.mxu0
    %v4385 = vadd.f32 %v3571, %v4384
    %4386 = vmatprep.mubr.bf16.mxu0 %v3659
    %4387 = vmatmul.mubr.bf16.gmra.mxu0 %v3658
    %v4388 = vpop.f32.mrf.mxu0
    %v4389 = vadd.f32 %v3567, %v4388
    %v4390 = vpop.f32.mrf.mxu0
    %v4391 = vadd.f32 %v3571, %v4390
    %v4392 = vpop.f32.mrf.mxu0
    %v4393 = vadd.f32 %v3567, %v4392
    %v4394 = vpop.f32.mrf.mxu0
    %v4395 = vadd.f32 %v3571, %v4394
    %4396 = vmatprep.mubr.bf16.mxu0 %v3661
    %4397 = vmatmul.mubr.bf16.gmra.mxu0 %v3660
    %v4398 = vpop.f32.mrf.mxu0
    %v4399 = vadd.f32 %v3567, %v4398
    %v4400 = vpop.f32.mrf.mxu0
    %v4401 = vadd.f32 %v3571, %v4400
    %v4402 = vpop.f32.mrf.mxu0
    %v4403 = vadd.f32 %v3567, %v4402
    %v4404 = vpop.f32.mrf.mxu0
    %v4405 = vadd.f32 %v3571, %v4404
    %4406 = vmatprep.mubr.bf16.mxu0 %v3663
    %4407 = vmatmul.mubr.bf16.gmra.mxu0 %v3662
    %v4408 = vpop.f32.mrf.mxu0
    %v4409 = vadd.f32 %v3567, %v4408
    %v4410 = vpop.f32.mrf.mxu0
    %v4411 = vadd.f32 %v3571, %v4410
    %v4412 = vpop.f32.mrf.mxu0
    %v4413 = vadd.f32 %v3567, %v4412
    %v4414 = vpop.f32.mrf.mxu0
    %v4415 = vadd.f32 %v3571, %v4414
    %4416 = vmatprep.mubr.bf16.mxu0 %v3665
    %4417 = vmatmul.mubr.bf16.gmra.mxu0 %v3664
    %v4418 = vpop.f32.mrf.mxu0
    %v4419 = vadd.f32 %v3567, %v4418
    %v4420 = vpop.f32.mrf.mxu0
    %v4421 = vadd.f32 %v3571, %v4420
    %v4422 = vpop.f32.mrf.mxu0
    %v4423 = vadd.f32 %v3567, %v4422
    %v4424 = vpop.f32.mrf.mxu0
    %v4425 = vadd.f32 %v3571, %v4424
    %4426 = vmatprep.mubr.bf16.mxu0 %v3667
    %4427 = vmatmul.mubr.bf16.gmra.mxu0 %v3666
    %v4428 = vpop.f32.mrf.mxu0
    %v4429 = vadd.f32 %v3567, %v4428
    %v4430 = vpop.f32.mrf.mxu0
    %v4431 = vadd.f32 %v3571, %v4430
    %v4432 = vpop.f32.mrf.mxu0
    %v4433 = vadd.f32 %v3567, %v4432
    %v4434 = vpop.f32.mrf.mxu0
    %v4435 = vadd.f32 %v3571, %v4434
    %4436 = vdwg.mxu0
    %4437 = vmatprep.subr.bf16.mxu0 %v4127
    %4438 = vmatpush1.bf16.msra.mxu0 %v4126
    %4439 = vmatprep.subr.bf16.mxu0 %v4119
    %4440 = vmatpush1.bf16.msra.mxu0 %v4118
    %4441 = vmatprep.subr.bf16.mxu0 %v4111
    %4442 = vmatpush1.bf16.msra.mxu0 %v4110
    %4443 = vmatprep.subr.bf16.mxu0 %v4103
    %4444 = vmatpush1.bf16.msra.mxu0 %v4102
    %4445 = vmatprep.subr.bf16.mxu0 %v4095
    %4446 = vmatpush1.bf16.msra.mxu0 %v4094
    %4447 = vmatprep.subr.bf16.mxu0 %v4087
    %4448 = vmatpush1.bf16.msra.mxu0 %v4086
    %4449 = vmatprep.subr.bf16.mxu0 %v4079
    %4450 = vmatpush1.bf16.msra.mxu0 %v4078
    %4451 = vmatprep.subr.bf16.mxu0 %v4071
    %4452 = vmatpush1.bf16.msra.mxu0 %v4070
    %4453 = vmatprep.subr.bf16.mxu0 %v4191
    %4454 = vmatpush2.bf16.msra.mxu0 %v4190
    %4455 = vmatprep.subr.bf16.mxu0 %v4183
    %4456 = vmatpush2.bf16.msra.mxu0 %v4182
    %4457 = vmatprep.subr.bf16.mxu0 %v4175
    %4458 = vmatpush2.bf16.msra.mxu0 %v4174
    %4459 = vmatprep.subr.bf16.mxu0 %v4167
    %4460 = vmatpush2.bf16.msra.mxu0 %v4166
    %4461 = vmatprep.subr.bf16.mxu0 %v4159
    %4462 = vmatpush2.bf16.msra.mxu0 %v4158
    %4463 = vmatprep.subr.bf16.mxu0 %v4151
    %4464 = vmatpush2.bf16.msra.mxu0 %v4150
    %4465 = vmatprep.subr.bf16.mxu0 %v4143
    %4466 = vmatpush2.bf16.msra.mxu0 %v4142
    %4467 = vmatprep.subr.bf16.mxu0 %v4135
    %4468 = vmatpush2.bf16.msra.mxu0 %v4134
    %4469 = vmatprep.mubr.bf16.mxu0 %v3653
    %4470 = vmatmul.mubr.bf16.gmra.mxu0 %v3652
    %v4471 = vpop.f32.mrf.mxu0
    %v4472 = vadd.f32 %v3575, %v4471
    %v4473 = vpop.f32.mrf.mxu0
    %v4474 = vadd.f32 %v3579, %v4473
    %v4475 = vpop.f32.mrf.mxu0
    %v4476 = vadd.f32 %v3575, %v4475
    %v4477 = vpop.f32.mrf.mxu0
    %v4478 = vadd.f32 %v3579, %v4477
    %4479 = vmatprep.mubr.bf16.mxu0 %v3655
    %4480 = vmatmul.mubr.bf16.gmra.mxu0 %v3654
    %v4481 = vpop.f32.mrf.mxu0
    %v4482 = vadd.f32 %v3575, %v4481
    %v4483 = vpop.f32.mrf.mxu0
    %v4484 = vadd.f32 %v3579, %v4483
    %v4485 = vpop.f32.mrf.mxu0
    %v4486 = vadd.f32 %v3575, %v4485
    %v4487 = vpop.f32.mrf.mxu0
    %v4488 = vadd.f32 %v3579, %v4487
    %4489 = vmatprep.mubr.bf16.mxu0 %v3657
    %4490 = vmatmul.mubr.bf16.gmra.mxu0 %v3656
    %v4491 = vpop.f32.mrf.mxu0
    %v4492 = vadd.f32 %v3575, %v4491
    %v4493 = vpop.f32.mrf.mxu0
    %v4494 = vadd.f32 %v3579, %v4493
    %v4495 = vpop.f32.mrf.mxu0
    %v4496 = vadd.f32 %v3575, %v4495
    %v4497 = vpop.f32.mrf.mxu0
    %v4498 = vadd.f32 %v3579, %v4497
    %4499 = vmatprep.mubr.bf16.mxu0 %v3659
    %4500 = vmatmul.mubr.bf16.gmra.mxu0 %v3658
    %v4501 = vpop.f32.mrf.mxu0
    %v4502 = vadd.f32 %v3575, %v4501
    %v4503 = vpop.f32.mrf.mxu0
    %v4504 = vadd.f32 %v3579, %v4503
    %v4505 = vpop.f32.mrf.mxu0
    %v4506 = vadd.f32 %v3575, %v4505
    %v4507 = vpop.f32.mrf.mxu0
    %v4508 = vadd.f32 %v3579, %v4507
    %4509 = vmatprep.mubr.bf16.mxu0 %v3661
    %4510 = vmatmul.mubr.bf16.gmra.mxu0 %v3660
    %v4511 = vpop.f32.mrf.mxu0
    %v4512 = vadd.f32 %v3575, %v4511
    %v4513 = vpop.f32.mrf.mxu0
    %v4514 = vadd.f32 %v3579, %v4513
    %v4515 = vpop.f32.mrf.mxu0
    %v4516 = vadd.f32 %v3575, %v4515
    %v4517 = vpop.f32.mrf.mxu0
    %v4518 = vadd.f32 %v3579, %v4517
    %4519 = vmatprep.mubr.bf16.mxu0 %v3663
    %4520 = vmatmul.mubr.bf16.gmra.mxu0 %v3662
    %v4521 = vpop.f32.mrf.mxu0
    %v4522 = vadd.f32 %v3575, %v4521
    %v4523 = vpop.f32.mrf.mxu0
    %v4524 = vadd.f32 %v3579, %v4523
    %v4525 = vpop.f32.mrf.mxu0
    %v4526 = vadd.f32 %v3575, %v4525
    %v4527 = vpop.f32.mrf.mxu0
    %v4528 = vadd.f32 %v3579, %v4527
    %4529 = vmatprep.mubr.bf16.mxu0 %v3665
    %4530 = vmatmul.mubr.bf16.gmra.mxu0 %v3664
    %v4531 = vpop.f32.mrf.mxu0
    %v4532 = vadd.f32 %v3575, %v4531
    %v4533 = vpop.f32.mrf.mxu0
    %v4534 = vadd.f32 %v3579, %v4533
    %v4535 = vpop.f32.mrf.mxu0
    %v4536 = vadd.f32 %v3575, %v4535
    %v4537 = vpop.f32.mrf.mxu0
    %v4538 = vadd.f32 %v3579, %v4537
    %4539 = vmatprep.mubr.bf16.mxu0 %v3667
    %4540 = vmatmul.mubr.bf16.gmra.mxu0 %v3666
    %v4541 = vpop.f32.mrf.mxu0
    %v4542 = vadd.f32 %v3575, %v4541
    %v4543 = vpop.f32.mrf.mxu0
    %v4544 = vadd.f32 %v3579, %v4543
    %v4545 = vpop.f32.mrf.mxu0
    %v4546 = vadd.f32 %v3575, %v4545
    %v4547 = vpop.f32.mrf.mxu0
    %v4548 = vadd.f32 %v3579, %v4547
    %4549 = vdwg.mxu0
    %4550 = vmatprep.subr.bf16.mxu0 %v4129
    %4551 = vmatpush1.bf16.msra.mxu0 %v4128
    %4552 = vmatprep.subr.bf16.mxu0 %v4121
    %4553 = vmatpush1.bf16.msra.mxu0 %v4120
    %4554 = vmatprep.subr.bf16.mxu0 %v4113
    %4555 = vmatpush1.bf16.msra.mxu0 %v4112
    %4556 = vmatprep.subr.bf16.mxu0 %v4105
    %4557 = vmatpush1.bf16.msra.mxu0 %v4104
    %4558 = vmatprep.subr.bf16.mxu0 %v4097
    %4559 = vmatpush1.bf16.msra.mxu0 %v4096
    %4560 = vmatprep.subr.bf16.mxu0 %v4089
    %4561 = vmatpush1.bf16.msra.mxu0 %v4088
    %4562 = vmatprep.subr.bf16.mxu0 %v4081
    %4563 = vmatpush1.bf16.msra.mxu0 %v4080
    %4564 = vmatprep.subr.bf16.mxu0 %v4073
    %4565 = vmatpush1.bf16.msra.mxu0 %v4072
    %4566 = vmatprep.subr.bf16.mxu0 %v4193
    %4567 = vmatpush2.bf16.msra.mxu0 %v4192
    %4568 = vmatprep.subr.bf16.mxu0 %v4185
    %4569 = vmatpush2.bf16.msra.mxu0 %v4184
    %4570 = vmatprep.subr.bf16.mxu0 %v4177
    %4571 = vmatpush2.bf16.msra.mxu0 %v4176
    %4572 = vmatprep.subr.bf16.mxu0 %v4169
    %4573 = vmatpush2.bf16.msra.mxu0 %v4168
    %4574 = vmatprep.subr.bf16.mxu0 %v4161
    %4575 = vmatpush2.bf16.msra.mxu0 %v4160
    %4576 = vmatprep.subr.bf16.mxu0 %v4153
    %4577 = vmatpush2.bf16.msra.mxu0 %v4152
    %4578 = vmatprep.subr.bf16.mxu0 %v4145
    %4579 = vmatpush2.bf16.msra.mxu0 %v4144
    %4580 = vmatprep.subr.bf16.mxu0 %v4137
    %4581 = vmatpush2.bf16.msra.mxu0 %v4136
    %4582 = vmatprep.mubr.bf16.mxu0 %v3653
    %4583 = vmatmul.mubr.bf16.gmra.mxu0 %v3652
    %v4584 = vpop.f32.mrf.mxu0
    %v4585 = vadd.f32 %v3583, %v4584
    %v4586 = vpop.f32.mrf.mxu0
    %v4587 = vadd.f32 %v3587, %v4586
    %v4588 = vpop.f32.mrf.mxu0
    %v4589 = vadd.f32 %v3583, %v4588
    %v4590 = vpop.f32.mrf.mxu0
    %v4591 = vadd.f32 %v3587, %v4590
    %4592 = vmatprep.mubr.bf16.mxu0 %v3655
    %4593 = vmatmul.mubr.bf16.gmra.mxu0 %v3654
    %v4594 = vpop.f32.mrf.mxu0
    %v4595 = vadd.f32 %v3583, %v4594
    %v4596 = vpop.f32.mrf.mxu0
    %v4597 = vadd.f32 %v3587, %v4596
    %v4598 = vpop.f32.mrf.mxu0
    %v4599 = vadd.f32 %v3583, %v4598
    %v4600 = vpop.f32.mrf.mxu0
    %v4601 = vadd.f32 %v3587, %v4600
    %4602 = vmatprep.mubr.bf16.mxu0 %v3657
    %4603 = vmatmul.mubr.bf16.gmra.mxu0 %v3656
    %v4604 = vpop.f32.mrf.mxu0
    %v4605 = vadd.f32 %v3583, %v4604
    %v4606 = vpop.f32.mrf.mxu0
    %v4607 = vadd.f32 %v3587, %v4606
    %v4608 = vpop.f32.mrf.mxu0
    %v4609 = vadd.f32 %v3583, %v4608
    %v4610 = vpop.f32.mrf.mxu0
    %v4611 = vadd.f32 %v3587, %v4610
    %4612 = vmatprep.mubr.bf16.mxu0 %v3659
    %4613 = vmatmul.mubr.bf16.gmra.mxu0 %v3658
    %v4614 = vpop.f32.mrf.mxu0
    %v4615 = vadd.f32 %v3583, %v4614
    %v4616 = vpop.f32.mrf.mxu0
    %v4617 = vadd.f32 %v3587, %v4616
    %v4618 = vpop.f32.mrf.mxu0
    %v4619 = vadd.f32 %v3583, %v4618
    %v4620 = vpop.f32.mrf.mxu0
    %v4621 = vadd.f32 %v3587, %v4620
    %4622 = vmatprep.mubr.bf16.mxu0 %v3661
    %4623 = vmatmul.mubr.bf16.gmra.mxu0 %v3660
    %v4624 = vpop.f32.mrf.mxu0
    %v4625 = vadd.f32 %v3583, %v4624
    %v4626 = vpop.f32.mrf.mxu0
    %v4627 = vadd.f32 %v3587, %v4626
    %v4628 = vpop.f32.mrf.mxu0
    %v4629 = vadd.f32 %v3583, %v4628
    %v4630 = vpop.f32.mrf.mxu0
    %v4631 = vadd.f32 %v3587, %v4630
    %4632 = vmatprep.mubr.bf16.mxu0 %v3663
    %4633 = vmatmul.mubr.bf16.gmra.mxu0 %v3662
    %v4634 = vpop.f32.mrf.mxu0
    %v4635 = vadd.f32 %v3583, %v4634
    %v4636 = vpop.f32.mrf.mxu0
    %v4637 = vadd.f32 %v3587, %v4636
    %v4638 = vpop.f32.mrf.mxu0
    %v4639 = vadd.f32 %v3583, %v4638
    %v4640 = vpop.f32.mrf.mxu0
    %v4641 = vadd.f32 %v3587, %v4640
    %4642 = vmatprep.mubr.bf16.mxu0 %v3665
    %4643 = vmatmul.mubr.bf16.gmra.mxu0 %v3664
    %v4644 = vpop.f32.mrf.mxu0
    %v4645 = vadd.f32 %v3583, %v4644
    %v4646 = vpop.f32.mrf.mxu0
    %v4647 = vadd.f32 %v3587, %v4646
    %v4648 = vpop.f32.mrf.mxu0
    %v4649 = vadd.f32 %v3583, %v4648
    %v4650 = vpop.f32.mrf.mxu0
    %v4651 = vadd.f32 %v3587, %v4650
    %4652 = vmatprep.mubr.bf16.mxu0 %v3667
    %4653 = vmatmul.mubr.bf16.gmra.mxu0 %v3666
    %v4654 = vpop.f32.mrf.mxu0
    %v4655 = vadd.f32 %v3583, %v4654
    %v4656 = vpop.f32.mrf.mxu0
    %v4657 = vadd.f32 %v3587, %v4656
    %v4658 = vpop.f32.mrf.mxu0
    %v4659 = vadd.f32 %v3583, %v4658
    %v4660 = vpop.f32.mrf.mxu0
    %v4661 = vadd.f32 %v3587, %v4660
    %4662 = vdwg.mxu0
    %4663 = vmatprep.subr.bf16.mxu0 %v4131
    %4664 = vmatpush1.bf16.msra.mxu0 %v4130
    %4665 = vmatprep.subr.bf16.mxu0 %v4123
    %4666 = vmatpush1.bf16.msra.mxu0 %v4122
    %4667 = vmatprep.subr.bf16.mxu0 %v4115
    %4668 = vmatpush1.bf16.msra.mxu0 %v4114
    %4669 = vmatprep.subr.bf16.mxu0 %v4107
    %4670 = vmatpush1.bf16.msra.mxu0 %v4106
    %4671 = vmatprep.subr.bf16.mxu0 %v4099
    %4672 = vmatpush1.bf16.msra.mxu0 %v4098
    %4673 = vmatprep.subr.bf16.mxu0 %v4091
    %4674 = vmatpush1.bf16.msra.mxu0 %v4090
    %4675 = vmatprep.subr.bf16.mxu0 %v4083
    %4676 = vmatpush1.bf16.msra.mxu0 %v4082
    %4677 = vmatprep.subr.bf16.mxu0 %v4075
    %4678 = vmatpush1.bf16.msra.mxu0 %v4074
    %4679 = vmatprep.subr.bf16.mxu0 %v4195
    %4680 = vmatpush2.bf16.msra.mxu0 %v4194
    %4681 = vmatprep.subr.bf16.mxu0 %v4187
    %4682 = vmatpush2.bf16.msra.mxu0 %v4186
    %4683 = vmatprep.subr.bf16.mxu0 %v4179
    %4684 = vmatpush2.bf16.msra.mxu0 %v4178
    %4685 = vmatprep.subr.bf16.mxu0 %v4171
    %4686 = vmatpush2.bf16.msra.mxu0 %v4170
    %4687 = vmatprep.subr.bf16.mxu0 %v4163
    %4688 = vmatpush2.bf16.msra.mxu0 %v4162
    %4689 = vmatprep.subr.bf16.mxu0 %v4155
    %4690 = vmatpush2.bf16.msra.mxu0 %v4154
    %4691 = vmatprep.subr.bf16.mxu0 %v4147
    %4692 = vmatpush2.bf16.msra.mxu0 %v4146
    %4693 = vmatprep.subr.bf16.mxu0 %v4139
    %4694 = vmatpush2.bf16.msra.mxu0 %v4138
    %4695 = vmatprep.mubr.bf16.mxu0 %v3653
    %4696 = vmatmul.mubr.bf16.gmra.mxu0 %v3652
    %v4697 = vpop.f32.mrf.mxu0
    %v4698 = vadd.f32 %v3591, %v4697
    %v4699 = vpop.f32.mrf.mxu0
    %v4700 = vadd.f32 %v3595, %v4699
    %v4701 = vpop.f32.mrf.mxu0
    %v4702 = vadd.f32 %v3591, %v4701
    %v4703 = vpop.f32.mrf.mxu0
    %v4704 = vadd.f32 %v3595, %v4703
    %4705 = vmatprep.mubr.bf16.mxu0 %v3655
    %4706 = vmatmul.mubr.bf16.gmra.mxu0 %v3654
    %v4707 = vpop.f32.mrf.mxu0
    %v4708 = vadd.f32 %v3591, %v4707
    %v4709 = vpop.f32.mrf.mxu0
    %v4710 = vadd.f32 %v3595, %v4709
    %v4711 = vpop.f32.mrf.mxu0
    %v4712 = vadd.f32 %v3591, %v4711
    %v4713 = vpop.f32.mrf.mxu0
    %v4714 = vadd.f32 %v3595, %v4713
    %4715 = vmatprep.mubr.bf16.mxu0 %v3657
    %4716 = vmatmul.mubr.bf16.gmra.mxu0 %v3656
    %v4717 = vpop.f32.mrf.mxu0
    %v4718 = vadd.f32 %v3591, %v4717
    %v4719 = vpop.f32.mrf.mxu0
    %v4720 = vadd.f32 %v3595, %v4719
    %v4721 = vpop.f32.mrf.mxu0
    %v4722 = vadd.f32 %v3591, %v4721
    %v4723 = vpop.f32.mrf.mxu0
    %v4724 = vadd.f32 %v3595, %v4723
    %4725 = vmatprep.mubr.bf16.mxu0 %v3659
    %4726 = vmatmul.mubr.bf16.gmra.mxu0 %v3658
    %v4727 = vpop.f32.mrf.mxu0
    %v4728 = vadd.f32 %v3591, %v4727
    %v4729 = vpop.f32.mrf.mxu0
    %v4730 = vadd.f32 %v3595, %v4729
    %v4731 = vpop.f32.mrf.mxu0
    %v4732 = vadd.f32 %v3591, %v4731
    %v4733 = vpop.f32.mrf.mxu0
    %v4734 = vadd.f32 %v3595, %v4733
    %4735 = vmatprep.mubr.bf16.mxu0 %v3661
    %4736 = vmatmul.mubr.bf16.gmra.mxu0 %v3660
    %v4737 = vpop.f32.mrf.mxu0
    %v4738 = vadd.f32 %v3591, %v4737
    %v4739 = vpop.f32.mrf.mxu0
    %v4740 = vadd.f32 %v3595, %v4739
    %v4741 = vpop.f32.mrf.mxu0
    %v4742 = vadd.f32 %v3591, %v4741
    %v4743 = vpop.f32.mrf.mxu0
    %v4744 = vadd.f32 %v3595, %v4743
    %4745 = vmatprep.mubr.bf16.mxu0 %v3663
    %4746 = vmatmul.mubr.bf16.gmra.mxu0 %v3662
    %v4747 = vpop.f32.mrf.mxu0
    %v4748 = vadd.f32 %v3591, %v4747
    %v4749 = vpop.f32.mrf.mxu0
    %v4750 = vadd.f32 %v3595, %v4749
    %v4751 = vpop.f32.mrf.mxu0
    %v4752 = vadd.f32 %v3591, %v4751
    %v4753 = vpop.f32.mrf.mxu0
    %v4754 = vadd.f32 %v3595, %v4753
    %4755 = vmatprep.mubr.bf16.mxu0 %v3665
    %4756 = vmatmul.mubr.bf16.gmra.mxu0 %v3664
    %v4757 = vpop.f32.mrf.mxu0
    %v4758 = vadd.f32 %v3591, %v4757
    %v4759 = vpop.f32.mrf.mxu0
    %v4760 = vadd.f32 %v3595, %v4759
    %v4761 = vpop.f32.mrf.mxu0
    %v4762 = vadd.f32 %v3591, %v4761
    %v4763 = vpop.f32.mrf.mxu0
    %v4764 = vadd.f32 %v3595, %v4763
    %4765 = vmatprep.mubr.bf16.mxu0 %v3667
    %4766 = vmatmul.mubr.bf16.gmra.mxu0 %v3666
    %v4767 = vpop.f32.mrf.mxu0
    %v4768 = vadd.f32 %v3591, %v4767
    %v4769 = vpop.f32.mrf.mxu0
    %v4770 = vadd.f32 %v3595, %v4769
    %v4771 = vpop.f32.mrf.mxu0
    %v4772 = vadd.f32 %v3591, %v4771
    %v4773 = vpop.f32.mrf.mxu0
    %v4774 = vadd.f32 %v3595, %v4773
    %4775 = vdwg.mxu0
    %v4776 = vpack.c.bf16 %v4363, %v4359
    %v4777 = vpack.c.bf16 %v4365, %v4361
    %v4778 = vpack.c.bf16 %v4476, %v4472
    %v4779 = vpack.c.bf16 %v4478, %v4474
    %v4780 = vpack.c.bf16 %v4589, %v4585
    %v4781 = vpack.c.bf16 %v4591, %v4587
    %v4782 = vpack.c.bf16 %v4702, %v4698
    %v4783 = vpack.c.bf16 %v4704, %v4700
    %v4784 = vpack.c.bf16 %v4373, %v4369
    %v4785 = vpack.c.bf16 %v4375, %v4371
    %v4786 = vpack.c.bf16 %v4486, %v4482
    %v4787 = vpack.c.bf16 %v4488, %v4484
    %v4788 = vpack.c.bf16 %v4599, %v4595
    %v4789 = vpack.c.bf16 %v4601, %v4597
    %v4790 = vpack.c.bf16 %v4712, %v4708
    %v4791 = vpack.c.bf16 %v4714, %v4710
    %v4792 = vpack.c.bf16 %v4383, %v4379
    %v4793 = vpack.c.bf16 %v4385, %v4381
    %v4794 = vpack.c.bf16 %v4496, %v4492
    %v4795 = vpack.c.bf16 %v4498, %v4494
    %v4796 = vpack.c.bf16 %v4609, %v4605
    %v4797 = vpack.c.bf16 %v4611, %v4607
    %v4798 = vpack.c.bf16 %v4722, %v4718
    %v4799 = vpack.c.bf16 %v4724, %v4720
    %v4800 = vpack.c.bf16 %v4393, %v4389
    %v4801 = vpack.c.bf16 %v4395, %v4391
    %v4802 = vpack.c.bf16 %v4506, %v4502
    %v4803 = vpack.c.bf16 %v4508, %v4504
    %v4804 = vpack.c.bf16 %v4619, %v4615
    %v4805 = vpack.c.bf16 %v4621, %v4617
    %v4806 = vpack.c.bf16 %v4732, %v4728
    %v4807 = vpack.c.bf16 %v4734, %v4730
    %v4808 = vpack.c.bf16 %v4403, %v4399
    %v4809 = vpack.c.bf16 %v4405, %v4401
    %v4810 = vpack.c.bf16 %v4516, %v4512
    %v4811 = vpack.c.bf16 %v4518, %v4514
    %v4812 = vpack.c.bf16 %v4629, %v4625
    %v4813 = vpack.c.bf16 %v4631, %v4627
    %v4814 = vpack.c.bf16 %v4742, %v4738
    %v4815 = vpack.c.bf16 %v4744, %v4740
    %v4816 = vpack.c.bf16 %v4413, %v4409
    %v4817 = vpack.c.bf16 %v4415, %v4411
    %v4818 = vpack.c.bf16 %v4526, %v4522
    %v4819 = vpack.c.bf16 %v4528, %v4524
    %v4820 = vpack.c.bf16 %v4639, %v4635
    %v4821 = vpack.c.bf16 %v4641, %v4637
    %v4822 = vpack.c.bf16 %v4752, %v4748
    %v4823 = vpack.c.bf16 %v4754, %v4750
    %v4824 = vpack.c.bf16 %v4423, %v4419
    %v4825 = vpack.c.bf16 %v4425, %v4421
    %v4826 = vpack.c.bf16 %v4536, %v4532
    %v4827 = vpack.c.bf16 %v4538, %v4534
    %v4828 = vpack.c.bf16 %v4649, %v4645
    %v4829 = vpack.c.bf16 %v4651, %v4647
    %v4830 = vpack.c.bf16 %v4762, %v4758
    %v4831 = vpack.c.bf16 %v4764, %v4760
    %v4832 = vpack.c.bf16 %v4433, %v4429
    %v4833 = vpack.c.bf16 %v4435, %v4431
    %v4834 = vpack.c.bf16 %v4546, %v4542
    %v4835 = vpack.c.bf16 %v4548, %v4544
    %v4836 = vpack.c.bf16 %v4659, %v4655
    %v4837 = vpack.c.bf16 %v4661, %v4657
    %v4838 = vpack.c.bf16 %v4772, %v4768
    %v4839 = vpack.c.bf16 %v4774, %v4770
    %v4904 = vunpack.c.l.b16 %v3498
    %v4905 = vunpack.c.h.b16 %v3498
    %v4906 = vunpack.c.l.b16 %v3499
    %v4907 = vunpack.c.h.b16 %v3499
    %v4908 = vunpack.c.l.b16 %v3500
    %v4909 = vunpack.c.h.b16 %v3500
    %v4910 = vunpack.c.l.b16 %v3501
    %v4911 = vunpack.c.h.b16 %v3501
    %v4912 = vunpack.c.l.b16 %v3502
    %v4913 = vunpack.c.h.b16 %v3502
    %v4914 = vunpack.c.l.b16 %v3503
    %v4915 = vunpack.c.h.b16 %v3503
    %v4916 = vunpack.c.l.b16 %v3504
    %v4917 = vunpack.c.h.b16 %v3504
    %v4918 = vunpack.c.l.b16 %v3505
    %v4919 = vunpack.c.h.b16 %v3505
    %v4920 = vunpack.c.l.b16 %v3506
    %v4921 = vunpack.c.h.b16 %v3506
    %v4922 = vunpack.c.l.b16 %v3507
    %v4923 = vunpack.c.h.b16 %v3507
    %v4924 = vunpack.c.l.b16 %v3508
    %v4925 = vunpack.c.h.b16 %v3508
    %v4926 = vunpack.c.l.b16 %v3509
    %v4927 = vunpack.c.h.b16 %v3509
    %v4928 = vunpack.c.l.b16 %v3510
    %v4929 = vunpack.c.h.b16 %v3510
    %v4930 = vunpack.c.l.b16 %v3511
    %v4931 = vunpack.c.h.b16 %v3511
    %v4932 = vunpack.c.l.b16 %v3512
    %v4933 = vunpack.c.h.b16 %v3512
    %v4934 = vunpack.c.l.b16 %v3513
    %v4935 = vunpack.c.h.b16 %v3513
    %v4936 = vunpack.c.l.b16 %v3514
    %v4937 = vunpack.c.h.b16 %v3514
    %v4938 = vunpack.c.l.b16 %v3515
    %v4939 = vunpack.c.h.b16 %v3515
    %v4940 = vunpack.c.l.b16 %v3516
    %v4941 = vunpack.c.h.b16 %v3516
    %v4942 = vunpack.c.l.b16 %v3517
    %v4943 = vunpack.c.h.b16 %v3517
    %v4944 = vunpack.c.l.b16 %v3518
    %v4945 = vunpack.c.h.b16 %v3518
    %v4946 = vunpack.c.l.b16 %v3519
    %v4947 = vunpack.c.h.b16 %v3519
    %v4948 = vunpack.c.l.b16 %v3520
    %v4949 = vunpack.c.h.b16 %v3520
    %v4950 = vunpack.c.l.b16 %v3521
    %v4951 = vunpack.c.h.b16 %v3521
    %v4952 = vunpack.c.l.b16 %v3522
    %v4953 = vunpack.c.h.b16 %v3522
    %v4954 = vunpack.c.l.b16 %v3523
    %v4955 = vunpack.c.h.b16 %v3523
    %v4956 = vunpack.c.l.b16 %v3524
    %v4957 = vunpack.c.h.b16 %v3524
    %v4958 = vunpack.c.l.b16 %v3525
    %v4959 = vunpack.c.h.b16 %v3525
    %v4960 = vunpack.c.l.b16 %v3526
    %v4961 = vunpack.c.h.b16 %v3526
    %v4962 = vunpack.c.l.b16 %v3527
    %v4963 = vunpack.c.h.b16 %v3527
    %v4964 = vunpack.c.l.b16 %v3528
    %v4965 = vunpack.c.h.b16 %v3528
    %v4966 = vunpack.c.l.b16 %v3529
    %v4967 = vunpack.c.h.b16 %v3529
    %v4968 = vunpack.c.l.b16 %v3530
    %v4969 = vunpack.c.h.b16 %v3530
    %v4970 = vunpack.c.l.b16 %v3531
    %v4971 = vunpack.c.h.b16 %v3531
    %v4972 = vunpack.c.l.b16 %v3532
    %v4973 = vunpack.c.h.b16 %v3532
    %v4974 = vunpack.c.l.b16 %v3533
    %v4975 = vunpack.c.h.b16 %v3533
    %v4976 = vunpack.c.l.b16 %v3534
    %v4977 = vunpack.c.h.b16 %v3534
    %v4978 = vunpack.c.l.b16 %v3535
    %v4979 = vunpack.c.h.b16 %v3535
    %v4980 = vunpack.c.l.b16 %v3536
    %v4981 = vunpack.c.h.b16 %v3536
    %v4982 = vunpack.c.l.b16 %v3537
    %v4983 = vunpack.c.h.b16 %v3537
    %v4984 = vunpack.c.l.b16 %v3538
    %v4985 = vunpack.c.h.b16 %v3538
    %v4986 = vunpack.c.l.b16 %v3539
    %v4987 = vunpack.c.h.b16 %v3539
    %v4988 = vunpack.c.l.b16 %v3540
    %v4989 = vunpack.c.h.b16 %v3540
    %v4990 = vunpack.c.l.b16 %v3541
    %v4991 = vunpack.c.h.b16 %v3541
    %v4992 = vunpack.c.l.b16 %v3542
    %v4993 = vunpack.c.h.b16 %v3542
    %v4994 = vunpack.c.l.b16 %v3543
    %v4995 = vunpack.c.h.b16 %v3543
    %v4996 = vunpack.c.l.b16 %v3544
    %v4997 = vunpack.c.h.b16 %v3544
    %v4998 = vunpack.c.l.b16 %v3545
    %v4999 = vunpack.c.h.b16 %v3545
    %v5000 = vunpack.c.l.b16 %v3546
    %v5001 = vunpack.c.h.b16 %v3546
    %v5002 = vunpack.c.l.b16 %v3547
    %v5003 = vunpack.c.h.b16 %v3547
    %v5004 = vunpack.c.l.b16 %v3548
    %v5005 = vunpack.c.h.b16 %v3548
    %v5006 = vunpack.c.l.b16 %v3549
    %v5007 = vunpack.c.h.b16 %v3549
    %v5008 = vunpack.c.l.b16 %v3550
    %v5009 = vunpack.c.h.b16 %v3550
    %v5010 = vunpack.c.l.b16 %v3551
    %v5011 = vunpack.c.h.b16 %v3551
    %v5012 = vunpack.c.l.b16 %v3552
    %v5013 = vunpack.c.h.b16 %v3552
    %v5014 = vunpack.c.l.b16 %v3553
    %v5015 = vunpack.c.h.b16 %v3553
    %v5016 = vunpack.c.l.b16 %v3554
    %v5017 = vunpack.c.h.b16 %v3554
    %v5018 = vunpack.c.l.b16 %v3555
    %v5019 = vunpack.c.h.b16 %v3555
    %v5020 = vunpack.c.l.b16 %v3556
    %v5021 = vunpack.c.h.b16 %v3556
    %v5022 = vunpack.c.l.b16 %v3557
    %v5023 = vunpack.c.h.b16 %v3557
    %v5024 = vunpack.c.l.b16 %v3558
    %v5025 = vunpack.c.h.b16 %v3558
    %v5026 = vunpack.c.l.b16 %v3559
    %v5027 = vunpack.c.h.b16 %v3559
    %v5028 = vunpack.c.l.b16 %v3560
    %v5029 = vunpack.c.h.b16 %v3560
    %v5030 = vunpack.c.l.b16 %v3561
    %v5031 = vunpack.c.h.b16 %v3561
    %v5032 = vpack.c.b16 %v4908, %v4904
    %v5033 = vpack.c.b16 %v4909, %v4905
    %v5034 = vpack.c.b16 %v4910, %v4906
    %v5035 = vpack.c.b16 %v4911, %v4907
    %v5036 = vpack.c.b16 %v4916, %v4912
    %v5037 = vpack.c.b16 %v4917, %v4913
    %v5038 = vpack.c.b16 %v4918, %v4914
    %v5039 = vpack.c.b16 %v4919, %v4915
    %v5040 = vpack.c.b16 %v4924, %v4920
    %v5041 = vpack.c.b16 %v4925, %v4921
    %v5042 = vpack.c.b16 %v4926, %v4922
    %v5043 = vpack.c.b16 %v4927, %v4923
    %v5044 = vpack.c.b16 %v4932, %v4928
    %v5045 = vpack.c.b16 %v4933, %v4929
    %v5046 = vpack.c.b16 %v4934, %v4930
    %v5047 = vpack.c.b16 %v4935, %v4931
    %v5048 = vpack.c.b16 %v4940, %v4936
    %v5049 = vpack.c.b16 %v4941, %v4937
    %v5050 = vpack.c.b16 %v4942, %v4938
    %v5051 = vpack.c.b16 %v4943, %v4939
    %v5052 = vpack.c.b16 %v4948, %v4944
    %v5053 = vpack.c.b16 %v4949, %v4945
    %v5054 = vpack.c.b16 %v4950, %v4946
    %v5055 = vpack.c.b16 %v4951, %v4947
    %v5056 = vpack.c.b16 %v4956, %v4952
    %v5057 = vpack.c.b16 %v4957, %v4953
    %v5058 = vpack.c.b16 %v4958, %v4954
    %v5059 = vpack.c.b16 %v4959, %v4955
    %v5060 = vpack.c.b16 %v4964, %v4960
    %v5061 = vpack.c.b16 %v4965, %v4961
    %v5062 = vpack.c.b16 %v4966, %v4962
    %v5063 = vpack.c.b16 %v4967, %v4963
    %v5064 = vpack.c.b16 %v4972, %v4968
    %v5065 = vpack.c.b16 %v4973, %v4969
    %v5066 = vpack.c.b16 %v4974, %v4970
    %v5067 = vpack.c.b16 %v4975, %v4971
    %v5068 = vpack.c.b16 %v4980, %v4976
    %v5069 = vpack.c.b16 %v4981, %v4977
    %v5070 = vpack.c.b16 %v4982, %v4978
    %v5071 = vpack.c.b16 %v4983, %v4979
    %v5072 = vpack.c.b16 %v4988, %v4984
    %v5073 = vpack.c.b16 %v4989, %v4985
    %v5074 = vpack.c.b16 %v4990, %v4986
    %v5075 = vpack.c.b16 %v4991, %v4987
    %v5076 = vpack.c.b16 %v4996, %v4992
    %v5077 = vpack.c.b16 %v4997, %v4993
    %v5078 = vpack.c.b16 %v4998, %v4994
    %v5079 = vpack.c.b16 %v4999, %v4995
    %v5080 = vpack.c.b16 %v5004, %v5000
    %v5081 = vpack.c.b16 %v5005, %v5001
    %v5082 = vpack.c.b16 %v5006, %v5002
    %v5083 = vpack.c.b16 %v5007, %v5003
    %v5084 = vpack.c.b16 %v5012, %v5008
    %v5085 = vpack.c.b16 %v5013, %v5009
    %v5086 = vpack.c.b16 %v5014, %v5010
    %v5087 = vpack.c.b16 %v5015, %v5011
    %v5088 = vpack.c.b16 %v5020, %v5016
    %v5089 = vpack.c.b16 %v5021, %v5017
    %v5090 = vpack.c.b16 %v5022, %v5018
    %v5091 = vpack.c.b16 %v5023, %v5019
    %v5092 = vpack.c.b16 %v5028, %v5024
    %v5093 = vpack.c.b16 %v5029, %v5025
    %v5094 = vpack.c.b16 %v5030, %v5026
    %v5095 = vpack.c.b16 %v5031, %v5027
    %5160 = vmatprep.subr.bf16.mxu0 %v5061
    %5161 = vmatpush1.bf16.msra.mxu0 %v5060
    %5162 = vmatprep.subr.bf16.mxu0 %v5057
    %5163 = vmatpush1.bf16.msra.mxu0 %v5056
    %5164 = vmatprep.subr.bf16.mxu0 %v5053
    %5165 = vmatpush1.bf16.msra.mxu0 %v5052
    %5166 = vmatprep.subr.bf16.mxu0 %v5049
    %5167 = vmatpush1.bf16.msra.mxu0 %v5048
    %5168 = vmatprep.subr.bf16.mxu0 %v5045
    %5169 = vmatpush1.bf16.msra.mxu0 %v5044
    %5170 = vmatprep.subr.bf16.mxu0 %v5041
    %5171 = vmatpush1.bf16.msra.mxu0 %v5040
    %5172 = vmatprep.subr.bf16.mxu0 %v5037
    %5173 = vmatpush1.bf16.msra.mxu0 %v5036
    %5174 = vmatprep.subr.bf16.mxu0 %v5033
    %5175 = vmatpush1.bf16.msra.mxu0 %v5032
    %5176 = vmatprep.subr.bf16.mxu0 %v5093
    %5177 = vmatpush2.bf16.msra.mxu0 %v5092
    %5178 = vmatprep.subr.bf16.mxu0 %v5089
    %5179 = vmatpush2.bf16.msra.mxu0 %v5088
    %5180 = vmatprep.subr.bf16.mxu0 %v5085
    %5181 = vmatpush2.bf16.msra.mxu0 %v5084
    %5182 = vmatprep.subr.bf16.mxu0 %v5081
    %5183 = vmatpush2.bf16.msra.mxu0 %v5080
    %5184 = vmatprep.subr.bf16.mxu0 %v5077
    %5185 = vmatpush2.bf16.msra.mxu0 %v5076
    %5186 = vmatprep.subr.bf16.mxu0 %v5073
    %5187 = vmatpush2.bf16.msra.mxu0 %v5072
    %5188 = vmatprep.subr.bf16.mxu0 %v5069
    %5189 = vmatpush2.bf16.msra.mxu0 %v5068
    %5190 = vmatprep.subr.bf16.mxu0 %v5065
    %5191 = vmatpush2.bf16.msra.mxu0 %v5064
    %5192 = vmatprep.mubr.bf16.mxu0 0
    %5193 = vmatmul.mubr.bf16.gmra.mxu0 0
    %v5194 = vpop.f32.mrf.mxu0
    %v5195 = vadd.f32 0.0, %v5194
    %v5196 = vpop.f32.mrf.mxu0
    %v5197 = vadd.f32 0.0, %v5196
    %v5198 = vpop.f32.mrf.mxu0
    %v5199 = vadd.f32 0.0, %v5198
    %v5200 = vpop.f32.mrf.mxu0
    %v5201 = vadd.f32 0.0, %v5200
    %5202 = vmatprep.mubr.bf16.mxu0 0
    %5203 = vmatmul.mubr.bf16.gmra.mxu0 0
    %v5204 = vpop.f32.mrf.mxu0
    %v5205 = vadd.f32 0.0, %v5204
    %v5206 = vpop.f32.mrf.mxu0
    %v5207 = vadd.f32 0.0, %v5206
    %v5208 = vpop.f32.mrf.mxu0
    %v5209 = vadd.f32 0.0, %v5208
    %v5210 = vpop.f32.mrf.mxu0
    %v5211 = vadd.f32 0.0, %v5210
    %5212 = vdwg.mxu0
    %5213 = vmatprep.subr.bf16.mxu0 %v5063
    %5214 = vmatpush1.bf16.msra.mxu0 %v5062
    %5215 = vmatprep.subr.bf16.mxu0 %v5059
    %5216 = vmatpush1.bf16.msra.mxu0 %v5058
    %5217 = vmatprep.subr.bf16.mxu0 %v5055
    %5218 = vmatpush1.bf16.msra.mxu0 %v5054
    %5219 = vmatprep.subr.bf16.mxu0 %v5051
    %5220 = vmatpush1.bf16.msra.mxu0 %v5050
    %5221 = vmatprep.subr.bf16.mxu0 %v5047
    %5222 = vmatpush1.bf16.msra.mxu0 %v5046
    %5223 = vmatprep.subr.bf16.mxu0 %v5043
    %5224 = vmatpush1.bf16.msra.mxu0 %v5042
    %5225 = vmatprep.subr.bf16.mxu0 %v5039
    %5226 = vmatpush1.bf16.msra.mxu0 %v5038
    %5227 = vmatprep.subr.bf16.mxu0 %v5035
    %5228 = vmatpush1.bf16.msra.mxu0 %v5034
    %5229 = vmatprep.subr.bf16.mxu0 %v5095
    %5230 = vmatpush2.bf16.msra.mxu0 %v5094
    %5231 = vmatprep.subr.bf16.mxu0 %v5091
    %5232 = vmatpush2.bf16.msra.mxu0 %v5090
    %5233 = vmatprep.subr.bf16.mxu0 %v5087
    %5234 = vmatpush2.bf16.msra.mxu0 %v5086
    %5235 = vmatprep.subr.bf16.mxu0 %v5083
    %5236 = vmatpush2.bf16.msra.mxu0 %v5082
    %5237 = vmatprep.subr.bf16.mxu0 %v5079
    %5238 = vmatpush2.bf16.msra.mxu0 %v5078
    %5239 = vmatprep.subr.bf16.mxu0 %v5075
    %5240 = vmatpush2.bf16.msra.mxu0 %v5074
    %5241 = vmatprep.subr.bf16.mxu0 %v5071
    %5242 = vmatpush2.bf16.msra.mxu0 %v5070
    %5243 = vmatprep.subr.bf16.mxu0 %v5067
    %5244 = vmatpush2.bf16.msra.mxu0 %v5066
    %5245 = vmatprep.mubr.bf16.mxu0 0
    %5246 = vmatmul.mubr.bf16.gmra.mxu0 0
    %v5247 = vpop.f32.mrf.mxu0
    %v5248 = vadd.f32 0.0, %v5247
    %v5249 = vpop.f32.mrf.mxu0
    %v5250 = vadd.f32 0.0, %v5249
    %v5251 = vpop.f32.mrf.mxu0
    %v5252 = vadd.f32 0.0, %v5251
    %v5253 = vpop.f32.mrf.mxu0
    %v5254 = vadd.f32 0.0, %v5253
    %5255 = vmatprep.mubr.bf16.mxu0 0
    %5256 = vmatmul.mubr.bf16.gmra.mxu0 0
    %v5257 = vpop.f32.mrf.mxu0
    %v5258 = vadd.f32 0.0, %v5257
    %v5259 = vpop.f32.mrf.mxu0
    %v5260 = vadd.f32 0.0, %v5259
    %v5261 = vpop.f32.mrf.mxu0
    %v5262 = vadd.f32 0.0, %v5261
    %v5263 = vpop.f32.mrf.mxu0
    %v5264 = vadd.f32 0.0, %v5263
    %5265 = vdwg.mxu0
    %v5266 = vunpack.c.l.bf16 %v4776
    %v5267 = vunpack.c.l.bf16 %v4777
    %v5268 = vunpack.c.l.bf16 %v4778
    %v5269 = vunpack.c.l.bf16 %v4779
    %v5270 = vunpack.c.h.bf16 %v4776
    %v5271 = vunpack.c.h.bf16 %v4777
    %v5272 = vunpack.c.h.bf16 %v4778
    %v5273 = vunpack.c.h.bf16 %v4779
    %v5274 = vadd.f32 %v5266, %v5195
    %v5275 = vadd.f32 %v5267, %v5197
    %v5276 = vadd.f32 %v5268, %v5248
    %v5277 = vadd.f32 %v5269, %v5250
    %v5278 = vadd.f32 %v5270, %v5199
    %v5279 = vadd.f32 %v5271, %v5201
    %v5280 = vadd.f32 %v5272, %v5252
    %v5281 = vadd.f32 %v5273, %v5254
    %v5282 = vunpack.c.l.bf16 %v4836
    %v5283 = vunpack.c.l.bf16 %v4837
    %v5284 = vunpack.c.l.bf16 %v4838
    %v5285 = vunpack.c.l.bf16 %v4839
    %v5286 = vunpack.c.h.bf16 %v4836
    %v5287 = vunpack.c.h.bf16 %v4837
    %v5288 = vunpack.c.h.bf16 %v4838
    %v5289 = vunpack.c.h.bf16 %v4839
    %v5290 = vadd.f32 %v5282, %v5205
    %v5291 = vadd.f32 %v5283, %v5207
    %v5292 = vadd.f32 %v5284, %v5258
    %v5293 = vadd.f32 %v5285, %v5260
    %v5294 = vadd.f32 %v5286, %v5209
    %v5295 = vadd.f32 %v5287, %v5211
    %v5296 = vadd.f32 %v5288, %v5262
    %v5297 = vadd.f32 %v5289, %v5264
    %v5298 = vmul.f32 %v5274, 0.5
    %v5299 = vmul.f32 %v5278, 0.5
    %v5300 = vtanh.pop %v5298
    %v5301 = vtanh.pop %v5299
    %v5302 = vmul.f32 %v5300, 0.5
    %v5303 = vmul.f32 %v5301, 0.5
    %v5304 = vadd.f32 %v5302, 0.5
    %v5305 = vadd.f32 %v5303, 0.5
    %v5306 = vmul.f32 %v5275, 0.5
    %v5307 = vmul.f32 %v5279, 0.5
    %v5308 = vtanh.pop %v5306
    %v5309 = vtanh.pop %v5307
    %v5310 = vmul.f32 %v5308, 0.5
    %v5311 = vmul.f32 %v5309, 0.5
    %v5312 = vadd.f32 %v5310, 0.5
    %v5313 = vadd.f32 %v5311, 0.5
    %v5314 = vtanh.pop %v5276
    %v5315 = vtanh.pop %v5280
    %v5316 = vmul.f32 %v5277, 0.5
    %v5317 = vmul.f32 %v5281, 0.5
    %v5318 = vtanh.pop %v5316
    %v5319 = vtanh.pop %v5317
    %v5320 = vmul.f32 %v5318, 0.5
    %v5321 = vmul.f32 %v5319, 0.5
    %v5322 = vadd.f32 %v5320, 0.5
    %v5323 = vadd.f32 %v5321, 0.5
    %v5324 = vmul.f32 %v5312, 0.0
    %v5325 = vmul.f32 %v5313, 0.0
    %v5326 = vmul.f32 %v5304, %v5314
    %v5327 = vmul.f32 %v5305, %v5315
    %v5328 = vadd.f32 %v5324, %v5326
    %v5329 = vadd.f32 %v5325, %v5327
    %v5330 = vtanh.pop %v5328
    %v5331 = vtanh.pop %v5329
    %v5332 = vmul.f32 %v5322, %v5330
    %v5333 = vmul.f32 %v5323, %v5331
    %v5334 = vpack.c.bf16 %v5333, %v5332
    %v5335 = vmul.f32 %v5290, 0.5
    %v5336 = vmul.f32 %v5294, 0.5
    %v5337 = vtanh.pop %v5335
    %v5338 = vtanh.pop %v5336
    %v5339 = vmul.f32 %v5337, 0.5
    %v5340 = vmul.f32 %v5338, 0.5
    %v5341 = vadd.f32 %v5339, 0.5
    %v5342 = vadd.f32 %v5340, 0.5
    %v5343 = vmul.f32 %v5291, 0.5
    %v5344 = vmul.f32 %v5295, 0.5
    %v5345 = vtanh.pop %v5343
    %v5346 = vtanh.pop %v5344
    %v5347 = vmul.f32 %v5345, 0.5
    %v5348 = vmul.f32 %v5346, 0.5
    %v5349 = vadd.f32 %v5347, 0.5
    %v5350 = vadd.f32 %v5348, 0.5
    %v5351 = vtanh.pop %v5292
    %v5352 = vtanh.pop %v5296
    %v5353 = vmul.f32 %v5293, 0.5
    %v5354 = vmul.f32 %v5297, 0.5
    %v5355 = vtanh.pop %v5353
    %v5356 = vtanh.pop %v5354
    %v5357 = vmul.f32 %v5355, 0.5
    %v5358 = vmul.f32 %v5356, 0.5
    %v5359 = vadd.f32 %v5357, 0.5
    %v5360 = vadd.f32 %v5358, 0.5
    %v5361 = vmul.f32 %v5349, 0.0
    %v5362 = vmul.f32 %v5350, 0.0
    %v5363 = vmul.f32 %v5341, %v5351
    %v5364 = vmul.f32 %v5342, %v5352
    %v5365 = vadd.f32 %v5361, %v5363
    %v5366 = vadd.f32 %v5362, %v5364
    %v5367 = vtanh.pop %v5365
    %v5368 = vtanh.pop %v5366
    %v5369 = vmul.f32 %v5359, %v5367
    %v5370 = vmul.f32 %v5360, %v5368
    %v5371 = vpack.c.bf16 %v5370, %v5369
    %v5373 = vunpack.c.l.b16 %v5334
    %v5374 = vunpack.c.h.b16 %v5334
    %v5375 = vpack.c.b16 %v5373, %v5373
    %v5376 = vpack.c.b16 %v5374, %v5374
    %5379 = vst [vmem:[#allocation2] sm:$0xf] %v5375
    %5380 = vst [vmem:[#allocation2 + $0x8] sm:$0xf] %v5376
    %v5382 = vunpack.c.l.b16 %v5371
    %v5383 = vunpack.c.h.b16 %v5371
    %v5384 = vpack.c.b16 %v5382, %v5382
    %v5385 = vpack.c.b16 %v5383, %v5383
    %5388 = vst [vmem:[%s1730 + $0x4] sm:$0xf] %v5384
    %5389 = vst [vmem:[%s1730 + $0xc] sm:$0xf] %v5385
    %5390 = vmatprep.subr.bf16.mxu0 %v5061
    %5391 = vmatpush1.bf16.msra.mxu0 %v5060
    %5392 = vmatprep.subr.bf16.mxu0 %v5057
    %5393 = vmatpush1.bf16.msra.mxu0 %v5056
    %5394 = vmatprep.subr.bf16.mxu0 %v5053
    %5395 = vmatpush1.bf16.msra.mxu0 %v5052
    %5396 = vmatprep.subr.bf16.mxu0 %v5049
    %5397 = vmatpush1.bf16.msra.mxu0 %v5048
    %5398 = vmatprep.subr.bf16.mxu0 %v5045
    %5399 = vmatpush1.bf16.msra.mxu0 %v5044
    %5400 = vmatprep.subr.bf16.mxu0 %v5041
    %5401 = vmatpush1.bf16.msra.mxu0 %v5040
    %5402 = vmatprep.subr.bf16.mxu0 %v5037
    %5403 = vmatpush1.bf16.msra.mxu0 %v5036
    %5404 = vmatprep.subr.bf16.mxu0 %v5033
    %5405 = vmatpush1.bf16.msra.mxu0 %v5032
    %5406 = vmatprep.subr.bf16.mxu0 %v5093
    %5407 = vmatpush2.bf16.msra.mxu0 %v5092
    %5408 = vmatprep.subr.bf16.mxu0 %v5089
    %5409 = vmatpush2.bf16.msra.mxu0 %v5088
    %5410 = vmatprep.subr.bf16.mxu0 %v5085
    %5411 = vmatpush2.bf16.msra.mxu0 %v5084
    %5412 = vmatprep.subr.bf16.mxu0 %v5081
    %5413 = vmatpush2.bf16.msra.mxu0 %v5080
    %5414 = vmatprep.subr.bf16.mxu0 %v5077
    %5415 = vmatpush2.bf16.msra.mxu0 %v5076
    %5416 = vmatprep.subr.bf16.mxu0 %v5073
    %5417 = vmatpush2.bf16.msra.mxu0 %v5072
    %5418 = vmatprep.subr.bf16.mxu0 %v5069
    %5419 = vmatpush2.bf16.msra.mxu0 %v5068
    %5420 = vmatprep.subr.bf16.mxu0 %v5065
    %5421 = vmatpush2.bf16.msra.mxu0 %v5064
    %5422 = vmatprep.mubr.bf16.mxu0 0
    %5423 = vmatmul.mubr.bf16.gmra.mxu0 %v5334
    %v5424 = vpop.f32.mrf.mxu0
    %v5425 = vadd.f32 0.0, %v5424
    %v5426 = vpop.f32.mrf.mxu0
    %v5427 = vadd.f32 0.0, %v5426
    %v5428 = vpop.f32.mrf.mxu0
    %v5429 = vadd.f32 0.0, %v5428
    %v5430 = vpop.f32.mrf.mxu0
    %v5431 = vadd.f32 0.0, %v5430
    %5432 = vmatprep.mubr.bf16.mxu0 %v5371
    %5433 = vmatmul.mubr.bf16.gmra.mxu0 0
    %v5434 = vpop.f32.mrf.mxu0
    %v5435 = vadd.f32 0.0, %v5434
    %v5436 = vpop.f32.mrf.mxu0
    %v5437 = vadd.f32 0.0, %v5436
    %v5438 = vpop.f32.mrf.mxu0
    %v5439 = vadd.f32 0.0, %v5438
    %v5440 = vpop.f32.mrf.mxu0
    %v5441 = vadd.f32 0.0, %v5440
    %5442 = vdwg.mxu0
    %5443 = vmatprep.subr.bf16.mxu0 %v5063
    %5444 = vmatpush1.bf16.msra.mxu0 %v5062
    %5445 = vmatprep.subr.bf16.mxu0 %v5059
    %5446 = vmatpush1.bf16.msra.mxu0 %v5058
    %5447 = vmatprep.subr.bf16.mxu0 %v5055
    %5448 = vmatpush1.bf16.msra.mxu0 %v5054
    %5449 = vmatprep.subr.bf16.mxu0 %v5051
    %5450 = vmatpush1.bf16.msra.mxu0 %v5050
    %5451 = vmatprep.subr.bf16.mxu0 %v5047
    %5452 = vmatpush1.bf16.msra.mxu0 %v5046
    %5453 = vmatprep.subr.bf16.mxu0 %v5043
    %5454 = vmatpush1.bf16.msra.mxu0 %v5042
    %5455 = vmatprep.subr.bf16.mxu0 %v5039
    %5456 = vmatpush1.bf16.msra.mxu0 %v5038
    %5457 = vmatprep.subr.bf16.mxu0 %v5035
    %5458 = vmatpush1.bf16.msra.mxu0 %v5034
    %5459 = vmatprep.subr.bf16.mxu0 %v5095
    %5460 = vmatpush2.bf16.msra.mxu0 %v5094
    %5461 = vmatprep.subr.bf16.mxu0 %v5091
    %5462 = vmatpush2.bf16.msra.mxu0 %v5090
    %5463 = vmatprep.subr.bf16.mxu0 %v5087
    %5464 = vmatpush2.bf16.msra.mxu0 %v5086
    %5465 = vmatprep.subr.bf16.mxu0 %v5083
    %5466 = vmatpush2.bf16.msra.mxu0 %v5082
    %5467 = vmatprep.subr.bf16.mxu0 %v5079
    %5468 = vmatpush2.bf16.msra.mxu0 %v5078
    %5469 = vmatprep.subr.bf16.mxu0 %v5075
    %5470 = vmatpush2.bf16.msra.mxu0 %v5074
    %5471 = vmatprep.subr.bf16.mxu0 %v5071
    %5472 = vmatpush2.bf16.msra.mxu0 %v5070
    %5473 = vmatprep.subr.bf16.mxu0 %v5067
    %5474 = vmatpush2.bf16.msra.mxu0 %v5066
    %5475 = vmatprep.mubr.bf16.mxu0 0
    %5476 = vmatmul.mubr.bf16.gmra.mxu0 %v5334
    %v5477 = vpop.f32.mrf.mxu0
    %v5478 = vadd.f32 0.0, %v5477
    %v5479 = vpop.f32.mrf.mxu0
    %v5480 = vadd.f32 0.0, %v5479
    %v5481 = vpop.f32.mrf.mxu0
    %v5482 = vadd.f32 0.0, %v5481
    %v5483 = vpop.f32.mrf.mxu0
    %v5484 = vadd.f32 0.0, %v5483
    %5485 = vmatprep.mubr.bf16.mxu0 %v5371
    %5486 = vmatmul.mubr.bf16.gmra.mxu0 0
    %v5487 = vpop.f32.mrf.mxu0
    %v5488 = vadd.f32 0.0, %v5487
    %v5489 = vpop.f32.mrf.mxu0
    %v5490 = vadd.f32 0.0, %v5489
    %v5491 = vpop.f32.mrf.mxu0
    %v5492 = vadd.f32 0.0, %v5491
    %v5493 = vpop.f32.mrf.mxu0
    %v5494 = vadd.f32 0.0, %v5493
    %5495 = vdwg.mxu0
    %v5496 = vunpack.c.l.bf16 %v4784
    %v5497 = vunpack.c.l.bf16 %v4785
    %v5498 = vunpack.c.l.bf16 %v4786
    %v5499 = vunpack.c.l.bf16 %v4787
    %v5500 = vunpack.c.h.bf16 %v4784
    %v5501 = vunpack.c.h.bf16 %v4785
    %v5502 = vunpack.c.h.bf16 %v4786
    %v5503 = vunpack.c.h.bf16 %v4787
    %v5504 = vadd.f32 %v5496, %v5425
    %v5505 = vadd.f32 %v5497, %v5427
    %v5506 = vadd.f32 %v5498, %v5478
    %v5507 = vadd.f32 %v5499, %v5480
    %v5508 = vadd.f32 %v5500, %v5429
    %v5509 = vadd.f32 %v5501, %v5431
    %v5510 = vadd.f32 %v5502, %v5482
    %v5511 = vadd.f32 %v5503, %v5484
    %v5512 = vunpack.c.l.bf16 %v4828
    %v5513 = vunpack.c.l.bf16 %v4829
    %v5514 = vunpack.c.l.bf16 %v4830
    %v5515 = vunpack.c.l.bf16 %v4831
    %v5516 = vunpack.c.h.bf16 %v4828
    %v5517 = vunpack.c.h.bf16 %v4829
    %v5518 = vunpack.c.h.bf16 %v4830
    %v5519 = vunpack.c.h.bf16 %v4831
    %v5520 = vadd.f32 %v5512, %v5435
    %v5521 = vadd.f32 %v5513, %v5437
    %v5522 = vadd.f32 %v5514, %v5488
    %v5523 = vadd.f32 %v5515, %v5490
    %v5524 = vadd.f32 %v5516, %v5439
    %v5525 = vadd.f32 %v5517, %v5441
    %v5526 = vadd.f32 %v5518, %v5492
    %v5527 = vadd.f32 %v5519, %v5494
    %v5528 = vmul.f32 %v5504, 0.5
    %v5529 = vmul.f32 %v5508, 0.5
    %v5530 = vtanh.pop %v5528
    %v5531 = vtanh.pop %v5529
    %v5532 = vmul.f32 %v5530, 0.5
    %v5533 = vmul.f32 %v5531, 0.5
    %v5534 = vadd.f32 %v5532, 0.5
    %v5535 = vadd.f32 %v5533, 0.5
    %v5536 = vmul.f32 %v5505, 0.5
    %v5537 = vmul.f32 %v5509, 0.5
    %v5538 = vtanh.pop %v5536
    %v5539 = vtanh.pop %v5537
    %v5540 = vmul.f32 %v5538, 0.5
    %v5541 = vmul.f32 %v5539, 0.5
    %v5542 = vadd.f32 %v5540, 0.5
    %v5543 = vadd.f32 %v5541, 0.5
    %v5544 = vtanh.pop %v5506
    %v5545 = vtanh.pop %v5510
    %v5546 = vmul.f32 %v5507, 0.5
    %v5547 = vmul.f32 %v5511, 0.5
    %v5548 = vtanh.pop %v5546
    %v5549 = vtanh.pop %v5547
    %v5550 = vmul.f32 %v5548, 0.5
    %v5551 = vmul.f32 %v5549, 0.5
    %v5552 = vadd.f32 %v5550, 0.5
    %v5553 = vadd.f32 %v5551, 0.5
    %v5554 = vmul.f32 %v5542, %v5328
    %v5555 = vmul.f32 %v5543, %v5329
    %v5556 = vmul.f32 %v5534, %v5544
    %v5557 = vmul.f32 %v5535, %v5545
    %v5558 = vadd.f32 %v5554, %v5556
    %v5559 = vadd.f32 %v5555, %v5557
    %v5560 = vtanh.pop %v5558
    %v5561 = vtanh.pop %v5559
    %v5562 = vmul.f32 %v5552, %v5560
    %v5563 = vmul.f32 %v5553, %v5561
    %v5564 = vpack.c.bf16 %v5563, %v5562
    %v5565 = vmul.f32 %v5520, 0.5
    %v5566 = vmul.f32 %v5524, 0.5
    %v5567 = vtanh.pop %v5565
    %v5568 = vtanh.pop %v5566
    %v5569 = vmul.f32 %v5567, 0.5
    %v5570 = vmul.f32 %v5568, 0.5
    %v5571 = vadd.f32 %v5569, 0.5
    %v5572 = vadd.f32 %v5570, 0.5
    %v5573 = vmul.f32 %v5521, 0.5
    %v5574 = vmul.f32 %v5525, 0.5
    %v5575 = vtanh.pop %v5573
    %v5576 = vtanh.pop %v5574
    %v5577 = vmul.f32 %v5575, 0.5
    %v5578 = vmul.f32 %v5576, 0.5
    %v5579 = vadd.f32 %v5577, 0.5
    %v5580 = vadd.f32 %v5578, 0.5
    %v5581 = vtanh.pop %v5522
    %v5582 = vtanh.pop %v5526
    %v5583 = vmul.f32 %v5523, 0.5
    %v5584 = vmul.f32 %v5527, 0.5
    %v5585 = vtanh.pop %v5583
    %v5586 = vtanh.pop %v5584
    %v5587 = vmul.f32 %v5585, 0.5
    %v5588 = vmul.f32 %v5586, 0.5
    %v5589 = vadd.f32 %v5587, 0.5
    %v5590 = vadd.f32 %v5588, 0.5
    %v5591 = vmul.f32 %v5579, %v5365
    %v5592 = vmul.f32 %v5580, %v5366
    %v5593 = vmul.f32 %v5571, %v5581
    %v5594 = vmul.f32 %v5572, %v5582
    %v5595 = vadd.f32 %v5591, %v5593
    %v5596 = vadd.f32 %v5592, %v5594
    %v5597 = vtanh.pop %v5595
    %v5598 = vtanh.pop %v5596
    %v5599 = vmul.f32 %v5589, %v5597
    %v5600 = vmul.f32 %v5590, %v5598
    %v5601 = vpack.c.bf16 %v5600, %v5599
    %v5603 = vunpack.c.l.b16 %v5564
    %v5604 = vunpack.c.h.b16 %v5564
    %v5605 = vpack.c.b16 %v5603, %v5603
    %v5606 = vpack.c.b16 %v5604, %v5604
    %5609 = vst [vmem:[%s1952] sm:$0xf] %v5605
    %5610 = vst [vmem:[%s1952 + $0x8] sm:$0xf] %v5606
    %v5612 = vunpack.c.l.b16 %v5601
    %v5613 = vunpack.c.h.b16 %v5601
    %v5614 = vpack.c.b16 %v5612, %v5612
    %v5615 = vpack.c.b16 %v5613, %v5613
    %5618 = vst [vmem:[%s1962 + $0x4] sm:$0xf] %v5614
    %5619 = vst [vmem:[%s1962 + $0xc] sm:$0xf] %v5615
    %5620 = vmatprep.subr.bf16.mxu0 %v5061
    %5621 = vmatpush1.bf16.msra.mxu0 %v5060
    %5622 = vmatprep.subr.bf16.mxu0 %v5057
    %5623 = vmatpush1.bf16.msra.mxu0 %v5056
    %5624 = vmatprep.subr.bf16.mxu0 %v5053
    %5625 = vmatpush1.bf16.msra.mxu0 %v5052
    %5626 = vmatprep.subr.bf16.mxu0 %v5049
    %5627 = vmatpush1.bf16.msra.mxu0 %v5048
    %5628 = vmatprep.subr.bf16.mxu0 %v5045
    %5629 = vmatpush1.bf16.msra.mxu0 %v5044
    %5630 = vmatprep.subr.bf16.mxu0 %v5041
    %5631 = vmatpush1.bf16.msra.mxu0 %v5040
    %5632 = vmatprep.subr.bf16.mxu0 %v5037
    %5633 = vmatpush1.bf16.msra.mxu0 %v5036
    %5634 = vmatprep.subr.bf16.mxu0 %v5033
    %5635 = vmatpush1.bf16.msra.mxu0 %v5032
    %5636 = vmatprep.subr.bf16.mxu0 %v5093
    %5637 = vmatpush2.bf16.msra.mxu0 %v5092
    %5638 = vmatprep.subr.bf16.mxu0 %v5089
    %5639 = vmatpush2.bf16.msra.mxu0 %v5088
    %5640 = vmatprep.subr.bf16.mxu0 %v5085
    %5641 = vmatpush2.bf16.msra.mxu0 %v5084
    %5642 = vmatprep.subr.bf16.mxu0 %v5081
    %5643 = vmatpush2.bf16.msra.mxu0 %v5080
    %5644 = vmatprep.subr.bf16.mxu0 %v5077
    %5645 = vmatpush2.bf16.msra.mxu0 %v5076
    %5646 = vmatprep.subr.bf16.mxu0 %v5073
    %5647 = vmatpush2.bf16.msra.mxu0 %v5072
    %5648 = vmatprep.subr.bf16.mxu0 %v5069
    %5649 = vmatpush2.bf16.msra.mxu0 %v5068
    %5650 = vmatprep.subr.bf16.mxu0 %v5065
    %5651 = vmatpush2.bf16.msra.mxu0 %v5064
    %5652 = vmatprep.mubr.bf16.mxu0 0
    %5653 = vmatmul.mubr.bf16.gmra.mxu0 %v5564
    %v5654 = vpop.f32.mrf.mxu0
    %v5655 = vadd.f32 0.0, %v5654
    %v5656 = vpop.f32.mrf.mxu0
    %v5657 = vadd.f32 0.0, %v5656
    %v5658 = vpop.f32.mrf.mxu0
    %v5659 = vadd.f32 0.0, %v5658
    %v5660 = vpop.f32.mrf.mxu0
    %v5661 = vadd.f32 0.0, %v5660
    %5662 = vmatprep.mubr.bf16.mxu0 %v5601
    %5663 = vmatmul.mubr.bf16.gmra.mxu0 0
    %v5664 = vpop.f32.mrf.mxu0
    %v5665 = vadd.f32 0.0, %v5664
    %v5666 = vpop.f32.mrf.mxu0
    %v5667 = vadd.f32 0.0, %v5666
    %v5668 = vpop.f32.mrf.mxu0
    %v5669 = vadd.f32 0.0, %v5668
    %v5670 = vpop.f32.mrf.mxu0
    %v5671 = vadd.f32 0.0, %v5670
    %5672 = vdwg.mxu0
    %5673 = vmatprep.subr.bf16.mxu0 %v5063
    %5674 = vmatpush1.bf16.msra.mxu0 %v5062
    %5675 = vmatprep.subr.bf16.mxu0 %v5059
    %5676 = vmatpush1.bf16.msra.mxu0 %v5058
    %5677 = vmatprep.subr.bf16.mxu0 %v5055
    %5678 = vmatpush1.bf16.msra.mxu0 %v5054
    %5679 = vmatprep.subr.bf16.mxu0 %v5051
    %5680 = vmatpush1.bf16.msra.mxu0 %v5050
    %5681 = vmatprep.subr.bf16.mxu0 %v5047
    %5682 = vmatpush1.bf16.msra.mxu0 %v5046
    %5683 = vmatprep.subr.bf16.mxu0 %v5043
    %5684 = vmatpush1.bf16.msra.mxu0 %v5042
    %5685 = vmatprep.subr.bf16.mxu0 %v5039
    %5686 = vmatpush1.bf16.msra.mxu0 %v5038
    %5687 = vmatprep.subr.bf16.mxu0 %v5035
    %5688 = vmatpush1.bf16.msra.mxu0 %v5034
    %5689 = vmatprep.subr.bf16.mxu0 %v5095
    %5690 = vmatpush2.bf16.msra.mxu0 %v5094
    %5691 = vmatprep.subr.bf16.mxu0 %v5091
    %5692 = vmatpush2.bf16.msra.mxu0 %v5090
    %5693 = vmatprep.subr.bf16.mxu0 %v5087
    %5694 = vmatpush2.bf16.msra.mxu0 %v5086
    %5695 = vmatprep.subr.bf16.mxu0 %v5083
    %5696 = vmatpush2.bf16.msra.mxu0 %v5082
    %5697 = vmatprep.subr.bf16.mxu0 %v5079
    %5698 = vmatpush2.bf16.msra.mxu0 %v5078
    %5699 = vmatprep.subr.bf16.mxu0 %v5075
    %5700 = vmatpush2.bf16.msra.mxu0 %v5074
    %5701 = vmatprep.subr.bf16.mxu0 %v5071
    %5702 = vmatpush2.bf16.msra.mxu0 %v5070
    %5703 = vmatprep.subr.bf16.mxu0 %v5067
    %5704 = vmatpush2.bf16.msra.mxu0 %v5066
    %5705 = vmatprep.mubr.bf16.mxu0 0
    %5706 = vmatmul.mubr.bf16.gmra.mxu0 %v5564
    %v5707 = vpop.f32.mrf.mxu0
    %v5708 = vadd.f32 0.0, %v5707
    %v5709 = vpop.f32.mrf.mxu0
    %v5710 = vadd.f32 0.0, %v5709
    %v5711 = vpop.f32.mrf.mxu0
    %v5712 = vadd.f32 0.0, %v5711
    %v5713 = vpop.f32.mrf.mxu0
    %v5714 = vadd.f32 0.0, %v5713
    %5715 = vmatprep.mubr.bf16.mxu0 %v5601
    %5716 = vmatmul.mubr.bf16.gmra.mxu0 0
    %v5717 = vpop.f32.mrf.mxu0
    %v5718 = vadd.f32 0.0, %v5717
    %v5719 = vpop.f32.mrf.mxu0
    %v5720 = vadd.f32 0.0, %v5719
    %v5721 = vpop.f32.mrf.mxu0
    %v5722 = vadd.f32 0.0, %v5721
    %v5723 = vpop.f32.mrf.mxu0
    %v5724 = vadd.f32 0.0, %v5723
    %5725 = vdwg.mxu0
    %v5726 = vunpack.c.l.bf16 %v4792
    %v5727 = vunpack.c.l.bf16 %v4793
    %v5728 = vunpack.c.l.bf16 %v4794
    %v5729 = vunpack.c.l.bf16 %v4795
    %v5730 = vunpack.c.h.bf16 %v4792
    %v5731 = vunpack.c.h.bf16 %v4793
    %v5732 = vunpack.c.h.bf16 %v4794
    %v5733 = vunpack.c.h.bf16 %v4795
    %v5734 = vadd.f32 %v5726, %v5655
    %v5735 = vadd.f32 %v5727, %v5657
    %v5736 = vadd.f32 %v5728, %v5708
    %v5737 = vadd.f32 %v5729, %v5710
    %v5738 = vadd.f32 %v5730, %v5659
    %v5739 = vadd.f32 %v5731, %v5661
    %v5740 = vadd.f32 %v5732, %v5712
    %v5741 = vadd.f32 %v5733, %v5714
    %v5742 = vunpack.c.l.bf16 %v4820
    %v5743 = vunpack.c.l.bf16 %v4821
    %v5744 = vunpack.c.l.bf16 %v4822
    %v5745 = vunpack.c.l.bf16 %v4823
    %v5746 = vunpack.c.h.bf16 %v4820
    %v5747 = vunpack.c.h.bf16 %v4821
    %v5748 = vunpack.c.h.bf16 %v4822
    %v5749 = vunpack.c.h.bf16 %v4823
    %v5750 = vadd.f32 %v5742, %v5665
    %v5751 = vadd.f32 %v5743, %v5667
    %v5752 = vadd.f32 %v5744, %v5718
    %v5753 = vadd.f32 %v5745, %v5720
    %v5754 = vadd.f32 %v5746, %v5669
    %v5755 = vadd.f32 %v5747, %v5671
    %v5756 = vadd.f32 %v5748, %v5722
    %v5757 = vadd.f32 %v5749, %v5724
    %v5758 = vmul.f32 %v5734, 0.5
    %v5759 = vmul.f32 %v5738, 0.5
    %v5760 = vtanh.pop %v5758
    %v5761 = vtanh.pop %v5759
    %v5762 = vmul.f32 %v5760, 0.5
    %v5763 = vmul.f32 %v5761, 0.5
    %v5764 = vadd.f32 %v5762, 0.5
    %v5765 = vadd.f32 %v5763, 0.5
    %v5766 = vmul.f32 %v5735, 0.5
    %v5767 = vmul.f32 %v5739, 0.5
    %v5768 = vtanh.pop %v5766
    %v5769 = vtanh.pop %v5767
    %v5770 = vmul.f32 %v5768, 0.5
    %v5771 = vmul.f32 %v5769, 0.5
    %v5772 = vadd.f32 %v5770, 0.5
    %v5773 = vadd.f32 %v5771, 0.5
    %v5774 = vtanh.pop %v5736
    %v5775 = vtanh.pop %v5740
    %v5776 = vmul.f32 %v5737, 0.5
    %v5777 = vmul.f32 %v5741, 0.5
    %v5778 = vtanh.pop %v5776
    %v5779 = vtanh.pop %v5777
    %v5780 = vmul.f32 %v5778, 0.5
    %v5781 = vmul.f32 %v5779, 0.5
    %v5782 = vadd.f32 %v5780, 0.5
    %v5783 = vadd.f32 %v5781, 0.5
    %v5784 = vmul.f32 %v5772, %v5558
    %v5785 = vmul.f32 %v5773, %v5559
    %v5786 = vmul.f32 %v5764, %v5774
    %v5787 = vmul.f32 %v5765, %v5775
    %v5788 = vadd.f32 %v5784, %v5786
    %v5789 = vadd.f32 %v5785, %v5787
    %v5790 = vtanh.pop %v5788
    %v5791 = vtanh.pop %v5789
    %v5792 = vmul.f32 %v5782, %v5790
    %v5793 = vmul.f32 %v5783, %v5791
    %v5794 = vpack.c.bf16 %v5793, %v5792
    %v5795 = vmul.f32 %v5750, 0.5
    %v5796 = vmul.f32 %v5754, 0.5
    %v5797 = vtanh.pop %v5795
    %v5798 = vtanh.pop %v5796
    %v5799 = vmul.f32 %v5797, 0.5
    %v5800 = vmul.f32 %v5798, 0.5
    %v5801 = vadd.f32 %v5799, 0.5
    %v5802 = vadd.f32 %v5800, 0.5
    %v5803 = vmul.f32 %v5751, 0.5
    %v5804 = vmul.f32 %v5755, 0.5
    %v5805 = vtanh.pop %v5803
    %v5806 = vtanh.pop %v5804
    %v5807 = vmul.f32 %v5805, 0.5
    %v5808 = vmul.f32 %v5806, 0.5
    %v5809 = vadd.f32 %v5807, 0.5
    %v5810 = vadd.f32 %v5808, 0.5
    %v5811 = vtanh.pop %v5752
    %v5812 = vtanh.pop %v5756
    %v5813 = vmul.f32 %v5753, 0.5
    %v5814 = vmul.f32 %v5757, 0.5
    %v5815 = vtanh.pop %v5813
    %v5816 = vtanh.pop %v5814
    %v5817 = vmul.f32 %v5815, 0.5
    %v5818 = vmul.f32 %v5816, 0.5
    %v5819 = vadd.f32 %v5817, 0.5
    %v5820 = vadd.f32 %v5818, 0.5
    %v5821 = vmul.f32 %v5809, %v5595
    %v5822 = vmul.f32 %v5810, %v5596
    %v5823 = vmul.f32 %v5801, %v5811
    %v5824 = vmul.f32 %v5802, %v5812
    %v5825 = vadd.f32 %v5821, %v5823
    %v5826 = vadd.f32 %v5822, %v5824
    %v5827 = vtanh.pop %v5825
    %v5828 = vtanh.pop %v5826
    %v5829 = vmul.f32 %v5819, %v5827
    %v5830 = vmul.f32 %v5820, %v5828
    %v5831 = vpack.c.bf16 %v5830, %v5829
    %v5833 = vunpack.c.l.b16 %v5794
    %v5834 = vunpack.c.h.b16 %v5794
    %v5835 = vpack.c.b16 %v5833, %v5833
    %v5836 = vpack.c.b16 %v5834, %v5834
    %5839 = vst [vmem:[%s2184] sm:$0xf] %v5835
    %5840 = vst [vmem:[%s2184 + $0x8] sm:$0xf] %v5836
    %v5842 = vunpack.c.l.b16 %v5831
    %v5843 = vunpack.c.h.b16 %v5831
    %v5844 = vpack.c.b16 %v5842, %v5842
    %v5845 = vpack.c.b16 %v5843, %v5843
    %5848 = vst [vmem:[%s2194 + $0x4] sm:$0xf] %v5844
    %5849 = vst [vmem:[%s2194 + $0xc] sm:$0xf] %v5845
    %5850 = vmatprep.subr.bf16.mxu0 %v5061
    %5851 = vmatpush1.bf16.msra.mxu0 %v5060
    %5852 = vmatprep.subr.bf16.mxu0 %v5057
    %5853 = vmatpush1.bf16.msra.mxu0 %v5056
    %5854 = vmatprep.subr.bf16.mxu0 %v5053
    %5855 = vmatpush1.bf16.msra.mxu0 %v5052
    %5856 = vmatprep.subr.bf16.mxu0 %v5049
    %5857 = vmatpush1.bf16.msra.mxu0 %v5048
    %5858 = vmatprep.subr.bf16.mxu0 %v5045
    %5859 = vmatpush1.bf16.msra.mxu0 %v5044
    %5860 = vmatprep.subr.bf16.mxu0 %v5041
    %5861 = vmatpush1.bf16.msra.mxu0 %v5040
    %5862 = vmatprep.subr.bf16.mxu0 %v5037
    %5863 = vmatpush1.bf16.msra.mxu0 %v5036
    %5864 = vmatprep.subr.bf16.mxu0 %v5033
    %5865 = vmatpush1.bf16.msra.mxu0 %v5032
    %5866 = vmatprep.subr.bf16.mxu0 %v5093
    %5867 = vmatpush2.bf16.msra.mxu0 %v5092
    %5868 = vmatprep.subr.bf16.mxu0 %v5089
    %5869 = vmatpush2.bf16.msra.mxu0 %v5088
    %5870 = vmatprep.subr.bf16.mxu0 %v5085
    %5871 = vmatpush2.bf16.msra.mxu0 %v5084
    %5872 = vmatprep.subr.bf16.mxu0 %v5081
    %5873 = vmatpush2.bf16.msra.mxu0 %v5080
    %5874 = vmatprep.subr.bf16.mxu0 %v5077
    %5875 = vmatpush2.bf16.msra.mxu0 %v5076
    %5876 = vmatprep.subr.bf16.mxu0 %v5073
    %5877 = vmatpush2.bf16.msra.mxu0 %v5072
    %5878 = vmatprep.subr.bf16.mxu0 %v5069
    %5879 = vmatpush2.bf16.msra.mxu0 %v5068
    %5880 = vmatprep.subr.bf16.mxu0 %v5065
    %5881 = vmatpush2.bf16.msra.mxu0 %v5064
    %5882 = vmatprep.mubr.bf16.mxu0 0
    %5883 = vmatmul.mubr.bf16.gmra.mxu0 %v5794
    %v5884 = vpop.f32.mrf.mxu0
    %v5885 = vadd.f32 0.0, %v5884
    %v5886 = vpop.f32.mrf.mxu0
    %v5887 = vadd.f32 0.0, %v5886
    %v5888 = vpop.f32.mrf.mxu0
    %v5889 = vadd.f32 0.0, %v5888
    %v5890 = vpop.f32.mrf.mxu0
    %v5891 = vadd.f32 0.0, %v5890
    %5892 = vmatprep.mubr.bf16.mxu0 %v5831
    %5893 = vmatmul.mubr.bf16.gmra.mxu0 0
    %v5894 = vpop.f32.mrf.mxu0
    %v5895 = vadd.f32 0.0, %v5894
    %v5896 = vpop.f32.mrf.mxu0
    %v5897 = vadd.f32 0.0, %v5896
    %v5898 = vpop.f32.mrf.mxu0
    %v5899 = vadd.f32 0.0, %v5898
    %v5900 = vpop.f32.mrf.mxu0
    %v5901 = vadd.f32 0.0, %v5900
    %5902 = vdwg.mxu0
    %5903 = vmatprep.subr.bf16.mxu0 %v5063
    %5904 = vmatpush1.bf16.msra.mxu0 %v5062
    %5905 = vmatprep.subr.bf16.mxu0 %v5059
    %5906 = vmatpush1.bf16.msra.mxu0 %v5058
    %5907 = vmatprep.subr.bf16.mxu0 %v5055
    %5908 = vmatpush1.bf16.msra.mxu0 %v5054
    %5909 = vmatprep.subr.bf16.mxu0 %v5051
    %5910 = vmatpush1.bf16.msra.mxu0 %v5050
    %5911 = vmatprep.subr.bf16.mxu0 %v5047
    %5912 = vmatpush1.bf16.msra.mxu0 %v5046
    %5913 = vmatprep.subr.bf16.mxu0 %v5043
    %5914 = vmatpush1.bf16.msra.mxu0 %v5042
    %5915 = vmatprep.subr.bf16.mxu0 %v5039
    %5916 = vmatpush1.bf16.msra.mxu0 %v5038
    %5917 = vmatprep.subr.bf16.mxu0 %v5035
    %5918 = vmatpush1.bf16.msra.mxu0 %v5034
    %5919 = vmatprep.subr.bf16.mxu0 %v5095
    %5920 = vmatpush2.bf16.msra.mxu0 %v5094
    %5921 = vmatprep.subr.bf16.mxu0 %v5091
    %5922 = vmatpush2.bf16.msra.mxu0 %v5090
    %5923 = vmatprep.subr.bf16.mxu0 %v5087
    %5924 = vmatpush2.bf16.msra.mxu0 %v5086
    %5925 = vmatprep.subr.bf16.mxu0 %v5083
    %5926 = vmatpush2.bf16.msra.mxu0 %v5082
    %5927 = vmatprep.subr.bf16.mxu0 %v5079
    %5928 = vmatpush2.bf16.msra.mxu0 %v5078
    %5929 = vmatprep.subr.bf16.mxu0 %v5075
    %5930 = vmatpush2.bf16.msra.mxu0 %v5074
    %5931 = vmatprep.subr.bf16.mxu0 %v5071
    %5932 = vmatpush2.bf16.msra.mxu0 %v5070
    %5933 = vmatprep.subr.bf16.mxu0 %v5067
    %5934 = vmatpush2.bf16.msra.mxu0 %v5066
    %5935 = vmatprep.mubr.bf16.mxu0 0
    %5936 = vmatmul.mubr.bf16.gmra.mxu0 %v5794
    %v5937 = vpop.f32.mrf.mxu0
    %v5938 = vadd.f32 0.0, %v5937
    %v5939 = vpop.f32.mrf.mxu0
    %v5940 = vadd.f32 0.0, %v5939
    %v5941 = vpop.f32.mrf.mxu0
    %v5942 = vadd.f32 0.0, %v5941
    %v5943 = vpop.f32.mrf.mxu0
    %v5944 = vadd.f32 0.0, %v5943
    %5945 = vmatprep.mubr.bf16.mxu0 %v5831
    %5946 = vmatmul.mubr.bf16.gmra.mxu0 0
    %v5947 = vpop.f32.mrf.mxu0
    %v5948 = vadd.f32 0.0, %v5947
    %v5949 = vpop.f32.mrf.mxu0
    %v5950 = vadd.f32 0.0, %v5949
    %v5951 = vpop.f32.mrf.mxu0
    %v5952 = vadd.f32 0.0, %v5951
    %v5953 = vpop.f32.mrf.mxu0
    %v5954 = vadd.f32 0.0, %v5953
    %5955 = vdwg.mxu0
    %v5956 = vunpack.c.l.bf16 %v4800
    %v5957 = vunpack.c.l.bf16 %v4801
    %v5958 = vunpack.c.l.bf16 %v4802
    %v5959 = vunpack.c.l.bf16 %v4803
    %v5960 = vunpack.c.h.bf16 %v4800
    %v5961 = vunpack.c.h.bf16 %v4801
    %v5962 = vunpack.c.h.bf16 %v4802
    %v5963 = vunpack.c.h.bf16 %v4803
    %v5964 = vadd.f32 %v5956, %v5885
    %v5965 = vadd.f32 %v5957, %v5887
    %v5966 = vadd.f32 %v5958, %v5938
    %v5967 = vadd.f32 %v5959, %v5940
    %v5968 = vadd.f32 %v5960, %v5889
    %v5969 = vadd.f32 %v5961, %v5891
    %v5970 = vadd.f32 %v5962, %v5942
    %v5971 = vadd.f32 %v5963, %v5944
    %v5972 = vunpack.c.l.bf16 %v4812
    %v5973 = vunpack.c.l.bf16 %v4813
    %v5974 = vunpack.c.l.bf16 %v4814
    %v5975 = vunpack.c.l.bf16 %v4815
    %v5976 = vunpack.c.h.bf16 %v4812
    %v5977 = vunpack.c.h.bf16 %v4813
    %v5978 = vunpack.c.h.bf16 %v4814
    %v5979 = vunpack.c.h.bf16 %v4815
    %v5980 = vadd.f32 %v5972, %v5895
    %v5981 = vadd.f32 %v5973, %v5897
    %v5982 = vadd.f32 %v5974, %v5948
    %v5983 = vadd.f32 %v5975, %v5950
    %v5984 = vadd.f32 %v5976, %v5899
    %v5985 = vadd.f32 %v5977, %v5901
    %v5986 = vadd.f32 %v5978, %v5952
    %v5987 = vadd.f32 %v5979, %v5954
    %v5988 = vmul.f32 %v5964, 0.5
    %v5989 = vmul.f32 %v5968, 0.5
    %v5990 = vtanh.pop %v5988
    %v5991 = vtanh.pop %v5989
    %v5992 = vmul.f32 %v5990, 0.5
    %v5993 = vmul.f32 %v5991, 0.5
    %v5994 = vadd.f32 %v5992, 0.5
    %v5995 = vadd.f32 %v5993, 0.5
    %v5996 = vmul.f32 %v5965, 0.5
    %v5997 = vmul.f32 %v5969, 0.5
    %v5998 = vtanh.pop %v5996
    %v5999 = vtanh.pop %v5997
    %v6000 = vmul.f32 %v5998, 0.5
    %v6001 = vmul.f32 %v5999, 0.5
    %v6002 = vadd.f32 %v6000, 0.5
    %v6003 = vadd.f32 %v6001, 0.5
    %v6004 = vtanh.pop %v5966
    %v6005 = vtanh.pop %v5970
    %v6006 = vmul.f32 %v5967, 0.5
    %v6007 = vmul.f32 %v5971, 0.5
    %v6008 = vtanh.pop %v6006
    %v6009 = vtanh.pop %v6007
    %v6010 = vmul.f32 %v6008, 0.5
    %v6011 = vmul.f32 %v6009, 0.5
    %v6012 = vadd.f32 %v6010, 0.5
    %v6013 = vadd.f32 %v6011, 0.5
    %v6014 = vmul.f32 %v6002, %v5788
    %v6015 = vmul.f32 %v6003, %v5789
    %v6016 = vmul.f32 %v5994, %v6004
    %v6017 = vmul.f32 %v5995, %v6005
    %v6018 = vadd.f32 %v6014, %v6016
    %v6019 = vadd.f32 %v6015, %v6017
    %v6020 = vtanh.pop %v6018
    %v6021 = vtanh.pop %v6019
    %v6022 = vmul.f32 %v6012, %v6020
    %v6023 = vmul.f32 %v6013, %v6021
    %v6024 = vpack.c.bf16 %v6023, %v6022
    %v6025 = vmul.f32 %v5980, 0.5
    %v6026 = vmul.f32 %v5984, 0.5
    %v6027 = vtanh.pop %v6025
    %v6028 = vtanh.pop %v6026
    %v6029 = vmul.f32 %v6027, 0.5
    %v6030 = vmul.f32 %v6028, 0.5
    %v6031 = vadd.f32 %v6029, 0.5
    %v6032 = vadd.f32 %v6030, 0.5
    %v6033 = vmul.f32 %v5981, 0.5
    %v6034 = vmul.f32 %v5985, 0.5
    %v6035 = vtanh.pop %v6033
    %v6036 = vtanh.pop %v6034
    %v6037 = vmul.f32 %v6035, 0.5
    %v6038 = vmul.f32 %v6036, 0.5
    %v6039 = vadd.f32 %v6037, 0.5
    %v6040 = vadd.f32 %v6038, 0.5
    %v6041 = vtanh.pop %v5982
    %v6042 = vtanh.pop %v5986
    %v6043 = vmul.f32 %v5983, 0.5
    %v6044 = vmul.f32 %v5987, 0.5
    %v6045 = vtanh.pop %v6043
    %v6046 = vtanh.pop %v6044
    %v6047 = vmul.f32 %v6045, 0.5
    %v6048 = vmul.f32 %v6046, 0.5
    %v6049 = vadd.f32 %v6047, 0.5
    %v6050 = vadd.f32 %v6048, 0.5
    %v6051 = vmul.f32 %v6039, %v5825
    %v6052 = vmul.f32 %v6040, %v5826
    %v6053 = vmul.f32 %v6031, %v6041
    %v6054 = vmul.f32 %v6032, %v6042
    %v6055 = vadd.f32 %v6051, %v6053
    %v6056 = vadd.f32 %v6052, %v6054
    %v6057 = vtanh.pop %v6055
    %v6058 = vtanh.pop %v6056
    %v6059 = vmul.f32 %v6049, %v6057
    %v6060 = vmul.f32 %v6050, %v6058
    %v6061 = vpack.c.bf16 %v6060, %v6059
    %v6063 = vunpack.c.l.b16 %v6024
    %v6064 = vunpack.c.h.b16 %v6024
    %v6065 = vpack.c.b16 %v6063, %v6063
    %v6066 = vpack.c.b16 %v6064, %v6064
    %6069 = vst [vmem:[%s2416] sm:$0xf] %v6065
    %6070 = vst [vmem:[%s2416 + $0x8] sm:$0xf] %v6066
    %v6072 = vunpack.c.l.b16 %v6061
    %v6073 = vunpack.c.h.b16 %v6061
    %v6074 = vpack.c.b16 %v6072, %v6072
    %v6075 = vpack.c.b16 %v6073, %v6073
    %6078 = vst [vmem:[%s2426 + $0x4] sm:$0xf] %v6074
    %6079 = vst [vmem:[%s2426 + $0xc] sm:$0xf] %v6075
    %6080 = vmatprep.subr.bf16.mxu0 %v5061
    %6081 = vmatpush1.bf16.msra.mxu0 %v5060
    %6082 = vmatprep.subr.bf16.mxu0 %v5057
    %6083 = vmatpush1.bf16.msra.mxu0 %v5056
    %6084 = vmatprep.subr.bf16.mxu0 %v5053
    %6085 = vmatpush1.bf16.msra.mxu0 %v5052
    %6086 = vmatprep.subr.bf16.mxu0 %v5049
    %6087 = vmatpush1.bf16.msra.mxu0 %v5048
    %6088 = vmatprep.subr.bf16.mxu0 %v5045
    %6089 = vmatpush1.bf16.msra.mxu0 %v5044
    %6090 = vmatprep.subr.bf16.mxu0 %v5041
    %6091 = vmatpush1.bf16.msra.mxu0 %v5040
    %6092 = vmatprep.subr.bf16.mxu0 %v5037
    %6093 = vmatpush1.bf16.msra.mxu0 %v5036
    %6094 = vmatprep.subr.bf16.mxu0 %v5033
    %6095 = vmatpush1.bf16.msra.mxu0 %v5032
    %6096 = vmatprep.subr.bf16.mxu0 %v5093
    %6097 = vmatpush2.bf16.msra.mxu0 %v5092
    %6098 = vmatprep.subr.bf16.mxu0 %v5089
    %6099 = vmatpush2.bf16.msra.mxu0 %v5088
    %6100 = vmatprep.subr.bf16.mxu0 %v5085
    %6101 = vmatpush2.bf16.msra.mxu0 %v5084
    %6102 = vmatprep.subr.bf16.mxu0 %v5081
    %6103 = vmatpush2.bf16.msra.mxu0 %v5080
    %6104 = vmatprep.subr.bf16.mxu0 %v5077
    %6105 = vmatpush2.bf16.msra.mxu0 %v5076
    %6106 = vmatprep.subr.bf16.mxu0 %v5073
    %6107 = vmatpush2.bf16.msra.mxu0 %v5072
    %6108 = vmatprep.subr.bf16.mxu0 %v5069
    %6109 = vmatpush2.bf16.msra.mxu0 %v5068
    %6110 = vmatprep.subr.bf16.mxu0 %v5065
    %6111 = vmatpush2.bf16.msra.mxu0 %v5064
    %6112 = vmatprep.mubr.bf16.mxu0 0
    %6113 = vmatmul.mubr.bf16.gmra.mxu0 %v6024
    %v6114 = vpop.f32.mrf.mxu0
    %v6115 = vadd.f32 0.0, %v6114
    %v6116 = vpop.f32.mrf.mxu0
    %v6117 = vadd.f32 0.0, %v6116
    %v6118 = vpop.f32.mrf.mxu0
    %v6119 = vadd.f32 0.0, %v6118
    %v6120 = vpop.f32.mrf.mxu0
    %v6121 = vadd.f32 0.0, %v6120
    %6122 = vmatprep.mubr.bf16.mxu0 %v6061
    %6123 = vmatmul.mubr.bf16.gmra.mxu0 0
    %v6124 = vpop.f32.mrf.mxu0
    %v6125 = vadd.f32 0.0, %v6124
    %v6126 = vpop.f32.mrf.mxu0
    %v6127 = vadd.f32 0.0, %v6126
    %v6128 = vpop.f32.mrf.mxu0
    %v6129 = vadd.f32 0.0, %v6128
    %v6130 = vpop.f32.mrf.mxu0
    %v6131 = vadd.f32 0.0, %v6130
    %6132 = vdwg.mxu0
    %6133 = vmatprep.subr.bf16.mxu0 %v5063
    %6134 = vmatpush1.bf16.msra.mxu0 %v5062
    %6135 = vmatprep.subr.bf16.mxu0 %v5059
    %6136 = vmatpush1.bf16.msra.mxu0 %v5058
    %6137 = vmatprep.subr.bf16.mxu0 %v5055
    %6138 = vmatpush1.bf16.msra.mxu0 %v5054
    %6139 = vmatprep.subr.bf16.mxu0 %v5051
    %6140 = vmatpush1.bf16.msra.mxu0 %v5050
    %6141 = vmatprep.subr.bf16.mxu0 %v5047
    %6142 = vmatpush1.bf16.msra.mxu0 %v5046
    %6143 = vmatprep.subr.bf16.mxu0 %v5043
    %6144 = vmatpush1.bf16.msra.mxu0 %v5042
    %6145 = vmatprep.subr.bf16.mxu0 %v5039
    %6146 = vmatpush1.bf16.msra.mxu0 %v5038
    %6147 = vmatprep.subr.bf16.mxu0 %v5035
    %6148 = vmatpush1.bf16.msra.mxu0 %v5034
    %6149 = vmatprep.subr.bf16.mxu0 %v5095
    %6150 = vmatpush2.bf16.msra.mxu0 %v5094
    %6151 = vmatprep.subr.bf16.mxu0 %v5091
    %6152 = vmatpush2.bf16.msra.mxu0 %v5090
    %6153 = vmatprep.subr.bf16.mxu0 %v5087
    %6154 = vmatpush2.bf16.msra.mxu0 %v5086
    %6155 = vmatprep.subr.bf16.mxu0 %v5083
    %6156 = vmatpush2.bf16.msra.mxu0 %v5082
    %6157 = vmatprep.subr.bf16.mxu0 %v5079
    %6158 = vmatpush2.bf16.msra.mxu0 %v5078
    %6159 = vmatprep.subr.bf16.mxu0 %v5075
    %6160 = vmatpush2.bf16.msra.mxu0 %v5074
    %6161 = vmatprep.subr.bf16.mxu0 %v5071
    %6162 = vmatpush2.bf16.msra.mxu0 %v5070
    %6163 = vmatprep.subr.bf16.mxu0 %v5067
    %6164 = vmatpush2.bf16.msra.mxu0 %v5066
    %6165 = vmatprep.mubr.bf16.mxu0 0
    %6166 = vmatmul.mubr.bf16.gmra.mxu0 %v6024
    %v6167 = vpop.f32.mrf.mxu0
    %v6168 = vadd.f32 0.0, %v6167
    %v6169 = vpop.f32.mrf.mxu0
    %v6170 = vadd.f32 0.0, %v6169
    %v6171 = vpop.f32.mrf.mxu0
    %v6172 = vadd.f32 0.0, %v6171
    %v6173 = vpop.f32.mrf.mxu0
    %v6174 = vadd.f32 0.0, %v6173
    %6175 = vmatprep.mubr.bf16.mxu0 %v6061
    %6176 = vmatmul.mubr.bf16.gmra.mxu0 0
    %v6177 = vpop.f32.mrf.mxu0
    %v6178 = vadd.f32 0.0, %v6177
    %v6179 = vpop.f32.mrf.mxu0
    %v6180 = vadd.f32 0.0, %v6179
    %v6181 = vpop.f32.mrf.mxu0
    %v6182 = vadd.f32 0.0, %v6181
    %v6183 = vpop.f32.mrf.mxu0
    %v6184 = vadd.f32 0.0, %v6183
    %6185 = vdwg.mxu0
    %v6186 = vunpack.c.l.bf16 %v4808
    %v6187 = vunpack.c.l.bf16 %v4809
    %v6188 = vunpack.c.l.bf16 %v4810
    %v6189 = vunpack.c.l.bf16 %v4811
    %v6190 = vunpack.c.h.bf16 %v4808
    %v6191 = vunpack.c.h.bf16 %v4809
    %v6192 = vunpack.c.h.bf16 %v4810
    %v6193 = vunpack.c.h.bf16 %v4811
    %v6194 = vadd.f32 %v6186, %v6115
    %v6195 = vadd.f32 %v6187, %v6117
    %v6196 = vadd.f32 %v6188, %v6168
    %v6197 = vadd.f32 %v6189, %v6170
    %v6198 = vadd.f32 %v6190, %v6119
    %v6199 = vadd.f32 %v6191, %v6121
    %v6200 = vadd.f32 %v6192, %v6172
    %v6201 = vadd.f32 %v6193, %v6174
    %v6202 = vunpack.c.l.bf16 %v4804
    %v6203 = vunpack.c.l.bf16 %v4805
    %v6204 = vunpack.c.l.bf16 %v4806
    %v6205 = vunpack.c.l.bf16 %v4807
    %v6206 = vunpack.c.h.bf16 %v4804
    %v6207 = vunpack.c.h.bf16 %v4805
    %v6208 = vunpack.c.h.bf16 %v4806
    %v6209 = vunpack.c.h.bf16 %v4807
    %v6210 = vadd.f32 %v6202, %v6125
    %v6211 = vadd.f32 %v6203, %v6127
    %v6212 = vadd.f32 %v6204, %v6178
    %v6213 = vadd.f32 %v6205, %v6180
    %v6214 = vadd.f32 %v6206, %v6129
    %v6215 = vadd.f32 %v6207, %v6131
    %v6216 = vadd.f32 %v6208, %v6182
    %v6217 = vadd.f32 %v6209, %v6184
    %v6218 = vmul.f32 %v6194, 0.5
    %v6219 = vmul.f32 %v6198, 0.5
    %v6220 = vtanh.pop %v6218
    %v6221 = vtanh.pop %v6219
    %v6222 = vmul.f32 %v6220, 0.5
    %v6223 = vmul.f32 %v6221, 0.5
    %v6224 = vadd.f32 %v6222, 0.5
    %v6225 = vadd.f32 %v6223, 0.5
    %v6226 = vmul.f32 %v6195, 0.5
    %v6227 = vmul.f32 %v6199, 0.5
    %v6228 = vtanh.pop %v6226
    %v6229 = vtanh.pop %v6227
    %v6230 = vmul.f32 %v6228, 0.5
    %v6231 = vmul.f32 %v6229, 0.5
    %v6232 = vadd.f32 %v6230, 0.5
    %v6233 = vadd.f32 %v6231, 0.5
    %v6234 = vtanh.pop %v6196
    %v6235 = vtanh.pop %v6200
    %v6236 = vmul.f32 %v6197, 0.5
    %v6237 = vmul.f32 %v6201, 0.5
    %v6238 = vtanh.pop %v6236
    %v6239 = vtanh.pop %v6237
    %v6240 = vmul.f32 %v6238, 0.5
    %v6241 = vmul.f32 %v6239, 0.5
    %v6242 = vadd.f32 %v6240, 0.5
    %v6243 = vadd.f32 %v6241, 0.5
    %v6244 = vmul.f32 %v6232, %v6018
    %v6245 = vmul.f32 %v6233, %v6019
    %v6246 = vmul.f32 %v6224, %v6234
    %v6247 = vmul.f32 %v6225, %v6235
    %v6248 = vadd.f32 %v6244, %v6246
    %v6249 = vadd.f32 %v6245, %v6247
    %v6250 = vtanh.pop %v6248
    %v6251 = vtanh.pop %v6249
    %v6252 = vmul.f32 %v6242, %v6250
    %v6253 = vmul.f32 %v6243, %v6251
    %v6254 = vpack.c.bf16 %v6253, %v6252
    %v6255 = vmul.f32 %v6210, 0.5
    %v6256 = vmul.f32 %v6214, 0.5
    %v6257 = vtanh.pop %v6255
    %v6258 = vtanh.pop %v6256
    %v6259 = vmul.f32 %v6257, 0.5
    %v6260 = vmul.f32 %v6258, 0.5
    %v6261 = vadd.f32 %v6259, 0.5
    %v6262 = vadd.f32 %v6260, 0.5
    %v6263 = vmul.f32 %v6211, 0.5
    %v6264 = vmul.f32 %v6215, 0.5
    %v6265 = vtanh.pop %v6263
    %v6266 = vtanh.pop %v6264
    %v6267 = vmul.f32 %v6265, 0.5
    %v6268 = vmul.f32 %v6266, 0.5
    %v6269 = vadd.f32 %v6267, 0.5
    %v6270 = vadd.f32 %v6268, 0.5
    %v6271 = vtanh.pop %v6212
    %v6272 = vtanh.pop %v6216
    %v6273 = vmul.f32 %v6213, 0.5
    %v6274 = vmul.f32 %v6217, 0.5
    %v6275 = vtanh.pop %v6273
    %v6276 = vtanh.pop %v6274
    %v6277 = vmul.f32 %v6275, 0.5
    %v6278 = vmul.f32 %v6276, 0.5
    %v6279 = vadd.f32 %v6277, 0.5
    %v6280 = vadd.f32 %v6278, 0.5
    %v6281 = vmul.f32 %v6269, %v6055
    %v6282 = vmul.f32 %v6270, %v6056
    %v6283 = vmul.f32 %v6261, %v6271
    %v6284 = vmul.f32 %v6262, %v6272
    %v6285 = vadd.f32 %v6281, %v6283
    %v6286 = vadd.f32 %v6282, %v6284
    %v6287 = vtanh.pop %v6285
    %v6288 = vtanh.pop %v6286
    %v6289 = vmul.f32 %v6279, %v6287
    %v6290 = vmul.f32 %v6280, %v6288
    %v6291 = vpack.c.bf16 %v6290, %v6289
    %v6293 = vunpack.c.l.b16 %v6254
    %v6294 = vunpack.c.h.b16 %v6254
    %v6295 = vpack.c.b16 %v6293, %v6293
    %v6296 = vpack.c.b16 %v6294, %v6294
    %6299 = vst [vmem:[%s2426] sm:$0xf] %v6295
    %6300 = vst [vmem:[%s2426 + $0x8] sm:$0xf] %v6296
    %v6302 = vunpack.c.l.b16 %v6291
    %v6303 = vunpack.c.h.b16 %v6291
    %v6304 = vpack.c.b16 %v6302, %v6302
    %v6305 = vpack.c.b16 %v6303, %v6303
    %6308 = vst [vmem:[%s2416 + $0x4] sm:$0xf] %v6304
    %6309 = vst [vmem:[%s2416 + $0xc] sm:$0xf] %v6305
    %6310 = vmatprep.subr.bf16.mxu0 %v5061
    %6311 = vmatpush1.bf16.msra.mxu0 %v5060
    %6312 = vmatprep.subr.bf16.mxu0 %v5057
    %6313 = vmatpush1.bf16.msra.mxu0 %v5056
    %6314 = vmatprep.subr.bf16.mxu0 %v5053
    %6315 = vmatpush1.bf16.msra.mxu0 %v5052
    %6316 = vmatprep.subr.bf16.mxu0 %v5049
    %6317 = vmatpush1.bf16.msra.mxu0 %v5048
    %6318 = vmatprep.subr.bf16.mxu0 %v5045
    %6319 = vmatpush1.bf16.msra.mxu0 %v5044
    %6320 = vmatprep.subr.bf16.mxu0 %v5041
    %6321 = vmatpush1.bf16.msra.mxu0 %v5040
    %6322 = vmatprep.subr.bf16.mxu0 %v5037
    %6323 = vmatpush1.bf16.msra.mxu0 %v5036
    %6324 = vmatprep.subr.bf16.mxu0 %v5033
    %6325 = vmatpush1.bf16.msra.mxu0 %v5032
    %6326 = vmatprep.subr.bf16.mxu0 %v5093
    %6327 = vmatpush2.bf16.msra.mxu0 %v5092
    %6328 = vmatprep.subr.bf16.mxu0 %v5089
    %6329 = vmatpush2.bf16.msra.mxu0 %v5088
    %6330 = vmatprep.subr.bf16.mxu0 %v5085
    %6331 = vmatpush2.bf16.msra.mxu0 %v5084
    %6332 = vmatprep.subr.bf16.mxu0 %v5081
    %6333 = vmatpush2.bf16.msra.mxu0 %v5080
    %6334 = vmatprep.subr.bf16.mxu0 %v5077
    %6335 = vmatpush2.bf16.msra.mxu0 %v5076
    %6336 = vmatprep.subr.bf16.mxu0 %v5073
    %6337 = vmatpush2.bf16.msra.mxu0 %v5072
    %6338 = vmatprep.subr.bf16.mxu0 %v5069
    %6339 = vmatpush2.bf16.msra.mxu0 %v5068
    %6340 = vmatprep.subr.bf16.mxu0 %v5065
    %6341 = vmatpush2.bf16.msra.mxu0 %v5064
    %6342 = vmatprep.mubr.bf16.mxu0 0
    %6343 = vmatmul.mubr.bf16.gmra.mxu0 %v6254
    %v6344 = vpop.f32.mrf.mxu0
    %v6345 = vadd.f32 0.0, %v6344
    %v6346 = vpop.f32.mrf.mxu0
    %v6347 = vadd.f32 0.0, %v6346
    %v6348 = vpop.f32.mrf.mxu0
    %v6349 = vadd.f32 0.0, %v6348
    %v6350 = vpop.f32.mrf.mxu0
    %v6351 = vadd.f32 0.0, %v6350
    %6352 = vmatprep.mubr.bf16.mxu0 %v6291
    %6353 = vmatmul.mubr.bf16.gmra.mxu0 0
    %v6354 = vpop.f32.mrf.mxu0
    %v6355 = vadd.f32 0.0, %v6354
    %v6356 = vpop.f32.mrf.mxu0
    %v6357 = vadd.f32 0.0, %v6356
    %v6358 = vpop.f32.mrf.mxu0
    %v6359 = vadd.f32 0.0, %v6358
    %v6360 = vpop.f32.mrf.mxu0
    %v6361 = vadd.f32 0.0, %v6360
    %6362 = vdwg.mxu0
    %6363 = vmatprep.subr.bf16.mxu0 %v5063
    %6364 = vmatpush1.bf16.msra.mxu0 %v5062
    %6365 = vmatprep.subr.bf16.mxu0 %v5059
    %6366 = vmatpush1.bf16.msra.mxu0 %v5058
    %6367 = vmatprep.subr.bf16.mxu0 %v5055
    %6368 = vmatpush1.bf16.msra.mxu0 %v5054
    %6369 = vmatprep.subr.bf16.mxu0 %v5051
    %6370 = vmatpush1.bf16.msra.mxu0 %v5050
    %6371 = vmatprep.subr.bf16.mxu0 %v5047
    %6372 = vmatpush1.bf16.msra.mxu0 %v5046
    %6373 = vmatprep.subr.bf16.mxu0 %v5043
    %6374 = vmatpush1.bf16.msra.mxu0 %v5042
    %6375 = vmatprep.subr.bf16.mxu0 %v5039
    %6376 = vmatpush1.bf16.msra.mxu0 %v5038
    %6377 = vmatprep.subr.bf16.mxu0 %v5035
    %6378 = vmatpush1.bf16.msra.mxu0 %v5034
    %6379 = vmatprep.subr.bf16.mxu0 %v5095
    %6380 = vmatpush2.bf16.msra.mxu0 %v5094
    %6381 = vmatprep.subr.bf16.mxu0 %v5091
    %6382 = vmatpush2.bf16.msra.mxu0 %v5090
    %6383 = vmatprep.subr.bf16.mxu0 %v5087
    %6384 = vmatpush2.bf16.msra.mxu0 %v5086
    %6385 = vmatprep.subr.bf16.mxu0 %v5083
    %6386 = vmatpush2.bf16.msra.mxu0 %v5082
    %6387 = vmatprep.subr.bf16.mxu0 %v5079
    %6388 = vmatpush2.bf16.msra.mxu0 %v5078
    %6389 = vmatprep.subr.bf16.mxu0 %v5075
    %6390 = vmatpush2.bf16.msra.mxu0 %v5074
    %6391 = vmatprep.subr.bf16.mxu0 %v5071
    %6392 = vmatpush2.bf16.msra.mxu0 %v5070
    %6393 = vmatprep.subr.bf16.mxu0 %v5067
    %6394 = vmatpush2.bf16.msra.mxu0 %v5066
    %6395 = vmatprep.mubr.bf16.mxu0 0
    %6396 = vmatmul.mubr.bf16.gmra.mxu0 %v6254
    %v6397 = vpop.f32.mrf.mxu0
    %v6398 = vadd.f32 0.0, %v6397
    %v6399 = vpop.f32.mrf.mxu0
    %v6400 = vadd.f32 0.0, %v6399
    %v6401 = vpop.f32.mrf.mxu0
    %v6402 = vadd.f32 0.0, %v6401
    %v6403 = vpop.f32.mrf.mxu0
    %v6404 = vadd.f32 0.0, %v6403
    %6405 = vmatprep.mubr.bf16.mxu0 %v6291
    %6406 = vmatmul.mubr.bf16.gmra.mxu0 0
    %v6407 = vpop.f32.mrf.mxu0
    %v6408 = vadd.f32 0.0, %v6407
    %v6409 = vpop.f32.mrf.mxu0
    %v6410 = vadd.f32 0.0, %v6409
    %v6411 = vpop.f32.mrf.mxu0
    %v6412 = vadd.f32 0.0, %v6411
    %v6413 = vpop.f32.mrf.mxu0
    %v6414 = vadd.f32 0.0, %v6413
    %6415 = vdwg.mxu0
    %v6416 = vunpack.c.l.bf16 %v4816
    %v6417 = vunpack.c.l.bf16 %v4817
    %v6418 = vunpack.c.l.bf16 %v4818
    %v6419 = vunpack.c.l.bf16 %v4819
    %v6420 = vunpack.c.h.bf16 %v4816
    %v6421 = vunpack.c.h.bf16 %v4817
    %v6422 = vunpack.c.h.bf16 %v4818
    %v6423 = vunpack.c.h.bf16 %v4819
    %v6424 = vadd.f32 %v6416, %v6345
    %v6425 = vadd.f32 %v6417, %v6347
    %v6426 = vadd.f32 %v6418, %v6398
    %v6427 = vadd.f32 %v6419, %v6400
    %v6428 = vadd.f32 %v6420, %v6349
    %v6429 = vadd.f32 %v6421, %v6351
    %v6430 = vadd.f32 %v6422, %v6402
    %v6431 = vadd.f32 %v6423, %v6404
    %v6432 = vunpack.c.l.bf16 %v4796
    %v6433 = vunpack.c.l.bf16 %v4797
    %v6434 = vunpack.c.l.bf16 %v4798
    %v6435 = vunpack.c.l.bf16 %v4799
    %v6436 = vunpack.c.h.bf16 %v4796
    %v6437 = vunpack.c.h.bf16 %v4797
    %v6438 = vunpack.c.h.bf16 %v4798
    %v6439 = vunpack.c.h.bf16 %v4799
    %v6440 = vadd.f32 %v6432, %v6355
    %v6441 = vadd.f32 %v6433, %v6357
    %v6442 = vadd.f32 %v6434, %v6408
    %v6443 = vadd.f32 %v6435, %v6410
    %v6444 = vadd.f32 %v6436, %v6359
    %v6445 = vadd.f32 %v6437, %v6361
    %v6446 = vadd.f32 %v6438, %v6412
    %v6447 = vadd.f32 %v6439, %v6414
    %v6448 = vmul.f32 %v6424, 0.5
    %v6449 = vmul.f32 %v6428, 0.5
    %v6450 = vtanh.pop %v6448
    %v6451 = vtanh.pop %v6449
    %v6452 = vmul.f32 %v6450, 0.5
    %v6453 = vmul.f32 %v6451, 0.5
    %v6454 = vadd.f32 %v6452, 0.5
    %v6455 = vadd.f32 %v6453, 0.5
    %v6456 = vmul.f32 %v6425, 0.5
    %v6457 = vmul.f32 %v6429, 0.5
    %v6458 = vtanh.pop %v6456
    %v6459 = vtanh.pop %v6457
    %v6460 = vmul.f32 %v6458, 0.5
    %v6461 = vmul.f32 %v6459, 0.5
    %v6462 = vadd.f32 %v6460, 0.5
    %v6463 = vadd.f32 %v6461, 0.5
    %v6464 = vtanh.pop %v6426
    %v6465 = vtanh.pop %v6430
    %v6466 = vmul.f32 %v6427, 0.5
    %v6467 = vmul.f32 %v6431, 0.5
    %v6468 = vtanh.pop %v6466
    %v6469 = vtanh.pop %v6467
    %v6470 = vmul.f32 %v6468, 0.5
    %v6471 = vmul.f32 %v6469, 0.5
    %v6472 = vadd.f32 %v6470, 0.5
    %v6473 = vadd.f32 %v6471, 0.5
    %v6474 = vmul.f32 %v6462, %v6248
    %v6475 = vmul.f32 %v6463, %v6249
    %v6476 = vmul.f32 %v6454, %v6464
    %v6477 = vmul.f32 %v6455, %v6465
    %v6478 = vadd.f32 %v6474, %v6476
    %v6479 = vadd.f32 %v6475, %v6477
    %v6480 = vtanh.pop %v6478
    %v6481 = vtanh.pop %v6479
    %v6482 = vmul.f32 %v6472, %v6480
    %v6483 = vmul.f32 %v6473, %v6481
    %v6484 = vpack.c.bf16 %v6483, %v6482
    %v6485 = vmul.f32 %v6440, 0.5
    %v6486 = vmul.f32 %v6444, 0.5
    %v6487 = vtanh.pop %v6485
    %v6488 = vtanh.pop %v6486
    %v6489 = vmul.f32 %v6487, 0.5
    %v6490 = vmul.f32 %v6488, 0.5
    %v6491 = vadd.f32 %v6489, 0.5
    %v6492 = vadd.f32 %v6490, 0.5
    %v6493 = vmul.f32 %v6441, 0.5
    %v6494 = vmul.f32 %v6445, 0.5
    %v6495 = vtanh.pop %v6493
    %v6496 = vtanh.pop %v6494
    %v6497 = vmul.f32 %v6495, 0.5
    %v6498 = vmul.f32 %v6496, 0.5
    %v6499 = vadd.f32 %v6497, 0.5
    %v6500 = vadd.f32 %v6498, 0.5
    %v6501 = vtanh.pop %v6442
    %v6502 = vtanh.pop %v6446
    %v6503 = vmul.f32 %v6443, 0.5
    %v6504 = vmul.f32 %v6447, 0.5
    %v6505 = vtanh.pop %v6503
    %v6506 = vtanh.pop %v6504
    %v6507 = vmul.f32 %v6505, 0.5
    %v6508 = vmul.f32 %v6506, 0.5
    %v6509 = vadd.f32 %v6507, 0.5
    %v6510 = vadd.f32 %v6508, 0.5
    %v6511 = vmul.f32 %v6499, %v6285
    %v6512 = vmul.f32 %v6500, %v6286
    %v6513 = vmul.f32 %v6491, %v6501
    %v6514 = vmul.f32 %v6492, %v6502
    %v6515 = vadd.f32 %v6511, %v6513
    %v6516 = vadd.f32 %v6512, %v6514
    %v6517 = vtanh.pop %v6515
    %v6518 = vtanh.pop %v6516
    %v6519 = vmul.f32 %v6509, %v6517
    %v6520 = vmul.f32 %v6510, %v6518
    %v6521 = vpack.c.bf16 %v6520, %v6519
    %v6523 = vunpack.c.l.b16 %v6484
    %v6524 = vunpack.c.h.b16 %v6484
    %v6525 = vpack.c.b16 %v6523, %v6523
    %v6526 = vpack.c.b16 %v6524, %v6524
    %6529 = vst [vmem:[%s2194] sm:$0xf] %v6525
    %6530 = vst [vmem:[%s2194 + $0x8] sm:$0xf] %v6526
    %v6532 = vunpack.c.l.b16 %v6521
    %v6533 = vunpack.c.h.b16 %v6521
    %v6534 = vpack.c.b16 %v6532, %v6532
    %v6535 = vpack.c.b16 %v6533, %v6533
    %6538 = vst [vmem:[%s2184 + $0x4] sm:$0xf] %v6534
    %6539 = vst [vmem:[%s2184 + $0xc] sm:$0xf] %v6535
    %6540 = vmatprep.subr.bf16.mxu0 %v5061
    %6541 = vmatpush1.bf16.msra.mxu0 %v5060
    %6542 = vmatprep.subr.bf16.mxu0 %v5057
    %6543 = vmatpush1.bf16.msra.mxu0 %v5056
    %6544 = vmatprep.subr.bf16.mxu0 %v5053
    %6545 = vmatpush1.bf16.msra.mxu0 %v5052
    %6546 = vmatprep.subr.bf16.mxu0 %v5049
    %6547 = vmatpush1.bf16.msra.mxu0 %v5048
    %6548 = vmatprep.subr.bf16.mxu0 %v5045
    %6549 = vmatpush1.bf16.msra.mxu0 %v5044
    %6550 = vmatprep.subr.bf16.mxu0 %v5041
    %6551 = vmatpush1.bf16.msra.mxu0 %v5040
    %6552 = vmatprep.subr.bf16.mxu0 %v5037
    %6553 = vmatpush1.bf16.msra.mxu0 %v5036
    %6554 = vmatprep.subr.bf16.mxu0 %v5033
    %6555 = vmatpush1.bf16.msra.mxu0 %v5032
    %6556 = vmatprep.subr.bf16.mxu0 %v5093
    %6557 = vmatpush2.bf16.msra.mxu0 %v5092
    %6558 = vmatprep.subr.bf16.mxu0 %v5089
    %6559 = vmatpush2.bf16.msra.mxu0 %v5088
    %6560 = vmatprep.subr.bf16.mxu0 %v5085
    %6561 = vmatpush2.bf16.msra.mxu0 %v5084
    %6562 = vmatprep.subr.bf16.mxu0 %v5081
    %6563 = vmatpush2.bf16.msra.mxu0 %v5080
    %6564 = vmatprep.subr.bf16.mxu0 %v5077
    %6565 = vmatpush2.bf16.msra.mxu0 %v5076
    %6566 = vmatprep.subr.bf16.mxu0 %v5073
    %6567 = vmatpush2.bf16.msra.mxu0 %v5072
    %6568 = vmatprep.subr.bf16.mxu0 %v5069
    %6569 = vmatpush2.bf16.msra.mxu0 %v5068
    %6570 = vmatprep.subr.bf16.mxu0 %v5065
    %6571 = vmatpush2.bf16.msra.mxu0 %v5064
    %6572 = vmatprep.mubr.bf16.mxu0 0
    %6573 = vmatmul.mubr.bf16.gmra.mxu0 %v6484
    %v6574 = vpop.f32.mrf.mxu0
    %v6575 = vadd.f32 0.0, %v6574
    %v6576 = vpop.f32.mrf.mxu0
    %v6577 = vadd.f32 0.0, %v6576
    %v6578 = vpop.f32.mrf.mxu0
    %v6579 = vadd.f32 0.0, %v6578
    %v6580 = vpop.f32.mrf.mxu0
    %v6581 = vadd.f32 0.0, %v6580
    %6582 = vmatprep.mubr.bf16.mxu0 %v6521
    %6583 = vmatmul.mubr.bf16.gmra.mxu0 0
    %v6584 = vpop.f32.mrf.mxu0
    %v6585 = vadd.f32 0.0, %v6584
    %v6586 = vpop.f32.mrf.mxu0
    %v6587 = vadd.f32 0.0, %v6586
    %v6588 = vpop.f32.mrf.mxu0
    %v6589 = vadd.f32 0.0, %v6588
    %v6590 = vpop.f32.mrf.mxu0
    %v6591 = vadd.f32 0.0, %v6590
    %6592 = vdwg.mxu0
    %6593 = vmatprep.subr.bf16.mxu0 %v5063
    %6594 = vmatpush1.bf16.msra.mxu0 %v5062
    %6595 = vmatprep.subr.bf16.mxu0 %v5059
    %6596 = vmatpush1.bf16.msra.mxu0 %v5058
    %6597 = vmatprep.subr.bf16.mxu0 %v5055
    %6598 = vmatpush1.bf16.msra.mxu0 %v5054
    %6599 = vmatprep.subr.bf16.mxu0 %v5051
    %6600 = vmatpush1.bf16.msra.mxu0 %v5050
    %6601 = vmatprep.subr.bf16.mxu0 %v5047
    %6602 = vmatpush1.bf16.msra.mxu0 %v5046
    %6603 = vmatprep.subr.bf16.mxu0 %v5043
    %6604 = vmatpush1.bf16.msra.mxu0 %v5042
    %6605 = vmatprep.subr.bf16.mxu0 %v5039
    %6606 = vmatpush1.bf16.msra.mxu0 %v5038
    %6607 = vmatprep.subr.bf16.mxu0 %v5035
    %6608 = vmatpush1.bf16.msra.mxu0 %v5034
    %6609 = vmatprep.subr.bf16.mxu0 %v5095
    %6610 = vmatpush2.bf16.msra.mxu0 %v5094
    %6611 = vmatprep.subr.bf16.mxu0 %v5091
    %6612 = vmatpush2.bf16.msra.mxu0 %v5090
    %6613 = vmatprep.subr.bf16.mxu0 %v5087
    %6614 = vmatpush2.bf16.msra.mxu0 %v5086
    %6615 = vmatprep.subr.bf16.mxu0 %v5083
    %6616 = vmatpush2.bf16.msra.mxu0 %v5082
    %6617 = vmatprep.subr.bf16.mxu0 %v5079
    %6618 = vmatpush2.bf16.msra.mxu0 %v5078
    %6619 = vmatprep.subr.bf16.mxu0 %v5075
    %6620 = vmatpush2.bf16.msra.mxu0 %v5074
    %6621 = vmatprep.subr.bf16.mxu0 %v5071
    %6622 = vmatpush2.bf16.msra.mxu0 %v5070
    %6623 = vmatprep.subr.bf16.mxu0 %v5067
    %6624 = vmatpush2.bf16.msra.mxu0 %v5066
    %6625 = vmatprep.mubr.bf16.mxu0 0
    %6626 = vmatmul.mubr.bf16.gmra.mxu0 %v6484
    %v6627 = vpop.f32.mrf.mxu0
    %v6628 = vadd.f32 0.0, %v6627
    %v6629 = vpop.f32.mrf.mxu0
    %v6630 = vadd.f32 0.0, %v6629
    %v6631 = vpop.f32.mrf.mxu0
    %v6632 = vadd.f32 0.0, %v6631
    %v6633 = vpop.f32.mrf.mxu0
    %v6634 = vadd.f32 0.0, %v6633
    %6635 = vmatprep.mubr.bf16.mxu0 %v6521
    %6636 = vmatmul.mubr.bf16.gmra.mxu0 0
    %v6637 = vpop.f32.mrf.mxu0
    %v6638 = vadd.f32 0.0, %v6637
    %v6639 = vpop.f32.mrf.mxu0
    %v6640 = vadd.f32 0.0, %v6639
    %v6641 = vpop.f32.mrf.mxu0
    %v6642 = vadd.f32 0.0, %v6641
    %v6643 = vpop.f32.mrf.mxu0
    %v6644 = vadd.f32 0.0, %v6643
    %6645 = vdwg.mxu0
    %v6646 = vunpack.c.l.bf16 %v4824
    %v6647 = vunpack.c.l.bf16 %v4825
    %v6648 = vunpack.c.l.bf16 %v4826
    %v6649 = vunpack.c.l.bf16 %v4827
    %v6650 = vunpack.c.h.bf16 %v4824
    %v6651 = vunpack.c.h.bf16 %v4825
    %v6652 = vunpack.c.h.bf16 %v4826
    %v6653 = vunpack.c.h.bf16 %v4827
    %v6654 = vadd.f32 %v6646, %v6575
    %v6655 = vadd.f32 %v6647, %v6577
    %v6656 = vadd.f32 %v6648, %v6628
    %v6657 = vadd.f32 %v6649, %v6630
    %v6658 = vadd.f32 %v6650, %v6579
    %v6659 = vadd.f32 %v6651, %v6581
    %v6660 = vadd.f32 %v6652, %v6632
    %v6661 = vadd.f32 %v6653, %v6634
    %v6662 = vunpack.c.l.bf16 %v4788
    %v6663 = vunpack.c.l.bf16 %v4789
    %v6664 = vunpack.c.l.bf16 %v4790
    %v6665 = vunpack.c.l.bf16 %v4791
    %v6666 = vunpack.c.h.bf16 %v4788
    %v6667 = vunpack.c.h.bf16 %v4789
    %v6668 = vunpack.c.h.bf16 %v4790
    %v6669 = vunpack.c.h.bf16 %v4791
    %v6670 = vadd.f32 %v6662, %v6585
    %v6671 = vadd.f32 %v6663, %v6587
    %v6672 = vadd.f32 %v6664, %v6638
    %v6673 = vadd.f32 %v6665, %v6640
    %v6674 = vadd.f32 %v6666, %v6589
    %v6675 = vadd.f32 %v6667, %v6591
    %v6676 = vadd.f32 %v6668, %v6642
    %v6677 = vadd.f32 %v6669, %v6644
    %v6678 = vmul.f32 %v6654, 0.5
    %v6679 = vmul.f32 %v6658, 0.5
    %v6680 = vtanh.pop %v6678
    %v6681 = vtanh.pop %v6679
    %v6682 = vmul.f32 %v6680, 0.5
    %v6683 = vmul.f32 %v6681, 0.5
    %v6684 = vadd.f32 %v6682, 0.5
    %v6685 = vadd.f32 %v6683, 0.5
    %v6686 = vmul.f32 %v6655, 0.5
    %v6687 = vmul.f32 %v6659, 0.5
    %v6688 = vtanh.pop %v6686
    %v6689 = vtanh.pop %v6687
    %v6690 = vmul.f32 %v6688, 0.5
    %v6691 = vmul.f32 %v6689, 0.5
    %v6692 = vadd.f32 %v6690, 0.5
    %v6693 = vadd.f32 %v6691, 0.5
    %v6694 = vtanh.pop %v6656
    %v6695 = vtanh.pop %v6660
    %v6696 = vmul.f32 %v6657, 0.5
    %v6697 = vmul.f32 %v6661, 0.5
    %v6698 = vtanh.pop %v6696
    %v6699 = vtanh.pop %v6697
    %v6700 = vmul.f32 %v6698, 0.5
    %v6701 = vmul.f32 %v6699, 0.5
    %v6702 = vadd.f32 %v6700, 0.5
    %v6703 = vadd.f32 %v6701, 0.5
    %v6704 = vmul.f32 %v6692, %v6478
    %v6705 = vmul.f32 %v6693, %v6479
    %v6706 = vmul.f32 %v6684, %v6694
    %v6707 = vmul.f32 %v6685, %v6695
    %v6708 = vadd.f32 %v6704, %v6706
    %v6709 = vadd.f32 %v6705, %v6707
    %v6710 = vtanh.pop %v6708
    %v6711 = vtanh.pop %v6709
    %v6712 = vmul.f32 %v6702, %v6710
    %v6713 = vmul.f32 %v6703, %v6711
    %v6714 = vpack.c.bf16 %v6713, %v6712
    %v6715 = vmul.f32 %v6670, 0.5
    %v6716 = vmul.f32 %v6674, 0.5
    %v6717 = vtanh.pop %v6715
    %v6718 = vtanh.pop %v6716
    %v6719 = vmul.f32 %v6717, 0.5
    %v6720 = vmul.f32 %v6718, 0.5
    %v6721 = vadd.f32 %v6719, 0.5
    %v6722 = vadd.f32 %v6720, 0.5
    %v6723 = vmul.f32 %v6671, 0.5
    %v6724 = vmul.f32 %v6675, 0.5
    %v6725 = vtanh.pop %v6723
    %v6726 = vtanh.pop %v6724
    %v6727 = vmul.f32 %v6725, 0.5
    %v6728 = vmul.f32 %v6726, 0.5
    %v6729 = vadd.f32 %v6727, 0.5
    %v6730 = vadd.f32 %v6728, 0.5
    %v6731 = vtanh.pop %v6672
    %v6732 = vtanh.pop %v6676
    %v6733 = vmul.f32 %v6673, 0.5
    %v6734 = vmul.f32 %v6677, 0.5
    %v6735 = vtanh.pop %v6733
    %v6736 = vtanh.pop %v6734
    %v6737 = vmul.f32 %v6735, 0.5
    %v6738 = vmul.f32 %v6736, 0.5
    %v6739 = vadd.f32 %v6737, 0.5
    %v6740 = vadd.f32 %v6738, 0.5
    %v6741 = vmul.f32 %v6729, %v6515
    %v6742 = vmul.f32 %v6730, %v6516
    %v6743 = vmul.f32 %v6721, %v6731
    %v6744 = vmul.f32 %v6722, %v6732
    %v6745 = vadd.f32 %v6741, %v6743
    %v6746 = vadd.f32 %v6742, %v6744
    %v6747 = vtanh.pop %v6745
    %v6748 = vtanh.pop %v6746
    %v6749 = vmul.f32 %v6739, %v6747
    %v6750 = vmul.f32 %v6740, %v6748
    %v6751 = vpack.c.bf16 %v6750, %v6749
    %v6753 = vunpack.c.l.b16 %v6714
    %v6754 = vunpack.c.h.b16 %v6714
    %v6755 = vpack.c.b16 %v6753, %v6753
    %v6756 = vpack.c.b16 %v6754, %v6754
    %6759 = vst [vmem:[%s1962] sm:$0xf] %v6755
    %6760 = vst [vmem:[%s1962 + $0x8] sm:$0xf] %v6756
    %v6762 = vunpack.c.l.b16 %v6751
    %v6763 = vunpack.c.h.b16 %v6751
    %v6764 = vpack.c.b16 %v6762, %v6762
    %v6765 = vpack.c.b16 %v6763, %v6763
    %6768 = vst [vmem:[%s1952 + $0x4] sm:$0xf] %v6764
    %6769 = vst [vmem:[%s1952 + $0xc] sm:$0xf] %v6765
    %6770 = vmatprep.subr.bf16.mxu0 %v5061
    %6771 = vmatpush1.bf16.msra.mxu0 %v5060
    %6772 = vmatprep.subr.bf16.mxu0 %v5057
    %6773 = vmatpush1.bf16.msra.mxu0 %v5056
    %6774 = vmatprep.subr.bf16.mxu0 %v5053
    %6775 = vmatpush1.bf16.msra.mxu0 %v5052
    %6776 = vmatprep.subr.bf16.mxu0 %v5049
    %6777 = vmatpush1.bf16.msra.mxu0 %v5048
    %6778 = vmatprep.subr.bf16.mxu0 %v5045
    %6779 = vmatpush1.bf16.msra.mxu0 %v5044
    %6780 = vmatprep.subr.bf16.mxu0 %v5041
    %6781 = vmatpush1.bf16.msra.mxu0 %v5040
    %6782 = vmatprep.subr.bf16.mxu0 %v5037
    %6783 = vmatpush1.bf16.msra.mxu0 %v5036
    %6784 = vmatprep.subr.bf16.mxu0 %v5033
    %6785 = vmatpush1.bf16.msra.mxu0 %v5032
    %6786 = vmatprep.subr.bf16.mxu0 %v5093
    %6787 = vmatpush2.bf16.msra.mxu0 %v5092
    %6788 = vmatprep.subr.bf16.mxu0 %v5089
    %6789 = vmatpush2.bf16.msra.mxu0 %v5088
    %6790 = vmatprep.subr.bf16.mxu0 %v5085
    %6791 = vmatpush2.bf16.msra.mxu0 %v5084
    %6792 = vmatprep.subr.bf16.mxu0 %v5081
    %6793 = vmatpush2.bf16.msra.mxu0 %v5080
    %6794 = vmatprep.subr.bf16.mxu0 %v5077
    %6795 = vmatpush2.bf16.msra.mxu0 %v5076
    %6796 = vmatprep.subr.bf16.mxu0 %v5073
    %6797 = vmatpush2.bf16.msra.mxu0 %v5072
    %6798 = vmatprep.subr.bf16.mxu0 %v5069
    %6799 = vmatpush2.bf16.msra.mxu0 %v5068
    %6800 = vmatprep.subr.bf16.mxu0 %v5065
    %6801 = vmatpush2.bf16.msra.mxu0 %v5064
    %6802 = vmatprep.mubr.bf16.mxu0 0
    %6803 = vmatmul.mubr.bf16.gmra.mxu0 %v6714
    %v6804 = vpop.f32.mrf.mxu0
    %v6805 = vadd.f32 0.0, %v6804
    %v6806 = vpop.f32.mrf.mxu0
    %v6807 = vadd.f32 0.0, %v6806
    %v6808 = vpop.f32.mrf.mxu0
    %v6809 = vadd.f32 0.0, %v6808
    %v6810 = vpop.f32.mrf.mxu0
    %v6811 = vadd.f32 0.0, %v6810
    %6812 = vmatprep.mubr.bf16.mxu0 %v6751
    %6813 = vmatmul.mubr.bf16.gmra.mxu0 0
    %v6814 = vpop.f32.mrf.mxu0
    %v6815 = vadd.f32 0.0, %v6814
    %v6816 = vpop.f32.mrf.mxu0
    %v6817 = vadd.f32 0.0, %v6816
    %v6818 = vpop.f32.mrf.mxu0
    %v6819 = vadd.f32 0.0, %v6818
    %v6820 = vpop.f32.mrf.mxu0
    %v6821 = vadd.f32 0.0, %v6820
    %6822 = vdwg.mxu0
    %6823 = vmatprep.subr.bf16.mxu0 %v5063
    %6824 = vmatpush1.bf16.msra.mxu0 %v5062
    %6825 = vmatprep.subr.bf16.mxu0 %v5059
    %6826 = vmatpush1.bf16.msra.mxu0 %v5058
    %6827 = vmatprep.subr.bf16.mxu0 %v5055
    %6828 = vmatpush1.bf16.msra.mxu0 %v5054
    %6829 = vmatprep.subr.bf16.mxu0 %v5051
    %6830 = vmatpush1.bf16.msra.mxu0 %v5050
    %6831 = vmatprep.subr.bf16.mxu0 %v5047
    %6832 = vmatpush1.bf16.msra.mxu0 %v5046
    %6833 = vmatprep.subr.bf16.mxu0 %v5043
    %6834 = vmatpush1.bf16.msra.mxu0 %v5042
    %6835 = vmatprep.subr.bf16.mxu0 %v5039
    %6836 = vmatpush1.bf16.msra.mxu0 %v5038
    %6837 = vmatprep.subr.bf16.mxu0 %v5035
    %6838 = vmatpush1.bf16.msra.mxu0 %v5034
    %6839 = vmatprep.subr.bf16.mxu0 %v5095
    %6840 = vmatpush2.bf16.msra.mxu0 %v5094
    %6841 = vmatprep.subr.bf16.mxu0 %v5091
    %6842 = vmatpush2.bf16.msra.mxu0 %v5090
    %6843 = vmatprep.subr.bf16.mxu0 %v5087
    %6844 = vmatpush2.bf16.msra.mxu0 %v5086
    %6845 = vmatprep.subr.bf16.mxu0 %v5083
    %6846 = vmatpush2.bf16.msra.mxu0 %v5082
    %6847 = vmatprep.subr.bf16.mxu0 %v5079
    %6848 = vmatpush2.bf16.msra.mxu0 %v5078
    %6849 = vmatprep.subr.bf16.mxu0 %v5075
    %6850 = vmatpush2.bf16.msra.mxu0 %v5074
    %6851 = vmatprep.subr.bf16.mxu0 %v5071
    %6852 = vmatpush2.bf16.msra.mxu0 %v5070
    %6853 = vmatprep.subr.bf16.mxu0 %v5067
    %6854 = vmatpush2.bf16.msra.mxu0 %v5066
    %6855 = vmatprep.mubr.bf16.mxu0 0
    %6856 = vmatmul.mubr.bf16.gmra.mxu0 %v6714
    %v6857 = vpop.f32.mrf.mxu0
    %v6858 = vadd.f32 0.0, %v6857
    %v6859 = vpop.f32.mrf.mxu0
    %v6860 = vadd.f32 0.0, %v6859
    %v6861 = vpop.f32.mrf.mxu0
    %v6862 = vadd.f32 0.0, %v6861
    %v6863 = vpop.f32.mrf.mxu0
    %v6864 = vadd.f32 0.0, %v6863
    %6865 = vmatprep.mubr.bf16.mxu0 %v6751
    %6866 = vmatmul.mubr.bf16.gmra.mxu0 0
    %v6867 = vpop.f32.mrf.mxu0
    %v6868 = vadd.f32 0.0, %v6867
    %v6869 = vpop.f32.mrf.mxu0
    %v6870 = vadd.f32 0.0, %v6869
    %v6871 = vpop.f32.mrf.mxu0
    %v6872 = vadd.f32 0.0, %v6871
    %v6873 = vpop.f32.mrf.mxu0
    %v6874 = vadd.f32 0.0, %v6873
    %6875 = vdwg.mxu0
    %v6876 = vunpack.c.l.bf16 %v4832
    %v6877 = vunpack.c.l.bf16 %v4833
    %v6878 = vunpack.c.l.bf16 %v4834
    %v6879 = vunpack.c.l.bf16 %v4835
    %v6880 = vunpack.c.h.bf16 %v4832
    %v6881 = vunpack.c.h.bf16 %v4833
    %v6882 = vunpack.c.h.bf16 %v4834
    %v6883 = vunpack.c.h.bf16 %v4835
    %v6884 = vadd.f32 %v6876, %v6805
    %v6885 = vadd.f32 %v6877, %v6807
    %v6886 = vadd.f32 %v6878, %v6858
    %v6887 = vadd.f32 %v6879, %v6860
    %v6888 = vadd.f32 %v6880, %v6809
    %v6889 = vadd.f32 %v6881, %v6811
    %v6890 = vadd.f32 %v6882, %v6862
    %v6891 = vadd.f32 %v6883, %v6864
    %v6892 = vunpack.c.l.bf16 %v4780
    %v6893 = vunpack.c.l.bf16 %v4781
    %v6894 = vunpack.c.l.bf16 %v4782
    %v6895 = vunpack.c.l.bf16 %v4783
    %v6896 = vunpack.c.h.bf16 %v4780
    %v6897 = vunpack.c.h.bf16 %v4781
    %v6898 = vunpack.c.h.bf16 %v4782
    %v6899 = vunpack.c.h.bf16 %v4783
    %v6900 = vadd.f32 %v6892, %v6815
    %v6901 = vadd.f32 %v6893, %v6817
    %v6902 = vadd.f32 %v6894, %v6868
    %v6903 = vadd.f32 %v6895, %v6870
    %v6904 = vadd.f32 %v6896, %v6819
    %v6905 = vadd.f32 %v6897, %v6821
    %v6906 = vadd.f32 %v6898, %v6872
    %v6907 = vadd.f32 %v6899, %v6874
    %v6908 = vmul.f32 %v6884, 0.5
    %v6909 = vmul.f32 %v6888, 0.5
    %v6910 = vtanh.pop %v6908
    %v6911 = vtanh.pop %v6909
    %v6912 = vmul.f32 %v6910, 0.5
    %v6913 = vmul.f32 %v6911, 0.5
    %v6914 = vadd.f32 %v6912, 0.5
    %v6915 = vadd.f32 %v6913, 0.5
    %v6916 = vmul.f32 %v6885, 0.5
    %v6917 = vmul.f32 %v6889, 0.5
    %v6918 = vtanh.pop %v6916
    %v6919 = vtanh.pop %v6917
    %v6920 = vmul.f32 %v6918, 0.5
    %v6921 = vmul.f32 %v6919, 0.5
    %v6922 = vadd.f32 %v6920, 0.5
    %v6923 = vadd.f32 %v6921, 0.5
    %v6924 = vtanh.pop %v6886
    %v6925 = vtanh.pop %v6890
    %v6926 = vmul.f32 %v6887, 0.5
    %v6927 = vmul.f32 %v6891, 0.5
    %v6928 = vtanh.pop %v6926
    %v6929 = vtanh.pop %v6927
    %v6930 = vmul.f32 %v6928, 0.5
    %v6931 = vmul.f32 %v6929, 0.5
    %v6932 = vadd.f32 %v6930, 0.5
    %v6933 = vadd.f32 %v6931, 0.5
    %v6934 = vmul.f32 %v6922, %v6708
    %v6935 = vmul.f32 %v6923, %v6709
    %v6936 = vmul.f32 %v6914, %v6924
    %v6937 = vmul.f32 %v6915, %v6925
    %v6938 = vadd.f32 %v6934, %v6936
    %v6939 = vadd.f32 %v6935, %v6937
    %v6940 = vtanh.pop %v6938
    %v6941 = vtanh.pop %v6939
    %v6942 = vmul.f32 %v6932, %v6940
    %v6943 = vmul.f32 %v6933, %v6941
    %v6944 = vpack.c.bf16 %v6943, %v6942
    %v6945 = vmul.f32 %v6900, 0.5
    %v6946 = vmul.f32 %v6904, 0.5
    %v6947 = vtanh.pop %v6945
    %v6948 = vtanh.pop %v6946
    %v6949 = vmul.f32 %v6947, 0.5
    %v6950 = vmul.f32 %v6948, 0.5
    %v6951 = vadd.f32 %v6949, 0.5
    %v6952 = vadd.f32 %v6950, 0.5
    %v6953 = vmul.f32 %v6901, 0.5
    %v6954 = vmul.f32 %v6905, 0.5
    %v6955 = vtanh.pop %v6953
    %v6956 = vtanh.pop %v6954
    %v6957 = vmul.f32 %v6955, 0.5
    %v6958 = vmul.f32 %v6956, 0.5
    %v6959 = vadd.f32 %v6957, 0.5
    %v6960 = vadd.f32 %v6958, 0.5
    %v6961 = vtanh.pop %v6902
    %v6962 = vtanh.pop %v6906
    %v6963 = vmul.f32 %v6903, 0.5
    %v6964 = vmul.f32 %v6907, 0.5
    %v6965 = vtanh.pop %v6963
    %v6966 = vtanh.pop %v6964
    %v6967 = vmul.f32 %v6965, 0.5
    %v6968 = vmul.f32 %v6966, 0.5
    %v6969 = vadd.f32 %v6967, 0.5
    %v6970 = vadd.f32 %v6968, 0.5
    %v6971 = vmul.f32 %v6959, %v6745
    %v6972 = vmul.f32 %v6960, %v6746
    %v6973 = vmul.f32 %v6951, %v6961
    %v6974 = vmul.f32 %v6952, %v6962
    %v6975 = vadd.f32 %v6971, %v6973
    %v6976 = vadd.f32 %v6972, %v6974
    %v6977 = vtanh.pop %v6975
    %v6978 = vtanh.pop %v6976
    %v6979 = vmul.f32 %v6969, %v6977
    %v6980 = vmul.f32 %v6970, %v6978
    %v6981 = vpack.c.bf16 %v6980, %v6979
    %v6983 = vunpack.c.l.b16 %v6944
    %v6984 = vunpack.c.h.b16 %v6944
    %v6985 = vpack.c.b16 %v6983, %v6983
    %v6986 = vpack.c.b16 %v6984, %v6984
    %6989 = vst [vmem:[%s1730] sm:$0xf] %v6985
    %6990 = vst [vmem:[%s1730 + $0x8] sm:$0xf] %v6986
    %v6992 = vunpack.c.l.b16 %v6981
    %v6993 = vunpack.c.h.b16 %v6981
    %v6994 = vpack.c.b16 %v6992, %v6992
    %v6995 = vpack.c.b16 %v6993, %v6993
    %6998 = vst [vmem:[#allocation2 + $0x4] sm:$0xf] %v6994
    %6999 = vst [vmem:[#allocation2 + $0xc] sm:$0xf] %v6995
    %v7000 = vld [vmem:[%s1730] sm:$0xff]
    %v7001 = vld [vmem:[%s1730 + $0x8] sm:$0xff]
    %v7002 = vld [vmem:[%s7] sm:$0xf]
    %v7003 = vld [vmem:[%s7 + $0x4] sm:$0xf]
    %v7004 = vld [vmem:[%s7 + $0x8] sm:$0xf]
    %v7005 = vld [vmem:[%s7 + $0xc] sm:$0xf]
    %v7006 = vld [vmem:[%s7 + $0x10] sm:$0xf]
    %v7007 = vld [vmem:[%s7 + $0x14] sm:$0xf]
    %v7008 = vld [vmem:[%s7 + $0x18] sm:$0xf]
    %v7009 = vld [vmem:[%s7 + $0x1c] sm:$0xf]
    %v7010 = vld [vmem:[%s7 + $0x20] sm:$0xf]
    %v7011 = vld [vmem:[%s7 + $0x24] sm:$0xf]
    %v7012 = vld [vmem:[%s7 + $0x28] sm:$0xf]
    %v7013 = vld [vmem:[%s7 + $0x2c] sm:$0xf]
    %v7014 = vld [vmem:[%s7 + $0x30] sm:$0xf]
    %v7015 = vld [vmem:[%s7 + $0x34] sm:$0xf]
    %v7016 = vld [vmem:[%s7 + $0x38] sm:$0xf]
    %v7017 = vld [vmem:[%s7 + $0x3c] sm:$0xf]
    %v7018 = vld [vmem:[%s7 + $0x40] sm:$0xf]
    %v7019 = vld [vmem:[%s7 + $0x44] sm:$0xf]
    %v7020 = vld [vmem:[%s7 + $0x48] sm:$0xf]
    %v7021 = vld [vmem:[%s7 + $0x4c] sm:$0xf]
    %v7022 = vld [vmem:[%s7 + $0x50] sm:$0xf]
    %v7023 = vld [vmem:[%s7 + $0x54] sm:$0xf]
    %v7024 = vld [vmem:[%s7 + $0x58] sm:$0xf]
    %v7025 = vld [vmem:[%s7 + $0x5c] sm:$0xf]
    %v7026 = vld [vmem:[%s7 + $0x60] sm:$0xf]
    %v7027 = vld [vmem:[%s7 + $0x64] sm:$0xf]
    %v7028 = vld [vmem:[%s7 + $0x68] sm:$0xf]
    %v7029 = vld [vmem:[%s7 + $0x6c] sm:$0xf]
    %v7030 = vld [vmem:[%s7 + $0x70] sm:$0xf]
    %v7031 = vld [vmem:[%s7 + $0x74] sm:$0xf]
    %v7032 = vld [vmem:[%s7 + $0x78] sm:$0xf]
    %v7033 = vld [vmem:[%s7 + $0x7c] sm:$0xf]
    %v7034 = vld [vmem:[#allocation6] sm:$0x1]
    %v7036 = vlaneseq
    %v7037 = vshrl.u32 %v7036, 7
    %v7038 = vsub.s32 0, %v7037
    %v7039 = vrot.slane %v7034, %v7038
    %v7043 = vunpack.c.l.b16 %v7000
    %v7044 = vunpack.c.h.b16 %v7000
    %v7045 = vunpack.c.l.b16 %v7001
    %v7046 = vunpack.c.h.b16 %v7001
    %v7047 = vpack.c.b16 %v7045, %v7043
    %v7048 = vpack.c.b16 %v7046, %v7044
    %v7083 = vunpack.c.l.b16 %v7002
    %v7084 = vunpack.c.l.b16 %v7003
    %v7085 = vunpack.c.l.b16 %v7004
    %v7086 = vunpack.c.l.b16 %v7005
    %v7087 = vunpack.c.l.b16 %v7006
    %v7088 = vunpack.c.l.b16 %v7007
    %v7089 = vunpack.c.l.b16 %v7008
    %v7090 = vunpack.c.l.b16 %v7009
    %v7091 = vunpack.c.l.b16 %v7010
    %v7092 = vunpack.c.l.b16 %v7011
    %v7093 = vunpack.c.l.b16 %v7012
    %v7094 = vunpack.c.l.b16 %v7013
    %v7095 = vunpack.c.l.b16 %v7014
    %v7096 = vunpack.c.l.b16 %v7015
    %v7097 = vunpack.c.l.b16 %v7016
    %v7098 = vunpack.c.l.b16 %v7017
    %v7099 = vunpack.c.l.b16 %v7018
    %v7100 = vunpack.c.l.b16 %v7019
    %v7101 = vunpack.c.l.b16 %v7020
    %v7102 = vunpack.c.l.b16 %v7021
    %v7103 = vunpack.c.l.b16 %v7022
    %v7104 = vunpack.c.l.b16 %v7023
    %v7105 = vunpack.c.l.b16 %v7024
    %v7106 = vunpack.c.l.b16 %v7025
    %v7107 = vunpack.c.l.b16 %v7026
    %v7108 = vunpack.c.l.b16 %v7027
    %v7109 = vunpack.c.l.b16 %v7028
    %v7110 = vunpack.c.l.b16 %v7029
    %v7111 = vunpack.c.l.b16 %v7030
    %v7112 = vunpack.c.l.b16 %v7031
    %v7113 = vunpack.c.l.b16 %v7032
    %v7114 = vunpack.c.l.b16 %v7033
    %v7115 = vpack.c.b16 %v7084, %v7083
    %v7116 = vpack.c.b16 %v7086, %v7085
    %v7117 = vpack.c.b16 %v7088, %v7087
    %v7118 = vpack.c.b16 %v7090, %v7089
    %v7119 = vpack.c.b16 %v7092, %v7091
    %v7120 = vpack.c.b16 %v7094, %v7093
    %v7121 = vpack.c.b16 %v7096, %v7095
    %v7122 = vpack.c.b16 %v7098, %v7097
    %v7123 = vpack.c.b16 %v7100, %v7099
    %v7124 = vpack.c.b16 %v7102, %v7101
    %v7125 = vpack.c.b16 %v7104, %v7103
    %v7126 = vpack.c.b16 %v7106, %v7105
    %v7127 = vpack.c.b16 %v7108, %v7107
    %v7128 = vpack.c.b16 %v7110, %v7109
    %v7129 = vpack.c.b16 %v7112, %v7111
    %v7130 = vpack.c.b16 %v7114, %v7113
    %7147 = vmatprep.subr.bf16.mxu0 0
    %7148 = vmatpush1.bf16.msra.mxu0 %v7122
    %7149 = vmatprep.subr.bf16.mxu0 0
    %7150 = vmatpush1.bf16.msra.mxu0 %v7121
    %7151 = vmatprep.subr.bf16.mxu0 0
    %7152 = vmatpush1.bf16.msra.mxu0 %v7120
    %7153 = vmatprep.subr.bf16.mxu0 0
    %7154 = vmatpush1.bf16.msra.mxu0 %v7119
    %7155 = vmatprep.subr.bf16.mxu0 0
    %7156 = vmatpush1.bf16.msra.mxu0 %v7118
    %7157 = vmatprep.subr.bf16.mxu0 0
    %7158 = vmatpush1.bf16.msra.mxu0 %v7117
    %7159 = vmatprep.subr.bf16.mxu0 0
    %7160 = vmatpush1.bf16.msra.mxu0 %v7116
    %7161 = vmatprep.subr.bf16.mxu0 0
    %7162 = vmatpush1.bf16.msra.mxu0 %v7115
    %7163 = vmatprep.subr.bf16.mxu0 0
    %7164 = vmatpush2.bf16.msra.mxu0 %v7130
    %7165 = vmatprep.subr.bf16.mxu0 0
    %7166 = vmatpush2.bf16.msra.mxu0 %v7129
    %7167 = vmatprep.subr.bf16.mxu0 0
    %7168 = vmatpush2.bf16.msra.mxu0 %v7128
    %7169 = vmatprep.subr.bf16.mxu0 0
    %7170 = vmatpush2.bf16.msra.mxu0 %v7127
    %7171 = vmatprep.subr.bf16.mxu0 0
    %7172 = vmatpush2.bf16.msra.mxu0 %v7126
    %7173 = vmatprep.subr.bf16.mxu0 0
    %7174 = vmatpush2.bf16.msra.mxu0 %v7125
    %7175 = vmatprep.subr.bf16.mxu0 0
    %7176 = vmatpush2.bf16.msra.mxu0 %v7124
    %7177 = vmatprep.subr.bf16.mxu0 0
    %7178 = vmatpush2.bf16.msra.mxu0 %v7123
    %7179 = vmatprep.mubr.bf16.mxu0 %v7048
    %7180 = vmatmul.mubr.bf16.gmra.mxu0 %v7047
    %v7181 = vpop.f32.mrf.mxu0
    %v7182 = vadd.f32 %v7039, %v7181
    %v7183 = vpop.f32.mrf.mxu0
    %v7184 = vpop.f32.mrf.mxu0
    %v7185 = vadd.f32 %v7039, %v7184
    %v7186 = vpop.f32.mrf.mxu0
    %7187 = vdwg.mxu0
    %v7188 = vmax.f32 %v7182, 0.0
    %v7189 = vmax.f32 %v7185, 0.0
    %v7190 = vpack.c.bf16 %v7189, %v7188
    %v7191 = vld [vmem:[%s9] sm:$0xf]
    %v7192 = vld [vmem:[%s9 + $0x4] sm:$0xf]
    %v7193 = vld [vmem:[%s9 + $0x8] sm:$0xf]
    %v7194 = vld [vmem:[%s9 + $0xc] sm:$0xf]
    %v7195 = vld [vmem:[%s9 + $0x10] sm:$0xf]
    %v7196 = vld [vmem:[%s9 + $0x14] sm:$0xf]
    %v7197 = vld [vmem:[%s9 + $0x18] sm:$0xf]
    %v7198 = vld [vmem:[%s9 + $0x1c] sm:$0xf]
    %v7199 = vld [vmem:[%s9 + $0x20] sm:$0xf]
    %v7200 = vld [vmem:[%s9 + $0x24] sm:$0xf]
    %v7201 = vld [vmem:[%s9 + $0x28] sm:$0xf]
    %v7202 = vld [vmem:[%s9 + $0x2c] sm:$0xf]
    %v7203 = vld [vmem:[%s9 + $0x30] sm:$0xf]
    %v7204 = vld [vmem:[%s9 + $0x34] sm:$0xf]
    %v7205 = vld [vmem:[%s9 + $0x38] sm:$0xf]
    %v7206 = vld [vmem:[%s9 + $0x3c] sm:$0xf]
    %v7207 = vld [vmem:[#allocation8] sm:$0x1]
    %v7209 = vlaneseq
    %v7210 = vshrl.u32 %v7209, 7
    %v7211 = vsub.s32 0, %v7210
    %v7212 = vrot.slane %v7207, %v7211
    %v7230 = vunpack.c.l.b16 %v7191
    %v7231 = vunpack.c.l.b16 %v7192
    %v7232 = vunpack.c.l.b16 %v7193
    %v7233 = vunpack.c.l.b16 %v7194
    %v7234 = vunpack.c.l.b16 %v7195
    %v7235 = vunpack.c.l.b16 %v7196
    %v7236 = vunpack.c.l.b16 %v7197
    %v7237 = vunpack.c.l.b16 %v7198
    %v7238 = vunpack.c.l.b16 %v7199
    %v7239 = vunpack.c.l.b16 %v7200
    %v7240 = vunpack.c.l.b16 %v7201
    %v7241 = vunpack.c.l.b16 %v7202
    %v7242 = vunpack.c.l.b16 %v7203
    %v7243 = vunpack.c.l.b16 %v7204
    %v7244 = vunpack.c.l.b16 %v7205
    %v7245 = vunpack.c.l.b16 %v7206
    %v7246 = vpack.c.b16 %v7231, %v7230
    %v7247 = vpack.c.b16 %v7233, %v7232
    %v7248 = vpack.c.b16 %v7235, %v7234
    %v7249 = vpack.c.b16 %v7237, %v7236
    %v7250 = vpack.c.b16 %v7239, %v7238
    %v7251 = vpack.c.b16 %v7241, %v7240
    %v7252 = vpack.c.b16 %v7243, %v7242
    %v7253 = vpack.c.b16 %v7245, %v7244
    %7262 = vmatprep.subr.bf16.mxu0 0
    %7263 = vmatpush1.bf16.msra.mxu0 %v7253
    %7264 = vmatprep.subr.bf16.mxu0 0
    %7265 = vmatpush1.bf16.msra.mxu0 %v7252
    %7266 = vmatprep.subr.bf16.mxu0 0
    %7267 = vmatpush1.bf16.msra.mxu0 %v7251
    %7268 = vmatprep.subr.bf16.mxu0 0
    %7269 = vmatpush1.bf16.msra.mxu0 %v7250
    %7270 = vmatprep.subr.bf16.mxu0 0
    %7271 = vmatpush1.bf16.msra.mxu0 %v7249
    %7272 = vmatprep.subr.bf16.mxu0 0
    %7273 = vmatpush1.bf16.msra.mxu0 %v7248
    %7274 = vmatprep.subr.bf16.mxu0 0
    %7275 = vmatpush1.bf16.msra.mxu0 %v7247
    %7276 = vmatprep.subr.bf16.mxu0 0
    %7277 = vmatpush1.bf16.msra.mxu0 %v7246
    %7278 = vmatprep.subr.bf16.mxu0 0
    %7279 = vmatpush2.bf16.msra.mxu0 0
    %7280 = vmatprep.subr.bf16.mxu0 0
    %7281 = vmatpush2.bf16.msra.mxu0 0
    %7282 = vmatprep.subr.bf16.mxu0 0
    %7283 = vmatpush2.bf16.msra.mxu0 0
    %7284 = vmatprep.subr.bf16.mxu0 0
    %7285 = vmatpush2.bf16.msra.mxu0 0
    %7286 = vmatprep.subr.bf16.mxu0 0
    %7287 = vmatpush2.bf16.msra.mxu0 0
    %7288 = vmatprep.subr.bf16.mxu0 0
    %7289 = vmatpush2.bf16.msra.mxu0 0
    %7290 = vmatprep.subr.bf16.mxu0 0
    %7291 = vmatpush2.bf16.msra.mxu0 0
    %7292 = vmatprep.subr.bf16.mxu0 0
    %7293 = vmatpush2.bf16.msra.mxu0 0
    %7294 = vmatprep.mubr.bf16.mxu0 0
    %7295 = vmatmul.mubr.bf16.gmra.mxu0 %v7190
    %v7296 = vpop.f32.mrf.mxu0
    %v7297 = vadd.f32 %v7212, %v7296
    %v7298 = vpop.f32.mrf.mxu0
    %v7299 = vpop.f32.mrf.mxu0
    %v7300 = vadd.f32 %v7212, %v7299
    %v7301 = vpop.f32.mrf.mxu0
    %7302 = vdwg.mxu0
    %7303 = vst [vmem:[%s11] sm:$0xff] %v7297
    %7304 = vst [vmem:[%s11 + $0x8] sm:$0xff] %v7300
    // Predicated region
    $region54: #{bilstm_forward.1} parent=1 // pred_check
      _
    $region55: #{bilstm_forward.1} parent=1 // pred_check_branch
      %7306 = sbr.rel (0) target = $region57
    $region56: #{bilstm_forward.1} parent=1 // pred_region
      _
    $region57: #{bilstm_forward.1} parent=1 // pred_fallthru
      _
    // Predicated region
    $region58: #{bilstm_forward.1} parent=1 // pred_check
      _
    $region59: #{bilstm_forward.1} parent=1 // pred_check_branch
      %7308 = sbr.rel (0) target = $region61
    $region60: #{bilstm_forward.1} parent=1 // pred_region
      _
    $region61: #{bilstm_forward.1} parent=1 // pred_fallthru
      _
    %7309 = vsyncpa [#allocation7], 1
    %7310 = vsyncpa [#allocation9], 1
  %7311 = vsyncmov [#allocation5]
  %s7312 = vpop.sfrf %7311
  %p7313 = scmp.eq.s32.totalorder %s7312, 0
  %p7314 = pneg %p7313
  %7316 = shalt.err (%p7314)
  %s7317 = scalar_lea.sflag [#allocation5], 1
  %7318 = vsyncmov %s7317
  %s7319 = vpop.sfrf %7318
  %p7320 = scmp.eq.s32.totalorder %s7319, 0
  %p7321 = pneg %p7320
  %7323 = shalt.err (%p7321)
  %s7324 = scalar_lea.sflag [#allocation5], 2
  %7325 = vsyncmov %s7324
  %s7326 = vpop.sfrf %7325
  %p7327 = scmp.eq.s32.totalorder %s7326, 0
  %p7328 = pneg %p7327
  %7330 = shalt.err (%p7328)
  %s7331 = scalar_lea.sflag [#allocation5], 3
  %7332 = vsyncmov %s7331
  %s7333 = vpop.sfrf %7332
  %p7334 = scmp.eq.s32.totalorder %s7333, 0
  %p7335 = pneg %p7334
  %7337 = shalt.err (%p7335)

</llo_original>
